<compile_context>
chip_gen: v6e
topology: v6e:2x2x1
jax: 0.10.0
libtpu: 0.0.40
codegen_flags: <defaults>
</compile_context>

<pallas_src>
import jax
import jax.numpy as jnp
from jax import lax
from jax.experimental import pallas as pl
from jax.experimental.pallas import tpu as pltpu


def caasf_kernel(x0_ref, x1_ref,
                 w0_ref, s0_ref, b0_ref,
                 wq0_ref, sq0_ref, bq0_ref,
                 wq1_ref, sq1_ref, bq1_ref,
                 wla_ref, wlb_ref, blv_ref,
                 wc_ref, sc_ref, bc_ref,
                 out_ref, pad_ref):
    """One grid step processes one image (block = (1, H, W, C), NHWC)."""
    H = x1_ref.shape[1]
    W = x1_ref.shape[2]
    C = x1_ref.shape[3]        # inter_dim
    K0 = x0_ref.shape[3]       # 4 * c1_l (space-to-depth folded 2x2 patch)
    f32 = jnp.float32

    # ---- level-0 branch: stride-2 2x2 conv folded to one matmul + BN + SiLU --
    x0 = x0_ref[0].reshape(H * W, K0)
    y0 = jnp.dot(x0, w0_ref[...], preferred_element_type=f32)
    y0 = y0 * s0_ref[...] + b0_ref[...]
    y0 = y0 * jax.nn.sigmoid(y0)                               # (H*W, C)

    # ---- level-1 branch: identity -------------------------------------------
    y1 = x1_ref[0].reshape(H * W, C).astype(f32)

    # ---- per-pixel fusion weights: two compress 1x1 convs -> 1x1 (16->2) conv
    #      -> softmax over the 2 levels (== sigmoid of the logit difference) ---
    v0 = jnp.dot(y0, wq0_ref[...], preferred_element_type=f32)
    v0 = v0 * sq0_ref[...] + bq0_ref[...]
    v0 = v0 * jax.nn.sigmoid(v0)                               # (H*W, 8)
    v1 = jnp.dot(y1, wq1_ref[...], preferred_element_type=f32)
    v1 = v1 * sq1_ref[...] + bq1_ref[...]
    v1 = v1 * jax.nn.sigmoid(v1)                               # (H*W, 8)

    logits = (jnp.dot(v0, wla_ref[...], preferred_element_type=f32)
              + jnp.dot(v1, wlb_ref[...], preferred_element_type=f32)
              + blv_ref[...])                                  # (H*W, 2)
    w0 = jax.nn.sigmoid(logits[:, 0:1] - logits[:, 1:2])       # (H*W, 1)
    fused = y0 * w0 + y1 * (1.0 - w0)                          # (H*W, C)

    # ---- stage fused map into zero-padded scratch for the 3x3 conv ----------
    # Zero only the 1-pixel halo ring (interior is fully overwritten below);
    # done every step so it is correct under megacore batch sharding.
    pad_ref[0:1, :, :] = jnp.zeros((1, W + 2, C), f32)
    pad_ref[H + 1:H + 2, :, :] = jnp.zeros((1, W + 2, C), f32)
    pad_ref[:, 0:1, :] = jnp.zeros((H + 2, 1, C), f32)
    pad_ref[:, W + 1:W + 2, :] = jnp.zeros((H + 2, 1, C), f32)
    pad_ref[1:1 + H, 1:1 + W, :] = fused.reshape(H, W, C)

    # ---- final 3x3 conv (pad=1) as 9 MXU matmuls + folded BN + SiLU ---------
    # One column-shifted load per kernel column (3 total); row taps are
    # sublane-aligned slices (offsets di*W, W = multiple of 8) of that value.
    acc = None
    for dj in range(3):
        col = pad_ref[:, dj:dj + W, :].reshape((H + 2) * W, C)  # (H+2)*W rows
        for di in range(3):
            tap = col[di * W:(di + H) * W, :]                   # (H*W, C)
            contrib = jnp.dot(tap, wc_ref[di * 3 + dj],
                              preferred_element_type=f32)
            acc = contrib if acc is None else acc + contrib
    z = acc * sc_ref[...] + bc_ref[...]
    z = z * jax.nn.sigmoid(z)
    out_ref[0, :, :, :] = z.reshape(H, W, C).astype(out_ref.dtype)


def _fold_bn(bn, eps=1e-5):
    g, b, m, v = bn
    scale = g / jnp.sqrt(v + eps)
    return scale.reshape(1, -1), (b - m * scale).reshape(1, -1)


@jax.jit
def caasf_pallas(x0_nchw, x1_nchw, w_s0, bn_s0, w_q0, bn_q0, w_q1, bn_q1,
                 w_lv, b_lv, w_c, bn_c):
    """CAASF forward (level=1).  x0: (N, c1_l, 2H, 2W), x1: (N, c1_h, H, W)."""
    N, C0, H2, W2 = x0_nchw.shape
    _, C, H, W = x1_nchw.shape
    CMP = w_q0.shape[0]
    assert H2 == 2 * H and W2 == 2 * W

    # Fold eval-mode BatchNorm into per-channel scale / bias.
    s0, b0 = _fold_bn(bn_s0)
    sq0, bq0 = _fold_bn(bn_q0)
    sq1, bq1 = _fold_bn(bn_q1)
    sc, bc = _fold_bn(bn_c)

    # One-time layout work (outside the hot loop): NCHW -> NHWC and fold the
    # stride-2 2x2 conv into a lane-dense matmul via space-to-depth.
    x0 = jnp.transpose(x0_nchw, (0, 2, 3, 1))                    # (N, 2H, 2W, C0)
    x0 = x0.reshape(N, H, 2, W, 2, C0)
    x0 = jnp.transpose(x0, (0, 1, 3, 2, 4, 5)).reshape(N, H, W, 4 * C0)
    x1 = jnp.transpose(x1_nchw, (0, 2, 3, 1))                    # (N, H, W, C)

    # Repack conv weights for the NHWC / matmul kernel.
    w0_k = jnp.transpose(w_s0, (2, 3, 1, 0)).reshape(4 * C0, C)  # (4*C0, C)
    wq0_k = jnp.transpose(w_q0[:, :, 0, 0], (1, 0))              # (C, 8)
    wq1_k = jnp.transpose(w_q1[:, :, 0, 0], (1, 0))              # (C, 8)
    wl_k = jnp.transpose(w_lv[:, :, 0, 0], (1, 0))               # (16, 2)
    wla, wlb = wl_k[:CMP, :], wl_k[CMP:, :]
    blv = b_lv.reshape(1, 2)
    wc_k = jnp.transpose(w_c, (2, 3, 1, 0)).reshape(9, C, C)     # (9, Cin, Cout)

    const2 = lambda n: (0, 0)
    out_nhwc = pl.pallas_call(
        caasf_kernel,
        out_shape=jax.ShapeDtypeStruct((N, H, W, C), x1.dtype),
        grid_spec=pltpu.PrefetchScalarGridSpec(
            num_scalar_prefetch=0,
            grid=(N,),
            in_specs=[
                pl.BlockSpec((1, H, W, 4 * C0), lambda n: (n, 0, 0, 0)),
                pl.BlockSpec((1, H, W, C), lambda n: (n, 0, 0, 0)),
                pl.BlockSpec((4 * C0, C), const2),
                pl.BlockSpec((1, C), const2),
                pl.BlockSpec((1, C), const2),
                pl.BlockSpec((C, CMP), const2),
                pl.BlockSpec((1, CMP), const2),
                pl.BlockSpec((1, CMP), const2),
                pl.BlockSpec((C, CMP), const2),
                pl.BlockSpec((1, CMP), const2),
                pl.BlockSpec((1, CMP), const2),
                pl.BlockSpec((CMP, 2), const2),
                pl.BlockSpec((CMP, 2), const2),
                pl.BlockSpec((1, 2), const2),
                pl.BlockSpec((9, C, C), lambda n: (0, 0, 0)),
                pl.BlockSpec((1, C), const2),
                pl.BlockSpec((1, C), const2),
            ],
            out_specs=pl.BlockSpec((1, H, W, C), lambda n: (n, 0, 0, 0)),
            scratch_shapes=[pltpu.VMEM((H + 2, W + 2, C), jnp.float32)],
        ),
        compiler_params=pltpu.CompilerParams(
            dimension_semantics=("parallel",)),
    )(x0, x1, w0_k, s0, b0, wq0_k, sq0, bq0, wq1_k, sq1, bq1,
      wla, wlb, blv, wc_k, sc, bc)

    return jnp.transpose(out_nhwc, (0, 3, 1, 2))                 # NHWC -> NCHW


# ---------------- pure-JAX reference (mirrors PyTorch eval semantics) --------
def _conv_bn_silu_ref(x, w, bn, stride=1, pad=0, eps=1e-5):
    y = lax.conv_general_dilated(
        x, w, (stride, stride), [(pad, pad), (pad, pad)],
        dimension_numbers=("NCHW", "OIHW", "NCHW"),
        precision=lax.Precision.HIGHEST)
    g, b, m, v = bn
    scale = (g / jnp.sqrt(v + eps))[None, :, None, None]
    y = (y - m[None, :, None, None]) * scale + b[None, :, None, None]
    return y * jax.nn.sigmoid(y)


def caasf_ref(x0, x1, w_s0, bn_s0, w_q0, bn_q0, w_q1, bn_q1, w_lv, b_lv,
              w_c, bn_c):
    l0 = _conv_bn_silu_ref(x0, w_s0, bn_s0, stride=2, pad=0)
    l1 = x1
    v0 = _conv_bn_silu_ref(l0, w_q0, bn_q0)
    v1 = _conv_bn_silu_ref(l1, w_q1, bn_q1)
    v = jnp.concatenate([v0, v1], axis=1)
    logits = lax.conv_general_dilated(
        v, w_lv, (1, 1), [(0, 0), (0, 0)],
        dimension_numbers=("NCHW", "OIHW", "NCHW"),
        precision=lax.Precision.HIGHEST) + b_lv[None, :, None, None]
    wgt = jax.nn.softmax(logits, axis=1)
    fused = l0 * wgt[:, 0:1] + l1 * wgt[:, 1:2]
    return _conv_bn_silu_ref(fused, w_c, bn_c, stride=1, pad=1)


if __name__ == "__main__":
    # CAASF(level=1) demo: c1 = (c1_l, c1_h) = (64, 128); inter_dim = 128
    # (lane-dense); level-1 spatial 16x16, level-0 32x32.
    N = 2
    C0 = 64           # c1_l
    C = 128           # c1_h == inter_dim
    H = W = 16
    CMP = 8           # compress_c

    key = jax.random.PRNGKey(0)
    ks = jax.random.split(key, 12)

    def bn_params(k, c):
        k1, k2, k3, k4 = jax.random.split(k, 4)
        g = 1.0 + 0.1 * jax.random.normal(k1, (c,), jnp.float32)
        b = 0.1 * jax.random.normal(k2, (c,), jnp.float32)
        m = 0.1 * jax.random.normal(k3, (c,), jnp.float32)
        v = jnp.abs(jax.random.normal(k4, (c,), jnp.float32)) * 0.5 + 0.5
        return g, b, m, v

    x0 = jax.random.normal(ks[0], (N, C0, 2 * H, 2 * W), jnp.float32)
    x1 = jax.random.normal(ks[1], (N, C, H, W), jnp.float32)

    # stride_level_0: nn.Conv2d(c1_l, inter_dim, 2, 2, 0, bias=False) + BN + SiLU
    w_s0 = jax.random.normal(ks[2], (C, C0, 2, 2), jnp.float32) * 0.05
    bn_s0 = bn_params(ks[3], C)
    # weight_level_0 / weight_level_1: nn.Conv2d(inter_dim, 8, 1, bias=False) + BN + SiLU
    w_q0 = jax.random.normal(ks[4], (CMP, C, 1, 1), jnp.float32) * 0.1
    bn_q0 = bn_params(ks[5], CMP)
    w_q1 = jax.random.normal(ks[6], (CMP, C, 1, 1), jnp.float32) * 0.1
    bn_q1 = bn_params(ks[7], CMP)
    # weights_levels: nn.Conv2d(16, 2, 1) with bias, no BN, no activation
    w_lv = jax.random.normal(ks[8], (2, 2 * CMP, 1, 1), jnp.float32) * 0.2
    b_lv = 0.1 * jax.random.normal(ks[9], (2,), jnp.float32)
    # conv: nn.Conv2d(inter_dim, inter_dim, 3, 1, 1, bias=False) + BN + SiLU
    w_c = jax.random.normal(ks[10], (C, C, 3, 3), jnp.float32) * 0.03
    bn_c = bn_params(ks[11], C)

    out = caasf_pallas(x0, x1, w_s0, bn_s0, w_q0, bn_q0, w_q1, bn_q1,
                       w_lv, b_lv, w_c, bn_c)
    out = jax.block_until_ready(out)

    ref = caasf_ref(x0, x1, w_s0, bn_s0, w_q0, bn_q0, w_q1, bn_q1,
                    w_lv, b_lv, w_c, bn_c)
    ref = jax.block_until_ready(ref)

    assert out.shape == (N, C, H, W), out.shape
    max_err = float(jnp.max(jnp.abs(out - ref)))
    assert jnp.allclose(out, ref, atol=5e-3, rtol=5e-3), max_err
    print("KERNEL_OK")
</pallas_src>

<mosaic_0001>
module attributes {stable_mosaic.version = 11 : i64} {
  func.func @caasf_kernel(%arg0: i32, %arg1: memref<1x16x16x256xf32, #tpu.memory_space<vmem>>, %arg2: memref<1x16x16x128xf32, #tpu.memory_space<vmem>>, %arg3: memref<256x128xf32, #tpu.memory_space<vmem>>, %arg4: memref<1x128xf32, #tpu.memory_space<vmem>>, %arg5: memref<1x128xf32, #tpu.memory_space<vmem>>, %arg6: memref<128x8xf32, #tpu.memory_space<vmem>>, %arg7: memref<1x8xf32, #tpu.memory_space<vmem>>, %arg8: memref<1x8xf32, #tpu.memory_space<vmem>>, %arg9: memref<128x8xf32, #tpu.memory_space<vmem>>, %arg10: memref<1x8xf32, #tpu.memory_space<vmem>>, %arg11: memref<1x8xf32, #tpu.memory_space<vmem>>, %arg12: memref<8x2xf32, #tpu.memory_space<vmem>>, %arg13: memref<8x2xf32, #tpu.memory_space<vmem>>, %arg14: memref<1x2xf32, #tpu.memory_space<vmem>>, %arg15: memref<9x128x128xf32, #tpu.memory_space<vmem>>, %arg16: memref<1x128xf32, #tpu.memory_space<vmem>>, %arg17: memref<1x128xf32, #tpu.memory_space<vmem>>, %arg18: memref<1x16x16x128xf32, #tpu.memory_space<vmem>>, %arg19: memref<18x18x128xf32, #tpu.memory_space<vmem>>) attributes {dimension_semantics = [#tpu.dimension_semantics<parallel>], iteration_bounds = array<i64: 2>, scalar_prefetch = 0 : i64, scratch_operands = 1 : i64, tpu.core_type = #tpu.core_type<tc>, window_params = [{transform_indices = @transform_0, window_bounds = array<i64: 1, 16, 16, 256>}, {transform_indices = @transform_1, window_bounds = array<i64: 1, 16, 16, 128>}, {pipeline_mode = #tpu.pipeline_mode<synchronous>, transform_indices = @transform_2, window_bounds = array<i64: 256, 128>}, {pipeline_mode = #tpu.pipeline_mode<synchronous>, transform_indices = @transform_3, window_bounds = array<i64: 1, 128>}, {pipeline_mode = #tpu.pipeline_mode<synchronous>, transform_indices = @transform_4, window_bounds = array<i64: 1, 128>}, {pipeline_mode = #tpu.pipeline_mode<synchronous>, transform_indices = @transform_5, window_bounds = array<i64: 128, 8>}, {pipeline_mode = #tpu.pipeline_mode<synchronous>, transform_indices = @transform_6, window_bounds = array<i64: 1, 8>}, {pipeline_mode = #tpu.pipeline_mode<synchronous>, transform_indices = @transform_7, window_bounds = array<i64: 1, 8>}, {pipeline_mode = #tpu.pipeline_mode<synchronous>, transform_indices = @transform_8, window_bounds = array<i64: 128, 8>}, {pipeline_mode = #tpu.pipeline_mode<synchronous>, transform_indices = @transform_9, window_bounds = array<i64: 1, 8>}, {pipeline_mode = #tpu.pipeline_mode<synchronous>, transform_indices = @transform_10, window_bounds = array<i64: 1, 8>}, {pipeline_mode = #tpu.pipeline_mode<synchronous>, transform_indices = @transform_11, window_bounds = array<i64: 8, 2>}, {pipeline_mode = #tpu.pipeline_mode<synchronous>, transform_indices = @transform_12, window_bounds = array<i64: 8, 2>}, {pipeline_mode = #tpu.pipeline_mode<synchronous>, transform_indices = @transform_13, window_bounds = array<i64: 1, 2>}, {pipeline_mode = #tpu.pipeline_mode<synchronous>, transform_indices = @transform_14, window_bounds = array<i64: 9, 128, 128>}, {pipeline_mode = #tpu.pipeline_mode<synchronous>, transform_indices = @transform_15, window_bounds = array<i64: 1, 128>}, {pipeline_mode = #tpu.pipeline_mode<synchronous>, transform_indices = @transform_16, window_bounds = array<i64: 1, 128>}, {transform_indices = @transform_17, window_bounds = array<i64: 1, 16, 16, 128>}]} {
    %c0 = arith.constant 0 : index
    %c0_0 = arith.constant 0 : index
    %c0_1 = arith.constant 0 : index
    %c0_2 = arith.constant 0 : index
    %0 = vector.load %arg1[%c0, %c0_0, %c0_1, %c0_2] : memref<1x16x16x256xf32, #tpu.memory_space<vmem>>, vector<1x16x16x256xf32>
    %1 = vector.shape_cast %0 : vector<1x16x16x256xf32> to vector<16x16x256xf32>
    %2 = vector.shape_cast %1 : vector<16x16x256xf32> to vector<256x256xf32>
    %c0_3 = arith.constant 0 : index
    %c0_4 = arith.constant 0 : index
    %3 = vector.load %arg3[%c0_3, %c0_4] : memref<256x128xf32, #tpu.memory_space<vmem>>, vector<256x128xf32>
    %cst = arith.constant dense<0.000000e+00> : vector<256x128xf32>
    %4 = tpu.matmul %2, %3, %cst {dimension_numbers = #tpu.dot_dimension_numbers<[1], [0], [0], [1], [0, 0, 1, 1], [], []>} : vector<256x256xf32>, vector<256x128xf32>, vector<256x128xf32> -> vector<256x128xf32>
    %c0_5 = arith.constant 0 : index
    %c0_6 = arith.constant 0 : index
    %5 = vector.load %arg4[%c0_5, %c0_6] : memref<1x128xf32, #tpu.memory_space<vmem>>, vector<1x128xf32>
    %6 = vector.broadcast %5 : vector<1x128xf32> to vector<256x128xf32>
    %7 = arith.mulf %4, %6 : vector<256x128xf32>
    %c0_7 = arith.constant 0 : index
    %c0_8 = arith.constant 0 : index
    %8 = vector.load %arg5[%c0_7, %c0_8] : memref<1x128xf32, #tpu.memory_space<vmem>>, vector<1x128xf32>
    %9 = vector.broadcast %8 : vector<1x128xf32> to vector<256x128xf32>
    %10 = arith.addf %7, %9 : vector<256x128xf32>
    %11 = arith.negf %10 : vector<256x128xf32>
    %12 = math.exp %11 : vector<256x128xf32>
    %cst_9 = arith.constant 1.000000e+00 : f32
    %13 = vector.broadcast %cst_9 : f32 to vector<256x128xf32>
    %14 = arith.addf %13, %12 : vector<256x128xf32>
    %15 = arith.divf %13, %14 : vector<256x128xf32>
    %16 = arith.mulf %10, %15 : vector<256x128xf32>
    %c0_10 = arith.constant 0 : index
    %c0_11 = arith.constant 0 : index
    %c0_12 = arith.constant 0 : index
    %c0_13 = arith.constant 0 : index
    %17 = vector.load %arg2[%c0_10, %c0_11, %c0_12, %c0_13] : memref<1x16x16x128xf32, #tpu.memory_space<vmem>>, vector<1x16x16x128xf32>
    %18 = vector.shape_cast %17 : vector<1x16x16x128xf32> to vector<16x16x128xf32>
    %19 = vector.shape_cast %18 : vector<16x16x128xf32> to vector<256x128xf32>
    %c0_14 = arith.constant 0 : index
    %c0_15 = arith.constant 0 : index
    %20 = vector.load %arg6[%c0_14, %c0_15] : memref<128x8xf32, #tpu.memory_space<vmem>>, vector<128x8xf32>
    %cst_16 = arith.constant dense<0.000000e+00> : vector<256x8xf32>
    %21 = tpu.matmul %16, %20, %cst_16 {dimension_numbers = #tpu.dot_dimension_numbers<[1], [0], [0], [1], [0, 0, 1, 1], [], []>} : vector<256x128xf32>, vector<128x8xf32>, vector<256x8xf32> -> vector<256x8xf32>
    %c0_17 = arith.constant 0 : index
    %c0_18 = arith.constant 0 : index
    %22 = vector.load %arg7[%c0_17, %c0_18] : memref<1x8xf32, #tpu.memory_space<vmem>>, vector<1x8xf32>
    %23 = vector.broadcast %22 : vector<1x8xf32> to vector<256x8xf32>
    %24 = arith.mulf %21, %23 : vector<256x8xf32>
    %c0_19 = arith.constant 0 : index
    %c0_20 = arith.constant 0 : index
    %25 = vector.load %arg8[%c0_19, %c0_20] : memref<1x8xf32, #tpu.memory_space<vmem>>, vector<1x8xf32>
    %26 = vector.broadcast %25 : vector<1x8xf32> to vector<256x8xf32>
    %27 = arith.addf %24, %26 : vector<256x8xf32>
    %28 = arith.negf %27 : vector<256x8xf32>
    %29 = math.exp %28 : vector<256x8xf32>
    %cst_21 = arith.constant 1.000000e+00 : f32
    %30 = vector.broadcast %cst_21 : f32 to vector<256x8xf32>
    %31 = arith.addf %30, %29 : vector<256x8xf32>
    %32 = arith.divf %30, %31 : vector<256x8xf32>
    %33 = arith.mulf %27, %32 : vector<256x8xf32>
    %c0_22 = arith.constant 0 : index
    %c0_23 = arith.constant 0 : index
    %34 = vector.load %arg9[%c0_22, %c0_23] : memref<128x8xf32, #tpu.memory_space<vmem>>, vector<128x8xf32>
    %cst_24 = arith.constant dense<0.000000e+00> : vector<256x8xf32>
    %35 = tpu.matmul %19, %34, %cst_24 {dimension_numbers = #tpu.dot_dimension_numbers<[1], [0], [0], [1], [0, 0, 1, 1], [], []>} : vector<256x128xf32>, vector<128x8xf32>, vector<256x8xf32> -> vector<256x8xf32>
    %c0_25 = arith.constant 0 : index
    %c0_26 = arith.constant 0 : index
    %36 = vector.load %arg10[%c0_25, %c0_26] : memref<1x8xf32, #tpu.memory_space<vmem>>, vector<1x8xf32>
    %37 = vector.broadcast %36 : vector<1x8xf32> to vector<256x8xf32>
    %38 = arith.mulf %35, %37 : vector<256x8xf32>
    %c0_27 = arith.constant 0 : index
    %c0_28 = arith.constant 0 : index
    %39 = vector.load %arg11[%c0_27, %c0_28] : memref<1x8xf32, #tpu.memory_space<vmem>>, vector<1x8xf32>
    %40 = vector.broadcast %39 : vector<1x8xf32> to vector<256x8xf32>
    %41 = arith.addf %38, %40 : vector<256x8xf32>
    %42 = arith.negf %41 : vector<256x8xf32>
    %43 = math.exp %42 : vector<256x8xf32>
    %cst_29 = arith.constant 1.000000e+00 : f32
    %44 = vector.broadcast %cst_29 : f32 to vector<256x8xf32>
    %45 = arith.addf %44, %43 : vector<256x8xf32>
    %46 = arith.divf %44, %45 : vector<256x8xf32>
    %47 = arith.mulf %41, %46 : vector<256x8xf32>
    %c0_30 = arith.constant 0 : index
    %c0_31 = arith.constant 0 : index
    %48 = vector.load %arg12[%c0_30, %c0_31] : memref<8x2xf32, #tpu.memory_space<vmem>>, vector<8x2xf32>
    %cst_32 = arith.constant dense<0.000000e+00> : vector<256x2xf32>
    %49 = tpu.matmul %33, %48, %cst_32 {dimension_numbers = #tpu.dot_dimension_numbers<[1], [0], [0], [1], [0, 0, 1, 1], [], []>} : vector<256x8xf32>, vector<8x2xf32>, vector<256x2xf32> -> vector<256x2xf32>
    %c0_33 = arith.constant 0 : index
    %c0_34 = arith.constant 0 : index
    %50 = vector.load %arg13[%c0_33, %c0_34] : memref<8x2xf32, #tpu.memory_space<vmem>>, vector<8x2xf32>
    %cst_35 = arith.constant dense<0.000000e+00> : vector<256x2xf32>
    %51 = tpu.matmul %47, %50, %cst_35 {dimension_numbers = #tpu.dot_dimension_numbers<[1], [0], [0], [1], [0, 0, 1, 1], [], []>} : vector<256x8xf32>, vector<8x2xf32>, vector<256x2xf32> -> vector<256x2xf32>
    %52 = arith.addf %49, %51 : vector<256x2xf32>
    %c0_36 = arith.constant 0 : index
    %c0_37 = arith.constant 0 : index
    %53 = vector.load %arg14[%c0_36, %c0_37] : memref<1x2xf32, #tpu.memory_space<vmem>>, vector<1x2xf32>
    %54 = vector.broadcast %53 : vector<1x2xf32> to vector<256x2xf32>
    %55 = arith.addf %52, %54 : vector<256x2xf32>
    %56 = vector.extract_strided_slice %55 {offsets = [0, 0], sizes = [256, 1], strides = [1, 1]} : vector<256x2xf32> to vector<256x1xf32>
    %57 = vector.extract_strided_slice %55 {offsets = [0, 1], sizes = [256, 1], strides = [1, 1]} : vector<256x2xf32> to vector<256x1xf32>
    %58 = arith.subf %56, %57 : vector<256x1xf32>
    %59 = arith.negf %58 : vector<256x1xf32>
    %60 = math.exp %59 : vector<256x1xf32>
    %cst_38 = arith.constant 1.000000e+00 : f32
    %61 = vector.broadcast %cst_38 : f32 to vector<256x1xf32>
    %62 = arith.addf %61, %60 : vector<256x1xf32>
    %63 = arith.divf %61, %62 : vector<256x1xf32>
    %64 = vector.broadcast %63 : vector<256x1xf32> to vector<256x128xf32>
    %65 = arith.mulf %16, %64 : vector<256x128xf32>
    %cst_39 = arith.constant 1.000000e+00 : f32
    %66 = vector.broadcast %cst_39 : f32 to vector<256x1xf32>
    %67 = arith.subf %66, %63 : vector<256x1xf32>
    %68 = vector.broadcast %67 : vector<256x1xf32> to vector<256x128xf32>
    %69 = arith.mulf %19, %68 : vector<256x128xf32>
    %70 = arith.addf %65, %69 : vector<256x128xf32>
    %cst_40 = arith.constant 0.000000e+00 : f32
    %71 = vector.broadcast %cst_40 : f32 to vector<1x18x128xf32>
    %c0_41 = arith.constant 0 : index
    %c0_42 = arith.constant 0 : index
    %c0_43 = arith.constant 0 : index
    %72 = vector.load %arg19[%c0_41, %c0_42, %c0_43] : memref<18x18x128xf32, #tpu.memory_space<vmem>>, vector<1x18x128xf32>
    tpu.vector_store %arg19[%c0_41, %c0_42, %c0_43], %71 {strides = array<i32>} : memref<18x18x128xf32, #tpu.memory_space<vmem>>, vector<1x18x128xf32>,
    %cst_44 = arith.constant 0.000000e+00 : f32
    %73 = vector.broadcast %cst_44 : f32 to vector<1x18x128xf32>
    %c17 = arith.constant 17 : index
    %c0_45 = arith.constant 0 : index
    %c0_46 = arith.constant 0 : index
    %74 = vector.load %arg19[%c17, %c0_45, %c0_46] : memref<18x18x128xf32, #tpu.memory_space<vmem>>, vector<1x18x128xf32>
    tpu.vector_store %arg19[%c17, %c0_45, %c0_46], %73 {strides = array<i32>} : memref<18x18x128xf32, #tpu.memory_space<vmem>>, vector<1x18x128xf32>,
    %cst_47 = arith.constant 0.000000e+00 : f32
    %75 = vector.broadcast %cst_47 : f32 to vector<18x1x128xf32>
    %c0_48 = arith.constant 0 : index
    %c0_49 = arith.constant 0 : index
    %c0_50 = arith.constant 0 : index
    %76 = vector.load %arg19[%c0_48, %c0_49, %c0_50] : memref<18x18x128xf32, #tpu.memory_space<vmem>>, vector<18x1x128xf32>
    tpu.vector_store %arg19[%c0_48, %c0_49, %c0_50], %75 {strides = array<i32>} : memref<18x18x128xf32, #tpu.memory_space<vmem>>, vector<18x1x128xf32>,
    %cst_51 = arith.constant 0.000000e+00 : f32
    %77 = vector.broadcast %cst_51 : f32 to vector<18x1x128xf32>
    %c0_52 = arith.constant 0 : index
    %c17_53 = arith.constant 17 : index
    %c0_54 = arith.constant 0 : index
    %78 = vector.load %arg19[%c0_52, %c17_53, %c0_54] : memref<18x18x128xf32, #tpu.memory_space<vmem>>, vector<18x1x128xf32>
    tpu.vector_store %arg19[%c0_52, %c17_53, %c0_54], %77 {strides = array<i32>} : memref<18x18x128xf32, #tpu.memory_space<vmem>>, vector<18x1x128xf32>,
    %79 = vector.shape_cast %70 : vector<256x128xf32> to vector<16x16x128xf32>
    %c1 = arith.constant 1 : index
    %c1_55 = arith.constant 1 : index
    %c0_56 = arith.constant 0 : index
    %80 = vector.load %arg19[%c1, %c1_55, %c0_56] : memref<18x18x128xf32, #tpu.memory_space<vmem>>, vector<16x16x128xf32>
    tpu.vector_store %arg19[%c1, %c1_55, %c0_56], %79 {strides = array<i32>} : memref<18x18x128xf32, #tpu.memory_space<vmem>>, vector<16x16x128xf32>,
    %c0_57 = arith.constant 0 : index
    %c0_58 = arith.constant 0 : index
    %c0_59 = arith.constant 0 : index
    %81 = vector.load %arg19[%c0_57, %c0_58, %c0_59] : memref<18x18x128xf32, #tpu.memory_space<vmem>>, vector<18x16x128xf32>
    %82 = vector.shape_cast %81 : vector<18x16x128xf32> to vector<288x128xf32>
    %83 = vector.extract_strided_slice %82 {offsets = [0, 0], sizes = [256, 128], strides = [1, 1]} : vector<288x128xf32> to vector<256x128xf32>
    %c0_60 = arith.constant 0 : index
    %c0_61 = arith.constant 0 : index
    %c0_62 = arith.constant 0 : index
    %84 = vector.load %arg15[%c0_60, %c0_61, %c0_62] : memref<9x128x128xf32, #tpu.memory_space<vmem>>, vector<1x128x128xf32>
    %85 = vector.shape_cast %84 : vector<1x128x128xf32> to vector<128x128xf32>
    %cst_63 = arith.constant dense<0.000000e+00> : vector<256x128xf32>
    %86 = tpu.matmul %83, %85, %cst_63 {dimension_numbers = #tpu.dot_dimension_numbers<[1], [0], [0], [1], [0, 0, 1, 1], [], []>} : vector<256x128xf32>, vector<128x128xf32>, vector<256x128xf32> -> vector<256x128xf32>
    %87 = vector.extract_strided_slice %82 {offsets = [16, 0], sizes = [256, 128], strides = [1, 1]} : vector<288x128xf32> to vector<256x128xf32>
    %c3 = arith.constant 3 : index
    %c0_64 = arith.constant 0 : index
    %c0_65 = arith.constant 0 : index
    %88 = vector.load %arg15[%c3, %c0_64, %c0_65] : memref<9x128x128xf32, #tpu.memory_space<vmem>>, vector<1x128x128xf32>
    %89 = vector.shape_cast %88 : vector<1x128x128xf32> to vector<128x128xf32>
    %cst_66 = arith.constant dense<0.000000e+00> : vector<256x128xf32>
    %90 = tpu.matmul %87, %89, %cst_66 {dimension_numbers = #tpu.dot_dimension_numbers<[1], [0], [0], [1], [0, 0, 1, 1], [], []>} : vector<256x128xf32>, vector<128x128xf32>, vector<256x128xf32> -> vector<256x128xf32>
    %91 = arith.addf %86, %90 : vector<256x128xf32>
    %92 = vector.extract_strided_slice %82 {offsets = [32, 0], sizes = [256, 128], strides = [1, 1]} : vector<288x128xf32> to vector<256x128xf32>
    %c6 = arith.constant 6 : index
    %c0_67 = arith.constant 0 : index
    %c0_68 = arith.constant 0 : index
    %93 = vector.load %arg15[%c6, %c0_67, %c0_68] : memref<9x128x128xf32, #tpu.memory_space<vmem>>, vector<1x128x128xf32>
    %94 = vector.shape_cast %93 : vector<1x128x128xf32> to vector<128x128xf32>
    %cst_69 = arith.constant dense<0.000000e+00> : vector<256x128xf32>
    %95 = tpu.matmul %92, %94, %cst_69 {dimension_numbers = #tpu.dot_dimension_numbers<[1], [0], [0], [1], [0, 0, 1, 1], [], []>} : vector<256x128xf32>, vector<128x128xf32>, vector<256x128xf32> -> vector<256x128xf32>
    %96 = arith.addf %91, %95 : vector<256x128xf32>
    %c0_70 = arith.constant 0 : index
    %c1_71 = arith.constant 1 : index
    %c0_72 = arith.constant 0 : index
    %97 = vector.load %arg19[%c0_70, %c1_71, %c0_72] : memref<18x18x128xf32, #tpu.memory_space<vmem>>, vector<18x16x128xf32>
    %98 = vector.shape_cast %97 : vector<18x16x128xf32> to vector<288x128xf32>
    %99 = vector.extract_strided_slice %98 {offsets = [0, 0], sizes = [256, 128], strides = [1, 1]} : vector<288x128xf32> to vector<256x128xf32>
    %c1_73 = arith.constant 1 : index
    %c0_74 = arith.constant 0 : index
    %c0_75 = arith.constant 0 : index
    %100 = vector.load %arg15[%c1_73, %c0_74, %c0_75] : memref<9x128x128xf32, #tpu.memory_space<vmem>>, vector<1x128x128xf32>
    %101 = vector.shape_cast %100 : vector<1x128x128xf32> to vector<128x128xf32>
    %cst_76 = arith.constant dense<0.000000e+00> : vector<256x128xf32>
    %102 = tpu.matmul %99, %101, %cst_76 {dimension_numbers = #tpu.dot_dimension_numbers<[1], [0], [0], [1], [0, 0, 1, 1], [], []>} : vector<256x128xf32>, vector<128x128xf32>, vector<256x128xf32> -> vector<256x128xf32>
    %103 = arith.addf %96, %102 : vector<256x128xf32>
    %104 = vector.extract_strided_slice %98 {offsets = [16, 0], sizes = [256, 128], strides = [1, 1]} : vector<288x128xf32> to vector<256x128xf32>
    %c4 = arith.constant 4 : index
    %c0_77 = arith.constant 0 : index
    %c0_78 = arith.constant 0 : index
    %105 = vector.load %arg15[%c4, %c0_77, %c0_78] : memref<9x128x128xf32, #tpu.memory_space<vmem>>, vector<1x128x128xf32>
    %106 = vector.shape_cast %105 : vector<1x128x128xf32> to vector<128x128xf32>
    %cst_79 = arith.constant dense<0.000000e+00> : vector<256x128xf32>
    %107 = tpu.matmul %104, %106, %cst_79 {dimension_numbers = #tpu.dot_dimension_numbers<[1], [0], [0], [1], [0, 0, 1, 1], [], []>} : vector<256x128xf32>, vector<128x128xf32>, vector<256x128xf32> -> vector<256x128xf32>
    %108 = arith.addf %103, %107 : vector<256x128xf32>
    %109 = vector.extract_strided_slice %98 {offsets = [32, 0], sizes = [256, 128], strides = [1, 1]} : vector<288x128xf32> to vector<256x128xf32>
    %c7 = arith.constant 7 : index
    %c0_80 = arith.constant 0 : index
    %c0_81 = arith.constant 0 : index
    %110 = vector.load %arg15[%c7, %c0_80, %c0_81] : memref<9x128x128xf32, #tpu.memory_space<vmem>>, vector<1x128x128xf32>
    %111 = vector.shape_cast %110 : vector<1x128x128xf32> to vector<128x128xf32>
    %cst_82 = arith.constant dense<0.000000e+00> : vector<256x128xf32>
    %112 = tpu.matmul %109, %111, %cst_82 {dimension_numbers = #tpu.dot_dimension_numbers<[1], [0], [0], [1], [0, 0, 1, 1], [], []>} : vector<256x128xf32>, vector<128x128xf32>, vector<256x128xf32> -> vector<256x128xf32>
    %113 = arith.addf %108, %112 : vector<256x128xf32>
    %c0_83 = arith.constant 0 : index
    %c2 = arith.constant 2 : index
    %c0_84 = arith.constant 0 : index
    %114 = vector.load %arg19[%c0_83, %c2, %c0_84] : memref<18x18x128xf32, #tpu.memory_space<vmem>>, vector<18x16x128xf32>
    %115 = vector.shape_cast %114 : vector<18x16x128xf32> to vector<288x128xf32>
    %116 = vector.extract_strided_slice %115 {offsets = [0, 0], sizes = [256, 128], strides = [1, 1]} : vector<288x128xf32> to vector<256x128xf32>
    %c2_85 = arith.constant 2 : index
    %c0_86 = arith.constant 0 : index
    %c0_87 = arith.constant 0 : index
    %117 = vector.load %arg15[%c2_85, %c0_86, %c0_87] : memref<9x128x128xf32, #tpu.memory_space<vmem>>, vector<1x128x128xf32>
    %118 = vector.shape_cast %117 : vector<1x128x128xf32> to vector<128x128xf32>
    %cst_88 = arith.constant dense<0.000000e+00> : vector<256x128xf32>
    %119 = tpu.matmul %116, %118, %cst_88 {dimension_numbers = #tpu.dot_dimension_numbers<[1], [0], [0], [1], [0, 0, 1, 1], [], []>} : vector<256x128xf32>, vector<128x128xf32>, vector<256x128xf32> -> vector<256x128xf32>
    %120 = arith.addf %113, %119 : vector<256x128xf32>
    %121 = vector.extract_strided_slice %115 {offsets = [16, 0], sizes = [256, 128], strides = [1, 1]} : vector<288x128xf32> to vector<256x128xf32>
    %c5 = arith.constant 5 : index
    %c0_89 = arith.constant 0 : index
    %c0_90 = arith.constant 0 : index
    %122 = vector.load %arg15[%c5, %c0_89, %c0_90] : memref<9x128x128xf32, #tpu.memory_space<vmem>>, vector<1x128x128xf32>
    %123 = vector.shape_cast %122 : vector<1x128x128xf32> to vector<128x128xf32>
    %cst_91 = arith.constant dense<0.000000e+00> : vector<256x128xf32>
    %124 = tpu.matmul %121, %123, %cst_91 {dimension_numbers = #tpu.dot_dimension_numbers<[1], [0], [0], [1], [0, 0, 1, 1], [], []>} : vector<256x128xf32>, vector<128x128xf32>, vector<256x128xf32> -> vector<256x128xf32>
    %125 = arith.addf %120, %124 : vector<256x128xf32>
    %126 = vector.extract_strided_slice %115 {offsets = [32, 0], sizes = [256, 128], strides = [1, 1]} : vector<288x128xf32> to vector<256x128xf32>
    %c8 = arith.constant 8 : index
    %c0_92 = arith.constant 0 : index
    %c0_93 = arith.constant 0 : index
    %127 = vector.load %arg15[%c8, %c0_92, %c0_93] : memref<9x128x128xf32, #tpu.memory_space<vmem>>, vector<1x128x128xf32>
    %128 = vector.shape_cast %127 : vector<1x128x128xf32> to vector<128x128xf32>
    %cst_94 = arith.constant dense<0.000000e+00> : vector<256x128xf32>
    %129 = tpu.matmul %126, %128, %cst_94 {dimension_numbers = #tpu.dot_dimension_numbers<[1], [0], [0], [1], [0, 0, 1, 1], [], []>} : vector<256x128xf32>, vector<128x128xf32>, vector<256x128xf32> -> vector<256x128xf32>
    %130 = arith.addf %125, %129 : vector<256x128xf32>
    %c0_95 = arith.constant 0 : index
    %c0_96 = arith.constant 0 : index
    %131 = vector.load %arg16[%c0_95, %c0_96] : memref<1x128xf32, #tpu.memory_space<vmem>>, vector<1x128xf32>
    %132 = vector.broadcast %131 : vector<1x128xf32> to vector<256x128xf32>
    %133 = arith.mulf %130, %132 : vector<256x128xf32>
    %c0_97 = arith.constant 0 : index
    %c0_98 = arith.constant 0 : index
    %134 = vector.load %arg17[%c0_97, %c0_98] : memref<1x128xf32, #tpu.memory_space<vmem>>, vector<1x128xf32>
    %135 = vector.broadcast %134 : vector<1x128xf32> to vector<256x128xf32>
    %136 = arith.addf %133, %135 : vector<256x128xf32>
    %137 = arith.negf %136 : vector<256x128xf32>
    %138 = math.exp %137 : vector<256x128xf32>
    %cst_99 = arith.constant 1.000000e+00 : f32
    %139 = vector.broadcast %cst_99 : f32 to vector<256x128xf32>
    %140 = arith.addf %139, %138 : vector<256x128xf32>
    %141 = arith.divf %139, %140 : vector<256x128xf32>
    %142 = arith.mulf %136, %141 : vector<256x128xf32>
    %143 = vector.shape_cast %142 : vector<256x128xf32> to vector<16x16x128xf32>
    %c0_100 = arith.constant 0 : index
    %c0_101 = arith.constant 0 : index
    %c0_102 = arith.constant 0 : index
    %c0_103 = arith.constant 0 : index
    %144 = vector.load %arg18[%c0_100, %c0_101, %c0_102, %c0_103] : memref<1x16x16x128xf32, #tpu.memory_space<vmem>>, vector<1x16x16x128xf32>
    %145 = vector.shape_cast %144 : vector<1x16x16x128xf32> to vector<16x16x128xf32>
    %146 = vector.shape_cast %143 : vector<16x16x128xf32> to vector<1x16x16x128xf32>
    tpu.vector_store %arg18[%c0_100, %c0_101, %c0_102, %c0_103], %146 {strides = array<i32>} : memref<1x16x16x128xf32, #tpu.memory_space<vmem>>, vector<1x16x16x128xf32>,
    return
  }
  func.func @transform_0(%arg0: i32) -> (i32, i32, i32, i32) {
    %c0_i32 = arith.constant 0 : i32
    %c0_i32_0 = arith.constant 0 : i32
    %c0_i32_1 = arith.constant 0 : i32
    %c0_i32_2 = arith.constant 0 : i32
    return %arg0, %c0_i32, %c0_i32_0, %c0_i32_1 : i32, i32, i32, i32
  }
  func.func @transform_1(%arg0: i32) -> (i32, i32, i32, i32) {
    %c0_i32 = arith.constant 0 : i32
    %c0_i32_0 = arith.constant 0 : i32
    %c0_i32_1 = arith.constant 0 : i32
    %c0_i32_2 = arith.constant 0 : i32
    return %arg0, %c0_i32, %c0_i32_0, %c0_i32_1 : i32, i32, i32, i32
  }
  func.func @transform_2(%arg0: i32) -> (i32, i32) {
    %c0_i32 = arith.constant 0 : i32
    %c0_i32_0 = arith.constant 0 : i32
    %c0_i32_1 = arith.constant 0 : i32
    return %c0_i32, %c0_i32_0 : i32, i32
  }
  func.func @transform_3(%arg0: i32) -> (i32, i32) {
    %c0_i32 = arith.constant 0 : i32
    %c0_i32_0 = arith.constant 0 : i32
    %c0_i32_1 = arith.constant 0 : i32
    return %c0_i32, %c0_i32_0 : i32, i32
  }
  func.func @transform_4(%arg0: i32) -> (i32, i32) {
    %c0_i32 = arith.constant 0 : i32
    %c0_i32_0 = arith.constant 0 : i32
    %c0_i32_1 = arith.constant 0 : i32
    return %c0_i32, %c0_i32_0 : i32, i32
  }
  func.func @transform_5(%arg0: i32) -> (i32, i32) {
    %c0_i32 = arith.constant 0 : i32
    %c0_i32_0 = arith.constant 0 : i32
    %c0_i32_1 = arith.constant 0 : i32
    return %c0_i32, %c0_i32_0 : i32, i32
  }
  func.func @transform_6(%arg0: i32) -> (i32, i32) {
    %c0_i32 = arith.constant 0 : i32
    %c0_i32_0 = arith.constant 0 : i32
    %c0_i32_1 = arith.constant 0 : i32
    return %c0_i32, %c0_i32_0 : i32, i32
  }
  func.func @transform_7(%arg0: i32) -> (i32, i32) {
    %c0_i32 = arith.constant 0 : i32
    %c0_i32_0 = arith.constant 0 : i32
    %c0_i32_1 = arith.constant 0 : i32
    return %c0_i32, %c0_i32_0 : i32, i32
  }
  func.func @transform_8(%arg0: i32) -> (i32, i32) {
    %c0_i32 = arith.constant 0 : i32
    %c0_i32_0 = arith.constant 0 : i32
    %c0_i32_1 = arith.constant 0 : i32
    return %c0_i32, %c0_i32_0 : i32, i32
  }
  func.func @transform_9(%arg0: i32) -> (i32, i32) {
    %c0_i32 = arith.constant 0 : i32
    %c0_i32_0 = arith.constant 0 : i32
    %c0_i32_1 = arith.constant 0 : i32
    return %c0_i32, %c0_i32_0 : i32, i32
  }
  func.func @transform_10(%arg0: i32) -> (i32, i32) {
    %c0_i32 = arith.constant 0 : i32
    %c0_i32_0 = arith.constant 0 : i32
    %c0_i32_1 = arith.constant 0 : i32
    return %c0_i32, %c0_i32_0 : i32, i32
  }
  func.func @transform_11(%arg0: i32) -> (i32, i32) {
    %c0_i32 = arith.constant 0 : i32
    %c0_i32_0 = arith.constant 0 : i32
    %c0_i32_1 = arith.constant 0 : i32
    return %c0_i32, %c0_i32_0 : i32, i32
  }
  func.func @transform_12(%arg0: i32) -> (i32, i32) {
    %c0_i32 = arith.constant 0 : i32
    %c0_i32_0 = arith.constant 0 : i32
    %c0_i32_1 = arith.constant 0 : i32
    return %c0_i32, %c0_i32_0 : i32, i32
  }
  func.func @transform_13(%arg0: i32) -> (i32, i32) {
    %c0_i32 = arith.constant 0 : i32
    %c0_i32_0 = arith.constant 0 : i32
    %c0_i32_1 = arith.constant 0 : i32
    return %c0_i32, %c0_i32_0 : i32, i32
  }
  func.func @transform_14(%arg0: i32) -> (i32, i32, i32) {
    %c0_i32 = arith.constant 0 : i32
    %c0_i32_0 = arith.constant 0 : i32
    %c0_i32_1 = arith.constant 0 : i32
    %c0_i32_2 = arith.constant 0 : i32
    return %c0_i32, %c0_i32_0, %c0_i32_1 : i32, i32, i32
  }
  func.func @transform_15(%arg0: i32) -> (i32, i32) {
    %c0_i32 = arith.constant 0 : i32
    %c0_i32_0 = arith.constant 0 : i32
    %c0_i32_1 = arith.constant 0 : i32
    return %c0_i32, %c0_i32_0 : i32, i32
  }
  func.func @transform_16(%arg0: i32) -> (i32, i32) {
    %c0_i32 = arith.constant 0 : i32
    %c0_i32_0 = arith.constant 0 : i32
    %c0_i32_1 = arith.constant 0 : i32
    return %c0_i32, %c0_i32_0 : i32, i32
  }
  func.func @transform_17(%arg0: i32) -> (i32, i32, i32, i32) {
    %c0_i32 = arith.constant 0 : i32
    %c0_i32_0 = arith.constant 0 : i32
    %c0_i32_1 = arith.constant 0 : i32
    %c0_i32_2 = arith.constant 0 : i32
    return %arg0, %c0_i32, %c0_i32_0, %c0_i32_1 : i32, i32, i32, i32
  }
}

</mosaic_0001>

<llo_original>
// kernel: caasf_pallas.1
$region0: #{caasf_pallas.1}
  #allocation0 [shape = 'u32[]', space=smem, size = 0x4, offset = 0x4, fixed_abs, tag = 'smem constant byte address 0x4 - core index']
  #allocation1 [shape = 'u32[144,128]{1,0:T(1,128)}', space=vmem, size = 0x12000, scoped, tag = 'internal scratch']
  #allocation2 [shape = 'f32[18,18,128]{2,1,0:T(8,128)}', space=vmem, size = 0x36000, scoped, tag = 'scratch operand']
  %s0 = inlined_call_operand.vmem [shape: f32[2,16,16,256], index: 0, kind: input, shape index: {}]
  %s1 = inlined_call_operand.vmem [shape: f32[2,16,16,128], index: 1, kind: input, shape index: {}]
  %s2 = inlined_call_operand.vmem [shape: f32[256,128], index: 2, kind: input, shape index: {}]
  %s3 = inlined_call_operand.vmem [shape: f32[1,128], index: 3, kind: input, shape index: {}]
  %s4 = inlined_call_operand.vmem [shape: f32[1,128], index: 4, kind: input, shape index: {}]
  %s5 = inlined_call_operand.vmem [shape: f32[128,8], index: 5, kind: input, shape index: {}]
  %s6 = inlined_call_operand.vmem [shape: f32[1,8], index: 6, kind: input, shape index: {}]
  %s7 = inlined_call_operand.vmem [shape: f32[1,8], index: 7, kind: input, shape index: {}]
  %s8 = inlined_call_operand.vmem [shape: f32[128,8], index: 8, kind: input, shape index: {}]
  %s9 = inlined_call_operand.vmem [shape: f32[1,8], index: 9, kind: input, shape index: {}]
  %s10 = inlined_call_operand.vmem [shape: f32[1,8], index: 10, kind: input, shape index: {}]
  %s11 = inlined_call_operand.vmem [shape: f32[8,2], index: 11, kind: input, shape index: {}]
  %s12 = inlined_call_operand.vmem [shape: f32[8,2], index: 12, kind: input, shape index: {}]
  %s13 = inlined_call_operand.vmem [shape: f32[1,2], index: 13, kind: input, shape index: {}]
  %s14 = inlined_call_operand.vmem [shape: f32[9,128,128], index: 14, kind: input, shape index: {}]
  %s15 = inlined_call_operand.vmem [shape: f32[1,128], index: 15, kind: input, shape index: {}]
  %s16 = inlined_call_operand.vmem [shape: f32[1,128], index: 16, kind: input, shape index: {}]
  %s17 = inlined_call_operand.hbm [shape: f32[2,16,16,128], index: 17, kind: output, shape index: {}]
  %s18 = sld [smem:[#allocation0]]
  $region101: #{caasf_pallas.1} parent=0
    _
  %s20 = ssub.s32 1, %s18
  %s21 = scalar_select 0, %s20, %s18
  $region1: #{caasf_pallas.1} parent=0
    #allocation3 [shape = 'u8[262144]{0}', space=vmem, size = 0x40000, scoped, tag = 'output window, operand 0']
    #allocation4 [shape = 's32[2]{0}', space=sflag, size = 0x8, scoped, tag = 'scoped memory for caasf_pallas.1']
    %22 = vsyncpa [#allocation4], 0
    %s23 = scalar_lea.sflag [#allocation4], 1
    %24 = vsyncpa %s23, 0
    loop: start=0, step=1, limit=4
    $region2: #{caasf_pallas.1} parent=1 // loop_pre_header
      _
    $region3: #{caasf_pallas.1} parent=1 // loop_header
      %s26 = sphi 0, %s30
      %p27 = scmp.ge.s32.totalorder %s26, 4
      %s36 = sphi 0, %s38
      %s39 = sphi 0, %s36
      %s40 = sphi 0, %s39
      %s56 = sphi 0, %s40
      %s62 = sphi 0, %s64
      %s65 = sphi 0, %s62
      %s66 = sphi 0, %s65
      %s82 = sphi 0, %s66
      %s86 = sphi 0, %s86
      %s88 = sphi 0, %s86
      %s89 = sphi 0, %s88
      %s103 = sphi 0, %s89
      %s107 = sphi 0, %s107
      %s109 = sphi 0, %s107
      %s110 = sphi 0, %s109
      %s124 = sphi 0, %s110
      %s128 = sphi 0, %s128
      %s130 = sphi 0, %s128
      %s131 = sphi 0, %s130
      %s145 = sphi 0, %s131
      %s149 = sphi 0, %s149
      %s151 = sphi 0, %s149
      %s152 = sphi 0, %s151
      %s166 = sphi 0, %s152
      %s170 = sphi 0, %s170
      %s172 = sphi 0, %s170
      %s173 = sphi 0, %s172
      %s187 = sphi 0, %s173
      %s191 = sphi 0, %s191
      %s193 = sphi 0, %s191
      %s194 = sphi 0, %s193
      %s208 = sphi 0, %s194
      %s212 = sphi 0, %s212
      %s214 = sphi 0, %s212
      %s215 = sphi 0, %s214
      %s229 = sphi 0, %s215
      %s233 = sphi 0, %s233
      %s235 = sphi 0, %s233
      %s236 = sphi 0, %s235
      %s250 = sphi 0, %s236
      %s254 = sphi 0, %s254
      %s256 = sphi 0, %s254
      %s257 = sphi 0, %s256
      %s271 = sphi 0, %s257
      %s275 = sphi 0, %s275
      %s277 = sphi 0, %s275
      %s278 = sphi 0, %s277
      %s292 = sphi 0, %s278
      %s296 = sphi 0, %s296
      %s298 = sphi 0, %s296
      %s299 = sphi 0, %s298
      %s313 = sphi 0, %s299
      %s317 = sphi 0, %s317
      %s319 = sphi 0, %s317
      %s320 = sphi 0, %s319
      %s334 = sphi 0, %s320
      %s338 = sphi 0, %s338
      %s340 = sphi 0, %s338
      %s341 = sphi 0, %s340
      %s355 = sphi 0, %s341
      %s359 = sphi 0, %s359
      %s361 = sphi 0, %s359
      %s362 = sphi 0, %s361
      %s376 = sphi 0, %s362
      %s380 = sphi 0, %s380
      %s382 = sphi 0, %s380
      %s383 = sphi 0, %s382
      %s397 = sphi 0, %s383
      %s403 = sphi 0, %s405
      %s406 = sphi 0, %s403
      %s407 = sphi 0, %s406
      %s423 = sphi 0, %s407
    $region4: #{caasf_pallas.1} parent=1 // loop_header_branch
      %29 = sbr.rel (%p27) target = $region8
    $region5: #{caasf_pallas.1} parent=1 // loop_body
      %s31 = ssub.s32 %s26, 1
      %s32 = ssub.s32 %s26, 2
      %s33 = sadd.s32 %s26, 1
      %s34 = ssub.s32 %s26, %s33
      %p35 = scmp.eq.s32.totalorder %s34, 0
      %s37 = sadd.s32 %s36, 1
      %s38 = scalar_select %p35, %s36, %s37
      %p41 = pneg %p35
      %p42 = scmp.eq.s32.totalorder %s26, 1
      %p43 = por %p41, %p42
      %p44 = scmp.ne.s32.totalorder %s36, %s39
      %p45 = scmp.eq.s32.totalorder %s26, 0
      %p46 = por %p44, %p45
      %p47 = scmp.ne.s32.totalorder %s36, %s39
      %p48 = scmp.eq.s32.totalorder %s31, 1
      %p49 = por %p47, %p48
      %p50 = scmp.ne.s32.totalorder %s39, %s40
      %p51 = scmp.eq.s32.totalorder %s31, 0
      %p52 = por %p50, %p51
      %p53 = scmp.ne.s32.totalorder %s39, %s40
      %p54 = scmp.eq.s32.totalorder %s32, 1
      %p55 = por %p53, %p54
      %p57 = scmp.ne.s32.totalorder %s40, %s56
      %p58 = scmp.eq.s32.totalorder %s32, 0
      %p59 = por %p57, %p58
      %s60 = ssub.s32 %s26, %s33
      %p61 = scmp.eq.s32.totalorder %s60, 0
      %s63 = sadd.s32 %s62, 1
      %s64 = scalar_select %p61, %s62, %s63
      %p67 = pneg %p61
      %p68 = scmp.eq.s32.totalorder %s26, 1
      %p69 = por %p67, %p68
      %p70 = scmp.ne.s32.totalorder %s62, %s65
      %p71 = scmp.eq.s32.totalorder %s26, 0
      %p72 = por %p70, %p71
      %p73 = scmp.ne.s32.totalorder %s62, %s65
      %p74 = scmp.eq.s32.totalorder %s31, 1
      %p75 = por %p73, %p74
      %p76 = scmp.ne.s32.totalorder %s65, %s66
      %p77 = scmp.eq.s32.totalorder %s31, 0
      %p78 = por %p76, %p77
      %p79 = scmp.ne.s32.totalorder %s65, %s66
      %p80 = scmp.eq.s32.totalorder %s32, 1
      %p81 = por %p79, %p80
      %p83 = scmp.ne.s32.totalorder %s66, %s82
      %p84 = scmp.eq.s32.totalorder %s32, 0
      %p85 = por %p83, %p84
      %s87 = sadd.s32 %s86, 1
      %p90 = scmp.eq.s32.totalorder %s26, 1
      %p91 = scmp.ne.s32.totalorder %s86, %s88
      %p92 = scmp.eq.s32.totalorder %s26, 0
      %p93 = por %p91, %p92
      %p94 = scmp.ne.s32.totalorder %s86, %s88
      %p95 = scmp.eq.s32.totalorder %s31, 1
      %p96 = por %p94, %p95
      %p97 = scmp.ne.s32.totalorder %s88, %s89
      %p98 = scmp.eq.s32.totalorder %s31, 0
      %p99 = por %p97, %p98
      %p100 = scmp.ne.s32.totalorder %s88, %s89
      %p101 = scmp.eq.s32.totalorder %s32, 1
      %p102 = por %p100, %p101
      %p104 = scmp.ne.s32.totalorder %s89, %s103
      %p105 = scmp.eq.s32.totalorder %s32, 0
      %p106 = por %p104, %p105
      %s108 = sadd.s32 %s107, 1
      %p111 = scmp.eq.s32.totalorder %s26, 1
      %p112 = scmp.ne.s32.totalorder %s107, %s109
      %p113 = scmp.eq.s32.totalorder %s26, 0
      %p114 = por %p112, %p113
      %p115 = scmp.ne.s32.totalorder %s107, %s109
      %p116 = scmp.eq.s32.totalorder %s31, 1
      %p117 = por %p115, %p116
      %p118 = scmp.ne.s32.totalorder %s109, %s110
      %p119 = scmp.eq.s32.totalorder %s31, 0
      %p120 = por %p118, %p119
      %p121 = scmp.ne.s32.totalorder %s109, %s110
      %p122 = scmp.eq.s32.totalorder %s32, 1
      %p123 = por %p121, %p122
      %p125 = scmp.ne.s32.totalorder %s110, %s124
      %p126 = scmp.eq.s32.totalorder %s32, 0
      %p127 = por %p125, %p126
      %s129 = sadd.s32 %s128, 1
      %p132 = scmp.eq.s32.totalorder %s26, 1
      %p133 = scmp.ne.s32.totalorder %s128, %s130
      %p134 = scmp.eq.s32.totalorder %s26, 0
      %p135 = por %p133, %p134
      %p136 = scmp.ne.s32.totalorder %s128, %s130
      %p137 = scmp.eq.s32.totalorder %s31, 1
      %p138 = por %p136, %p137
      %p139 = scmp.ne.s32.totalorder %s130, %s131
      %p140 = scmp.eq.s32.totalorder %s31, 0
      %p141 = por %p139, %p140
      %p142 = scmp.ne.s32.totalorder %s130, %s131
      %p143 = scmp.eq.s32.totalorder %s32, 1
      %p144 = por %p142, %p143
      %p146 = scmp.ne.s32.totalorder %s131, %s145
      %p147 = scmp.eq.s32.totalorder %s32, 0
      %p148 = por %p146, %p147
      %s150 = sadd.s32 %s149, 1
      %p153 = scmp.eq.s32.totalorder %s26, 1
      %p154 = scmp.ne.s32.totalorder %s149, %s151
      %p155 = scmp.eq.s32.totalorder %s26, 0
      %p156 = por %p154, %p155
      %p157 = scmp.ne.s32.totalorder %s149, %s151
      %p158 = scmp.eq.s32.totalorder %s31, 1
      %p159 = por %p157, %p158
      %p160 = scmp.ne.s32.totalorder %s151, %s152
      %p161 = scmp.eq.s32.totalorder %s31, 0
      %p162 = por %p160, %p161
      %p163 = scmp.ne.s32.totalorder %s151, %s152
      %p164 = scmp.eq.s32.totalorder %s32, 1
      %p165 = por %p163, %p164
      %p167 = scmp.ne.s32.totalorder %s152, %s166
      %p168 = scmp.eq.s32.totalorder %s32, 0
      %p169 = por %p167, %p168
      %s171 = sadd.s32 %s170, 1
      %p174 = scmp.eq.s32.totalorder %s26, 1
      %p175 = scmp.ne.s32.totalorder %s170, %s172
      %p176 = scmp.eq.s32.totalorder %s26, 0
      %p177 = por %p175, %p176
      %p178 = scmp.ne.s32.totalorder %s170, %s172
      %p179 = scmp.eq.s32.totalorder %s31, 1
      %p180 = por %p178, %p179
      %p181 = scmp.ne.s32.totalorder %s172, %s173
      %p182 = scmp.eq.s32.totalorder %s31, 0
      %p183 = por %p181, %p182
      %p184 = scmp.ne.s32.totalorder %s172, %s173
      %p185 = scmp.eq.s32.totalorder %s32, 1
      %p186 = por %p184, %p185
      %p188 = scmp.ne.s32.totalorder %s173, %s187
      %p189 = scmp.eq.s32.totalorder %s32, 0
      %p190 = por %p188, %p189
      %s192 = sadd.s32 %s191, 1
      %p195 = scmp.eq.s32.totalorder %s26, 1
      %p196 = scmp.ne.s32.totalorder %s191, %s193
      %p197 = scmp.eq.s32.totalorder %s26, 0
      %p198 = por %p196, %p197
      %p199 = scmp.ne.s32.totalorder %s191, %s193
      %p200 = scmp.eq.s32.totalorder %s31, 1
      %p201 = por %p199, %p200
      %p202 = scmp.ne.s32.totalorder %s193, %s194
      %p203 = scmp.eq.s32.totalorder %s31, 0
      %p204 = por %p202, %p203
      %p205 = scmp.ne.s32.totalorder %s193, %s194
      %p206 = scmp.eq.s32.totalorder %s32, 1
      %p207 = por %p205, %p206
      %p209 = scmp.ne.s32.totalorder %s194, %s208
      %p210 = scmp.eq.s32.totalorder %s32, 0
      %p211 = por %p209, %p210
      %s213 = sadd.s32 %s212, 1
      %p216 = scmp.eq.s32.totalorder %s26, 1
      %p217 = scmp.ne.s32.totalorder %s212, %s214
      %p218 = scmp.eq.s32.totalorder %s26, 0
      %p219 = por %p217, %p218
      %p220 = scmp.ne.s32.totalorder %s212, %s214
      %p221 = scmp.eq.s32.totalorder %s31, 1
      %p222 = por %p220, %p221
      %p223 = scmp.ne.s32.totalorder %s214, %s215
      %p224 = scmp.eq.s32.totalorder %s31, 0
      %p225 = por %p223, %p224
      %p226 = scmp.ne.s32.totalorder %s214, %s215
      %p227 = scmp.eq.s32.totalorder %s32, 1
      %p228 = por %p226, %p227
      %p230 = scmp.ne.s32.totalorder %s215, %s229
      %p231 = scmp.eq.s32.totalorder %s32, 0
      %p232 = por %p230, %p231
      %s234 = sadd.s32 %s233, 1
      %p237 = scmp.eq.s32.totalorder %s26, 1
      %p238 = scmp.ne.s32.totalorder %s233, %s235
      %p239 = scmp.eq.s32.totalorder %s26, 0
      %p240 = por %p238, %p239
      %p241 = scmp.ne.s32.totalorder %s233, %s235
      %p242 = scmp.eq.s32.totalorder %s31, 1
      %p243 = por %p241, %p242
      %p244 = scmp.ne.s32.totalorder %s235, %s236
      %p245 = scmp.eq.s32.totalorder %s31, 0
      %p246 = por %p244, %p245
      %p247 = scmp.ne.s32.totalorder %s235, %s236
      %p248 = scmp.eq.s32.totalorder %s32, 1
      %p249 = por %p247, %p248
      %p251 = scmp.ne.s32.totalorder %s236, %s250
      %p252 = scmp.eq.s32.totalorder %s32, 0
      %p253 = por %p251, %p252
      %s255 = sadd.s32 %s254, 1
      %p258 = scmp.eq.s32.totalorder %s26, 1
      %p259 = scmp.ne.s32.totalorder %s254, %s256
      %p260 = scmp.eq.s32.totalorder %s26, 0
      %p261 = por %p259, %p260
      %p262 = scmp.ne.s32.totalorder %s254, %s256
      %p263 = scmp.eq.s32.totalorder %s31, 1
      %p264 = por %p262, %p263
      %p265 = scmp.ne.s32.totalorder %s256, %s257
      %p266 = scmp.eq.s32.totalorder %s31, 0
      %p267 = por %p265, %p266
      %p268 = scmp.ne.s32.totalorder %s256, %s257
      %p269 = scmp.eq.s32.totalorder %s32, 1
      %p270 = por %p268, %p269
      %p272 = scmp.ne.s32.totalorder %s257, %s271
      %p273 = scmp.eq.s32.totalorder %s32, 0
      %p274 = por %p272, %p273
      %s276 = sadd.s32 %s275, 1
      %p279 = scmp.eq.s32.totalorder %s26, 1
      %p280 = scmp.ne.s32.totalorder %s275, %s277
      %p281 = scmp.eq.s32.totalorder %s26, 0
      %p282 = por %p280, %p281
      %p283 = scmp.ne.s32.totalorder %s275, %s277
      %p284 = scmp.eq.s32.totalorder %s31, 1
      %p285 = por %p283, %p284
      %p286 = scmp.ne.s32.totalorder %s277, %s278
      %p287 = scmp.eq.s32.totalorder %s31, 0
      %p288 = por %p286, %p287
      %p289 = scmp.ne.s32.totalorder %s277, %s278
      %p290 = scmp.eq.s32.totalorder %s32, 1
      %p291 = por %p289, %p290
      %p293 = scmp.ne.s32.totalorder %s278, %s292
      %p294 = scmp.eq.s32.totalorder %s32, 0
      %p295 = por %p293, %p294
      %s297 = sadd.s32 %s296, 1
      %p300 = scmp.eq.s32.totalorder %s26, 1
      %p301 = scmp.ne.s32.totalorder %s296, %s298
      %p302 = scmp.eq.s32.totalorder %s26, 0
      %p303 = por %p301, %p302
      %p304 = scmp.ne.s32.totalorder %s296, %s298
      %p305 = scmp.eq.s32.totalorder %s31, 1
      %p306 = por %p304, %p305
      %p307 = scmp.ne.s32.totalorder %s298, %s299
      %p308 = scmp.eq.s32.totalorder %s31, 0
      %p309 = por %p307, %p308
      %p310 = scmp.ne.s32.totalorder %s298, %s299
      %p311 = scmp.eq.s32.totalorder %s32, 1
      %p312 = por %p310, %p311
      %p314 = scmp.ne.s32.totalorder %s299, %s313
      %p315 = scmp.eq.s32.totalorder %s32, 0
      %p316 = por %p314, %p315
      %s318 = sadd.s32 %s317, 1
      %p321 = scmp.eq.s32.totalorder %s26, 1
      %p322 = scmp.ne.s32.totalorder %s317, %s319
      %p323 = scmp.eq.s32.totalorder %s26, 0
      %p324 = por %p322, %p323
      %p325 = scmp.ne.s32.totalorder %s317, %s319
      %p326 = scmp.eq.s32.totalorder %s31, 1
      %p327 = por %p325, %p326
      %p328 = scmp.ne.s32.totalorder %s319, %s320
      %p329 = scmp.eq.s32.totalorder %s31, 0
      %p330 = por %p328, %p329
      %p331 = scmp.ne.s32.totalorder %s319, %s320
      %p332 = scmp.eq.s32.totalorder %s32, 1
      %p333 = por %p331, %p332
      %p335 = scmp.ne.s32.totalorder %s320, %s334
      %p336 = scmp.eq.s32.totalorder %s32, 0
      %p337 = por %p335, %p336
      %s339 = sadd.s32 %s338, 1
      %p342 = scmp.eq.s32.totalorder %s26, 1
      %p343 = scmp.ne.s32.totalorder %s338, %s340
      %p344 = scmp.eq.s32.totalorder %s26, 0
      %p345 = por %p343, %p344
      %p346 = scmp.ne.s32.totalorder %s338, %s340
      %p347 = scmp.eq.s32.totalorder %s31, 1
      %p348 = por %p346, %p347
      %p349 = scmp.ne.s32.totalorder %s340, %s341
      %p350 = scmp.eq.s32.totalorder %s31, 0
      %p351 = por %p349, %p350
      %p352 = scmp.ne.s32.totalorder %s340, %s341
      %p353 = scmp.eq.s32.totalorder %s32, 1
      %p354 = por %p352, %p353
      %p356 = scmp.ne.s32.totalorder %s341, %s355
      %p357 = scmp.eq.s32.totalorder %s32, 0
      %p358 = por %p356, %p357
      %s360 = sadd.s32 %s359, 1
      %p363 = scmp.eq.s32.totalorder %s26, 1
      %p364 = scmp.ne.s32.totalorder %s359, %s361
      %p365 = scmp.eq.s32.totalorder %s26, 0
      %p366 = por %p364, %p365
      %p367 = scmp.ne.s32.totalorder %s359, %s361
      %p368 = scmp.eq.s32.totalorder %s31, 1
      %p369 = por %p367, %p368
      %p370 = scmp.ne.s32.totalorder %s361, %s362
      %p371 = scmp.eq.s32.totalorder %s31, 0
      %p372 = por %p370, %p371
      %p373 = scmp.ne.s32.totalorder %s361, %s362
      %p374 = scmp.eq.s32.totalorder %s32, 1
      %p375 = por %p373, %p374
      %p377 = scmp.ne.s32.totalorder %s362, %s376
      %p378 = scmp.eq.s32.totalorder %s32, 0
      %p379 = por %p377, %p378
      %s381 = sadd.s32 %s380, 1
      %p384 = scmp.eq.s32.totalorder %s26, 1
      %p385 = scmp.ne.s32.totalorder %s380, %s382
      %p386 = scmp.eq.s32.totalorder %s26, 0
      %p387 = por %p385, %p386
      %p388 = scmp.ne.s32.totalorder %s380, %s382
      %p389 = scmp.eq.s32.totalorder %s31, 1
      %p390 = por %p388, %p389
      %p391 = scmp.ne.s32.totalorder %s382, %s383
      %p392 = scmp.eq.s32.totalorder %s31, 0
      %p393 = por %p391, %p392
      %p394 = scmp.ne.s32.totalorder %s382, %s383
      %p395 = scmp.eq.s32.totalorder %s32, 1
      %p396 = por %p394, %p395
      %p398 = scmp.ne.s32.totalorder %s383, %s397
      %p399 = scmp.eq.s32.totalorder %s32, 0
      %p400 = por %p398, %p399
      %s401 = ssub.s32 %s26, %s33
      %p402 = scmp.eq.s32.totalorder %s401, 0
      %s404 = sadd.s32 %s403, 1
      %s405 = scalar_select %p402, %s403, %s404
      %p408 = pneg %p402
      %p409 = scmp.eq.s32.totalorder %s26, 1
      %p410 = por %p408, %p409
      %p411 = scmp.ne.s32.totalorder %s403, %s406
      %p412 = scmp.eq.s32.totalorder %s26, 0
      %p413 = por %p411, %p412
      %p414 = scmp.ne.s32.totalorder %s403, %s406
      %p415 = scmp.eq.s32.totalorder %s31, 1
      %p416 = por %p414, %p415
      %p417 = scmp.ne.s32.totalorder %s406, %s407
      %p418 = scmp.eq.s32.totalorder %s31, 0
      %p419 = por %p417, %p418
      %p420 = scmp.ne.s32.totalorder %s406, %s407
      %p421 = scmp.eq.s32.totalorder %s32, 1
      %p422 = por %p420, %p421
      %p424 = scmp.ne.s32.totalorder %s407, %s423
      %p425 = scmp.eq.s32.totalorder %s32, 0
      %p426 = por %p424, %p425
      %p427 = scmp.le.s32.totalorder 1, %s26
      %p428 = scmp.lt.s32.totalorder %s26, 3
      %p429 = pnand %p427, %p428
      %p430 = pneg %p429
      // Predicated region
      $region9: #{caasf_pallas.1} parent=5 // pred_check
        _
      $region10: #{caasf_pallas.1} parent=5 // pred_check_branch
        %432 = sbr.rel (%p429) target = $region12
      $region11: #{caasf_pallas.1} parent=5 // pred_region
        %s433 = ssub.s32 %s26, 1
        // Predicated region
        $region13: #{caasf_pallas.1} parent=11 // pred_check
          %p434 = pneg %p99
        $region14: #{caasf_pallas.1} parent=11 // pred_check_branch
          %436 = sbr.rel (%p434) target = $region16
        $region15: #{caasf_pallas.1} parent=11 // pred_region
          _
        $region16: #{caasf_pallas.1} parent=11 // pred_fallthru
          _
        // Predicated region
        $region17: #{caasf_pallas.1} parent=11 // pred_check
          %p437 = pneg %p120
        $region18: #{caasf_pallas.1} parent=11 // pred_check_branch
          %439 = sbr.rel (%p437) target = $region20
        $region19: #{caasf_pallas.1} parent=11 // pred_region
          _
        $region20: #{caasf_pallas.1} parent=11 // pred_fallthru
          _
        // Predicated region
        $region21: #{caasf_pallas.1} parent=11 // pred_check
          %p440 = pneg %p141
        $region22: #{caasf_pallas.1} parent=11 // pred_check_branch
          %442 = sbr.rel (%p440) target = $region24
        $region23: #{caasf_pallas.1} parent=11 // pred_region
          _
        $region24: #{caasf_pallas.1} parent=11 // pred_fallthru
          _
        // Predicated region
        $region25: #{caasf_pallas.1} parent=11 // pred_check
          %p443 = pneg %p162
        $region26: #{caasf_pallas.1} parent=11 // pred_check_branch
          %445 = sbr.rel (%p443) target = $region28
        $region27: #{caasf_pallas.1} parent=11 // pred_region
          _
        $region28: #{caasf_pallas.1} parent=11 // pred_fallthru
          _
        // Predicated region
        $region29: #{caasf_pallas.1} parent=11 // pred_check
          %p446 = pneg %p183
        $region30: #{caasf_pallas.1} parent=11 // pred_check_branch
          %448 = sbr.rel (%p446) target = $region32
        $region31: #{caasf_pallas.1} parent=11 // pred_region
          _
        $region32: #{caasf_pallas.1} parent=11 // pred_fallthru
          _
        // Predicated region
        $region33: #{caasf_pallas.1} parent=11 // pred_check
          %p449 = pneg %p204
        $region34: #{caasf_pallas.1} parent=11 // pred_check_branch
          %451 = sbr.rel (%p449) target = $region36
        $region35: #{caasf_pallas.1} parent=11 // pred_region
          _
        $region36: #{caasf_pallas.1} parent=11 // pred_fallthru
          _
        // Predicated region
        $region37: #{caasf_pallas.1} parent=11 // pred_check
          %p452 = pneg %p225
        $region38: #{caasf_pallas.1} parent=11 // pred_check_branch
          %454 = sbr.rel (%p452) target = $region40
        $region39: #{caasf_pallas.1} parent=11 // pred_region
          _
        $region40: #{caasf_pallas.1} parent=11 // pred_fallthru
          _
        // Predicated region
        $region41: #{caasf_pallas.1} parent=11 // pred_check
          %p455 = pneg %p246
        $region42: #{caasf_pallas.1} parent=11 // pred_check_branch
          %457 = sbr.rel (%p455) target = $region44
        $region43: #{caasf_pallas.1} parent=11 // pred_region
          _
        $region44: #{caasf_pallas.1} parent=11 // pred_fallthru
          _
        // Predicated region
        $region45: #{caasf_pallas.1} parent=11 // pred_check
          %p458 = pneg %p267
        $region46: #{caasf_pallas.1} parent=11 // pred_check_branch
          %460 = sbr.rel (%p458) target = $region48
        $region47: #{caasf_pallas.1} parent=11 // pred_region
          _
        $region48: #{caasf_pallas.1} parent=11 // pred_fallthru
          _
        // Predicated region
        $region49: #{caasf_pallas.1} parent=11 // pred_check
          %p461 = pneg %p288
        $region50: #{caasf_pallas.1} parent=11 // pred_check_branch
          %463 = sbr.rel (%p461) target = $region52
        $region51: #{caasf_pallas.1} parent=11 // pred_region
          _
        $region52: #{caasf_pallas.1} parent=11 // pred_fallthru
          _
        // Predicated region
        $region53: #{caasf_pallas.1} parent=11 // pred_check
          %p464 = pneg %p309
        $region54: #{caasf_pallas.1} parent=11 // pred_check_branch
          %466 = sbr.rel (%p464) target = $region56
        $region55: #{caasf_pallas.1} parent=11 // pred_region
          _
        $region56: #{caasf_pallas.1} parent=11 // pred_fallthru
          _
        // Predicated region
        $region57: #{caasf_pallas.1} parent=11 // pred_check
          %p467 = pneg %p330
        $region58: #{caasf_pallas.1} parent=11 // pred_check_branch
          %469 = sbr.rel (%p467) target = $region60
        $region59: #{caasf_pallas.1} parent=11 // pred_region
          _
        $region60: #{caasf_pallas.1} parent=11 // pred_fallthru
          _
        // Predicated region
        $region61: #{caasf_pallas.1} parent=11 // pred_check
          %p470 = pneg %p351
        $region62: #{caasf_pallas.1} parent=11 // pred_check_branch
          %472 = sbr.rel (%p470) target = $region64
        $region63: #{caasf_pallas.1} parent=11 // pred_region
          _
        $region64: #{caasf_pallas.1} parent=11 // pred_fallthru
          _
        // Predicated region
        $region65: #{caasf_pallas.1} parent=11 // pred_check
          %p473 = pneg %p372
        $region66: #{caasf_pallas.1} parent=11 // pred_check_branch
          %475 = sbr.rel (%p473) target = $region68
        $region67: #{caasf_pallas.1} parent=11 // pred_region
          _
        $region68: #{caasf_pallas.1} parent=11 // pred_fallthru
          _
        // Predicated region
        $region69: #{caasf_pallas.1} parent=11 // pred_check
          %p476 = pneg %p393
        $region70: #{caasf_pallas.1} parent=11 // pred_check_branch
          %478 = sbr.rel (%p476) target = $region72
        $region71: #{caasf_pallas.1} parent=11 // pred_region
          _
        $region72: #{caasf_pallas.1} parent=11 // pred_fallthru
          _
      $region12: #{caasf_pallas.1} parent=5 // pred_fallthru
        _
      %p479 = scmp.lt.s32.totalorder %s26, 2
      // Predicated region
      $region73: #{caasf_pallas.1} parent=5 // pred_check
        %p480 = pneg %p479
      $region74: #{caasf_pallas.1} parent=5 // pred_check_branch
        %482 = sbr.rel (%p480) target = $region76
      $region75: #{caasf_pallas.1} parent=5 // pred_region
        // Predicated region
        $region77: #{caasf_pallas.1} parent=75 // pred_check
          %p483 = pneg %p46
        $region78: #{caasf_pallas.1} parent=75 // pred_check_branch
          %485 = sbr.rel (%p483) target = $region80
        $region79: #{caasf_pallas.1} parent=75 // pred_region
          %p486 = scmp.lt.s32.totalorder %s26, 1
          %s487 = scalar_select %p486, %s26, 1
          %s488 = smul.addr %s487, 64
          %s489 = smul.addr %s488, 8
          %s490 = scalar_lea.vmem %s0, %s489
        $region80: #{caasf_pallas.1} parent=75 // pred_fallthru
          _
        // Predicated region
        $region81: #{caasf_pallas.1} parent=75 // pred_check
          %p491 = pneg %p72
        $region82: #{caasf_pallas.1} parent=75 // pred_check_branch
          %493 = sbr.rel (%p491) target = $region84
        $region83: #{caasf_pallas.1} parent=75 // pred_region
          %p494 = scmp.lt.s32.totalorder %s26, 1
          %s495 = scalar_select %p494, %s26, 1
          %s496 = smul.addr %s495, 32
          %s497 = smul.addr %s496, 8
          %s498 = scalar_lea.vmem %s1, %s497
        $region84: #{caasf_pallas.1} parent=75 // pred_fallthru
          _
      $region76: #{caasf_pallas.1} parent=5 // pred_fallthru
        _
      %p499 = scmp.le.s32.totalorder 1, %s26
      %p500 = scmp.lt.s32.totalorder %s26, 3
      %p501 = pnand %p499, %p500
      %p502 = pneg %p501
      // Predicated region
      $region85: #{caasf_pallas.1} parent=5 // pred_check
        _
      $region86: #{caasf_pallas.1} parent=5 // pred_check_branch
        %504 = sbr.rel (%p501) target = $region88
      $region87: #{caasf_pallas.1} parent=5 // pred_region
        %s505 = ssub.s32 %s26, 1
        %p506 = scmp.lt.s32.totalorder %s31, 1
        %s507 = scalar_select %p506, %s31, 1
        %s508 = smul.addr %s507, 64
        %s509 = smul.addr %s508, 8
        %s510 = scalar_lea.vmem %s0, %s509
        %p511 = pneg %p52
        %p512 = pneg %p49
        %p513 = scmp.lt.s32.totalorder %s31, 1
        %s514 = scalar_select %p513, %s31, 1
        %s515 = smul.addr %s514, 32
        %s516 = smul.addr %s515, 8
        %s517 = scalar_lea.vmem %s1, %s516
        %p518 = pneg %p78
        %p519 = pneg %p75
        %p520 = pneg %p99
        %p521 = pneg %p96
        %p522 = pneg %p120
        %p523 = pneg %p117
        %p524 = pneg %p141
        %p525 = pneg %p138
        %p526 = pneg %p162
        %p527 = pneg %p159
        %p528 = pneg %p183
        %p529 = pneg %p180
        %p530 = pneg %p204
        %p531 = pneg %p201
        %p532 = pneg %p225
        %p533 = pneg %p222
        %p534 = pneg %p246
        %p535 = pneg %p243
        %p536 = pneg %p267
        %p537 = pneg %p264
        %p538 = pneg %p288
        %p539 = pneg %p285
        %p540 = pneg %p309
        %p541 = pneg %p306
        %p542 = pneg %p330
        %p543 = pneg %p327
        %p544 = pneg %p351
        %p545 = pneg %p348
        %p546 = pneg %p372
        %p547 = pneg %p369
        %p548 = pneg %p393
        %p549 = pneg %p390
        %p550 = pneg %p419
        %p551 = pneg %p416
        %s552 = sand.u32 %s406, 1
        %s553 = scalar_lea.sflag [#allocation4], %s552
        %s554 = sand.u32 %s406, 1
        %s555 = smul.addr %s554, 256
        %s556 = scalar_lea.vmem [#allocation3], %s555
        %p557 = scmp.lt.s32.totalorder %s31, 1
        %s558 = scalar_select %p557, %s31, 1
        %s559 = smul.addr %s558, 64
        %s560 = smul.addr %s559, 8
        %s561 = scalar_lea.vmem %s0, %s560
        %p562 = scmp.lt.s32.totalorder %s31, 1
        %s563 = scalar_select %p562, %s31, 1
        %s564 = smul.addr %s563, 32
        %s565 = smul.addr %s564, 8
        %s566 = scalar_lea.vmem %s1, %s565
        %v567 = vld [vmem:[%s561] sm:$0xff]
        %v568 = vld [vmem:[%s561 + $0x8] sm:$0xff]
        %v569 = vld [vmem:[%s561 + $0x10] sm:$0xff]
        %v570 = vld [vmem:[%s561 + $0x18] sm:$0xff]
        %v571 = vld [vmem:[%s561 + $0x20] sm:$0xff]
        %v572 = vld [vmem:[%s561 + $0x28] sm:$0xff]
        %v573 = vld [vmem:[%s561 + $0x30] sm:$0xff]
        %v574 = vld [vmem:[%s561 + $0x38] sm:$0xff]
        %v575 = vld [vmem:[%s561 + $0x40] sm:$0xff]
        %v576 = vld [vmem:[%s561 + $0x48] sm:$0xff]
        %v577 = vld [vmem:[%s561 + $0x50] sm:$0xff]
        %v578 = vld [vmem:[%s561 + $0x58] sm:$0xff]
        %v579 = vld [vmem:[%s561 + $0x60] sm:$0xff]
        %v580 = vld [vmem:[%s561 + $0x68] sm:$0xff]
        %v581 = vld [vmem:[%s561 + $0x70] sm:$0xff]
        %v582 = vld [vmem:[%s561 + $0x78] sm:$0xff]
        %v583 = vld [vmem:[%s561 + $0x80] sm:$0xff]
        %v584 = vld [vmem:[%s561 + $0x88] sm:$0xff]
        %v585 = vld [vmem:[%s561 + $0x90] sm:$0xff]
        %v586 = vld [vmem:[%s561 + $0x98] sm:$0xff]
        %v587 = vld [vmem:[%s561 + $0xa0] sm:$0xff]
        %v588 = vld [vmem:[%s561 + $0xa8] sm:$0xff]
        %v589 = vld [vmem:[%s561 + $0xb0] sm:$0xff]
        %v590 = vld [vmem:[%s561 + $0xb8] sm:$0xff]
        %v591 = vld [vmem:[%s561 + $0xc0] sm:$0xff]
        %v592 = vld [vmem:[%s561 + $0xc8] sm:$0xff]
        %v593 = vld [vmem:[%s561 + $0xd0] sm:$0xff]
        %v594 = vld [vmem:[%s561 + $0xd8] sm:$0xff]
        %v595 = vld [vmem:[%s561 + $0xe0] sm:$0xff]
        %v596 = vld [vmem:[%s561 + $0xe8] sm:$0xff]
        %v597 = vld [vmem:[%s561 + $0xf0] sm:$0xff]
        %v598 = vld [vmem:[%s561 + $0xf8] sm:$0xff]
        %v599 = vld [vmem:[%s561 + $0x100] sm:$0xff]
        %v600 = vld [vmem:[%s561 + $0x108] sm:$0xff]
        %v601 = vld [vmem:[%s561 + $0x110] sm:$0xff]
        %v602 = vld [vmem:[%s561 + $0x118] sm:$0xff]
        %v603 = vld [vmem:[%s561 + $0x120] sm:$0xff]
        %v604 = vld [vmem:[%s561 + $0x128] sm:$0xff]
        %v605 = vld [vmem:[%s561 + $0x130] sm:$0xff]
        %v606 = vld [vmem:[%s561 + $0x138] sm:$0xff]
        %v607 = vld [vmem:[%s561 + $0x140] sm:$0xff]
        %v608 = vld [vmem:[%s561 + $0x148] sm:$0xff]
        %v609 = vld [vmem:[%s561 + $0x150] sm:$0xff]
        %v610 = vld [vmem:[%s561 + $0x158] sm:$0xff]
        %v611 = vld [vmem:[%s561 + $0x160] sm:$0xff]
        %v612 = vld [vmem:[%s561 + $0x168] sm:$0xff]
        %v613 = vld [vmem:[%s561 + $0x170] sm:$0xff]
        %v614 = vld [vmem:[%s561 + $0x178] sm:$0xff]
        %v615 = vld [vmem:[%s561 + $0x180] sm:$0xff]
        %v616 = vld [vmem:[%s561 + $0x188] sm:$0xff]
        %v617 = vld [vmem:[%s561 + $0x190] sm:$0xff]
        %v618 = vld [vmem:[%s561 + $0x198] sm:$0xff]
        %v619 = vld [vmem:[%s561 + $0x1a0] sm:$0xff]
        %v620 = vld [vmem:[%s561 + $0x1a8] sm:$0xff]
        %v621 = vld [vmem:[%s561 + $0x1b0] sm:$0xff]
        %v622 = vld [vmem:[%s561 + $0x1b8] sm:$0xff]
        %v623 = vld [vmem:[%s561 + $0x1c0] sm:$0xff]
        %v624 = vld [vmem:[%s561 + $0x1c8] sm:$0xff]
        %v625 = vld [vmem:[%s561 + $0x1d0] sm:$0xff]
        %v626 = vld [vmem:[%s561 + $0x1d8] sm:$0xff]
        %v627 = vld [vmem:[%s561 + $0x1e0] sm:$0xff]
        %v628 = vld [vmem:[%s561 + $0x1e8] sm:$0xff]
        %v629 = vld [vmem:[%s561 + $0x1f0] sm:$0xff]
        %v630 = vld [vmem:[%s561 + $0x1f8] sm:$0xff]
        %v631 = vld [vmem:[%s2] sm:$0xff]
        %v632 = vld [vmem:[%s2 + $0x8] sm:$0xff]
        %v633 = vld [vmem:[%s2 + $0x10] sm:$0xff]
        %v634 = vld [vmem:[%s2 + $0x18] sm:$0xff]
        %v635 = vld [vmem:[%s2 + $0x20] sm:$0xff]
        %v636 = vld [vmem:[%s2 + $0x28] sm:$0xff]
        %v637 = vld [vmem:[%s2 + $0x30] sm:$0xff]
        %v638 = vld [vmem:[%s2 + $0x38] sm:$0xff]
        %v639 = vld [vmem:[%s2 + $0x40] sm:$0xff]
        %v640 = vld [vmem:[%s2 + $0x48] sm:$0xff]
        %v641 = vld [vmem:[%s2 + $0x50] sm:$0xff]
        %v642 = vld [vmem:[%s2 + $0x58] sm:$0xff]
        %v643 = vld [vmem:[%s2 + $0x60] sm:$0xff]
        %v644 = vld [vmem:[%s2 + $0x68] sm:$0xff]
        %v645 = vld [vmem:[%s2 + $0x70] sm:$0xff]
        %v646 = vld [vmem:[%s2 + $0x78] sm:$0xff]
        %v647 = vld [vmem:[%s2 + $0x80] sm:$0xff]
        %v648 = vld [vmem:[%s2 + $0x88] sm:$0xff]
        %v649 = vld [vmem:[%s2 + $0x90] sm:$0xff]
        %v650 = vld [vmem:[%s2 + $0x98] sm:$0xff]
        %v651 = vld [vmem:[%s2 + $0xa0] sm:$0xff]
        %v652 = vld [vmem:[%s2 + $0xa8] sm:$0xff]
        %v653 = vld [vmem:[%s2 + $0xb0] sm:$0xff]
        %v654 = vld [vmem:[%s2 + $0xb8] sm:$0xff]
        %v655 = vld [vmem:[%s2 + $0xc0] sm:$0xff]
        %v656 = vld [vmem:[%s2 + $0xc8] sm:$0xff]
        %v657 = vld [vmem:[%s2 + $0xd0] sm:$0xff]
        %v658 = vld [vmem:[%s2 + $0xd8] sm:$0xff]
        %v659 = vld [vmem:[%s2 + $0xe0] sm:$0xff]
        %v660 = vld [vmem:[%s2 + $0xe8] sm:$0xff]
        %v661 = vld [vmem:[%s2 + $0xf0] sm:$0xff]
        %v662 = vld [vmem:[%s2 + $0xf8] sm:$0xff]
        %663 = vmatprep.subr.mxu0 0.0
        %664 = vmatpush1.msra.mxu0 %v646
        %665 = vmatprep.subr.mxu0 0.0
        %666 = vmatpush1.msra.mxu0 %v645
        %667 = vmatprep.subr.mxu0 0.0
        %668 = vmatpush1.msra.mxu0 %v644
        %669 = vmatprep.subr.mxu0 0.0
        %670 = vmatpush1.msra.mxu0 %v643
        %671 = vmatprep.subr.mxu0 0.0
        %672 = vmatpush1.msra.mxu0 %v642
        %673 = vmatprep.subr.mxu0 0.0
        %674 = vmatpush1.msra.mxu0 %v641
        %675 = vmatprep.subr.mxu0 0.0
        %676 = vmatpush1.msra.mxu0 %v640
        %677 = vmatprep.subr.mxu0 0.0
        %678 = vmatpush1.msra.mxu0 %v639
        %679 = vmatprep.subr.mxu0 0.0
        %680 = vmatpush1.msra.mxu0 %v638
        %681 = vmatprep.subr.mxu0 0.0
        %682 = vmatpush1.msra.mxu0 %v637
        %683 = vmatprep.subr.mxu0 0.0
        %684 = vmatpush1.msra.mxu0 %v636
        %685 = vmatprep.subr.mxu0 0.0
        %686 = vmatpush1.msra.mxu0 %v635
        %687 = vmatprep.subr.mxu0 0.0
        %688 = vmatpush1.msra.mxu0 %v634
        %689 = vmatprep.subr.mxu0 0.0
        %690 = vmatpush1.msra.mxu0 %v633
        %691 = vmatprep.subr.mxu0 0.0
        %692 = vmatpush1.msra.mxu0 %v632
        %693 = vmatprep.subr.mxu0 0.0
        %694 = vmatpush1.msra.mxu0 %v631
        %695 = vmatprep.subr.mxu0 0.0
        %696 = vmatpush2.msra.mxu0 %v662
        %697 = vmatprep.subr.mxu0 0.0
        %698 = vmatpush2.msra.mxu0 %v661
        %699 = vmatprep.subr.mxu0 0.0
        %700 = vmatpush2.msra.mxu0 %v660
        %701 = vmatprep.subr.mxu0 0.0
        %702 = vmatpush2.msra.mxu0 %v659
        %703 = vmatprep.subr.mxu0 0.0
        %704 = vmatpush2.msra.mxu0 %v658
        %705 = vmatprep.subr.mxu0 0.0
        %706 = vmatpush2.msra.mxu0 %v657
        %707 = vmatprep.subr.mxu0 0.0
        %708 = vmatpush2.msra.mxu0 %v656
        %709 = vmatprep.subr.mxu0 0.0
        %710 = vmatpush2.msra.mxu0 %v655
        %711 = vmatprep.subr.mxu0 0.0
        %712 = vmatpush2.msra.mxu0 %v654
        %713 = vmatprep.subr.mxu0 0.0
        %714 = vmatpush2.msra.mxu0 %v653
        %715 = vmatprep.subr.mxu0 0.0
        %716 = vmatpush2.msra.mxu0 %v652
        %717 = vmatprep.subr.mxu0 0.0
        %718 = vmatpush2.msra.mxu0 %v651
        %719 = vmatprep.subr.mxu0 0.0
        %720 = vmatpush2.msra.mxu0 %v650
        %721 = vmatprep.subr.mxu0 0.0
        %722 = vmatpush2.msra.mxu0 %v649
        %723 = vmatprep.subr.mxu0 0.0
        %724 = vmatpush2.msra.mxu0 %v648
        %725 = vmatprep.subr.mxu0 0.0
        %726 = vmatpush2.msra.mxu0 %v647
        %727 = vmatprep.mubr.f32.mxu0 %v568
        %728 = vmatmul.mubr.f32.gmra.mxu0 %v567
        %v729 = vpop.f32.mrf.mxu0
        %v730 = vadd.f32 0.0, %v729
        %v731 = vpop.f32.mrf.mxu0
        %732 = vmatprep.mubr.f32.mxu0 %v570
        %733 = vmatmul.mubr.f32.gmra.mxu0 %v569
        %v734 = vpop.f32.mrf.mxu0
        %v735 = vadd.f32 0.0, %v734
        %v736 = vpop.f32.mrf.mxu0
        %737 = vmatprep.mubr.f32.mxu0 %v572
        %738 = vmatmul.mubr.f32.gmra.mxu0 %v571
        %v739 = vpop.f32.mrf.mxu0
        %v740 = vadd.f32 0.0, %v739
        %v741 = vpop.f32.mrf.mxu0
        %742 = vmatprep.mubr.f32.mxu0 %v574
        %743 = vmatmul.mubr.f32.gmra.mxu0 %v573
        %v744 = vpop.f32.mrf.mxu0
        %v745 = vadd.f32 0.0, %v744
        %v746 = vpop.f32.mrf.mxu0
        %747 = vmatprep.mubr.f32.mxu0 %v576
        %748 = vmatmul.mubr.f32.gmra.mxu0 %v575
        %v749 = vpop.f32.mrf.mxu0
        %v750 = vadd.f32 0.0, %v749
        %v751 = vpop.f32.mrf.mxu0
        %752 = vmatprep.mubr.f32.mxu0 %v578
        %753 = vmatmul.mubr.f32.gmra.mxu0 %v577
        %v754 = vpop.f32.mrf.mxu0
        %v755 = vadd.f32 0.0, %v754
        %v756 = vpop.f32.mrf.mxu0
        %757 = vmatprep.mubr.f32.mxu0 %v580
        %758 = vmatmul.mubr.f32.gmra.mxu0 %v579
        %v759 = vpop.f32.mrf.mxu0
        %v760 = vadd.f32 0.0, %v759
        %v761 = vpop.f32.mrf.mxu0
        %762 = vmatprep.mubr.f32.mxu0 %v582
        %763 = vmatmul.mubr.f32.gmra.mxu0 %v581
        %v764 = vpop.f32.mrf.mxu0
        %v765 = vadd.f32 0.0, %v764
        %v766 = vpop.f32.mrf.mxu0
        %767 = vmatprep.mubr.f32.mxu0 %v584
        %768 = vmatmul.mubr.f32.gmra.mxu0 %v583
        %v769 = vpop.f32.mrf.mxu0
        %v770 = vadd.f32 0.0, %v769
        %v771 = vpop.f32.mrf.mxu0
        %772 = vmatprep.mubr.f32.mxu0 %v586
        %773 = vmatmul.mubr.f32.gmra.mxu0 %v585
        %v774 = vpop.f32.mrf.mxu0
        %v775 = vadd.f32 0.0, %v774
        %v776 = vpop.f32.mrf.mxu0
        %777 = vmatprep.mubr.f32.mxu0 %v588
        %778 = vmatmul.mubr.f32.gmra.mxu0 %v587
        %v779 = vpop.f32.mrf.mxu0
        %v780 = vadd.f32 0.0, %v779
        %v781 = vpop.f32.mrf.mxu0
        %782 = vmatprep.mubr.f32.mxu0 %v590
        %783 = vmatmul.mubr.f32.gmra.mxu0 %v589
        %v784 = vpop.f32.mrf.mxu0
        %v785 = vadd.f32 0.0, %v784
        %v786 = vpop.f32.mrf.mxu0
        %787 = vmatprep.mubr.f32.mxu0 %v592
        %788 = vmatmul.mubr.f32.gmra.mxu0 %v591
        %v789 = vpop.f32.mrf.mxu0
        %v790 = vadd.f32 0.0, %v789
        %v791 = vpop.f32.mrf.mxu0
        %792 = vmatprep.mubr.f32.mxu0 %v594
        %793 = vmatmul.mubr.f32.gmra.mxu0 %v593
        %v794 = vpop.f32.mrf.mxu0
        %v795 = vadd.f32 0.0, %v794
        %v796 = vpop.f32.mrf.mxu0
        %797 = vmatprep.mubr.f32.mxu0 %v596
        %798 = vmatmul.mubr.f32.gmra.mxu0 %v595
        %v799 = vpop.f32.mrf.mxu0
        %v800 = vadd.f32 0.0, %v799
        %v801 = vpop.f32.mrf.mxu0
        %802 = vmatprep.mubr.f32.mxu0 %v598
        %803 = vmatmul.mubr.f32.gmra.mxu0 %v597
        %v804 = vpop.f32.mrf.mxu0
        %v805 = vadd.f32 0.0, %v804
        %v806 = vpop.f32.mrf.mxu0
        %807 = vmatprep.mubr.f32.mxu0 %v600
        %808 = vmatmul.mubr.f32.gmra.mxu0 %v599
        %v809 = vpop.f32.mrf.mxu0
        %v810 = vadd.f32 0.0, %v809
        %v811 = vpop.f32.mrf.mxu0
        %812 = vmatprep.mubr.f32.mxu0 %v602
        %813 = vmatmul.mubr.f32.gmra.mxu0 %v601
        %v814 = vpop.f32.mrf.mxu0
        %v815 = vadd.f32 0.0, %v814
        %v816 = vpop.f32.mrf.mxu0
        %817 = vmatprep.mubr.f32.mxu0 %v604
        %818 = vmatmul.mubr.f32.gmra.mxu0 %v603
        %v819 = vpop.f32.mrf.mxu0
        %v820 = vadd.f32 0.0, %v819
        %v821 = vpop.f32.mrf.mxu0
        %822 = vmatprep.mubr.f32.mxu0 %v606
        %823 = vmatmul.mubr.f32.gmra.mxu0 %v605
        %v824 = vpop.f32.mrf.mxu0
        %v825 = vadd.f32 0.0, %v824
        %v826 = vpop.f32.mrf.mxu0
        %827 = vmatprep.mubr.f32.mxu0 %v608
        %828 = vmatmul.mubr.f32.gmra.mxu0 %v607
        %v829 = vpop.f32.mrf.mxu0
        %v830 = vadd.f32 0.0, %v829
        %v831 = vpop.f32.mrf.mxu0
        %832 = vmatprep.mubr.f32.mxu0 %v610
        %833 = vmatmul.mubr.f32.gmra.mxu0 %v609
        %v834 = vpop.f32.mrf.mxu0
        %v835 = vadd.f32 0.0, %v834
        %v836 = vpop.f32.mrf.mxu0
        %837 = vmatprep.mubr.f32.mxu0 %v612
        %838 = vmatmul.mubr.f32.gmra.mxu0 %v611
        %v839 = vpop.f32.mrf.mxu0
        %v840 = vadd.f32 0.0, %v839
        %v841 = vpop.f32.mrf.mxu0
        %842 = vmatprep.mubr.f32.mxu0 %v614
        %843 = vmatmul.mubr.f32.gmra.mxu0 %v613
        %v844 = vpop.f32.mrf.mxu0
        %v845 = vadd.f32 0.0, %v844
        %v846 = vpop.f32.mrf.mxu0
        %847 = vmatprep.mubr.f32.mxu0 %v616
        %848 = vmatmul.mubr.f32.gmra.mxu0 %v615
        %v849 = vpop.f32.mrf.mxu0
        %v850 = vadd.f32 0.0, %v849
        %v851 = vpop.f32.mrf.mxu0
        %852 = vmatprep.mubr.f32.mxu0 %v618
        %853 = vmatmul.mubr.f32.gmra.mxu0 %v617
        %v854 = vpop.f32.mrf.mxu0
        %v855 = vadd.f32 0.0, %v854
        %v856 = vpop.f32.mrf.mxu0
        %857 = vmatprep.mubr.f32.mxu0 %v620
        %858 = vmatmul.mubr.f32.gmra.mxu0 %v619
        %v859 = vpop.f32.mrf.mxu0
        %v860 = vadd.f32 0.0, %v859
        %v861 = vpop.f32.mrf.mxu0
        %862 = vmatprep.mubr.f32.mxu0 %v622
        %863 = vmatmul.mubr.f32.gmra.mxu0 %v621
        %v864 = vpop.f32.mrf.mxu0
        %v865 = vadd.f32 0.0, %v864
        %v866 = vpop.f32.mrf.mxu0
        %867 = vmatprep.mubr.f32.mxu0 %v624
        %868 = vmatmul.mubr.f32.gmra.mxu0 %v623
        %v869 = vpop.f32.mrf.mxu0
        %v870 = vadd.f32 0.0, %v869
        %v871 = vpop.f32.mrf.mxu0
        %872 = vmatprep.mubr.f32.mxu0 %v626
        %873 = vmatmul.mubr.f32.gmra.mxu0 %v625
        %v874 = vpop.f32.mrf.mxu0
        %v875 = vadd.f32 0.0, %v874
        %v876 = vpop.f32.mrf.mxu0
        %877 = vmatprep.mubr.f32.mxu0 %v628
        %878 = vmatmul.mubr.f32.gmra.mxu0 %v627
        %v879 = vpop.f32.mrf.mxu0
        %v880 = vadd.f32 0.0, %v879
        %v881 = vpop.f32.mrf.mxu0
        %882 = vmatprep.mubr.f32.mxu0 %v630
        %883 = vmatmul.mubr.f32.gmra.mxu0 %v629
        %v884 = vpop.f32.mrf.mxu0
        %v885 = vadd.f32 0.0, %v884
        %v886 = vpop.f32.mrf.mxu0
        %887 = vdwg.mxu0
        %v888 = vld [vmem:[%s3] sm:$0x1]
        %v890 = vlaneseq
        %v891 = vshrl.u32 %v890, 7
        %v892 = vsub.s32 0, %v891
        %v893 = vrot.slane %v888, %v892
        %v895 = vmul.f32 %v730, %v893
        %v896 = vmul.f32 %v735, %v893
        %v897 = vmul.f32 %v740, %v893
        %v898 = vmul.f32 %v745, %v893
        %v899 = vmul.f32 %v750, %v893
        %v900 = vmul.f32 %v755, %v893
        %v901 = vmul.f32 %v760, %v893
        %v902 = vmul.f32 %v765, %v893
        %v903 = vmul.f32 %v770, %v893
        %v904 = vmul.f32 %v775, %v893
        %v905 = vmul.f32 %v780, %v893
        %v906 = vmul.f32 %v785, %v893
        %v907 = vmul.f32 %v790, %v893
        %v908 = vmul.f32 %v795, %v893
        %v909 = vmul.f32 %v800, %v893
        %v910 = vmul.f32 %v805, %v893
        %v911 = vmul.f32 %v810, %v893
        %v912 = vmul.f32 %v815, %v893
        %v913 = vmul.f32 %v820, %v893
        %v914 = vmul.f32 %v825, %v893
        %v915 = vmul.f32 %v830, %v893
        %v916 = vmul.f32 %v835, %v893
        %v917 = vmul.f32 %v840, %v893
        %v918 = vmul.f32 %v845, %v893
        %v919 = vmul.f32 %v850, %v893
        %v920 = vmul.f32 %v855, %v893
        %v921 = vmul.f32 %v860, %v893
        %v922 = vmul.f32 %v865, %v893
        %v923 = vmul.f32 %v870, %v893
        %v924 = vmul.f32 %v875, %v893
        %v925 = vmul.f32 %v880, %v893
        %v926 = vmul.f32 %v885, %v893
        %v927 = vld [vmem:[%s4] sm:$0x1]
        %v929 = vlaneseq
        %v930 = vshrl.u32 %v929, 7
        %v931 = vsub.s32 0, %v930
        %v932 = vrot.slane %v927, %v931
        %v934 = vadd.f32 %v895, %v932
        %v935 = vadd.f32 %v896, %v932
        %v936 = vadd.f32 %v897, %v932
        %v937 = vadd.f32 %v898, %v932
        %v938 = vadd.f32 %v899, %v932
        %v939 = vadd.f32 %v900, %v932
        %v940 = vadd.f32 %v901, %v932
        %v941 = vadd.f32 %v902, %v932
        %v942 = vadd.f32 %v903, %v932
        %v943 = vadd.f32 %v904, %v932
        %v944 = vadd.f32 %v905, %v932
        %v945 = vadd.f32 %v906, %v932
        %v946 = vadd.f32 %v907, %v932
        %v947 = vadd.f32 %v908, %v932
        %v948 = vadd.f32 %v909, %v932
        %v949 = vadd.f32 %v910, %v932
        %v950 = vadd.f32 %v911, %v932
        %v951 = vadd.f32 %v912, %v932
        %v952 = vadd.f32 %v913, %v932
        %v953 = vadd.f32 %v914, %v932
        %v954 = vadd.f32 %v915, %v932
        %v955 = vadd.f32 %v916, %v932
        %v956 = vadd.f32 %v917, %v932
        %v957 = vadd.f32 %v918, %v932
        %v958 = vadd.f32 %v919, %v932
        %v959 = vadd.f32 %v920, %v932
        %v960 = vadd.f32 %v921, %v932
        %v961 = vadd.f32 %v922, %v932
        %v962 = vadd.f32 %v923, %v932
        %v963 = vadd.f32 %v924, %v932
        %v964 = vadd.f32 %v925, %v932
        %v965 = vadd.f32 %v926, %v932
        %v966 = vxor.u32 %v934, 2147483648
        %v967 = vxor.u32 %v935, 2147483648
        %v968 = vxor.u32 %v936, 2147483648
        %v969 = vxor.u32 %v937, 2147483648
        %v970 = vxor.u32 %v938, 2147483648
        %v971 = vxor.u32 %v939, 2147483648
        %v972 = vxor.u32 %v940, 2147483648
        %v973 = vxor.u32 %v941, 2147483648
        %v974 = vxor.u32 %v942, 2147483648
        %v975 = vxor.u32 %v943, 2147483648
        %v976 = vxor.u32 %v944, 2147483648
        %v977 = vxor.u32 %v945, 2147483648
        %v978 = vxor.u32 %v946, 2147483648
        %v979 = vxor.u32 %v947, 2147483648
        %v980 = vxor.u32 %v948, 2147483648
        %v981 = vxor.u32 %v949, 2147483648
        %v982 = vxor.u32 %v950, 2147483648
        %v983 = vxor.u32 %v951, 2147483648
        %v984 = vxor.u32 %v952, 2147483648
        %v985 = vxor.u32 %v953, 2147483648
        %v986 = vxor.u32 %v954, 2147483648
        %v987 = vxor.u32 %v955, 2147483648
        %v988 = vxor.u32 %v956, 2147483648
        %v989 = vxor.u32 %v957, 2147483648
        %v990 = vxor.u32 %v958, 2147483648
        %v991 = vxor.u32 %v959, 2147483648
        %v992 = vxor.u32 %v960, 2147483648
        %v993 = vxor.u32 %v961, 2147483648
        %v994 = vxor.u32 %v962, 2147483648
        %v995 = vxor.u32 %v963, 2147483648
        %v996 = vxor.u32 %v964, 2147483648
        %v997 = vxor.u32 %v965, 2147483648
        %v998 = vmul.f32 %v966, 1.442695
        %v999 = vpow.pop %v998
        %v1000 = vmul.f32 %v967, 1.442695
        %v1001 = vpow.pop %v1000
        %v1002 = vmul.f32 %v968, 1.442695
        %v1003 = vpow.pop %v1002
        %v1004 = vmul.f32 %v969, 1.442695
        %v1005 = vpow.pop %v1004
        %v1006 = vmul.f32 %v970, 1.442695
        %v1007 = vpow.pop %v1006
        %v1008 = vmul.f32 %v971, 1.442695
        %v1009 = vpow.pop %v1008
        %v1010 = vmul.f32 %v972, 1.442695
        %v1011 = vpow.pop %v1010
        %v1012 = vmul.f32 %v973, 1.442695
        %v1013 = vpow.pop %v1012
        %v1014 = vmul.f32 %v974, 1.442695
        %v1015 = vpow.pop %v1014
        %v1016 = vmul.f32 %v975, 1.442695
        %v1017 = vpow.pop %v1016
        %v1018 = vmul.f32 %v976, 1.442695
        %v1019 = vpow.pop %v1018
        %v1020 = vmul.f32 %v977, 1.442695
        %v1021 = vpow.pop %v1020
        %v1022 = vmul.f32 %v978, 1.442695
        %v1023 = vpow.pop %v1022
        %v1024 = vmul.f32 %v979, 1.442695
        %v1025 = vpow.pop %v1024
        %v1026 = vmul.f32 %v980, 1.442695
        %v1027 = vpow.pop %v1026
        %v1028 = vmul.f32 %v981, 1.442695
        %v1029 = vpow.pop %v1028
        %v1030 = vmul.f32 %v982, 1.442695
        %v1031 = vpow.pop %v1030
        %v1032 = vmul.f32 %v983, 1.442695
        %v1033 = vpow.pop %v1032
        %v1034 = vmul.f32 %v984, 1.442695
        %v1035 = vpow.pop %v1034
        %v1036 = vmul.f32 %v985, 1.442695
        %v1037 = vpow.pop %v1036
        %v1038 = vmul.f32 %v986, 1.442695
        %v1039 = vpow.pop %v1038
        %v1040 = vmul.f32 %v987, 1.442695
        %v1041 = vpow.pop %v1040
        %v1042 = vmul.f32 %v988, 1.442695
        %v1043 = vpow.pop %v1042
        %v1044 = vmul.f32 %v989, 1.442695
        %v1045 = vpow.pop %v1044
        %v1046 = vmul.f32 %v990, 1.442695
        %v1047 = vpow.pop %v1046
        %v1048 = vmul.f32 %v991, 1.442695
        %v1049 = vpow.pop %v1048
        %v1050 = vmul.f32 %v992, 1.442695
        %v1051 = vpow.pop %v1050
        %v1052 = vmul.f32 %v993, 1.442695
        %v1053 = vpow.pop %v1052
        %v1054 = vmul.f32 %v994, 1.442695
        %v1055 = vpow.pop %v1054
        %v1056 = vmul.f32 %v995, 1.442695
        %v1057 = vpow.pop %v1056
        %v1058 = vmul.f32 %v996, 1.442695
        %v1059 = vpow.pop %v1058
        %v1060 = vmul.f32 %v997, 1.442695
        %v1061 = vpow.pop %v1060
        %v1062 = vadd.f32 %v999, 1.0
        %v1063 = vadd.f32 %v1001, 1.0
        %v1064 = vadd.f32 %v1003, 1.0
        %v1065 = vadd.f32 %v1005, 1.0
        %v1066 = vadd.f32 %v1007, 1.0
        %v1067 = vadd.f32 %v1009, 1.0
        %v1068 = vadd.f32 %v1011, 1.0
        %v1069 = vadd.f32 %v1013, 1.0
        %v1070 = vadd.f32 %v1015, 1.0
        %v1071 = vadd.f32 %v1017, 1.0
        %v1072 = vadd.f32 %v1019, 1.0
        %v1073 = vadd.f32 %v1021, 1.0
        %v1074 = vadd.f32 %v1023, 1.0
        %v1075 = vadd.f32 %v1025, 1.0
        %v1076 = vadd.f32 %v1027, 1.0
        %v1077 = vadd.f32 %v1029, 1.0
        %v1078 = vadd.f32 %v1031, 1.0
        %v1079 = vadd.f32 %v1033, 1.0
        %v1080 = vadd.f32 %v1035, 1.0
        %v1081 = vadd.f32 %v1037, 1.0
        %v1082 = vadd.f32 %v1039, 1.0
        %v1083 = vadd.f32 %v1041, 1.0
        %v1084 = vadd.f32 %v1043, 1.0
        %v1085 = vadd.f32 %v1045, 1.0
        %v1086 = vadd.f32 %v1047, 1.0
        %v1087 = vadd.f32 %v1049, 1.0
        %v1088 = vadd.f32 %v1051, 1.0
        %v1089 = vadd.f32 %v1053, 1.0
        %v1090 = vadd.f32 %v1055, 1.0
        %v1091 = vadd.f32 %v1057, 1.0
        %v1092 = vadd.f32 %v1059, 1.0
        %v1093 = vadd.f32 %v1061, 1.0
        %v1094 = vrcp.pop %v1062
        %v1095 = vmul.f32 1.0, %v1094
        %v1096 = vrcp.pop %v1063
        %v1097 = vmul.f32 1.0, %v1096
        %v1098 = vrcp.pop %v1064
        %v1099 = vmul.f32 1.0, %v1098
        %v1100 = vrcp.pop %v1065
        %v1101 = vmul.f32 1.0, %v1100
        %v1102 = vrcp.pop %v1066
        %v1103 = vmul.f32 1.0, %v1102
        %v1104 = vrcp.pop %v1067
        %v1105 = vmul.f32 1.0, %v1104
        %v1106 = vrcp.pop %v1068
        %v1107 = vmul.f32 1.0, %v1106
        %v1108 = vrcp.pop %v1069
        %v1109 = vmul.f32 1.0, %v1108
        %v1110 = vrcp.pop %v1070
        %v1111 = vmul.f32 1.0, %v1110
        %v1112 = vrcp.pop %v1071
        %v1113 = vmul.f32 1.0, %v1112
        %v1114 = vrcp.pop %v1072
        %v1115 = vmul.f32 1.0, %v1114
        %v1116 = vrcp.pop %v1073
        %v1117 = vmul.f32 1.0, %v1116
        %v1118 = vrcp.pop %v1074
        %v1119 = vmul.f32 1.0, %v1118
        %v1120 = vrcp.pop %v1075
        %v1121 = vmul.f32 1.0, %v1120
        %v1122 = vrcp.pop %v1076
        %v1123 = vmul.f32 1.0, %v1122
        %v1124 = vrcp.pop %v1077
        %v1125 = vmul.f32 1.0, %v1124
        %v1126 = vrcp.pop %v1078
        %v1127 = vmul.f32 1.0, %v1126
        %v1128 = vrcp.pop %v1079
        %v1129 = vmul.f32 1.0, %v1128
        %v1130 = vrcp.pop %v1080
        %v1131 = vmul.f32 1.0, %v1130
        %v1132 = vrcp.pop %v1081
        %v1133 = vmul.f32 1.0, %v1132
        %v1134 = vrcp.pop %v1082
        %v1135 = vmul.f32 1.0, %v1134
        %v1136 = vrcp.pop %v1083
        %v1137 = vmul.f32 1.0, %v1136
        %v1138 = vrcp.pop %v1084
        %v1139 = vmul.f32 1.0, %v1138
        %v1140 = vrcp.pop %v1085
        %v1141 = vmul.f32 1.0, %v1140
        %v1142 = vrcp.pop %v1086
        %v1143 = vmul.f32 1.0, %v1142
        %v1144 = vrcp.pop %v1087
        %v1145 = vmul.f32 1.0, %v1144
        %v1146 = vrcp.pop %v1088
        %v1147 = vmul.f32 1.0, %v1146
        %v1148 = vrcp.pop %v1089
        %v1149 = vmul.f32 1.0, %v1148
        %v1150 = vrcp.pop %v1090
        %v1151 = vmul.f32 1.0, %v1150
        %v1152 = vrcp.pop %v1091
        %v1153 = vmul.f32 1.0, %v1152
        %v1154 = vrcp.pop %v1092
        %v1155 = vmul.f32 1.0, %v1154
        %v1156 = vrcp.pop %v1093
        %v1157 = vmul.f32 1.0, %v1156
        %v1158 = vmul.f32 %v934, %v1095
        %v1159 = vmul.f32 %v935, %v1097
        %v1160 = vmul.f32 %v936, %v1099
        %v1161 = vmul.f32 %v937, %v1101
        %v1162 = vmul.f32 %v938, %v1103
        %v1163 = vmul.f32 %v939, %v1105
        %v1164 = vmul.f32 %v940, %v1107
        %v1165 = vmul.f32 %v941, %v1109
        %v1166 = vmul.f32 %v942, %v1111
        %v1167 = vmul.f32 %v943, %v1113
        %v1168 = vmul.f32 %v944, %v1115
        %v1169 = vmul.f32 %v945, %v1117
        %v1170 = vmul.f32 %v946, %v1119
        %v1171 = vmul.f32 %v947, %v1121
        %v1172 = vmul.f32 %v948, %v1123
        %v1173 = vmul.f32 %v949, %v1125
        %v1174 = vmul.f32 %v950, %v1127
        %v1175 = vmul.f32 %v951, %v1129
        %v1176 = vmul.f32 %v952, %v1131
        %v1177 = vmul.f32 %v953, %v1133
        %v1178 = vmul.f32 %v954, %v1135
        %v1179 = vmul.f32 %v955, %v1137
        %v1180 = vmul.f32 %v956, %v1139
        %v1181 = vmul.f32 %v957, %v1141
        %v1182 = vmul.f32 %v958, %v1143
        %v1183 = vmul.f32 %v959, %v1145
        %v1184 = vmul.f32 %v960, %v1147
        %v1185 = vmul.f32 %v961, %v1149
        %v1186 = vmul.f32 %v962, %v1151
        %v1187 = vmul.f32 %v963, %v1153
        %v1188 = vmul.f32 %v964, %v1155
        %v1189 = vmul.f32 %v965, %v1157
        %v1190 = vld [vmem:[%s566] sm:$0xff]
        %v1191 = vld [vmem:[%s566 + $0x8] sm:$0xff]
        %v1192 = vld [vmem:[%s566 + $0x10] sm:$0xff]
        %v1193 = vld [vmem:[%s566 + $0x18] sm:$0xff]
        %v1194 = vld [vmem:[%s566 + $0x20] sm:$0xff]
        %v1195 = vld [vmem:[%s566 + $0x28] sm:$0xff]
        %v1196 = vld [vmem:[%s566 + $0x30] sm:$0xff]
        %v1197 = vld [vmem:[%s566 + $0x38] sm:$0xff]
        %v1198 = vld [vmem:[%s566 + $0x40] sm:$0xff]
        %v1199 = vld [vmem:[%s566 + $0x48] sm:$0xff]
        %v1200 = vld [vmem:[%s566 + $0x50] sm:$0xff]
        %v1201 = vld [vmem:[%s566 + $0x58] sm:$0xff]
        %v1202 = vld [vmem:[%s566 + $0x60] sm:$0xff]
        %v1203 = vld [vmem:[%s566 + $0x68] sm:$0xff]
        %v1204 = vld [vmem:[%s566 + $0x70] sm:$0xff]
        %v1205 = vld [vmem:[%s566 + $0x78] sm:$0xff]
        %v1206 = vld [vmem:[%s566 + $0x80] sm:$0xff]
        %v1207 = vld [vmem:[%s566 + $0x88] sm:$0xff]
        %v1208 = vld [vmem:[%s566 + $0x90] sm:$0xff]
        %v1209 = vld [vmem:[%s566 + $0x98] sm:$0xff]
        %v1210 = vld [vmem:[%s566 + $0xa0] sm:$0xff]
        %v1211 = vld [vmem:[%s566 + $0xa8] sm:$0xff]
        %v1212 = vld [vmem:[%s566 + $0xb0] sm:$0xff]
        %v1213 = vld [vmem:[%s566 + $0xb8] sm:$0xff]
        %v1214 = vld [vmem:[%s566 + $0xc0] sm:$0xff]
        %v1215 = vld [vmem:[%s566 + $0xc8] sm:$0xff]
        %v1216 = vld [vmem:[%s566 + $0xd0] sm:$0xff]
        %v1217 = vld [vmem:[%s566 + $0xd8] sm:$0xff]
        %v1218 = vld [vmem:[%s566 + $0xe0] sm:$0xff]
        %v1219 = vld [vmem:[%s566 + $0xe8] sm:$0xff]
        %v1220 = vld [vmem:[%s566 + $0xf0] sm:$0xff]
        %v1221 = vld [vmem:[%s566 + $0xf8] sm:$0xff]
        %v1222 = vld [vmem:[%s5] sm:$0xff]
        %v1223 = vld [vmem:[%s5 + $0x8] sm:$0xff]
        %v1224 = vld [vmem:[%s5 + $0x10] sm:$0xff]
        %v1225 = vld [vmem:[%s5 + $0x18] sm:$0xff]
        %v1226 = vld [vmem:[%s5 + $0x20] sm:$0xff]
        %v1227 = vld [vmem:[%s5 + $0x28] sm:$0xff]
        %v1228 = vld [vmem:[%s5 + $0x30] sm:$0xff]
        %v1229 = vld [vmem:[%s5 + $0x38] sm:$0xff]
        %v1230 = vld [vmem:[%s5 + $0x40] sm:$0xff]
        %v1231 = vld [vmem:[%s5 + $0x48] sm:$0xff]
        %v1232 = vld [vmem:[%s5 + $0x50] sm:$0xff]
        %v1233 = vld [vmem:[%s5 + $0x58] sm:$0xff]
        %v1234 = vld [vmem:[%s5 + $0x60] sm:$0xff]
        %v1235 = vld [vmem:[%s5 + $0x68] sm:$0xff]
        %v1236 = vld [vmem:[%s5 + $0x70] sm:$0xff]
        %v1237 = vld [vmem:[%s5 + $0x78] sm:$0xff]
        %1238 = vmatprep.subr.mxu0 0.0
        %1239 = vmatpush1.msra.mxu0 %v1237
        %1240 = vmatprep.subr.mxu0 0.0
        %1241 = vmatpush1.msra.mxu0 %v1236
        %1242 = vmatprep.subr.mxu0 0.0
        %1243 = vmatpush1.msra.mxu0 %v1235
        %1244 = vmatprep.subr.mxu0 0.0
        %1245 = vmatpush1.msra.mxu0 %v1234
        %1246 = vmatprep.subr.mxu0 0.0
        %1247 = vmatpush1.msra.mxu0 %v1233
        %1248 = vmatprep.subr.mxu0 0.0
        %1249 = vmatpush1.msra.mxu0 %v1232
        %1250 = vmatprep.subr.mxu0 0.0
        %1251 = vmatpush1.msra.mxu0 %v1231
        %1252 = vmatprep.subr.mxu0 0.0
        %1253 = vmatpush1.msra.mxu0 %v1230
        %1254 = vmatprep.subr.mxu0 0.0
        %1255 = vmatpush1.msra.mxu0 %v1229
        %1256 = vmatprep.subr.mxu0 0.0
        %1257 = vmatpush1.msra.mxu0 %v1228
        %1258 = vmatprep.subr.mxu0 0.0
        %1259 = vmatpush1.msra.mxu0 %v1227
        %1260 = vmatprep.subr.mxu0 0.0
        %1261 = vmatpush1.msra.mxu0 %v1226
        %1262 = vmatprep.subr.mxu0 0.0
        %1263 = vmatpush1.msra.mxu0 %v1225
        %1264 = vmatprep.subr.mxu0 0.0
        %1265 = vmatpush1.msra.mxu0 %v1224
        %1266 = vmatprep.subr.mxu0 0.0
        %1267 = vmatpush1.msra.mxu0 %v1223
        %1268 = vmatprep.subr.mxu0 0.0
        %1269 = vmatpush1.msra.mxu0 %v1222
        %1270 = vmatprep.subr.mxu0 0.0
        %1271 = vmatpush2.msra.mxu0 0.0
        %1272 = vmatprep.subr.mxu0 0.0
        %1273 = vmatpush2.msra.mxu0 0.0
        %1274 = vmatprep.subr.mxu0 0.0
        %1275 = vmatpush2.msra.mxu0 0.0
        %1276 = vmatprep.subr.mxu0 0.0
        %1277 = vmatpush2.msra.mxu0 0.0
        %1278 = vmatprep.subr.mxu0 0.0
        %1279 = vmatpush2.msra.mxu0 0.0
        %1280 = vmatprep.subr.mxu0 0.0
        %1281 = vmatpush2.msra.mxu0 0.0
        %1282 = vmatprep.subr.mxu0 0.0
        %1283 = vmatpush2.msra.mxu0 0.0
        %1284 = vmatprep.subr.mxu0 0.0
        %1285 = vmatpush2.msra.mxu0 0.0
        %1286 = vmatprep.subr.mxu0 0.0
        %1287 = vmatpush2.msra.mxu0 0.0
        %1288 = vmatprep.subr.mxu0 0.0
        %1289 = vmatpush2.msra.mxu0 0.0
        %1290 = vmatprep.subr.mxu0 0.0
        %1291 = vmatpush2.msra.mxu0 0.0
        %1292 = vmatprep.subr.mxu0 0.0
        %1293 = vmatpush2.msra.mxu0 0.0
        %1294 = vmatprep.subr.mxu0 0.0
        %1295 = vmatpush2.msra.mxu0 0.0
        %1296 = vmatprep.subr.mxu0 0.0
        %1297 = vmatpush2.msra.mxu0 0.0
        %1298 = vmatprep.subr.mxu0 0.0
        %1299 = vmatpush2.msra.mxu0 0.0
        %1300 = vmatprep.subr.mxu0 0.0
        %1301 = vmatpush2.msra.mxu0 0.0
        %1302 = vmatprep.mubr.f32.mxu0 0.0
        %1303 = vmatmul.mubr.f32.gmra.mxu0 %v1158
        %v1304 = vpop.f32.mrf.mxu0
        %v1305 = vadd.f32 0.0, %v1304
        %v1306 = vpop.f32.mrf.mxu0
        %1307 = vmatprep.mubr.f32.mxu0 0.0
        %1308 = vmatmul.mubr.f32.gmra.mxu0 %v1159
        %v1309 = vpop.f32.mrf.mxu0
        %v1310 = vadd.f32 0.0, %v1309
        %v1311 = vpop.f32.mrf.mxu0
        %1312 = vmatprep.mubr.f32.mxu0 0.0
        %1313 = vmatmul.mubr.f32.gmra.mxu0 %v1160
        %v1314 = vpop.f32.mrf.mxu0
        %v1315 = vadd.f32 0.0, %v1314
        %v1316 = vpop.f32.mrf.mxu0
        %1317 = vmatprep.mubr.f32.mxu0 0.0
        %1318 = vmatmul.mubr.f32.gmra.mxu0 %v1161
        %v1319 = vpop.f32.mrf.mxu0
        %v1320 = vadd.f32 0.0, %v1319
        %v1321 = vpop.f32.mrf.mxu0
        %1322 = vmatprep.mubr.f32.mxu0 0.0
        %1323 = vmatmul.mubr.f32.gmra.mxu0 %v1162
        %v1324 = vpop.f32.mrf.mxu0
        %v1325 = vadd.f32 0.0, %v1324
        %v1326 = vpop.f32.mrf.mxu0
        %1327 = vmatprep.mubr.f32.mxu0 0.0
        %1328 = vmatmul.mubr.f32.gmra.mxu0 %v1163
        %v1329 = vpop.f32.mrf.mxu0
        %v1330 = vadd.f32 0.0, %v1329
        %v1331 = vpop.f32.mrf.mxu0
        %1332 = vmatprep.mubr.f32.mxu0 0.0
        %1333 = vmatmul.mubr.f32.gmra.mxu0 %v1164
        %v1334 = vpop.f32.mrf.mxu0
        %v1335 = vadd.f32 0.0, %v1334
        %v1336 = vpop.f32.mrf.mxu0
        %1337 = vmatprep.mubr.f32.mxu0 0.0
        %1338 = vmatmul.mubr.f32.gmra.mxu0 %v1165
        %v1339 = vpop.f32.mrf.mxu0
        %v1340 = vadd.f32 0.0, %v1339
        %v1341 = vpop.f32.mrf.mxu0
        %1342 = vmatprep.mubr.f32.mxu0 0.0
        %1343 = vmatmul.mubr.f32.gmra.mxu0 %v1166
        %v1344 = vpop.f32.mrf.mxu0
        %v1345 = vadd.f32 0.0, %v1344
        %v1346 = vpop.f32.mrf.mxu0
        %1347 = vmatprep.mubr.f32.mxu0 0.0
        %1348 = vmatmul.mubr.f32.gmra.mxu0 %v1167
        %v1349 = vpop.f32.mrf.mxu0
        %v1350 = vadd.f32 0.0, %v1349
        %v1351 = vpop.f32.mrf.mxu0
        %1352 = vmatprep.mubr.f32.mxu0 0.0
        %1353 = vmatmul.mubr.f32.gmra.mxu0 %v1168
        %v1354 = vpop.f32.mrf.mxu0
        %v1355 = vadd.f32 0.0, %v1354
        %v1356 = vpop.f32.mrf.mxu0
        %1357 = vmatprep.mubr.f32.mxu0 0.0
        %1358 = vmatmul.mubr.f32.gmra.mxu0 %v1169
        %v1359 = vpop.f32.mrf.mxu0
        %v1360 = vadd.f32 0.0, %v1359
        %v1361 = vpop.f32.mrf.mxu0
        %1362 = vmatprep.mubr.f32.mxu0 0.0
        %1363 = vmatmul.mubr.f32.gmra.mxu0 %v1170
        %v1364 = vpop.f32.mrf.mxu0
        %v1365 = vadd.f32 0.0, %v1364
        %v1366 = vpop.f32.mrf.mxu0
        %1367 = vmatprep.mubr.f32.mxu0 0.0
        %1368 = vmatmul.mubr.f32.gmra.mxu0 %v1171
        %v1369 = vpop.f32.mrf.mxu0
        %v1370 = vadd.f32 0.0, %v1369
        %v1371 = vpop.f32.mrf.mxu0
        %1372 = vmatprep.mubr.f32.mxu0 0.0
        %1373 = vmatmul.mubr.f32.gmra.mxu0 %v1172
        %v1374 = vpop.f32.mrf.mxu0
        %v1375 = vadd.f32 0.0, %v1374
        %v1376 = vpop.f32.mrf.mxu0
        %1377 = vmatprep.mubr.f32.mxu0 0.0
        %1378 = vmatmul.mubr.f32.gmra.mxu0 %v1173
        %v1379 = vpop.f32.mrf.mxu0
        %v1380 = vadd.f32 0.0, %v1379
        %v1381 = vpop.f32.mrf.mxu0
        %1382 = vmatprep.mubr.f32.mxu0 0.0
        %1383 = vmatmul.mubr.f32.gmra.mxu0 %v1174
        %v1384 = vpop.f32.mrf.mxu0
        %v1385 = vadd.f32 0.0, %v1384
        %v1386 = vpop.f32.mrf.mxu0
        %1387 = vmatprep.mubr.f32.mxu0 0.0
        %1388 = vmatmul.mubr.f32.gmra.mxu0 %v1175
        %v1389 = vpop.f32.mrf.mxu0
        %v1390 = vadd.f32 0.0, %v1389
        %v1391 = vpop.f32.mrf.mxu0
        %1392 = vmatprep.mubr.f32.mxu0 0.0
        %1393 = vmatmul.mubr.f32.gmra.mxu0 %v1176
        %v1394 = vpop.f32.mrf.mxu0
        %v1395 = vadd.f32 0.0, %v1394
        %v1396 = vpop.f32.mrf.mxu0
        %1397 = vmatprep.mubr.f32.mxu0 0.0
        %1398 = vmatmul.mubr.f32.gmra.mxu0 %v1177
        %v1399 = vpop.f32.mrf.mxu0
        %v1400 = vadd.f32 0.0, %v1399
        %v1401 = vpop.f32.mrf.mxu0
        %1402 = vmatprep.mubr.f32.mxu0 0.0
        %1403 = vmatmul.mubr.f32.gmra.mxu0 %v1178
        %v1404 = vpop.f32.mrf.mxu0
        %v1405 = vadd.f32 0.0, %v1404
        %v1406 = vpop.f32.mrf.mxu0
        %1407 = vmatprep.mubr.f32.mxu0 0.0
        %1408 = vmatmul.mubr.f32.gmra.mxu0 %v1179
        %v1409 = vpop.f32.mrf.mxu0
        %v1410 = vadd.f32 0.0, %v1409
        %v1411 = vpop.f32.mrf.mxu0
        %1412 = vmatprep.mubr.f32.mxu0 0.0
        %1413 = vmatmul.mubr.f32.gmra.mxu0 %v1180
        %v1414 = vpop.f32.mrf.mxu0
        %v1415 = vadd.f32 0.0, %v1414
        %v1416 = vpop.f32.mrf.mxu0
        %1417 = vmatprep.mubr.f32.mxu0 0.0
        %1418 = vmatmul.mubr.f32.gmra.mxu0 %v1181
        %v1419 = vpop.f32.mrf.mxu0
        %v1420 = vadd.f32 0.0, %v1419
        %v1421 = vpop.f32.mrf.mxu0
        %1422 = vmatprep.mubr.f32.mxu0 0.0
        %1423 = vmatmul.mubr.f32.gmra.mxu0 %v1182
        %v1424 = vpop.f32.mrf.mxu0
        %v1425 = vadd.f32 0.0, %v1424
        %v1426 = vpop.f32.mrf.mxu0
        %1427 = vmatprep.mubr.f32.mxu0 0.0
        %1428 = vmatmul.mubr.f32.gmra.mxu0 %v1183
        %v1429 = vpop.f32.mrf.mxu0
        %v1430 = vadd.f32 0.0, %v1429
        %v1431 = vpop.f32.mrf.mxu0
        %1432 = vmatprep.mubr.f32.mxu0 0.0
        %1433 = vmatmul.mubr.f32.gmra.mxu0 %v1184
        %v1434 = vpop.f32.mrf.mxu0
        %v1435 = vadd.f32 0.0, %v1434
        %v1436 = vpop.f32.mrf.mxu0
        %1437 = vmatprep.mubr.f32.mxu0 0.0
        %1438 = vmatmul.mubr.f32.gmra.mxu0 %v1185
        %v1439 = vpop.f32.mrf.mxu0
        %v1440 = vadd.f32 0.0, %v1439
        %v1441 = vpop.f32.mrf.mxu0
        %1442 = vmatprep.mubr.f32.mxu0 0.0
        %1443 = vmatmul.mubr.f32.gmra.mxu0 %v1186
        %v1444 = vpop.f32.mrf.mxu0
        %v1445 = vadd.f32 0.0, %v1444
        %v1446 = vpop.f32.mrf.mxu0
        %1447 = vmatprep.mubr.f32.mxu0 0.0
        %1448 = vmatmul.mubr.f32.gmra.mxu0 %v1187
        %v1449 = vpop.f32.mrf.mxu0
        %v1450 = vadd.f32 0.0, %v1449
        %v1451 = vpop.f32.mrf.mxu0
        %1452 = vmatprep.mubr.f32.mxu0 0.0
        %1453 = vmatmul.mubr.f32.gmra.mxu0 %v1188
        %v1454 = vpop.f32.mrf.mxu0
        %v1455 = vadd.f32 0.0, %v1454
        %v1456 = vpop.f32.mrf.mxu0
        %1457 = vmatprep.mubr.f32.mxu0 0.0
        %1458 = vmatmul.mubr.f32.gmra.mxu0 %v1189
        %v1459 = vpop.f32.mrf.mxu0
        %v1460 = vadd.f32 0.0, %v1459
        %v1461 = vpop.f32.mrf.mxu0
        %1462 = vdwg.mxu0
        %v1463 = vld [vmem:[%s6] sm:$0x1]
        %v1465 = vlaneseq
        %v1466 = vshrl.u32 %v1465, 7
        %v1467 = vsub.s32 0, %v1466
        %v1468 = vrot.slane %v1463, %v1467
        %v1470 = vmul.f32 %v1305, %v1468
        %v1471 = vmul.f32 %v1310, %v1468
        %v1472 = vmul.f32 %v1315, %v1468
        %v1473 = vmul.f32 %v1320, %v1468
        %v1474 = vmul.f32 %v1325, %v1468
        %v1475 = vmul.f32 %v1330, %v1468
        %v1476 = vmul.f32 %v1335, %v1468
        %v1477 = vmul.f32 %v1340, %v1468
        %v1478 = vmul.f32 %v1345, %v1468
        %v1479 = vmul.f32 %v1350, %v1468
        %v1480 = vmul.f32 %v1355, %v1468
        %v1481 = vmul.f32 %v1360, %v1468
        %v1482 = vmul.f32 %v1365, %v1468
        %v1483 = vmul.f32 %v1370, %v1468
        %v1484 = vmul.f32 %v1375, %v1468
        %v1485 = vmul.f32 %v1380, %v1468
        %v1486 = vmul.f32 %v1385, %v1468
        %v1487 = vmul.f32 %v1390, %v1468
        %v1488 = vmul.f32 %v1395, %v1468
        %v1489 = vmul.f32 %v1400, %v1468
        %v1490 = vmul.f32 %v1405, %v1468
        %v1491 = vmul.f32 %v1410, %v1468
        %v1492 = vmul.f32 %v1415, %v1468
        %v1493 = vmul.f32 %v1420, %v1468
        %v1494 = vmul.f32 %v1425, %v1468
        %v1495 = vmul.f32 %v1430, %v1468
        %v1496 = vmul.f32 %v1435, %v1468
        %v1497 = vmul.f32 %v1440, %v1468
        %v1498 = vmul.f32 %v1445, %v1468
        %v1499 = vmul.f32 %v1450, %v1468
        %v1500 = vmul.f32 %v1455, %v1468
        %v1501 = vmul.f32 %v1460, %v1468
        %v1502 = vld [vmem:[%s7] sm:$0x1]
        %v1504 = vlaneseq
        %v1505 = vshrl.u32 %v1504, 7
        %v1506 = vsub.s32 0, %v1505
        %v1507 = vrot.slane %v1502, %v1506
        %v1509 = vadd.f32 %v1470, %v1507
        %v1510 = vadd.f32 %v1471, %v1507
        %v1511 = vadd.f32 %v1472, %v1507
        %v1512 = vadd.f32 %v1473, %v1507
        %v1513 = vadd.f32 %v1474, %v1507
        %v1514 = vadd.f32 %v1475, %v1507
        %v1515 = vadd.f32 %v1476, %v1507
        %v1516 = vadd.f32 %v1477, %v1507
        %v1517 = vadd.f32 %v1478, %v1507
        %v1518 = vadd.f32 %v1479, %v1507
        %v1519 = vadd.f32 %v1480, %v1507
        %v1520 = vadd.f32 %v1481, %v1507
        %v1521 = vadd.f32 %v1482, %v1507
        %v1522 = vadd.f32 %v1483, %v1507
        %v1523 = vadd.f32 %v1484, %v1507
        %v1524 = vadd.f32 %v1485, %v1507
        %v1525 = vadd.f32 %v1486, %v1507
        %v1526 = vadd.f32 %v1487, %v1507
        %v1527 = vadd.f32 %v1488, %v1507
        %v1528 = vadd.f32 %v1489, %v1507
        %v1529 = vadd.f32 %v1490, %v1507
        %v1530 = vadd.f32 %v1491, %v1507
        %v1531 = vadd.f32 %v1492, %v1507
        %v1532 = vadd.f32 %v1493, %v1507
        %v1533 = vadd.f32 %v1494, %v1507
        %v1534 = vadd.f32 %v1495, %v1507
        %v1535 = vadd.f32 %v1496, %v1507
        %v1536 = vadd.f32 %v1497, %v1507
        %v1537 = vadd.f32 %v1498, %v1507
        %v1538 = vadd.f32 %v1499, %v1507
        %v1539 = vadd.f32 %v1500, %v1507
        %v1540 = vadd.f32 %v1501, %v1507
        %v1541 = vxor.u32 %v1509, 2147483648
        %v1542 = vxor.u32 %v1510, 2147483648
        %v1543 = vxor.u32 %v1511, 2147483648
        %v1544 = vxor.u32 %v1512, 2147483648
        %v1545 = vxor.u32 %v1513, 2147483648
        %v1546 = vxor.u32 %v1514, 2147483648
        %v1547 = vxor.u32 %v1515, 2147483648
        %v1548 = vxor.u32 %v1516, 2147483648
        %v1549 = vxor.u32 %v1517, 2147483648
        %v1550 = vxor.u32 %v1518, 2147483648
        %v1551 = vxor.u32 %v1519, 2147483648
        %v1552 = vxor.u32 %v1520, 2147483648
        %v1553 = vxor.u32 %v1521, 2147483648
        %v1554 = vxor.u32 %v1522, 2147483648
        %v1555 = vxor.u32 %v1523, 2147483648
        %v1556 = vxor.u32 %v1524, 2147483648
        %v1557 = vxor.u32 %v1525, 2147483648
        %v1558 = vxor.u32 %v1526, 2147483648
        %v1559 = vxor.u32 %v1527, 2147483648
        %v1560 = vxor.u32 %v1528, 2147483648
        %v1561 = vxor.u32 %v1529, 2147483648
        %v1562 = vxor.u32 %v1530, 2147483648
        %v1563 = vxor.u32 %v1531, 2147483648
        %v1564 = vxor.u32 %v1532, 2147483648
        %v1565 = vxor.u32 %v1533, 2147483648
        %v1566 = vxor.u32 %v1534, 2147483648
        %v1567 = vxor.u32 %v1535, 2147483648
        %v1568 = vxor.u32 %v1536, 2147483648
        %v1569 = vxor.u32 %v1537, 2147483648
        %v1570 = vxor.u32 %v1538, 2147483648
        %v1571 = vxor.u32 %v1539, 2147483648
        %v1572 = vxor.u32 %v1540, 2147483648
        %v1573 = vmul.f32 %v1541, 1.442695
        %v1574 = vpow.pop %v1573
        %v1575 = vmul.f32 %v1542, 1.442695
        %v1576 = vpow.pop %v1575
        %v1577 = vmul.f32 %v1543, 1.442695
        %v1578 = vpow.pop %v1577
        %v1579 = vmul.f32 %v1544, 1.442695
        %v1580 = vpow.pop %v1579
        %v1581 = vmul.f32 %v1545, 1.442695
        %v1582 = vpow.pop %v1581
        %v1583 = vmul.f32 %v1546, 1.442695
        %v1584 = vpow.pop %v1583
        %v1585 = vmul.f32 %v1547, 1.442695
        %v1586 = vpow.pop %v1585
        %v1587 = vmul.f32 %v1548, 1.442695
        %v1588 = vpow.pop %v1587
        %v1589 = vmul.f32 %v1549, 1.442695
        %v1590 = vpow.pop %v1589
        %v1591 = vmul.f32 %v1550, 1.442695
        %v1592 = vpow.pop %v1591
        %v1593 = vmul.f32 %v1551, 1.442695
        %v1594 = vpow.pop %v1593
        %v1595 = vmul.f32 %v1552, 1.442695
        %v1596 = vpow.pop %v1595
        %v1597 = vmul.f32 %v1553, 1.442695
        %v1598 = vpow.pop %v1597
        %v1599 = vmul.f32 %v1554, 1.442695
        %v1600 = vpow.pop %v1599
        %v1601 = vmul.f32 %v1555, 1.442695
        %v1602 = vpow.pop %v1601
        %v1603 = vmul.f32 %v1556, 1.442695
        %v1604 = vpow.pop %v1603
        %v1605 = vmul.f32 %v1557, 1.442695
        %v1606 = vpow.pop %v1605
        %v1607 = vmul.f32 %v1558, 1.442695
        %v1608 = vpow.pop %v1607
        %v1609 = vmul.f32 %v1559, 1.442695
        %v1610 = vpow.pop %v1609
        %v1611 = vmul.f32 %v1560, 1.442695
        %v1612 = vpow.pop %v1611
        %v1613 = vmul.f32 %v1561, 1.442695
        %v1614 = vpow.pop %v1613
        %v1615 = vmul.f32 %v1562, 1.442695
        %v1616 = vpow.pop %v1615
        %v1617 = vmul.f32 %v1563, 1.442695
        %v1618 = vpow.pop %v1617
        %v1619 = vmul.f32 %v1564, 1.442695
        %v1620 = vpow.pop %v1619
        %v1621 = vmul.f32 %v1565, 1.442695
        %v1622 = vpow.pop %v1621
        %v1623 = vmul.f32 %v1566, 1.442695
        %v1624 = vpow.pop %v1623
        %v1625 = vmul.f32 %v1567, 1.442695
        %v1626 = vpow.pop %v1625
        %v1627 = vmul.f32 %v1568, 1.442695
        %v1628 = vpow.pop %v1627
        %v1629 = vmul.f32 %v1569, 1.442695
        %v1630 = vpow.pop %v1629
        %v1631 = vmul.f32 %v1570, 1.442695
        %v1632 = vpow.pop %v1631
        %v1633 = vmul.f32 %v1571, 1.442695
        %v1634 = vpow.pop %v1633
        %v1635 = vmul.f32 %v1572, 1.442695
        %v1636 = vpow.pop %v1635
        %v1637 = vadd.f32 %v1574, 1.0
        %v1638 = vadd.f32 %v1576, 1.0
        %v1639 = vadd.f32 %v1578, 1.0
        %v1640 = vadd.f32 %v1580, 1.0
        %v1641 = vadd.f32 %v1582, 1.0
        %v1642 = vadd.f32 %v1584, 1.0
        %v1643 = vadd.f32 %v1586, 1.0
        %v1644 = vadd.f32 %v1588, 1.0
        %v1645 = vadd.f32 %v1590, 1.0
        %v1646 = vadd.f32 %v1592, 1.0
        %v1647 = vadd.f32 %v1594, 1.0
        %v1648 = vadd.f32 %v1596, 1.0
        %v1649 = vadd.f32 %v1598, 1.0
        %v1650 = vadd.f32 %v1600, 1.0
        %v1651 = vadd.f32 %v1602, 1.0
        %v1652 = vadd.f32 %v1604, 1.0
        %v1653 = vadd.f32 %v1606, 1.0
        %v1654 = vadd.f32 %v1608, 1.0
        %v1655 = vadd.f32 %v1610, 1.0
        %v1656 = vadd.f32 %v1612, 1.0
        %v1657 = vadd.f32 %v1614, 1.0
        %v1658 = vadd.f32 %v1616, 1.0
        %v1659 = vadd.f32 %v1618, 1.0
        %v1660 = vadd.f32 %v1620, 1.0
        %v1661 = vadd.f32 %v1622, 1.0
        %v1662 = vadd.f32 %v1624, 1.0
        %v1663 = vadd.f32 %v1626, 1.0
        %v1664 = vadd.f32 %v1628, 1.0
        %v1665 = vadd.f32 %v1630, 1.0
        %v1666 = vadd.f32 %v1632, 1.0
        %v1667 = vadd.f32 %v1634, 1.0
        %v1668 = vadd.f32 %v1636, 1.0
        %v1669 = vrcp.pop %v1637
        %v1670 = vmul.f32 1.0, %v1669
        %v1671 = vrcp.pop %v1638
        %v1672 = vmul.f32 1.0, %v1671
        %v1673 = vrcp.pop %v1639
        %v1674 = vmul.f32 1.0, %v1673
        %v1675 = vrcp.pop %v1640
        %v1676 = vmul.f32 1.0, %v1675
        %v1677 = vrcp.pop %v1641
        %v1678 = vmul.f32 1.0, %v1677
        %v1679 = vrcp.pop %v1642
        %v1680 = vmul.f32 1.0, %v1679
        %v1681 = vrcp.pop %v1643
        %v1682 = vmul.f32 1.0, %v1681
        %v1683 = vrcp.pop %v1644
        %v1684 = vmul.f32 1.0, %v1683
        %v1685 = vrcp.pop %v1645
        %v1686 = vmul.f32 1.0, %v1685
        %v1687 = vrcp.pop %v1646
        %v1688 = vmul.f32 1.0, %v1687
        %v1689 = vrcp.pop %v1647
        %v1690 = vmul.f32 1.0, %v1689
        %v1691 = vrcp.pop %v1648
        %v1692 = vmul.f32 1.0, %v1691
        %v1693 = vrcp.pop %v1649
        %v1694 = vmul.f32 1.0, %v1693
        %v1695 = vrcp.pop %v1650
        %v1696 = vmul.f32 1.0, %v1695
        %v1697 = vrcp.pop %v1651
        %v1698 = vmul.f32 1.0, %v1697
        %v1699 = vrcp.pop %v1652
        %v1700 = vmul.f32 1.0, %v1699
        %v1701 = vrcp.pop %v1653
        %v1702 = vmul.f32 1.0, %v1701
        %v1703 = vrcp.pop %v1654
        %v1704 = vmul.f32 1.0, %v1703
        %v1705 = vrcp.pop %v1655
        %v1706 = vmul.f32 1.0, %v1705
        %v1707 = vrcp.pop %v1656
        %v1708 = vmul.f32 1.0, %v1707
        %v1709 = vrcp.pop %v1657
        %v1710 = vmul.f32 1.0, %v1709
        %v1711 = vrcp.pop %v1658
        %v1712 = vmul.f32 1.0, %v1711
        %v1713 = vrcp.pop %v1659
        %v1714 = vmul.f32 1.0, %v1713
        %v1715 = vrcp.pop %v1660
        %v1716 = vmul.f32 1.0, %v1715
        %v1717 = vrcp.pop %v1661
        %v1718 = vmul.f32 1.0, %v1717
        %v1719 = vrcp.pop %v1662
        %v1720 = vmul.f32 1.0, %v1719
        %v1721 = vrcp.pop %v1663
        %v1722 = vmul.f32 1.0, %v1721
        %v1723 = vrcp.pop %v1664
        %v1724 = vmul.f32 1.0, %v1723
        %v1725 = vrcp.pop %v1665
        %v1726 = vmul.f32 1.0, %v1725
        %v1727 = vrcp.pop %v1666
        %v1728 = vmul.f32 1.0, %v1727
        %v1729 = vrcp.pop %v1667
        %v1730 = vmul.f32 1.0, %v1729
        %v1731 = vrcp.pop %v1668
        %v1732 = vmul.f32 1.0, %v1731
        %v1733 = vmul.f32 %v1509, %v1670
        %v1734 = vmul.f32 %v1510, %v1672
        %v1735 = vmul.f32 %v1511, %v1674
        %v1736 = vmul.f32 %v1512, %v1676
        %v1737 = vmul.f32 %v1513, %v1678
        %v1738 = vmul.f32 %v1514, %v1680
        %v1739 = vmul.f32 %v1515, %v1682
        %v1740 = vmul.f32 %v1516, %v1684
        %v1741 = vmul.f32 %v1517, %v1686
        %v1742 = vmul.f32 %v1518, %v1688
        %v1743 = vmul.f32 %v1519, %v1690
        %v1744 = vmul.f32 %v1520, %v1692
        %v1745 = vmul.f32 %v1521, %v1694
        %v1746 = vmul.f32 %v1522, %v1696
        %v1747 = vmul.f32 %v1523, %v1698
        %v1748 = vmul.f32 %v1524, %v1700
        %v1749 = vmul.f32 %v1525, %v1702
        %v1750 = vmul.f32 %v1526, %v1704
        %v1751 = vmul.f32 %v1527, %v1706
        %v1752 = vmul.f32 %v1528, %v1708
        %v1753 = vmul.f32 %v1529, %v1710
        %v1754 = vmul.f32 %v1530, %v1712
        %v1755 = vmul.f32 %v1531, %v1714
        %v1756 = vmul.f32 %v1532, %v1716
        %v1757 = vmul.f32 %v1533, %v1718
        %v1758 = vmul.f32 %v1534, %v1720
        %v1759 = vmul.f32 %v1535, %v1722
        %v1760 = vmul.f32 %v1536, %v1724
        %v1761 = vmul.f32 %v1537, %v1726
        %v1762 = vmul.f32 %v1538, %v1728
        %v1763 = vmul.f32 %v1539, %v1730
        %v1764 = vmul.f32 %v1540, %v1732
        %v1765 = vld [vmem:[%s8] sm:$0xff]
        %v1766 = vld [vmem:[%s8 + $0x8] sm:$0xff]
        %v1767 = vld [vmem:[%s8 + $0x10] sm:$0xff]
        %v1768 = vld [vmem:[%s8 + $0x18] sm:$0xff]
        %v1769 = vld [vmem:[%s8 + $0x20] sm:$0xff]
        %v1770 = vld [vmem:[%s8 + $0x28] sm:$0xff]
        %v1771 = vld [vmem:[%s8 + $0x30] sm:$0xff]
        %v1772 = vld [vmem:[%s8 + $0x38] sm:$0xff]
        %v1773 = vld [vmem:[%s8 + $0x40] sm:$0xff]
        %v1774 = vld [vmem:[%s8 + $0x48] sm:$0xff]
        %v1775 = vld [vmem:[%s8 + $0x50] sm:$0xff]
        %v1776 = vld [vmem:[%s8 + $0x58] sm:$0xff]
        %v1777 = vld [vmem:[%s8 + $0x60] sm:$0xff]
        %v1778 = vld [vmem:[%s8 + $0x68] sm:$0xff]
        %v1779 = vld [vmem:[%s8 + $0x70] sm:$0xff]
        %v1780 = vld [vmem:[%s8 + $0x78] sm:$0xff]
        %1781 = vmatprep.subr.mxu0 0.0
        %1782 = vmatpush1.msra.mxu0 %v1780
        %1783 = vmatprep.subr.mxu0 0.0
        %1784 = vmatpush1.msra.mxu0 %v1779
        %1785 = vmatprep.subr.mxu0 0.0
        %1786 = vmatpush1.msra.mxu0 %v1778
        %1787 = vmatprep.subr.mxu0 0.0
        %1788 = vmatpush1.msra.mxu0 %v1777
        %1789 = vmatprep.subr.mxu0 0.0
        %1790 = vmatpush1.msra.mxu0 %v1776
        %1791 = vmatprep.subr.mxu0 0.0
        %1792 = vmatpush1.msra.mxu0 %v1775
        %1793 = vmatprep.subr.mxu0 0.0
        %1794 = vmatpush1.msra.mxu0 %v1774
        %1795 = vmatprep.subr.mxu0 0.0
        %1796 = vmatpush1.msra.mxu0 %v1773
        %1797 = vmatprep.subr.mxu0 0.0
        %1798 = vmatpush1.msra.mxu0 %v1772
        %1799 = vmatprep.subr.mxu0 0.0
        %1800 = vmatpush1.msra.mxu0 %v1771
        %1801 = vmatprep.subr.mxu0 0.0
        %1802 = vmatpush1.msra.mxu0 %v1770
        %1803 = vmatprep.subr.mxu0 0.0
        %1804 = vmatpush1.msra.mxu0 %v1769
        %1805 = vmatprep.subr.mxu0 0.0
        %1806 = vmatpush1.msra.mxu0 %v1768
        %1807 = vmatprep.subr.mxu0 0.0
        %1808 = vmatpush1.msra.mxu0 %v1767
        %1809 = vmatprep.subr.mxu0 0.0
        %1810 = vmatpush1.msra.mxu0 %v1766
        %1811 = vmatprep.subr.mxu0 0.0
        %1812 = vmatpush1.msra.mxu0 %v1765
        %1813 = vmatprep.subr.mxu0 0.0
        %1814 = vmatpush2.msra.mxu0 0.0
        %1815 = vmatprep.subr.mxu0 0.0
        %1816 = vmatpush2.msra.mxu0 0.0
        %1817 = vmatprep.subr.mxu0 0.0
        %1818 = vmatpush2.msra.mxu0 0.0
        %1819 = vmatprep.subr.mxu0 0.0
        %1820 = vmatpush2.msra.mxu0 0.0
        %1821 = vmatprep.subr.mxu0 0.0
        %1822 = vmatpush2.msra.mxu0 0.0
        %1823 = vmatprep.subr.mxu0 0.0
        %1824 = vmatpush2.msra.mxu0 0.0
        %1825 = vmatprep.subr.mxu0 0.0
        %1826 = vmatpush2.msra.mxu0 0.0
        %1827 = vmatprep.subr.mxu0 0.0
        %1828 = vmatpush2.msra.mxu0 0.0
        %1829 = vmatprep.subr.mxu0 0.0
        %1830 = vmatpush2.msra.mxu0 0.0
        %1831 = vmatprep.subr.mxu0 0.0
        %1832 = vmatpush2.msra.mxu0 0.0
        %1833 = vmatprep.subr.mxu0 0.0
        %1834 = vmatpush2.msra.mxu0 0.0
        %1835 = vmatprep.subr.mxu0 0.0
        %1836 = vmatpush2.msra.mxu0 0.0
        %1837 = vmatprep.subr.mxu0 0.0
        %1838 = vmatpush2.msra.mxu0 0.0
        %1839 = vmatprep.subr.mxu0 0.0
        %1840 = vmatpush2.msra.mxu0 0.0
        %1841 = vmatprep.subr.mxu0 0.0
        %1842 = vmatpush2.msra.mxu0 0.0
        %1843 = vmatprep.subr.mxu0 0.0
        %1844 = vmatpush2.msra.mxu0 0.0
        %1845 = vmatprep.mubr.f32.mxu0 0.0
        %1846 = vmatmul.mubr.f32.gmra.mxu0 %v1190
        %v1847 = vpop.f32.mrf.mxu0
        %v1848 = vadd.f32 0.0, %v1847
        %v1849 = vpop.f32.mrf.mxu0
        %1850 = vmatprep.mubr.f32.mxu0 0.0
        %1851 = vmatmul.mubr.f32.gmra.mxu0 %v1191
        %v1852 = vpop.f32.mrf.mxu0
        %v1853 = vadd.f32 0.0, %v1852
        %v1854 = vpop.f32.mrf.mxu0
        %1855 = vmatprep.mubr.f32.mxu0 0.0
        %1856 = vmatmul.mubr.f32.gmra.mxu0 %v1192
        %v1857 = vpop.f32.mrf.mxu0
        %v1858 = vadd.f32 0.0, %v1857
        %v1859 = vpop.f32.mrf.mxu0
        %1860 = vmatprep.mubr.f32.mxu0 0.0
        %1861 = vmatmul.mubr.f32.gmra.mxu0 %v1193
        %v1862 = vpop.f32.mrf.mxu0
        %v1863 = vadd.f32 0.0, %v1862
        %v1864 = vpop.f32.mrf.mxu0
        %1865 = vmatprep.mubr.f32.mxu0 0.0
        %1866 = vmatmul.mubr.f32.gmra.mxu0 %v1194
        %v1867 = vpop.f32.mrf.mxu0
        %v1868 = vadd.f32 0.0, %v1867
        %v1869 = vpop.f32.mrf.mxu0
        %1870 = vmatprep.mubr.f32.mxu0 0.0
        %1871 = vmatmul.mubr.f32.gmra.mxu0 %v1195
        %v1872 = vpop.f32.mrf.mxu0
        %v1873 = vadd.f32 0.0, %v1872
        %v1874 = vpop.f32.mrf.mxu0
        %1875 = vmatprep.mubr.f32.mxu0 0.0
        %1876 = vmatmul.mubr.f32.gmra.mxu0 %v1196
        %v1877 = vpop.f32.mrf.mxu0
        %v1878 = vadd.f32 0.0, %v1877
        %v1879 = vpop.f32.mrf.mxu0
        %1880 = vmatprep.mubr.f32.mxu0 0.0
        %1881 = vmatmul.mubr.f32.gmra.mxu0 %v1197
        %v1882 = vpop.f32.mrf.mxu0
        %v1883 = vadd.f32 0.0, %v1882
        %v1884 = vpop.f32.mrf.mxu0
        %1885 = vmatprep.mubr.f32.mxu0 0.0
        %1886 = vmatmul.mubr.f32.gmra.mxu0 %v1198
        %v1887 = vpop.f32.mrf.mxu0
        %v1888 = vadd.f32 0.0, %v1887
        %v1889 = vpop.f32.mrf.mxu0
        %1890 = vmatprep.mubr.f32.mxu0 0.0
        %1891 = vmatmul.mubr.f32.gmra.mxu0 %v1199
        %v1892 = vpop.f32.mrf.mxu0
        %v1893 = vadd.f32 0.0, %v1892
        %v1894 = vpop.f32.mrf.mxu0
        %1895 = vmatprep.mubr.f32.mxu0 0.0
        %1896 = vmatmul.mubr.f32.gmra.mxu0 %v1200
        %v1897 = vpop.f32.mrf.mxu0
        %v1898 = vadd.f32 0.0, %v1897
        %v1899 = vpop.f32.mrf.mxu0
        %1900 = vmatprep.mubr.f32.mxu0 0.0
        %1901 = vmatmul.mubr.f32.gmra.mxu0 %v1201
        %v1902 = vpop.f32.mrf.mxu0
        %v1903 = vadd.f32 0.0, %v1902
        %v1904 = vpop.f32.mrf.mxu0
        %1905 = vmatprep.mubr.f32.mxu0 0.0
        %1906 = vmatmul.mubr.f32.gmra.mxu0 %v1202
        %v1907 = vpop.f32.mrf.mxu0
        %v1908 = vadd.f32 0.0, %v1907
        %v1909 = vpop.f32.mrf.mxu0
        %1910 = vmatprep.mubr.f32.mxu0 0.0
        %1911 = vmatmul.mubr.f32.gmra.mxu0 %v1203
        %v1912 = vpop.f32.mrf.mxu0
        %v1913 = vadd.f32 0.0, %v1912
        %v1914 = vpop.f32.mrf.mxu0
        %1915 = vmatprep.mubr.f32.mxu0 0.0
        %1916 = vmatmul.mubr.f32.gmra.mxu0 %v1204
        %v1917 = vpop.f32.mrf.mxu0
        %v1918 = vadd.f32 0.0, %v1917
        %v1919 = vpop.f32.mrf.mxu0
        %1920 = vmatprep.mubr.f32.mxu0 0.0
        %1921 = vmatmul.mubr.f32.gmra.mxu0 %v1205
        %v1922 = vpop.f32.mrf.mxu0
        %v1923 = vadd.f32 0.0, %v1922
        %v1924 = vpop.f32.mrf.mxu0
        %1925 = vmatprep.mubr.f32.mxu0 0.0
        %1926 = vmatmul.mubr.f32.gmra.mxu0 %v1206
        %v1927 = vpop.f32.mrf.mxu0
        %v1928 = vadd.f32 0.0, %v1927
        %v1929 = vpop.f32.mrf.mxu0
        %1930 = vmatprep.mubr.f32.mxu0 0.0
        %1931 = vmatmul.mubr.f32.gmra.mxu0 %v1207
        %v1932 = vpop.f32.mrf.mxu0
        %v1933 = vadd.f32 0.0, %v1932
        %v1934 = vpop.f32.mrf.mxu0
        %1935 = vmatprep.mubr.f32.mxu0 0.0
        %1936 = vmatmul.mubr.f32.gmra.mxu0 %v1208
        %v1937 = vpop.f32.mrf.mxu0
        %v1938 = vadd.f32 0.0, %v1937
        %v1939 = vpop.f32.mrf.mxu0
        %1940 = vmatprep.mubr.f32.mxu0 0.0
        %1941 = vmatmul.mubr.f32.gmra.mxu0 %v1209
        %v1942 = vpop.f32.mrf.mxu0
        %v1943 = vadd.f32 0.0, %v1942
        %v1944 = vpop.f32.mrf.mxu0
        %1945 = vmatprep.mubr.f32.mxu0 0.0
        %1946 = vmatmul.mubr.f32.gmra.mxu0 %v1210
        %v1947 = vpop.f32.mrf.mxu0
        %v1948 = vadd.f32 0.0, %v1947
        %v1949 = vpop.f32.mrf.mxu0
        %1950 = vmatprep.mubr.f32.mxu0 0.0
        %1951 = vmatmul.mubr.f32.gmra.mxu0 %v1211
        %v1952 = vpop.f32.mrf.mxu0
        %v1953 = vadd.f32 0.0, %v1952
        %v1954 = vpop.f32.mrf.mxu0
        %1955 = vmatprep.mubr.f32.mxu0 0.0
        %1956 = vmatmul.mubr.f32.gmra.mxu0 %v1212
        %v1957 = vpop.f32.mrf.mxu0
        %v1958 = vadd.f32 0.0, %v1957
        %v1959 = vpop.f32.mrf.mxu0
        %1960 = vmatprep.mubr.f32.mxu0 0.0
        %1961 = vmatmul.mubr.f32.gmra.mxu0 %v1213
        %v1962 = vpop.f32.mrf.mxu0
        %v1963 = vadd.f32 0.0, %v1962
        %v1964 = vpop.f32.mrf.mxu0
        %1965 = vmatprep.mubr.f32.mxu0 0.0
        %1966 = vmatmul.mubr.f32.gmra.mxu0 %v1214
        %v1967 = vpop.f32.mrf.mxu0
        %v1968 = vadd.f32 0.0, %v1967
        %v1969 = vpop.f32.mrf.mxu0
        %1970 = vmatprep.mubr.f32.mxu0 0.0
        %1971 = vmatmul.mubr.f32.gmra.mxu0 %v1215
        %v1972 = vpop.f32.mrf.mxu0
        %v1973 = vadd.f32 0.0, %v1972
        %v1974 = vpop.f32.mrf.mxu0
        %1975 = vmatprep.mubr.f32.mxu0 0.0
        %1976 = vmatmul.mubr.f32.gmra.mxu0 %v1216
        %v1977 = vpop.f32.mrf.mxu0
        %v1978 = vadd.f32 0.0, %v1977
        %v1979 = vpop.f32.mrf.mxu0
        %1980 = vmatprep.mubr.f32.mxu0 0.0
        %1981 = vmatmul.mubr.f32.gmra.mxu0 %v1217
        %v1982 = vpop.f32.mrf.mxu0
        %v1983 = vadd.f32 0.0, %v1982
        %v1984 = vpop.f32.mrf.mxu0
        %1985 = vmatprep.mubr.f32.mxu0 0.0
        %1986 = vmatmul.mubr.f32.gmra.mxu0 %v1218
        %v1987 = vpop.f32.mrf.mxu0
        %v1988 = vadd.f32 0.0, %v1987
        %v1989 = vpop.f32.mrf.mxu0
        %1990 = vmatprep.mubr.f32.mxu0 0.0
        %1991 = vmatmul.mubr.f32.gmra.mxu0 %v1219
        %v1992 = vpop.f32.mrf.mxu0
        %v1993 = vadd.f32 0.0, %v1992
        %v1994 = vpop.f32.mrf.mxu0
        %1995 = vmatprep.mubr.f32.mxu0 0.0
        %1996 = vmatmul.mubr.f32.gmra.mxu0 %v1220
        %v1997 = vpop.f32.mrf.mxu0
        %v1998 = vadd.f32 0.0, %v1997
        %v1999 = vpop.f32.mrf.mxu0
        %2000 = vmatprep.mubr.f32.mxu0 0.0
        %2001 = vmatmul.mubr.f32.gmra.mxu0 %v1221
        %v2002 = vpop.f32.mrf.mxu0
        %v2003 = vadd.f32 0.0, %v2002
        %v2004 = vpop.f32.mrf.mxu0
        %2005 = vdwg.mxu0
        %v2006 = vld [vmem:[%s9] sm:$0x1]
        %v2008 = vlaneseq
        %v2009 = vshrl.u32 %v2008, 7
        %v2010 = vsub.s32 0, %v2009
        %v2011 = vrot.slane %v2006, %v2010
        %v2013 = vmul.f32 %v1848, %v2011
        %v2014 = vmul.f32 %v1853, %v2011
        %v2015 = vmul.f32 %v1858, %v2011
        %v2016 = vmul.f32 %v1863, %v2011
        %v2017 = vmul.f32 %v1868, %v2011
        %v2018 = vmul.f32 %v1873, %v2011
        %v2019 = vmul.f32 %v1878, %v2011
        %v2020 = vmul.f32 %v1883, %v2011
        %v2021 = vmul.f32 %v1888, %v2011
        %v2022 = vmul.f32 %v1893, %v2011
        %v2023 = vmul.f32 %v1898, %v2011
        %v2024 = vmul.f32 %v1903, %v2011
        %v2025 = vmul.f32 %v1908, %v2011
        %v2026 = vmul.f32 %v1913, %v2011
        %v2027 = vmul.f32 %v1918, %v2011
        %v2028 = vmul.f32 %v1923, %v2011
        %v2029 = vmul.f32 %v1928, %v2011
        %v2030 = vmul.f32 %v1933, %v2011
        %v2031 = vmul.f32 %v1938, %v2011
        %v2032 = vmul.f32 %v1943, %v2011
        %v2033 = vmul.f32 %v1948, %v2011
        %v2034 = vmul.f32 %v1953, %v2011
        %v2035 = vmul.f32 %v1958, %v2011
        %v2036 = vmul.f32 %v1963, %v2011
        %v2037 = vmul.f32 %v1968, %v2011
        %v2038 = vmul.f32 %v1973, %v2011
        %v2039 = vmul.f32 %v1978, %v2011
        %v2040 = vmul.f32 %v1983, %v2011
        %v2041 = vmul.f32 %v1988, %v2011
        %v2042 = vmul.f32 %v1993, %v2011
        %v2043 = vmul.f32 %v1998, %v2011
        %v2044 = vmul.f32 %v2003, %v2011
        %v2045 = vld [vmem:[%s10] sm:$0x1]
        %v2047 = vlaneseq
        %v2048 = vshrl.u32 %v2047, 7
        %v2049 = vsub.s32 0, %v2048
        %v2050 = vrot.slane %v2045, %v2049
        %v2052 = vadd.f32 %v2013, %v2050
        %v2053 = vadd.f32 %v2014, %v2050
        %v2054 = vadd.f32 %v2015, %v2050
        %v2055 = vadd.f32 %v2016, %v2050
        %v2056 = vadd.f32 %v2017, %v2050
        %v2057 = vadd.f32 %v2018, %v2050
        %v2058 = vadd.f32 %v2019, %v2050
        %v2059 = vadd.f32 %v2020, %v2050
        %v2060 = vadd.f32 %v2021, %v2050
        %v2061 = vadd.f32 %v2022, %v2050
        %v2062 = vadd.f32 %v2023, %v2050
        %v2063 = vadd.f32 %v2024, %v2050
        %v2064 = vadd.f32 %v2025, %v2050
        %v2065 = vadd.f32 %v2026, %v2050
        %v2066 = vadd.f32 %v2027, %v2050
        %v2067 = vadd.f32 %v2028, %v2050
        %v2068 = vadd.f32 %v2029, %v2050
        %v2069 = vadd.f32 %v2030, %v2050
        %v2070 = vadd.f32 %v2031, %v2050
        %v2071 = vadd.f32 %v2032, %v2050
        %v2072 = vadd.f32 %v2033, %v2050
        %v2073 = vadd.f32 %v2034, %v2050
        %v2074 = vadd.f32 %v2035, %v2050
        %v2075 = vadd.f32 %v2036, %v2050
        %v2076 = vadd.f32 %v2037, %v2050
        %v2077 = vadd.f32 %v2038, %v2050
        %v2078 = vadd.f32 %v2039, %v2050
        %v2079 = vadd.f32 %v2040, %v2050
        %v2080 = vadd.f32 %v2041, %v2050
        %v2081 = vadd.f32 %v2042, %v2050
        %v2082 = vadd.f32 %v2043, %v2050
        %v2083 = vadd.f32 %v2044, %v2050
        %v2084 = vxor.u32 %v2052, 2147483648
        %v2085 = vxor.u32 %v2053, 2147483648
        %v2086 = vxor.u32 %v2054, 2147483648
        %v2087 = vxor.u32 %v2055, 2147483648
        %v2088 = vxor.u32 %v2056, 2147483648
        %v2089 = vxor.u32 %v2057, 2147483648
        %v2090 = vxor.u32 %v2058, 2147483648
        %v2091 = vxor.u32 %v2059, 2147483648
        %v2092 = vxor.u32 %v2060, 2147483648
        %v2093 = vxor.u32 %v2061, 2147483648
        %v2094 = vxor.u32 %v2062, 2147483648
        %v2095 = vxor.u32 %v2063, 2147483648
        %v2096 = vxor.u32 %v2064, 2147483648
        %v2097 = vxor.u32 %v2065, 2147483648
        %v2098 = vxor.u32 %v2066, 2147483648
        %v2099 = vxor.u32 %v2067, 2147483648
        %v2100 = vxor.u32 %v2068, 2147483648
        %v2101 = vxor.u32 %v2069, 2147483648
        %v2102 = vxor.u32 %v2070, 2147483648
        %v2103 = vxor.u32 %v2071, 2147483648
        %v2104 = vxor.u32 %v2072, 2147483648
        %v2105 = vxor.u32 %v2073, 2147483648
        %v2106 = vxor.u32 %v2074, 2147483648
        %v2107 = vxor.u32 %v2075, 2147483648
        %v2108 = vxor.u32 %v2076, 2147483648
        %v2109 = vxor.u32 %v2077, 2147483648
        %v2110 = vxor.u32 %v2078, 2147483648
        %v2111 = vxor.u32 %v2079, 2147483648
        %v2112 = vxor.u32 %v2080, 2147483648
        %v2113 = vxor.u32 %v2081, 2147483648
        %v2114 = vxor.u32 %v2082, 2147483648
        %v2115 = vxor.u32 %v2083, 2147483648
        %v2116 = vmul.f32 %v2084, 1.442695
        %v2117 = vpow.pop %v2116
        %v2118 = vmul.f32 %v2085, 1.442695
        %v2119 = vpow.pop %v2118
        %v2120 = vmul.f32 %v2086, 1.442695
        %v2121 = vpow.pop %v2120
        %v2122 = vmul.f32 %v2087, 1.442695
        %v2123 = vpow.pop %v2122
        %v2124 = vmul.f32 %v2088, 1.442695
        %v2125 = vpow.pop %v2124
        %v2126 = vmul.f32 %v2089, 1.442695
        %v2127 = vpow.pop %v2126
        %v2128 = vmul.f32 %v2090, 1.442695
        %v2129 = vpow.pop %v2128
        %v2130 = vmul.f32 %v2091, 1.442695
        %v2131 = vpow.pop %v2130
        %v2132 = vmul.f32 %v2092, 1.442695
        %v2133 = vpow.pop %v2132
        %v2134 = vmul.f32 %v2093, 1.442695
        %v2135 = vpow.pop %v2134
        %v2136 = vmul.f32 %v2094, 1.442695
        %v2137 = vpow.pop %v2136
        %v2138 = vmul.f32 %v2095, 1.442695
        %v2139 = vpow.pop %v2138
        %v2140 = vmul.f32 %v2096, 1.442695
        %v2141 = vpow.pop %v2140
        %v2142 = vmul.f32 %v2097, 1.442695
        %v2143 = vpow.pop %v2142
        %v2144 = vmul.f32 %v2098, 1.442695
        %v2145 = vpow.pop %v2144
        %v2146 = vmul.f32 %v2099, 1.442695
        %v2147 = vpow.pop %v2146
        %v2148 = vmul.f32 %v2100, 1.442695
        %v2149 = vpow.pop %v2148
        %v2150 = vmul.f32 %v2101, 1.442695
        %v2151 = vpow.pop %v2150
        %v2152 = vmul.f32 %v2102, 1.442695
        %v2153 = vpow.pop %v2152
        %v2154 = vmul.f32 %v2103, 1.442695
        %v2155 = vpow.pop %v2154
        %v2156 = vmul.f32 %v2104, 1.442695
        %v2157 = vpow.pop %v2156
        %v2158 = vmul.f32 %v2105, 1.442695
        %v2159 = vpow.pop %v2158
        %v2160 = vmul.f32 %v2106, 1.442695
        %v2161 = vpow.pop %v2160
        %v2162 = vmul.f32 %v2107, 1.442695
        %v2163 = vpow.pop %v2162
        %v2164 = vmul.f32 %v2108, 1.442695
        %v2165 = vpow.pop %v2164
        %v2166 = vmul.f32 %v2109, 1.442695
        %v2167 = vpow.pop %v2166
        %v2168 = vmul.f32 %v2110, 1.442695
        %v2169 = vpow.pop %v2168
        %v2170 = vmul.f32 %v2111, 1.442695
        %v2171 = vpow.pop %v2170
        %v2172 = vmul.f32 %v2112, 1.442695
        %v2173 = vpow.pop %v2172
        %v2174 = vmul.f32 %v2113, 1.442695
        %v2175 = vpow.pop %v2174
        %v2176 = vmul.f32 %v2114, 1.442695
        %v2177 = vpow.pop %v2176
        %v2178 = vmul.f32 %v2115, 1.442695
        %v2179 = vpow.pop %v2178
        %v2180 = vadd.f32 %v2117, 1.0
        %v2181 = vadd.f32 %v2119, 1.0
        %v2182 = vadd.f32 %v2121, 1.0
        %v2183 = vadd.f32 %v2123, 1.0
        %v2184 = vadd.f32 %v2125, 1.0
        %v2185 = vadd.f32 %v2127, 1.0
        %v2186 = vadd.f32 %v2129, 1.0
        %v2187 = vadd.f32 %v2131, 1.0
        %v2188 = vadd.f32 %v2133, 1.0
        %v2189 = vadd.f32 %v2135, 1.0
        %v2190 = vadd.f32 %v2137, 1.0
        %v2191 = vadd.f32 %v2139, 1.0
        %v2192 = vadd.f32 %v2141, 1.0
        %v2193 = vadd.f32 %v2143, 1.0
        %v2194 = vadd.f32 %v2145, 1.0
        %v2195 = vadd.f32 %v2147, 1.0
        %v2196 = vadd.f32 %v2149, 1.0
        %v2197 = vadd.f32 %v2151, 1.0
        %v2198 = vadd.f32 %v2153, 1.0
        %v2199 = vadd.f32 %v2155, 1.0
        %v2200 = vadd.f32 %v2157, 1.0
        %v2201 = vadd.f32 %v2159, 1.0
        %v2202 = vadd.f32 %v2161, 1.0
        %v2203 = vadd.f32 %v2163, 1.0
        %v2204 = vadd.f32 %v2165, 1.0
        %v2205 = vadd.f32 %v2167, 1.0
        %v2206 = vadd.f32 %v2169, 1.0
        %v2207 = vadd.f32 %v2171, 1.0
        %v2208 = vadd.f32 %v2173, 1.0
        %v2209 = vadd.f32 %v2175, 1.0
        %v2210 = vadd.f32 %v2177, 1.0
        %v2211 = vadd.f32 %v2179, 1.0
        %v2212 = vrcp.pop %v2180
        %v2213 = vmul.f32 1.0, %v2212
        %v2214 = vrcp.pop %v2181
        %v2215 = vmul.f32 1.0, %v2214
        %v2216 = vrcp.pop %v2182
        %v2217 = vmul.f32 1.0, %v2216
        %v2218 = vrcp.pop %v2183
        %v2219 = vmul.f32 1.0, %v2218
        %v2220 = vrcp.pop %v2184
        %v2221 = vmul.f32 1.0, %v2220
        %v2222 = vrcp.pop %v2185
        %v2223 = vmul.f32 1.0, %v2222
        %v2224 = vrcp.pop %v2186
        %v2225 = vmul.f32 1.0, %v2224
        %v2226 = vrcp.pop %v2187
        %v2227 = vmul.f32 1.0, %v2226
        %v2228 = vrcp.pop %v2188
        %v2229 = vmul.f32 1.0, %v2228
        %v2230 = vrcp.pop %v2189
        %v2231 = vmul.f32 1.0, %v2230
        %v2232 = vrcp.pop %v2190
        %v2233 = vmul.f32 1.0, %v2232
        %v2234 = vrcp.pop %v2191
        %v2235 = vmul.f32 1.0, %v2234
        %v2236 = vrcp.pop %v2192
        %v2237 = vmul.f32 1.0, %v2236
        %v2238 = vrcp.pop %v2193
        %v2239 = vmul.f32 1.0, %v2238
        %v2240 = vrcp.pop %v2194
        %v2241 = vmul.f32 1.0, %v2240
        %v2242 = vrcp.pop %v2195
        %v2243 = vmul.f32 1.0, %v2242
        %v2244 = vrcp.pop %v2196
        %v2245 = vmul.f32 1.0, %v2244
        %v2246 = vrcp.pop %v2197
        %v2247 = vmul.f32 1.0, %v2246
        %v2248 = vrcp.pop %v2198
        %v2249 = vmul.f32 1.0, %v2248
        %v2250 = vrcp.pop %v2199
        %v2251 = vmul.f32 1.0, %v2250
        %v2252 = vrcp.pop %v2200
        %v2253 = vmul.f32 1.0, %v2252
        %v2254 = vrcp.pop %v2201
        %v2255 = vmul.f32 1.0, %v2254
        %v2256 = vrcp.pop %v2202
        %v2257 = vmul.f32 1.0, %v2256
        %v2258 = vrcp.pop %v2203
        %v2259 = vmul.f32 1.0, %v2258
        %v2260 = vrcp.pop %v2204
        %v2261 = vmul.f32 1.0, %v2260
        %v2262 = vrcp.pop %v2205
        %v2263 = vmul.f32 1.0, %v2262
        %v2264 = vrcp.pop %v2206
        %v2265 = vmul.f32 1.0, %v2264
        %v2266 = vrcp.pop %v2207
        %v2267 = vmul.f32 1.0, %v2266
        %v2268 = vrcp.pop %v2208
        %v2269 = vmul.f32 1.0, %v2268
        %v2270 = vrcp.pop %v2209
        %v2271 = vmul.f32 1.0, %v2270
        %v2272 = vrcp.pop %v2210
        %v2273 = vmul.f32 1.0, %v2272
        %v2274 = vrcp.pop %v2211
        %v2275 = vmul.f32 1.0, %v2274
        %v2276 = vmul.f32 %v2052, %v2213
        %v2277 = vmul.f32 %v2053, %v2215
        %v2278 = vmul.f32 %v2054, %v2217
        %v2279 = vmul.f32 %v2055, %v2219
        %v2280 = vmul.f32 %v2056, %v2221
        %v2281 = vmul.f32 %v2057, %v2223
        %v2282 = vmul.f32 %v2058, %v2225
        %v2283 = vmul.f32 %v2059, %v2227
        %v2284 = vmul.f32 %v2060, %v2229
        %v2285 = vmul.f32 %v2061, %v2231
        %v2286 = vmul.f32 %v2062, %v2233
        %v2287 = vmul.f32 %v2063, %v2235
        %v2288 = vmul.f32 %v2064, %v2237
        %v2289 = vmul.f32 %v2065, %v2239
        %v2290 = vmul.f32 %v2066, %v2241
        %v2291 = vmul.f32 %v2067, %v2243
        %v2292 = vmul.f32 %v2068, %v2245
        %v2293 = vmul.f32 %v2069, %v2247
        %v2294 = vmul.f32 %v2070, %v2249
        %v2295 = vmul.f32 %v2071, %v2251
        %v2296 = vmul.f32 %v2072, %v2253
        %v2297 = vmul.f32 %v2073, %v2255
        %v2298 = vmul.f32 %v2074, %v2257
        %v2299 = vmul.f32 %v2075, %v2259
        %v2300 = vmul.f32 %v2076, %v2261
        %v2301 = vmul.f32 %v2077, %v2263
        %v2302 = vmul.f32 %v2078, %v2265
        %v2303 = vmul.f32 %v2079, %v2267
        %v2304 = vmul.f32 %v2080, %v2269
        %v2305 = vmul.f32 %v2081, %v2271
        %v2306 = vmul.f32 %v2082, %v2273
        %v2307 = vmul.f32 %v2083, %v2275
        %v2308 = vld [vmem:[%s11] sm:$0xff]
        %v2309 = vld [vmem:[%s12] sm:$0xff]
        %vm2310 = vcmask 64512
        %v2312 = vsel %vm2310, %v2276, 0
        %v2315 = vsel %vm2310, %v2277, 0
        %v2318 = vsel %vm2310, %v2278, 0
        %v2321 = vsel %vm2310, %v2279, 0
        %v2324 = vsel %vm2310, %v2280, 0
        %v2327 = vsel %vm2310, %v2281, 0
        %v2330 = vsel %vm2310, %v2282, 0
        %v2333 = vsel %vm2310, %v2283, 0
        %v2336 = vsel %vm2310, %v2284, 0
        %v2339 = vsel %vm2310, %v2285, 0
        %v2342 = vsel %vm2310, %v2286, 0
        %v2345 = vsel %vm2310, %v2287, 0
        %v2348 = vsel %vm2310, %v2288, 0
        %v2351 = vsel %vm2310, %v2289, 0
        %v2354 = vsel %vm2310, %v2290, 0
        %v2357 = vsel %vm2310, %v2291, 0
        %v2360 = vsel %vm2310, %v2292, 0
        %v2363 = vsel %vm2310, %v2293, 0
        %v2366 = vsel %vm2310, %v2294, 0
        %v2369 = vsel %vm2310, %v2295, 0
        %v2372 = vsel %vm2310, %v2296, 0
        %v2375 = vsel %vm2310, %v2297, 0
        %v2378 = vsel %vm2310, %v2298, 0
        %v2381 = vsel %vm2310, %v2299, 0
        %v2384 = vsel %vm2310, %v2300, 0
        %v2387 = vsel %vm2310, %v2301, 0
        %v2390 = vsel %vm2310, %v2302, 0
        %v2393 = vsel %vm2310, %v2303, 0
        %v2396 = vsel %vm2310, %v2304, 0
        %v2399 = vsel %vm2310, %v2305, 0
        %v2402 = vsel %vm2310, %v2306, 0
        %v2405 = vsel %vm2310, %v2307, 0
        %2407 = vmatprep.subr.mxu0 0.0
        %2408 = vmatpush1.msra.mxu0 0.0
        %2409 = vmatprep.subr.mxu0 0.0
        %2410 = vmatpush1.msra.mxu0 0.0
        %2411 = vmatprep.subr.mxu0 0.0
        %2412 = vmatpush1.msra.mxu0 0.0
        %2413 = vmatprep.subr.mxu0 0.0
        %2414 = vmatpush1.msra.mxu0 0.0
        %2415 = vmatprep.subr.mxu0 0.0
        %2416 = vmatpush1.msra.mxu0 0.0
        %2417 = vmatprep.subr.mxu0 0.0
        %2418 = vmatpush1.msra.mxu0 0.0
        %2419 = vmatprep.subr.mxu0 0.0
        %2420 = vmatpush1.msra.mxu0 0.0
        %2421 = vmatprep.subr.mxu0 0.0
        %2422 = vmatpush1.msra.mxu0 0.0
        %2423 = vmatprep.subr.mxu0 0.0
        %2424 = vmatpush1.msra.mxu0 0.0
        %2425 = vmatprep.subr.mxu0 0.0
        %2426 = vmatpush1.msra.mxu0 0.0
        %2427 = vmatprep.subr.mxu0 0.0
        %2428 = vmatpush1.msra.mxu0 0.0
        %2429 = vmatprep.subr.mxu0 0.0
        %2430 = vmatpush1.msra.mxu0 0.0
        %2431 = vmatprep.subr.mxu0 0.0
        %2432 = vmatpush1.msra.mxu0 0.0
        %2433 = vmatprep.subr.mxu0 0.0
        %2434 = vmatpush1.msra.mxu0 0.0
        %2435 = vmatprep.subr.mxu0 0.0
        %2436 = vmatpush1.msra.mxu0 0.0
        %2437 = vmatprep.subr.mxu0 0.0
        %2438 = vmatpush1.msra.mxu0 %v2309
        %2439 = vmatprep.subr.mxu0 0.0
        %2440 = vmatpush2.msra.mxu0 0.0
        %2441 = vmatprep.subr.mxu0 0.0
        %2442 = vmatpush2.msra.mxu0 0.0
        %2443 = vmatprep.subr.mxu0 0.0
        %2444 = vmatpush2.msra.mxu0 0.0
        %2445 = vmatprep.subr.mxu0 0.0
        %2446 = vmatpush2.msra.mxu0 0.0
        %2447 = vmatprep.subr.mxu0 0.0
        %2448 = vmatpush2.msra.mxu0 0.0
        %2449 = vmatprep.subr.mxu0 0.0
        %2450 = vmatpush2.msra.mxu0 0.0
        %2451 = vmatprep.subr.mxu0 0.0
        %2452 = vmatpush2.msra.mxu0 0.0
        %2453 = vmatprep.subr.mxu0 0.0
        %2454 = vmatpush2.msra.mxu0 0.0
        %2455 = vmatprep.subr.mxu0 0.0
        %2456 = vmatpush2.msra.mxu0 0.0
        %2457 = vmatprep.subr.mxu0 0.0
        %2458 = vmatpush2.msra.mxu0 0.0
        %2459 = vmatprep.subr.mxu0 0.0
        %2460 = vmatpush2.msra.mxu0 0.0
        %2461 = vmatprep.subr.mxu0 0.0
        %2462 = vmatpush2.msra.mxu0 0.0
        %2463 = vmatprep.subr.mxu0 0.0
        %2464 = vmatpush2.msra.mxu0 0.0
        %2465 = vmatprep.subr.mxu0 0.0
        %2466 = vmatpush2.msra.mxu0 0.0
        %2467 = vmatprep.subr.mxu0 0.0
        %2468 = vmatpush2.msra.mxu0 0.0
        %2469 = vmatprep.subr.mxu0 0.0
        %2470 = vmatpush2.msra.mxu0 0.0
        %2471 = vmatprep.mubr.f32.mxu0 0.0
        %2472 = vmatmul.mubr.f32.gmra.mxu0 %v2312
        %v2473 = vpop.f32.mrf.mxu0
        %v2474 = vadd.f32 0.0, %v2473
        %v2475 = vpop.f32.mrf.mxu0
        %2476 = vmatprep.mubr.f32.mxu0 0.0
        %2477 = vmatmul.mubr.f32.gmra.mxu0 %v2315
        %v2478 = vpop.f32.mrf.mxu0
        %v2479 = vadd.f32 0.0, %v2478
        %v2480 = vpop.f32.mrf.mxu0
        %2481 = vmatprep.mubr.f32.mxu0 0.0
        %2482 = vmatmul.mubr.f32.gmra.mxu0 %v2318
        %v2483 = vpop.f32.mrf.mxu0
        %v2484 = vadd.f32 0.0, %v2483
        %v2485 = vpop.f32.mrf.mxu0
        %2486 = vmatprep.mubr.f32.mxu0 0.0
        %2487 = vmatmul.mubr.f32.gmra.mxu0 %v2321
        %v2488 = vpop.f32.mrf.mxu0
        %v2489 = vadd.f32 0.0, %v2488
        %v2490 = vpop.f32.mrf.mxu0
        %2491 = vmatprep.mubr.f32.mxu0 0.0
        %2492 = vmatmul.mubr.f32.gmra.mxu0 %v2324
        %v2493 = vpop.f32.mrf.mxu0
        %v2494 = vadd.f32 0.0, %v2493
        %v2495 = vpop.f32.mrf.mxu0
        %2496 = vmatprep.mubr.f32.mxu0 0.0
        %2497 = vmatmul.mubr.f32.gmra.mxu0 %v2327
        %v2498 = vpop.f32.mrf.mxu0
        %v2499 = vadd.f32 0.0, %v2498
        %v2500 = vpop.f32.mrf.mxu0
        %2501 = vmatprep.mubr.f32.mxu0 0.0
        %2502 = vmatmul.mubr.f32.gmra.mxu0 %v2330
        %v2503 = vpop.f32.mrf.mxu0
        %v2504 = vadd.f32 0.0, %v2503
        %v2505 = vpop.f32.mrf.mxu0
        %2506 = vmatprep.mubr.f32.mxu0 0.0
        %2507 = vmatmul.mubr.f32.gmra.mxu0 %v2333
        %v2508 = vpop.f32.mrf.mxu0
        %v2509 = vadd.f32 0.0, %v2508
        %v2510 = vpop.f32.mrf.mxu0
        %2511 = vmatprep.mubr.f32.mxu0 0.0
        %2512 = vmatmul.mubr.f32.gmra.mxu0 %v2336
        %v2513 = vpop.f32.mrf.mxu0
        %v2514 = vadd.f32 0.0, %v2513
        %v2515 = vpop.f32.mrf.mxu0
        %2516 = vmatprep.mubr.f32.mxu0 0.0
        %2517 = vmatmul.mubr.f32.gmra.mxu0 %v2339
        %v2518 = vpop.f32.mrf.mxu0
        %v2519 = vadd.f32 0.0, %v2518
        %v2520 = vpop.f32.mrf.mxu0
        %2521 = vmatprep.mubr.f32.mxu0 0.0
        %2522 = vmatmul.mubr.f32.gmra.mxu0 %v2342
        %v2523 = vpop.f32.mrf.mxu0
        %v2524 = vadd.f32 0.0, %v2523
        %v2525 = vpop.f32.mrf.mxu0
        %2526 = vmatprep.mubr.f32.mxu0 0.0
        %2527 = vmatmul.mubr.f32.gmra.mxu0 %v2345
        %v2528 = vpop.f32.mrf.mxu0
        %v2529 = vadd.f32 0.0, %v2528
        %v2530 = vpop.f32.mrf.mxu0
        %2531 = vmatprep.mubr.f32.mxu0 0.0
        %2532 = vmatmul.mubr.f32.gmra.mxu0 %v2348
        %v2533 = vpop.f32.mrf.mxu0
        %v2534 = vadd.f32 0.0, %v2533
        %v2535 = vpop.f32.mrf.mxu0
        %2536 = vmatprep.mubr.f32.mxu0 0.0
        %2537 = vmatmul.mubr.f32.gmra.mxu0 %v2351
        %v2538 = vpop.f32.mrf.mxu0
        %v2539 = vadd.f32 0.0, %v2538
        %v2540 = vpop.f32.mrf.mxu0
        %2541 = vmatprep.mubr.f32.mxu0 0.0
        %2542 = vmatmul.mubr.f32.gmra.mxu0 %v2354
        %v2543 = vpop.f32.mrf.mxu0
        %v2544 = vadd.f32 0.0, %v2543
        %v2545 = vpop.f32.mrf.mxu0
        %2546 = vmatprep.mubr.f32.mxu0 0.0
        %2547 = vmatmul.mubr.f32.gmra.mxu0 %v2357
        %v2548 = vpop.f32.mrf.mxu0
        %v2549 = vadd.f32 0.0, %v2548
        %v2550 = vpop.f32.mrf.mxu0
        %2551 = vmatprep.mubr.f32.mxu0 0.0
        %2552 = vmatmul.mubr.f32.gmra.mxu0 %v2360
        %v2553 = vpop.f32.mrf.mxu0
        %v2554 = vadd.f32 0.0, %v2553
        %v2555 = vpop.f32.mrf.mxu0
        %2556 = vmatprep.mubr.f32.mxu0 0.0
        %2557 = vmatmul.mubr.f32.gmra.mxu0 %v2363
        %v2558 = vpop.f32.mrf.mxu0
        %v2559 = vadd.f32 0.0, %v2558
        %v2560 = vpop.f32.mrf.mxu0
        %2561 = vmatprep.mubr.f32.mxu0 0.0
        %2562 = vmatmul.mubr.f32.gmra.mxu0 %v2366
        %v2563 = vpop.f32.mrf.mxu0
        %v2564 = vadd.f32 0.0, %v2563
        %v2565 = vpop.f32.mrf.mxu0
        %2566 = vmatprep.mubr.f32.mxu0 0.0
        %2567 = vmatmul.mubr.f32.gmra.mxu0 %v2369
        %v2568 = vpop.f32.mrf.mxu0
        %v2569 = vadd.f32 0.0, %v2568
        %v2570 = vpop.f32.mrf.mxu0
        %2571 = vmatprep.mubr.f32.mxu0 0.0
        %2572 = vmatmul.mubr.f32.gmra.mxu0 %v2372
        %v2573 = vpop.f32.mrf.mxu0
        %v2574 = vadd.f32 0.0, %v2573
        %v2575 = vpop.f32.mrf.mxu0
        %2576 = vmatprep.mubr.f32.mxu0 0.0
        %2577 = vmatmul.mubr.f32.gmra.mxu0 %v2375
        %v2578 = vpop.f32.mrf.mxu0
        %v2579 = vadd.f32 0.0, %v2578
        %v2580 = vpop.f32.mrf.mxu0
        %2581 = vmatprep.mubr.f32.mxu0 0.0
        %2582 = vmatmul.mubr.f32.gmra.mxu0 %v2378
        %v2583 = vpop.f32.mrf.mxu0
        %v2584 = vadd.f32 0.0, %v2583
        %v2585 = vpop.f32.mrf.mxu0
        %2586 = vmatprep.mubr.f32.mxu0 0.0
        %2587 = vmatmul.mubr.f32.gmra.mxu0 %v2381
        %v2588 = vpop.f32.mrf.mxu0
        %v2589 = vadd.f32 0.0, %v2588
        %v2590 = vpop.f32.mrf.mxu0
        %2591 = vmatprep.mubr.f32.mxu0 0.0
        %2592 = vmatmul.mubr.f32.gmra.mxu0 %v2384
        %v2593 = vpop.f32.mrf.mxu0
        %v2594 = vadd.f32 0.0, %v2593
        %v2595 = vpop.f32.mrf.mxu0
        %2596 = vmatprep.mubr.f32.mxu0 0.0
        %2597 = vmatmul.mubr.f32.gmra.mxu0 %v2387
        %v2598 = vpop.f32.mrf.mxu0
        %v2599 = vadd.f32 0.0, %v2598
        %v2600 = vpop.f32.mrf.mxu0
        %2601 = vmatprep.mubr.f32.mxu0 0.0
        %2602 = vmatmul.mubr.f32.gmra.mxu0 %v2390
        %v2603 = vpop.f32.mrf.mxu0
        %v2604 = vadd.f32 0.0, %v2603
        %v2605 = vpop.f32.mrf.mxu0
        %2606 = vmatprep.mubr.f32.mxu0 0.0
        %2607 = vmatmul.mubr.f32.gmra.mxu0 %v2393
        %v2608 = vpop.f32.mrf.mxu0
        %v2609 = vadd.f32 0.0, %v2608
        %v2610 = vpop.f32.mrf.mxu0
        %2611 = vmatprep.mubr.f32.mxu0 0.0
        %2612 = vmatmul.mubr.f32.gmra.mxu0 %v2396
        %v2613 = vpop.f32.mrf.mxu0
        %v2614 = vadd.f32 0.0, %v2613
        %v2615 = vpop.f32.mrf.mxu0
        %2616 = vmatprep.mubr.f32.mxu0 0.0
        %2617 = vmatmul.mubr.f32.gmra.mxu0 %v2399
        %v2618 = vpop.f32.mrf.mxu0
        %v2619 = vadd.f32 0.0, %v2618
        %v2620 = vpop.f32.mrf.mxu0
        %2621 = vmatprep.mubr.f32.mxu0 0.0
        %2622 = vmatmul.mubr.f32.gmra.mxu0 %v2402
        %v2623 = vpop.f32.mrf.mxu0
        %v2624 = vadd.f32 0.0, %v2623
        %v2625 = vpop.f32.mrf.mxu0
        %2626 = vmatprep.mubr.f32.mxu0 0.0
        %2627 = vmatmul.mubr.f32.gmra.mxu0 %v2405
        %v2628 = vpop.f32.mrf.mxu0
        %v2629 = vadd.f32 0.0, %v2628
        %v2630 = vpop.f32.mrf.mxu0
        %2631 = vdwg.mxu0
        %v2633 = vsel %vm2310, %v1733, 0
        %v2636 = vsel %vm2310, %v1734, 0
        %v2639 = vsel %vm2310, %v1735, 0
        %v2642 = vsel %vm2310, %v1736, 0
        %v2645 = vsel %vm2310, %v1737, 0
        %v2648 = vsel %vm2310, %v1738, 0
        %v2651 = vsel %vm2310, %v1739, 0
        %v2654 = vsel %vm2310, %v1740, 0
        %v2657 = vsel %vm2310, %v1741, 0
        %v2660 = vsel %vm2310, %v1742, 0
        %v2663 = vsel %vm2310, %v1743, 0
        %v2666 = vsel %vm2310, %v1744, 0
        %v2669 = vsel %vm2310, %v1745, 0
        %v2672 = vsel %vm2310, %v1746, 0
        %v2675 = vsel %vm2310, %v1747, 0
        %v2678 = vsel %vm2310, %v1748, 0
        %v2681 = vsel %vm2310, %v1749, 0
        %v2684 = vsel %vm2310, %v1750, 0
        %v2687 = vsel %vm2310, %v1751, 0
        %v2690 = vsel %vm2310, %v1752, 0
        %v2693 = vsel %vm2310, %v1753, 0
        %v2696 = vsel %vm2310, %v1754, 0
        %v2699 = vsel %vm2310, %v1755, 0
        %v2702 = vsel %vm2310, %v1756, 0
        %v2705 = vsel %vm2310, %v1757, 0
        %v2708 = vsel %vm2310, %v1758, 0
        %v2711 = vsel %vm2310, %v1759, 0
        %v2714 = vsel %vm2310, %v1760, 0
        %v2717 = vsel %vm2310, %v1761, 0
        %v2720 = vsel %vm2310, %v1762, 0
        %v2723 = vsel %vm2310, %v1763, 0
        %v2726 = vsel %vm2310, %v1764, 0
        %2728 = vmatprep.subr.mxu0 0.0
        %2729 = vmatpush1.msra.mxu0 0.0
        %2730 = vmatprep.subr.mxu0 0.0
        %2731 = vmatpush1.msra.mxu0 0.0
        %2732 = vmatprep.subr.mxu0 0.0
        %2733 = vmatpush1.msra.mxu0 0.0
        %2734 = vmatprep.subr.mxu0 0.0
        %2735 = vmatpush1.msra.mxu0 0.0
        %2736 = vmatprep.subr.mxu0 0.0
        %2737 = vmatpush1.msra.mxu0 0.0
        %2738 = vmatprep.subr.mxu0 0.0
        %2739 = vmatpush1.msra.mxu0 0.0
        %2740 = vmatprep.subr.mxu0 0.0
        %2741 = vmatpush1.msra.mxu0 0.0
        %2742 = vmatprep.subr.mxu0 0.0
        %2743 = vmatpush1.msra.mxu0 0.0
        %2744 = vmatprep.subr.mxu0 0.0
        %2745 = vmatpush1.msra.mxu0 0.0
        %2746 = vmatprep.subr.mxu0 0.0
        %2747 = vmatpush1.msra.mxu0 0.0
        %2748 = vmatprep.subr.mxu0 0.0
        %2749 = vmatpush1.msra.mxu0 0.0
        %2750 = vmatprep.subr.mxu0 0.0
        %2751 = vmatpush1.msra.mxu0 0.0
        %2752 = vmatprep.subr.mxu0 0.0
        %2753 = vmatpush1.msra.mxu0 0.0
        %2754 = vmatprep.subr.mxu0 0.0
        %2755 = vmatpush1.msra.mxu0 0.0
        %2756 = vmatprep.subr.mxu0 0.0
        %2757 = vmatpush1.msra.mxu0 0.0
        %2758 = vmatprep.subr.mxu0 0.0
        %2759 = vmatpush1.msra.mxu0 %v2308
        %2760 = vmatprep.subr.mxu0 0.0
        %2761 = vmatpush2.msra.mxu0 0.0
        %2762 = vmatprep.subr.mxu0 0.0
        %2763 = vmatpush2.msra.mxu0 0.0
        %2764 = vmatprep.subr.mxu0 0.0
        %2765 = vmatpush2.msra.mxu0 0.0
        %2766 = vmatprep.subr.mxu0 0.0
        %2767 = vmatpush2.msra.mxu0 0.0
        %2768 = vmatprep.subr.mxu0 0.0
        %2769 = vmatpush2.msra.mxu0 0.0
        %2770 = vmatprep.subr.mxu0 0.0
        %2771 = vmatpush2.msra.mxu0 0.0
        %2772 = vmatprep.subr.mxu0 0.0
        %2773 = vmatpush2.msra.mxu0 0.0
        %2774 = vmatprep.subr.mxu0 0.0
        %2775 = vmatpush2.msra.mxu0 0.0
        %2776 = vmatprep.subr.mxu0 0.0
        %2777 = vmatpush2.msra.mxu0 0.0
        %2778 = vmatprep.subr.mxu0 0.0
        %2779 = vmatpush2.msra.mxu0 0.0
        %2780 = vmatprep.subr.mxu0 0.0
        %2781 = vmatpush2.msra.mxu0 0.0
        %2782 = vmatprep.subr.mxu0 0.0
        %2783 = vmatpush2.msra.mxu0 0.0
        %2784 = vmatprep.subr.mxu0 0.0
        %2785 = vmatpush2.msra.mxu0 0.0
        %2786 = vmatprep.subr.mxu0 0.0
        %2787 = vmatpush2.msra.mxu0 0.0
        %2788 = vmatprep.subr.mxu0 0.0
        %2789 = vmatpush2.msra.mxu0 0.0
        %2790 = vmatprep.subr.mxu0 0.0
        %2791 = vmatpush2.msra.mxu0 0.0
        %2792 = vmatprep.mubr.f32.mxu0 0.0
        %2793 = vmatmul.mubr.f32.gmra.mxu0 %v2633
        %v2794 = vpop.f32.mrf.mxu0
        %v2795 = vadd.f32 %v2474, %v2794
        %v2796 = vpop.f32.mrf.mxu0
        %2797 = vmatprep.mubr.f32.mxu0 0.0
        %2798 = vmatmul.mubr.f32.gmra.mxu0 %v2636
        %v2799 = vpop.f32.mrf.mxu0
        %v2800 = vadd.f32 %v2479, %v2799
        %v2801 = vpop.f32.mrf.mxu0
        %2802 = vmatprep.mubr.f32.mxu0 0.0
        %2803 = vmatmul.mubr.f32.gmra.mxu0 %v2639
        %v2804 = vpop.f32.mrf.mxu0
        %v2805 = vadd.f32 %v2484, %v2804
        %v2806 = vpop.f32.mrf.mxu0
        %2807 = vmatprep.mubr.f32.mxu0 0.0
        %2808 = vmatmul.mubr.f32.gmra.mxu0 %v2642
        %v2809 = vpop.f32.mrf.mxu0
        %v2810 = vadd.f32 %v2489, %v2809
        %v2811 = vpop.f32.mrf.mxu0
        %2812 = vmatprep.mubr.f32.mxu0 0.0
        %2813 = vmatmul.mubr.f32.gmra.mxu0 %v2645
        %v2814 = vpop.f32.mrf.mxu0
        %v2815 = vadd.f32 %v2494, %v2814
        %v2816 = vpop.f32.mrf.mxu0
        %2817 = vmatprep.mubr.f32.mxu0 0.0
        %2818 = vmatmul.mubr.f32.gmra.mxu0 %v2648
        %v2819 = vpop.f32.mrf.mxu0
        %v2820 = vadd.f32 %v2499, %v2819
        %v2821 = vpop.f32.mrf.mxu0
        %2822 = vmatprep.mubr.f32.mxu0 0.0
        %2823 = vmatmul.mubr.f32.gmra.mxu0 %v2651
        %v2824 = vpop.f32.mrf.mxu0
        %v2825 = vadd.f32 %v2504, %v2824
        %v2826 = vpop.f32.mrf.mxu0
        %2827 = vmatprep.mubr.f32.mxu0 0.0
        %2828 = vmatmul.mubr.f32.gmra.mxu0 %v2654
        %v2829 = vpop.f32.mrf.mxu0
        %v2830 = vadd.f32 %v2509, %v2829
        %v2831 = vpop.f32.mrf.mxu0
        %2832 = vmatprep.mubr.f32.mxu0 0.0
        %2833 = vmatmul.mubr.f32.gmra.mxu0 %v2657
        %v2834 = vpop.f32.mrf.mxu0
        %v2835 = vadd.f32 %v2514, %v2834
        %v2836 = vpop.f32.mrf.mxu0
        %2837 = vmatprep.mubr.f32.mxu0 0.0
        %2838 = vmatmul.mubr.f32.gmra.mxu0 %v2660
        %v2839 = vpop.f32.mrf.mxu0
        %v2840 = vadd.f32 %v2519, %v2839
        %v2841 = vpop.f32.mrf.mxu0
        %2842 = vmatprep.mubr.f32.mxu0 0.0
        %2843 = vmatmul.mubr.f32.gmra.mxu0 %v2663
        %v2844 = vpop.f32.mrf.mxu0
        %v2845 = vadd.f32 %v2524, %v2844
        %v2846 = vpop.f32.mrf.mxu0
        %2847 = vmatprep.mubr.f32.mxu0 0.0
        %2848 = vmatmul.mubr.f32.gmra.mxu0 %v2666
        %v2849 = vpop.f32.mrf.mxu0
        %v2850 = vadd.f32 %v2529, %v2849
        %v2851 = vpop.f32.mrf.mxu0
        %2852 = vmatprep.mubr.f32.mxu0 0.0
        %2853 = vmatmul.mubr.f32.gmra.mxu0 %v2669
        %v2854 = vpop.f32.mrf.mxu0
        %v2855 = vadd.f32 %v2534, %v2854
        %v2856 = vpop.f32.mrf.mxu0
        %2857 = vmatprep.mubr.f32.mxu0 0.0
        %2858 = vmatmul.mubr.f32.gmra.mxu0 %v2672
        %v2859 = vpop.f32.mrf.mxu0
        %v2860 = vadd.f32 %v2539, %v2859
        %v2861 = vpop.f32.mrf.mxu0
        %2862 = vmatprep.mubr.f32.mxu0 0.0
        %2863 = vmatmul.mubr.f32.gmra.mxu0 %v2675
        %v2864 = vpop.f32.mrf.mxu0
        %v2865 = vadd.f32 %v2544, %v2864
        %v2866 = vpop.f32.mrf.mxu0
        %2867 = vmatprep.mubr.f32.mxu0 0.0
        %2868 = vmatmul.mubr.f32.gmra.mxu0 %v2678
        %v2869 = vpop.f32.mrf.mxu0
        %v2870 = vadd.f32 %v2549, %v2869
        %v2871 = vpop.f32.mrf.mxu0
        %2872 = vmatprep.mubr.f32.mxu0 0.0
        %2873 = vmatmul.mubr.f32.gmra.mxu0 %v2681
        %v2874 = vpop.f32.mrf.mxu0
        %v2875 = vadd.f32 %v2554, %v2874
        %v2876 = vpop.f32.mrf.mxu0
        %2877 = vmatprep.mubr.f32.mxu0 0.0
        %2878 = vmatmul.mubr.f32.gmra.mxu0 %v2684
        %v2879 = vpop.f32.mrf.mxu0
        %v2880 = vadd.f32 %v2559, %v2879
        %v2881 = vpop.f32.mrf.mxu0
        %2882 = vmatprep.mubr.f32.mxu0 0.0
        %2883 = vmatmul.mubr.f32.gmra.mxu0 %v2687
        %v2884 = vpop.f32.mrf.mxu0
        %v2885 = vadd.f32 %v2564, %v2884
        %v2886 = vpop.f32.mrf.mxu0
        %2887 = vmatprep.mubr.f32.mxu0 0.0
        %2888 = vmatmul.mubr.f32.gmra.mxu0 %v2690
        %v2889 = vpop.f32.mrf.mxu0
        %v2890 = vadd.f32 %v2569, %v2889
        %v2891 = vpop.f32.mrf.mxu0
        %2892 = vmatprep.mubr.f32.mxu0 0.0
        %2893 = vmatmul.mubr.f32.gmra.mxu0 %v2693
        %v2894 = vpop.f32.mrf.mxu0
        %v2895 = vadd.f32 %v2574, %v2894
        %v2896 = vpop.f32.mrf.mxu0
        %2897 = vmatprep.mubr.f32.mxu0 0.0
        %2898 = vmatmul.mubr.f32.gmra.mxu0 %v2696
        %v2899 = vpop.f32.mrf.mxu0
        %v2900 = vadd.f32 %v2579, %v2899
        %v2901 = vpop.f32.mrf.mxu0
        %2902 = vmatprep.mubr.f32.mxu0 0.0
        %2903 = vmatmul.mubr.f32.gmra.mxu0 %v2699
        %v2904 = vpop.f32.mrf.mxu0
        %v2905 = vadd.f32 %v2584, %v2904
        %v2906 = vpop.f32.mrf.mxu0
        %2907 = vmatprep.mubr.f32.mxu0 0.0
        %2908 = vmatmul.mubr.f32.gmra.mxu0 %v2702
        %v2909 = vpop.f32.mrf.mxu0
        %v2910 = vadd.f32 %v2589, %v2909
        %v2911 = vpop.f32.mrf.mxu0
        %2912 = vmatprep.mubr.f32.mxu0 0.0
        %2913 = vmatmul.mubr.f32.gmra.mxu0 %v2705
        %v2914 = vpop.f32.mrf.mxu0
        %v2915 = vadd.f32 %v2594, %v2914
        %v2916 = vpop.f32.mrf.mxu0
        %2917 = vmatprep.mubr.f32.mxu0 0.0
        %2918 = vmatmul.mubr.f32.gmra.mxu0 %v2708
        %v2919 = vpop.f32.mrf.mxu0
        %v2920 = vadd.f32 %v2599, %v2919
        %v2921 = vpop.f32.mrf.mxu0
        %2922 = vmatprep.mubr.f32.mxu0 0.0
        %2923 = vmatmul.mubr.f32.gmra.mxu0 %v2711
        %v2924 = vpop.f32.mrf.mxu0
        %v2925 = vadd.f32 %v2604, %v2924
        %v2926 = vpop.f32.mrf.mxu0
        %2927 = vmatprep.mubr.f32.mxu0 0.0
        %2928 = vmatmul.mubr.f32.gmra.mxu0 %v2714
        %v2929 = vpop.f32.mrf.mxu0
        %v2930 = vadd.f32 %v2609, %v2929
        %v2931 = vpop.f32.mrf.mxu0
        %2932 = vmatprep.mubr.f32.mxu0 0.0
        %2933 = vmatmul.mubr.f32.gmra.mxu0 %v2717
        %v2934 = vpop.f32.mrf.mxu0
        %v2935 = vadd.f32 %v2614, %v2934
        %v2936 = vpop.f32.mrf.mxu0
        %2937 = vmatprep.mubr.f32.mxu0 0.0
        %2938 = vmatmul.mubr.f32.gmra.mxu0 %v2720
        %v2939 = vpop.f32.mrf.mxu0
        %v2940 = vadd.f32 %v2619, %v2939
        %v2941 = vpop.f32.mrf.mxu0
        %2942 = vmatprep.mubr.f32.mxu0 0.0
        %2943 = vmatmul.mubr.f32.gmra.mxu0 %v2723
        %v2944 = vpop.f32.mrf.mxu0
        %v2945 = vadd.f32 %v2624, %v2944
        %v2946 = vpop.f32.mrf.mxu0
        %2947 = vmatprep.mubr.f32.mxu0 0.0
        %2948 = vmatmul.mubr.f32.gmra.mxu0 %v2726
        %v2949 = vpop.f32.mrf.mxu0
        %v2950 = vadd.f32 %v2629, %v2949
        %v2951 = vpop.f32.mrf.mxu0
        %2952 = vdwg.mxu0
        %v2953 = vld [vmem:[%s13] sm:$0x1]
        %v2955 = vlaneseq
        %v2956 = vshrl.u32 %v2955, 7
        %v2957 = vsub.s32 0, %v2956
        %v2958 = vrot.slane %v2953, %v2957
        %v2960 = vadd.f32 %v2795, %v2958
        %v2961 = vadd.f32 %v2800, %v2958
        %v2962 = vadd.f32 %v2805, %v2958
        %v2963 = vadd.f32 %v2810, %v2958
        %v2964 = vadd.f32 %v2815, %v2958
        %v2965 = vadd.f32 %v2820, %v2958
        %v2966 = vadd.f32 %v2825, %v2958
        %v2967 = vadd.f32 %v2830, %v2958
        %v2968 = vadd.f32 %v2835, %v2958
        %v2969 = vadd.f32 %v2840, %v2958
        %v2970 = vadd.f32 %v2845, %v2958
        %v2971 = vadd.f32 %v2850, %v2958
        %v2972 = vadd.f32 %v2855, %v2958
        %v2973 = vadd.f32 %v2860, %v2958
        %v2974 = vadd.f32 %v2865, %v2958
        %v2975 = vadd.f32 %v2870, %v2958
        %v2976 = vadd.f32 %v2875, %v2958
        %v2977 = vadd.f32 %v2880, %v2958
        %v2978 = vadd.f32 %v2885, %v2958
        %v2979 = vadd.f32 %v2890, %v2958
        %v2980 = vadd.f32 %v2895, %v2958
        %v2981 = vadd.f32 %v2900, %v2958
        %v2982 = vadd.f32 %v2905, %v2958
        %v2983 = vadd.f32 %v2910, %v2958
        %v2984 = vadd.f32 %v2915, %v2958
        %v2985 = vadd.f32 %v2920, %v2958
        %v2986 = vadd.f32 %v2925, %v2958
        %v2987 = vadd.f32 %v2930, %v2958
        %v2988 = vadd.f32 %v2935, %v2958
        %v2989 = vadd.f32 %v2940, %v2958
        %v2990 = vadd.f32 %v2945, %v2958
        %v2991 = vadd.f32 %v2950, %v2958
        %3024 = vrot.lane.b32.xlu0 %v2960, 127
        %v3025 = vpop.permute.xlu0 %3024
        %3026 = vrot.lane.b32.xlu0 %v2961, 127
        %v3027 = vpop.permute.xlu0 %3026
        %3028 = vrot.lane.b32.xlu0 %v2962, 127
        %v3029 = vpop.permute.xlu0 %3028
        %3030 = vrot.lane.b32.xlu0 %v2963, 127
        %v3031 = vpop.permute.xlu0 %3030
        %3032 = vrot.lane.b32.xlu0 %v2964, 127
        %v3033 = vpop.permute.xlu0 %3032
        %3034 = vrot.lane.b32.xlu0 %v2965, 127
        %v3035 = vpop.permute.xlu0 %3034
        %3036 = vrot.lane.b32.xlu0 %v2966, 127
        %v3037 = vpop.permute.xlu0 %3036
        %3038 = vrot.lane.b32.xlu0 %v2967, 127
        %v3039 = vpop.permute.xlu0 %3038
        %3040 = vrot.lane.b32.xlu0 %v2968, 127
        %v3041 = vpop.permute.xlu0 %3040
        %3042 = vrot.lane.b32.xlu0 %v2969, 127
        %v3043 = vpop.permute.xlu0 %3042
        %3044 = vrot.lane.b32.xlu0 %v2970, 127
        %v3045 = vpop.permute.xlu0 %3044
        %3046 = vrot.lane.b32.xlu0 %v2971, 127
        %v3047 = vpop.permute.xlu0 %3046
        %3048 = vrot.lane.b32.xlu0 %v2972, 127
        %v3049 = vpop.permute.xlu0 %3048
        %3050 = vrot.lane.b32.xlu0 %v2973, 127
        %v3051 = vpop.permute.xlu0 %3050
        %3052 = vrot.lane.b32.xlu0 %v2974, 127
        %v3053 = vpop.permute.xlu0 %3052
        %3054 = vrot.lane.b32.xlu0 %v2975, 127
        %v3055 = vpop.permute.xlu0 %3054
        %3056 = vrot.lane.b32.xlu0 %v2976, 127
        %v3057 = vpop.permute.xlu0 %3056
        %3058 = vrot.lane.b32.xlu0 %v2977, 127
        %v3059 = vpop.permute.xlu0 %3058
        %3060 = vrot.lane.b32.xlu0 %v2978, 127
        %v3061 = vpop.permute.xlu0 %3060
        %3062 = vrot.lane.b32.xlu0 %v2979, 127
        %v3063 = vpop.permute.xlu0 %3062
        %3064 = vrot.lane.b32.xlu0 %v2980, 127
        %v3065 = vpop.permute.xlu0 %3064
        %3066 = vrot.lane.b32.xlu0 %v2981, 127
        %v3067 = vpop.permute.xlu0 %3066
        %3068 = vrot.lane.b32.xlu0 %v2982, 127
        %v3069 = vpop.permute.xlu0 %3068
        %3070 = vrot.lane.b32.xlu0 %v2983, 127
        %v3071 = vpop.permute.xlu0 %3070
        %3072 = vrot.lane.b32.xlu0 %v2984, 127
        %v3073 = vpop.permute.xlu0 %3072
        %3074 = vrot.lane.b32.xlu0 %v2985, 127
        %v3075 = vpop.permute.xlu0 %3074
        %3076 = vrot.lane.b32.xlu0 %v2986, 127
        %v3077 = vpop.permute.xlu0 %3076
        %3078 = vrot.lane.b32.xlu0 %v2987, 127
        %v3079 = vpop.permute.xlu0 %3078
        %3080 = vrot.lane.b32.xlu0 %v2988, 127
        %v3081 = vpop.permute.xlu0 %3080
        %3082 = vrot.lane.b32.xlu0 %v2989, 127
        %v3083 = vpop.permute.xlu0 %3082
        %3084 = vrot.lane.b32.xlu0 %v2990, 127
        %v3085 = vpop.permute.xlu0 %3084
        %3086 = vrot.lane.b32.xlu0 %v2991, 127
        %v3087 = vpop.permute.xlu0 %3086
        %v3120 = vsub.f32 %v2960, %v3025
        %v3121 = vsub.f32 %v2961, %v3027
        %v3122 = vsub.f32 %v2962, %v3029
        %v3123 = vsub.f32 %v2963, %v3031
        %v3124 = vsub.f32 %v2964, %v3033
        %v3125 = vsub.f32 %v2965, %v3035
        %v3126 = vsub.f32 %v2966, %v3037
        %v3127 = vsub.f32 %v2967, %v3039
        %v3128 = vsub.f32 %v2968, %v3041
        %v3129 = vsub.f32 %v2969, %v3043
        %v3130 = vsub.f32 %v2970, %v3045
        %v3131 = vsub.f32 %v2971, %v3047
        %v3132 = vsub.f32 %v2972, %v3049
        %v3133 = vsub.f32 %v2973, %v3051
        %v3134 = vsub.f32 %v2974, %v3053
        %v3135 = vsub.f32 %v2975, %v3055
        %v3136 = vsub.f32 %v2976, %v3057
        %v3137 = vsub.f32 %v2977, %v3059
        %v3138 = vsub.f32 %v2978, %v3061
        %v3139 = vsub.f32 %v2979, %v3063
        %v3140 = vsub.f32 %v2980, %v3065
        %v3141 = vsub.f32 %v2981, %v3067
        %v3142 = vsub.f32 %v2982, %v3069
        %v3143 = vsub.f32 %v2983, %v3071
        %v3144 = vsub.f32 %v2984, %v3073
        %v3145 = vsub.f32 %v2985, %v3075
        %v3146 = vsub.f32 %v2986, %v3077
        %v3147 = vsub.f32 %v2987, %v3079
        %v3148 = vsub.f32 %v2988, %v3081
        %v3149 = vsub.f32 %v2989, %v3083
        %v3150 = vsub.f32 %v2990, %v3085
        %v3151 = vsub.f32 %v2991, %v3087
        %v3152 = vxor.u32 %v3120, 2147483648
        %v3153 = vxor.u32 %v3121, 2147483648
        %v3154 = vxor.u32 %v3122, 2147483648
        %v3155 = vxor.u32 %v3123, 2147483648
        %v3156 = vxor.u32 %v3124, 2147483648
        %v3157 = vxor.u32 %v3125, 2147483648
        %v3158 = vxor.u32 %v3126, 2147483648
        %v3159 = vxor.u32 %v3127, 2147483648
        %v3160 = vxor.u32 %v3128, 2147483648
        %v3161 = vxor.u32 %v3129, 2147483648
        %v3162 = vxor.u32 %v3130, 2147483648
        %v3163 = vxor.u32 %v3131, 2147483648
        %v3164 = vxor.u32 %v3132, 2147483648
        %v3165 = vxor.u32 %v3133, 2147483648
        %v3166 = vxor.u32 %v3134, 2147483648
        %v3167 = vxor.u32 %v3135, 2147483648
        %v3168 = vxor.u32 %v3136, 2147483648
        %v3169 = vxor.u32 %v3137, 2147483648
        %v3170 = vxor.u32 %v3138, 2147483648
        %v3171 = vxor.u32 %v3139, 2147483648
        %v3172 = vxor.u32 %v3140, 2147483648
        %v3173 = vxor.u32 %v3141, 2147483648
        %v3174 = vxor.u32 %v3142, 2147483648
        %v3175 = vxor.u32 %v3143, 2147483648
        %v3176 = vxor.u32 %v3144, 2147483648
        %v3177 = vxor.u32 %v3145, 2147483648
        %v3178 = vxor.u32 %v3146, 2147483648
        %v3179 = vxor.u32 %v3147, 2147483648
        %v3180 = vxor.u32 %v3148, 2147483648
        %v3181 = vxor.u32 %v3149, 2147483648
        %v3182 = vxor.u32 %v3150, 2147483648
        %v3183 = vxor.u32 %v3151, 2147483648
        %v3184 = vmul.f32 %v3152, 1.442695
        %v3185 = vpow.pop %v3184
        %v3186 = vmul.f32 %v3153, 1.442695
        %v3187 = vpow.pop %v3186
        %v3188 = vmul.f32 %v3154, 1.442695
        %v3189 = vpow.pop %v3188
        %v3190 = vmul.f32 %v3155, 1.442695
        %v3191 = vpow.pop %v3190
        %v3192 = vmul.f32 %v3156, 1.442695
        %v3193 = vpow.pop %v3192
        %v3194 = vmul.f32 %v3157, 1.442695
        %v3195 = vpow.pop %v3194
        %v3196 = vmul.f32 %v3158, 1.442695
        %v3197 = vpow.pop %v3196
        %v3198 = vmul.f32 %v3159, 1.442695
        %v3199 = vpow.pop %v3198
        %v3200 = vmul.f32 %v3160, 1.442695
        %v3201 = vpow.pop %v3200
        %v3202 = vmul.f32 %v3161, 1.442695
        %v3203 = vpow.pop %v3202
        %v3204 = vmul.f32 %v3162, 1.442695
        %v3205 = vpow.pop %v3204
        %v3206 = vmul.f32 %v3163, 1.442695
        %v3207 = vpow.pop %v3206
        %v3208 = vmul.f32 %v3164, 1.442695
        %v3209 = vpow.pop %v3208
        %v3210 = vmul.f32 %v3165, 1.442695
        %v3211 = vpow.pop %v3210
        %v3212 = vmul.f32 %v3166, 1.442695
        %v3213 = vpow.pop %v3212
        %v3214 = vmul.f32 %v3167, 1.442695
        %v3215 = vpow.pop %v3214
        %v3216 = vmul.f32 %v3168, 1.442695
        %v3217 = vpow.pop %v3216
        %v3218 = vmul.f32 %v3169, 1.442695
        %v3219 = vpow.pop %v3218
        %v3220 = vmul.f32 %v3170, 1.442695
        %v3221 = vpow.pop %v3220
        %v3222 = vmul.f32 %v3171, 1.442695
        %v3223 = vpow.pop %v3222
        %v3224 = vmul.f32 %v3172, 1.442695
        %v3225 = vpow.pop %v3224
        %v3226 = vmul.f32 %v3173, 1.442695
        %v3227 = vpow.pop %v3226
        %v3228 = vmul.f32 %v3174, 1.442695
        %v3229 = vpow.pop %v3228
        %v3230 = vmul.f32 %v3175, 1.442695
        %v3231 = vpow.pop %v3230
        %v3232 = vmul.f32 %v3176, 1.442695
        %v3233 = vpow.pop %v3232
        %v3234 = vmul.f32 %v3177, 1.442695
        %v3235 = vpow.pop %v3234
        %v3236 = vmul.f32 %v3178, 1.442695
        %v3237 = vpow.pop %v3236
        %v3238 = vmul.f32 %v3179, 1.442695
        %v3239 = vpow.pop %v3238
        %v3240 = vmul.f32 %v3180, 1.442695
        %v3241 = vpow.pop %v3240
        %v3242 = vmul.f32 %v3181, 1.442695
        %v3243 = vpow.pop %v3242
        %v3244 = vmul.f32 %v3182, 1.442695
        %v3245 = vpow.pop %v3244
        %v3246 = vmul.f32 %v3183, 1.442695
        %v3247 = vpow.pop %v3246
        %v3248 = vadd.f32 %v3185, 1.0
        %v3249 = vadd.f32 %v3187, 1.0
        %v3250 = vadd.f32 %v3189, 1.0
        %v3251 = vadd.f32 %v3191, 1.0
        %v3252 = vadd.f32 %v3193, 1.0
        %v3253 = vadd.f32 %v3195, 1.0
        %v3254 = vadd.f32 %v3197, 1.0
        %v3255 = vadd.f32 %v3199, 1.0
        %v3256 = vadd.f32 %v3201, 1.0
        %v3257 = vadd.f32 %v3203, 1.0
        %v3258 = vadd.f32 %v3205, 1.0
        %v3259 = vadd.f32 %v3207, 1.0
        %v3260 = vadd.f32 %v3209, 1.0
        %v3261 = vadd.f32 %v3211, 1.0
        %v3262 = vadd.f32 %v3213, 1.0
        %v3263 = vadd.f32 %v3215, 1.0
        %v3264 = vadd.f32 %v3217, 1.0
        %v3265 = vadd.f32 %v3219, 1.0
        %v3266 = vadd.f32 %v3221, 1.0
        %v3267 = vadd.f32 %v3223, 1.0
        %v3268 = vadd.f32 %v3225, 1.0
        %v3269 = vadd.f32 %v3227, 1.0
        %v3270 = vadd.f32 %v3229, 1.0
        %v3271 = vadd.f32 %v3231, 1.0
        %v3272 = vadd.f32 %v3233, 1.0
        %v3273 = vadd.f32 %v3235, 1.0
        %v3274 = vadd.f32 %v3237, 1.0
        %v3275 = vadd.f32 %v3239, 1.0
        %v3276 = vadd.f32 %v3241, 1.0
        %v3277 = vadd.f32 %v3243, 1.0
        %v3278 = vadd.f32 %v3245, 1.0
        %v3279 = vadd.f32 %v3247, 1.0
        %v3280 = vrcp.pop %v3248
        %v3281 = vmul.f32 1.0, %v3280
        %v3282 = vrcp.pop %v3249
        %v3283 = vmul.f32 1.0, %v3282
        %v3284 = vrcp.pop %v3250
        %v3285 = vmul.f32 1.0, %v3284
        %v3286 = vrcp.pop %v3251
        %v3287 = vmul.f32 1.0, %v3286
        %v3288 = vrcp.pop %v3252
        %v3289 = vmul.f32 1.0, %v3288
        %v3290 = vrcp.pop %v3253
        %v3291 = vmul.f32 1.0, %v3290
        %v3292 = vrcp.pop %v3254
        %v3293 = vmul.f32 1.0, %v3292
        %v3294 = vrcp.pop %v3255
        %v3295 = vmul.f32 1.0, %v3294
        %v3296 = vrcp.pop %v3256
        %v3297 = vmul.f32 1.0, %v3296
        %v3298 = vrcp.pop %v3257
        %v3299 = vmul.f32 1.0, %v3298
        %v3300 = vrcp.pop %v3258
        %v3301 = vmul.f32 1.0, %v3300
        %v3302 = vrcp.pop %v3259
        %v3303 = vmul.f32 1.0, %v3302
        %v3304 = vrcp.pop %v3260
        %v3305 = vmul.f32 1.0, %v3304
        %v3306 = vrcp.pop %v3261
        %v3307 = vmul.f32 1.0, %v3306
        %v3308 = vrcp.pop %v3262
        %v3309 = vmul.f32 1.0, %v3308
        %v3310 = vrcp.pop %v3263
        %v3311 = vmul.f32 1.0, %v3310
        %v3312 = vrcp.pop %v3264
        %v3313 = vmul.f32 1.0, %v3312
        %v3314 = vrcp.pop %v3265
        %v3315 = vmul.f32 1.0, %v3314
        %v3316 = vrcp.pop %v3266
        %v3317 = vmul.f32 1.0, %v3316
        %v3318 = vrcp.pop %v3267
        %v3319 = vmul.f32 1.0, %v3318
        %v3320 = vrcp.pop %v3268
        %v3321 = vmul.f32 1.0, %v3320
        %v3322 = vrcp.pop %v3269
        %v3323 = vmul.f32 1.0, %v3322
        %v3324 = vrcp.pop %v3270
        %v3325 = vmul.f32 1.0, %v3324
        %v3326 = vrcp.pop %v3271
        %v3327 = vmul.f32 1.0, %v3326
        %v3328 = vrcp.pop %v3272
        %v3329 = vmul.f32 1.0, %v3328
        %v3330 = vrcp.pop %v3273
        %v3331 = vmul.f32 1.0, %v3330
        %v3332 = vrcp.pop %v3274
        %v3333 = vmul.f32 1.0, %v3332
        %v3334 = vrcp.pop %v3275
        %v3335 = vmul.f32 1.0, %v3334
        %v3336 = vrcp.pop %v3276
        %v3337 = vmul.f32 1.0, %v3336
        %v3338 = vrcp.pop %v3277
        %v3339 = vmul.f32 1.0, %v3338
        %v3340 = vrcp.pop %v3278
        %v3341 = vmul.f32 1.0, %v3340
        %v3342 = vrcp.pop %v3279
        %v3343 = vmul.f32 1.0, %v3342
        %3345 = vset.pattern.permute.xlu0 0
        %3346 = vperm.xlu0 %3345, %v3281
        %v3347 = vpop.permute.xlu0 %3346
        %3350 = vset.pattern.permute.xlu0 0
        %3351 = vperm.xlu0 %3350, %v3283
        %v3352 = vpop.permute.xlu0 %3351
        %3355 = vset.pattern.permute.xlu0 0
        %3356 = vperm.xlu0 %3355, %v3285
        %v3357 = vpop.permute.xlu0 %3356
        %3360 = vset.pattern.permute.xlu0 0
        %3361 = vperm.xlu0 %3360, %v3287
        %v3362 = vpop.permute.xlu0 %3361
        %3365 = vset.pattern.permute.xlu0 0
        %3366 = vperm.xlu0 %3365, %v3289
        %v3367 = vpop.permute.xlu0 %3366
        %3370 = vset.pattern.permute.xlu0 0
        %3371 = vperm.xlu0 %3370, %v3291
        %v3372 = vpop.permute.xlu0 %3371
        %3375 = vset.pattern.permute.xlu0 0
        %3376 = vperm.xlu0 %3375, %v3293
        %v3377 = vpop.permute.xlu0 %3376
        %3380 = vset.pattern.permute.xlu0 0
        %3381 = vperm.xlu0 %3380, %v3295
        %v3382 = vpop.permute.xlu0 %3381
        %3385 = vset.pattern.permute.xlu0 0
        %3386 = vperm.xlu0 %3385, %v3297
        %v3387 = vpop.permute.xlu0 %3386
        %3390 = vset.pattern.permute.xlu0 0
        %3391 = vperm.xlu0 %3390, %v3299
        %v3392 = vpop.permute.xlu0 %3391
        %3395 = vset.pattern.permute.xlu0 0
        %3396 = vperm.xlu0 %3395, %v3301
        %v3397 = vpop.permute.xlu0 %3396
        %3400 = vset.pattern.permute.xlu0 0
        %3401 = vperm.xlu0 %3400, %v3303
        %v3402 = vpop.permute.xlu0 %3401
        %3405 = vset.pattern.permute.xlu0 0
        %3406 = vperm.xlu0 %3405, %v3305
        %v3407 = vpop.permute.xlu0 %3406
        %3410 = vset.pattern.permute.xlu0 0
        %3411 = vperm.xlu0 %3410, %v3307
        %v3412 = vpop.permute.xlu0 %3411
        %3415 = vset.pattern.permute.xlu0 0
        %3416 = vperm.xlu0 %3415, %v3309
        %v3417 = vpop.permute.xlu0 %3416
        %3420 = vset.pattern.permute.xlu0 0
        %3421 = vperm.xlu0 %3420, %v3311
        %v3422 = vpop.permute.xlu0 %3421
        %3425 = vset.pattern.permute.xlu0 0
        %3426 = vperm.xlu0 %3425, %v3313
        %v3427 = vpop.permute.xlu0 %3426
        %3430 = vset.pattern.permute.xlu0 0
        %3431 = vperm.xlu0 %3430, %v3315
        %v3432 = vpop.permute.xlu0 %3431
        %3435 = vset.pattern.permute.xlu0 0
        %3436 = vperm.xlu0 %3435, %v3317
        %v3437 = vpop.permute.xlu0 %3436
        %3440 = vset.pattern.permute.xlu0 0
        %3441 = vperm.xlu0 %3440, %v3319
        %v3442 = vpop.permute.xlu0 %3441
        %3445 = vset.pattern.permute.xlu0 0
        %3446 = vperm.xlu0 %3445, %v3321
        %v3447 = vpop.permute.xlu0 %3446
        %3450 = vset.pattern.permute.xlu0 0
        %3451 = vperm.xlu0 %3450, %v3323
        %v3452 = vpop.permute.xlu0 %3451
        %3455 = vset.pattern.permute.xlu0 0
        %3456 = vperm.xlu0 %3455, %v3325
        %v3457 = vpop.permute.xlu0 %3456
        %3460 = vset.pattern.permute.xlu0 0
        %3461 = vperm.xlu0 %3460, %v3327
        %v3462 = vpop.permute.xlu0 %3461
        %3465 = vset.pattern.permute.xlu0 0
        %3466 = vperm.xlu0 %3465, %v3329
        %v3467 = vpop.permute.xlu0 %3466
        %3470 = vset.pattern.permute.xlu0 0
        %3471 = vperm.xlu0 %3470, %v3331
        %v3472 = vpop.permute.xlu0 %3471
        %3475 = vset.pattern.permute.xlu0 0
        %3476 = vperm.xlu0 %3475, %v3333
        %v3477 = vpop.permute.xlu0 %3476
        %3480 = vset.pattern.permute.xlu0 0
        %3481 = vperm.xlu0 %3480, %v3335
        %v3482 = vpop.permute.xlu0 %3481
        %3485 = vset.pattern.permute.xlu0 0
        %3486 = vperm.xlu0 %3485, %v3337
        %v3487 = vpop.permute.xlu0 %3486
        %3490 = vset.pattern.permute.xlu0 0
        %3491 = vperm.xlu0 %3490, %v3339
        %v3492 = vpop.permute.xlu0 %3491
        %3495 = vset.pattern.permute.xlu0 0
        %3496 = vperm.xlu0 %3495, %v3341
        %v3497 = vpop.permute.xlu0 %3496
        %3500 = vset.pattern.permute.xlu0 0
        %3501 = vperm.xlu0 %3500, %v3343
        %v3502 = vpop.permute.xlu0 %3501
        %v3504 = vmul.f32 %v1158, %v3347
        %v3505 = vmul.f32 %v1159, %v3352
        %v3506 = vmul.f32 %v1160, %v3357
        %v3507 = vmul.f32 %v1161, %v3362
        %v3508 = vmul.f32 %v1162, %v3367
        %v3509 = vmul.f32 %v1163, %v3372
        %v3510 = vmul.f32 %v1164, %v3377
        %v3511 = vmul.f32 %v1165, %v3382
        %v3512 = vmul.f32 %v1166, %v3387
        %v3513 = vmul.f32 %v1167, %v3392
        %v3514 = vmul.f32 %v1168, %v3397
        %v3515 = vmul.f32 %v1169, %v3402
        %v3516 = vmul.f32 %v1170, %v3407
        %v3517 = vmul.f32 %v1171, %v3412
        %v3518 = vmul.f32 %v1172, %v3417
        %v3519 = vmul.f32 %v1173, %v3422
        %v3520 = vmul.f32 %v1174, %v3427
        %v3521 = vmul.f32 %v1175, %v3432
        %v3522 = vmul.f32 %v1176, %v3437
        %v3523 = vmul.f32 %v1177, %v3442
        %v3524 = vmul.f32 %v1178, %v3447
        %v3525 = vmul.f32 %v1179, %v3452
        %v3526 = vmul.f32 %v1180, %v3457
        %v3527 = vmul.f32 %v1181, %v3462
        %v3528 = vmul.f32 %v1182, %v3467
        %v3529 = vmul.f32 %v1183, %v3472
        %v3530 = vmul.f32 %v1184, %v3477
        %v3531 = vmul.f32 %v1185, %v3482
        %v3532 = vmul.f32 %v1186, %v3487
        %v3533 = vmul.f32 %v1187, %v3492
        %v3534 = vmul.f32 %v1188, %v3497
        %v3535 = vmul.f32 %v1189, %v3502
        %v3536 = vsub.f32 1.0, %v3281
        %v3537 = vsub.f32 1.0, %v3283
        %v3538 = vsub.f32 1.0, %v3285
        %v3539 = vsub.f32 1.0, %v3287
        %v3540 = vsub.f32 1.0, %v3289
        %v3541 = vsub.f32 1.0, %v3291
        %v3542 = vsub.f32 1.0, %v3293
        %v3543 = vsub.f32 1.0, %v3295
        %v3544 = vsub.f32 1.0, %v3297
        %v3545 = vsub.f32 1.0, %v3299
        %v3546 = vsub.f32 1.0, %v3301
        %v3547 = vsub.f32 1.0, %v3303
        %v3548 = vsub.f32 1.0, %v3305
        %v3549 = vsub.f32 1.0, %v3307
        %v3550 = vsub.f32 1.0, %v3309
        %v3551 = vsub.f32 1.0, %v3311
        %v3552 = vsub.f32 1.0, %v3313
        %v3553 = vsub.f32 1.0, %v3315
        %v3554 = vsub.f32 1.0, %v3317
        %v3555 = vsub.f32 1.0, %v3319
        %v3556 = vsub.f32 1.0, %v3321
        %v3557 = vsub.f32 1.0, %v3323
        %v3558 = vsub.f32 1.0, %v3325
        %v3559 = vsub.f32 1.0, %v3327
        %v3560 = vsub.f32 1.0, %v3329
        %v3561 = vsub.f32 1.0, %v3331
        %v3562 = vsub.f32 1.0, %v3333
        %v3563 = vsub.f32 1.0, %v3335
        %v3564 = vsub.f32 1.0, %v3337
        %v3565 = vsub.f32 1.0, %v3339
        %v3566 = vsub.f32 1.0, %v3341
        %v3567 = vsub.f32 1.0, %v3343
        %3569 = vset.pattern.permute.xlu0 0
        %3570 = vperm.xlu0 %3569, %v3536
        %v3571 = vpop.permute.xlu0 %3570
        %3574 = vset.pattern.permute.xlu0 0
        %3575 = vperm.xlu0 %3574, %v3537
        %v3576 = vpop.permute.xlu0 %3575
        %3579 = vset.pattern.permute.xlu0 0
        %3580 = vperm.xlu0 %3579, %v3538
        %v3581 = vpop.permute.xlu0 %3580
        %3584 = vset.pattern.permute.xlu0 0
        %3585 = vperm.xlu0 %3584, %v3539
        %v3586 = vpop.permute.xlu0 %3585
        %3589 = vset.pattern.permute.xlu0 0
        %3590 = vperm.xlu0 %3589, %v3540
        %v3591 = vpop.permute.xlu0 %3590
        %3594 = vset.pattern.permute.xlu0 0
        %3595 = vperm.xlu0 %3594, %v3541
        %v3596 = vpop.permute.xlu0 %3595
        %3599 = vset.pattern.permute.xlu0 0
        %3600 = vperm.xlu0 %3599, %v3542
        %v3601 = vpop.permute.xlu0 %3600
        %3604 = vset.pattern.permute.xlu0 0
        %3605 = vperm.xlu0 %3604, %v3543
        %v3606 = vpop.permute.xlu0 %3605
        %3609 = vset.pattern.permute.xlu0 0
        %3610 = vperm.xlu0 %3609, %v3544
        %v3611 = vpop.permute.xlu0 %3610
        %3614 = vset.pattern.permute.xlu0 0
        %3615 = vperm.xlu0 %3614, %v3545
        %v3616 = vpop.permute.xlu0 %3615
        %3619 = vset.pattern.permute.xlu0 0
        %3620 = vperm.xlu0 %3619, %v3546
        %v3621 = vpop.permute.xlu0 %3620
        %3624 = vset.pattern.permute.xlu0 0
        %3625 = vperm.xlu0 %3624, %v3547
        %v3626 = vpop.permute.xlu0 %3625
        %3629 = vset.pattern.permute.xlu0 0
        %3630 = vperm.xlu0 %3629, %v3548
        %v3631 = vpop.permute.xlu0 %3630
        %3634 = vset.pattern.permute.xlu0 0
        %3635 = vperm.xlu0 %3634, %v3549
        %v3636 = vpop.permute.xlu0 %3635
        %3639 = vset.pattern.permute.xlu0 0
        %3640 = vperm.xlu0 %3639, %v3550
        %v3641 = vpop.permute.xlu0 %3640
        %3644 = vset.pattern.permute.xlu0 0
        %3645 = vperm.xlu0 %3644, %v3551
        %v3646 = vpop.permute.xlu0 %3645
        %3649 = vset.pattern.permute.xlu0 0
        %3650 = vperm.xlu0 %3649, %v3552
        %v3651 = vpop.permute.xlu0 %3650
        %3654 = vset.pattern.permute.xlu0 0
        %3655 = vperm.xlu0 %3654, %v3553
        %v3656 = vpop.permute.xlu0 %3655
        %3659 = vset.pattern.permute.xlu0 0
        %3660 = vperm.xlu0 %3659, %v3554
        %v3661 = vpop.permute.xlu0 %3660
        %3664 = vset.pattern.permute.xlu0 0
        %3665 = vperm.xlu0 %3664, %v3555
        %v3666 = vpop.permute.xlu0 %3665
        %3669 = vset.pattern.permute.xlu0 0
        %3670 = vperm.xlu0 %3669, %v3556
        %v3671 = vpop.permute.xlu0 %3670
        %3674 = vset.pattern.permute.xlu0 0
        %3675 = vperm.xlu0 %3674, %v3557
        %v3676 = vpop.permute.xlu0 %3675
        %3679 = vset.pattern.permute.xlu0 0
        %3680 = vperm.xlu0 %3679, %v3558
        %v3681 = vpop.permute.xlu0 %3680
        %3684 = vset.pattern.permute.xlu0 0
        %3685 = vperm.xlu0 %3684, %v3559
        %v3686 = vpop.permute.xlu0 %3685
        %3689 = vset.pattern.permute.xlu0 0
        %3690 = vperm.xlu0 %3689, %v3560
        %v3691 = vpop.permute.xlu0 %3690
        %3694 = vset.pattern.permute.xlu0 0
        %3695 = vperm.xlu0 %3694, %v3561
        %v3696 = vpop.permute.xlu0 %3695
        %3699 = vset.pattern.permute.xlu0 0
        %3700 = vperm.xlu0 %3699, %v3562
        %v3701 = vpop.permute.xlu0 %3700
        %3704 = vset.pattern.permute.xlu0 0
        %3705 = vperm.xlu0 %3704, %v3563
        %v3706 = vpop.permute.xlu0 %3705
        %3709 = vset.pattern.permute.xlu0 0
        %3710 = vperm.xlu0 %3709, %v3564
        %v3711 = vpop.permute.xlu0 %3710
        %3714 = vset.pattern.permute.xlu0 0
        %3715 = vperm.xlu0 %3714, %v3565
        %v3716 = vpop.permute.xlu0 %3715
        %3719 = vset.pattern.permute.xlu0 0
        %3720 = vperm.xlu0 %3719, %v3566
        %v3721 = vpop.permute.xlu0 %3720
        %3724 = vset.pattern.permute.xlu0 0
        %3725 = vperm.xlu0 %3724, %v3567
        %v3726 = vpop.permute.xlu0 %3725
        %v3728 = vmul.f32 %v1190, %v3571
        %v3729 = vmul.f32 %v1191, %v3576
        %v3730 = vmul.f32 %v1192, %v3581
        %v3731 = vmul.f32 %v1193, %v3586
        %v3732 = vmul.f32 %v1194, %v3591
        %v3733 = vmul.f32 %v1195, %v3596
        %v3734 = vmul.f32 %v1196, %v3601
        %v3735 = vmul.f32 %v1197, %v3606
        %v3736 = vmul.f32 %v1198, %v3611
        %v3737 = vmul.f32 %v1199, %v3616
        %v3738 = vmul.f32 %v1200, %v3621
        %v3739 = vmul.f32 %v1201, %v3626
        %v3740 = vmul.f32 %v1202, %v3631
        %v3741 = vmul.f32 %v1203, %v3636
        %v3742 = vmul.f32 %v1204, %v3641
        %v3743 = vmul.f32 %v1205, %v3646
        %v3744 = vmul.f32 %v1206, %v3651
        %v3745 = vmul.f32 %v1207, %v3656
        %v3746 = vmul.f32 %v1208, %v3661
        %v3747 = vmul.f32 %v1209, %v3666
        %v3748 = vmul.f32 %v1210, %v3671
        %v3749 = vmul.f32 %v1211, %v3676
        %v3750 = vmul.f32 %v1212, %v3681
        %v3751 = vmul.f32 %v1213, %v3686
        %v3752 = vmul.f32 %v1214, %v3691
        %v3753 = vmul.f32 %v1215, %v3696
        %v3754 = vmul.f32 %v1216, %v3701
        %v3755 = vmul.f32 %v1217, %v3706
        %v3756 = vmul.f32 %v1218, %v3711
        %v3757 = vmul.f32 %v1219, %v3716
        %v3758 = vmul.f32 %v1220, %v3721
        %v3759 = vmul.f32 %v1221, %v3726
        %v3760 = vadd.f32 %v3504, %v3728
        %v3761 = vadd.f32 %v3505, %v3729
        %v3762 = vadd.f32 %v3506, %v3730
        %v3763 = vadd.f32 %v3507, %v3731
        %v3764 = vadd.f32 %v3508, %v3732
        %v3765 = vadd.f32 %v3509, %v3733
        %v3766 = vadd.f32 %v3510, %v3734
        %v3767 = vadd.f32 %v3511, %v3735
        %v3768 = vadd.f32 %v3512, %v3736
        %v3769 = vadd.f32 %v3513, %v3737
        %v3770 = vadd.f32 %v3514, %v3738
        %v3771 = vadd.f32 %v3515, %v3739
        %v3772 = vadd.f32 %v3516, %v3740
        %v3773 = vadd.f32 %v3517, %v3741
        %v3774 = vadd.f32 %v3518, %v3742
        %v3775 = vadd.f32 %v3519, %v3743
        %v3776 = vadd.f32 %v3520, %v3744
        %v3777 = vadd.f32 %v3521, %v3745
        %v3778 = vadd.f32 %v3522, %v3746
        %v3779 = vadd.f32 %v3523, %v3747
        %v3780 = vadd.f32 %v3524, %v3748
        %v3781 = vadd.f32 %v3525, %v3749
        %v3782 = vadd.f32 %v3526, %v3750
        %v3783 = vadd.f32 %v3527, %v3751
        %v3784 = vadd.f32 %v3528, %v3752
        %v3785 = vadd.f32 %v3529, %v3753
        %v3786 = vadd.f32 %v3530, %v3754
        %v3787 = vadd.f32 %v3531, %v3755
        %v3788 = vadd.f32 %v3532, %v3756
        %v3789 = vadd.f32 %v3533, %v3757
        %v3790 = vadd.f32 %v3534, %v3758
        %v3791 = vadd.f32 %v3535, %v3759
        %3792 = vst [vmem:[#allocation2] sm:$0xff] 0.0
        %3793 = vst [vmem:[#allocation2 + $0x8] sm:$0xff] 0.0
        %3794 = vst [vmem:[#allocation2 + $0x10] sm:$0x3] 0.0
        %s3795 = scalar_lea.vmem [#allocation2], 408
        %3796 = vst [vmem:[%s3795] sm:$0xff] 0.0
        %3797 = vst [vmem:[%s3795 + $0x8] sm:$0xff] 0.0
        %3798 = vst [vmem:[%s3795 + $0x10] sm:$0x3] 0.0
        %3799 = vst [vmem:[#allocation2] sm:$0x1] 0.0
        %3800 = vst [vmem:[#allocation2 + $0x18] sm:$0x1] 0.0
        %3801 = vst [vmem:[#allocation2 + $0x30] sm:$0x1] 0.0
        %3802 = vst [vmem:[#allocation2 + $0x48] sm:$0x1] 0.0
        %3803 = vst [vmem:[#allocation2 + $0x60] sm:$0x1] 0.0
        %3804 = vst [vmem:[#allocation2 + $0x78] sm:$0x1] 0.0
        %3805 = vst [vmem:[#allocation2 + $0x90] sm:$0x1] 0.0
        %3806 = vst [vmem:[#allocation2 + $0xa8] sm:$0x1] 0.0
        %3807 = vst [vmem:[#allocation2 + $0xc0] sm:$0x1] 0.0
        %3808 = vst [vmem:[#allocation2 + $0xd8] sm:$0x1] 0.0
        %3809 = vst [vmem:[#allocation2 + $0xf0] sm:$0x1] 0.0
        %3810 = vst [vmem:[#allocation2 + $0x108] sm:$0x1] 0.0
        %3811 = vst [vmem:[#allocation2 + $0x120] sm:$0x1] 0.0
        %3812 = vst [vmem:[#allocation2 + $0x138] sm:$0x1] 0.0
        %3813 = vst [vmem:[#allocation2 + $0x150] sm:$0x1] 0.0
        %3814 = vst [vmem:[#allocation2 + $0x168] sm:$0x1] 0.0
        %3815 = vst [vmem:[#allocation2 + $0x180] sm:$0x1] 0.0
        %3816 = vst [vmem:[#allocation2 + $0x198] sm:$0x1] 0.0
        %3817 = vst [vmem:[#allocation2 + $0x11] sm:$0x1] 0.0
        %3818 = vst [vmem:[#allocation2 + $0x29] sm:$0x1] 0.0
        %3819 = vst [vmem:[#allocation2 + $0x41] sm:$0x1] 0.0
        %3820 = vst [vmem:[#allocation2 + $0x59] sm:$0x1] 0.0
        %3821 = vst [vmem:[#allocation2 + $0x71] sm:$0x1] 0.0
        %3822 = vst [vmem:[#allocation2 + $0x89] sm:$0x1] 0.0
        %3823 = vst [vmem:[#allocation2 + $0xa1] sm:$0x1] 0.0
        %3824 = vst [vmem:[#allocation2 + $0xb9] sm:$0x1] 0.0
        %3825 = vst [vmem:[#allocation2 + $0xd1] sm:$0x1] 0.0
        %3826 = vst [vmem:[#allocation2 + $0xe9] sm:$0x1] 0.0
        %3827 = vst [vmem:[#allocation2 + $0x101] sm:$0x1] 0.0
        %3828 = vst [vmem:[#allocation2 + $0x119] sm:$0x1] 0.0
        %3829 = vst [vmem:[#allocation2 + $0x131] sm:$0x1] 0.0
        %3830 = vst [vmem:[#allocation2 + $0x149] sm:$0x1] 0.0
        %3831 = vst [vmem:[#allocation2 + $0x161] sm:$0x1] 0.0
        %3832 = vst [vmem:[#allocation2 + $0x179] sm:$0x1] 0.0
        %3833 = vst [vmem:[#allocation2 + $0x191] sm:$0x1] 0.0
        %3834 = vst [vmem:[#allocation2 + $0x1a9] sm:$0x1] 0.0
        %s3835 = scalar_lea.vmem [#allocation2], 24
        %3836 = vst [vmem:[%s3835 + $0x1] sm:$0xff] %v3760
        %3837 = vst [vmem:[%s3835 + $0x9] sm:$0xff] %v3761
        %3838 = vst [vmem:[%s3835 + $0x19] sm:$0xff] %v3762
        %3839 = vst [vmem:[%s3835 + $0x21] sm:$0xff] %v3763
        %3840 = vst [vmem:[%s3835 + $0x31] sm:$0xff] %v3764
        %3841 = vst [vmem:[%s3835 + $0x39] sm:$0xff] %v3765
        %3842 = vst [vmem:[%s3835 + $0x49] sm:$0xff] %v3766
        %3843 = vst [vmem:[%s3835 + $0x51] sm:$0xff] %v3767
        %3844 = vst [vmem:[%s3835 + $0x61] sm:$0xff] %v3768
        %3845 = vst [vmem:[%s3835 + $0x69] sm:$0xff] %v3769
        %3846 = vst [vmem:[%s3835 + $0x79] sm:$0xff] %v3770
        %3847 = vst [vmem:[%s3835 + $0x81] sm:$0xff] %v3771
        %3848 = vst [vmem:[%s3835 + $0x91] sm:$0xff] %v3772
        %3849 = vst [vmem:[%s3835 + $0x99] sm:$0xff] %v3773
        %3850 = vst [vmem:[%s3835 + $0xa9] sm:$0xff] %v3774
        %3851 = vst [vmem:[%s3835 + $0xb1] sm:$0xff] %v3775
        %3852 = vst [vmem:[%s3835 + $0xc1] sm:$0xff] %v3776
        %3853 = vst [vmem:[%s3835 + $0xc9] sm:$0xff] %v3777
        %3854 = vst [vmem:[%s3835 + $0xd9] sm:$0xff] %v3778
        %3855 = vst [vmem:[%s3835 + $0xe1] sm:$0xff] %v3779
        %3856 = vst [vmem:[%s3835 + $0xf1] sm:$0xff] %v3780
        %3857 = vst [vmem:[%s3835 + $0xf9] sm:$0xff] %v3781
        %3858 = vst [vmem:[%s3835 + $0x109] sm:$0xff] %v3782
        %3859 = vst [vmem:[%s3835 + $0x111] sm:$0xff] %v3783
        %3860 = vst [vmem:[%s3835 + $0x121] sm:$0xff] %v3784
        %3861 = vst [vmem:[%s3835 + $0x129] sm:$0xff] %v3785
        %3862 = vst [vmem:[%s3835 + $0x139] sm:$0xff] %v3786
        %3863 = vst [vmem:[%s3835 + $0x141] sm:$0xff] %v3787
        %3864 = vst [vmem:[%s3835 + $0x151] sm:$0xff] %v3788
        %3865 = vst [vmem:[%s3835 + $0x159] sm:$0xff] %v3789
        %3866 = vst [vmem:[%s3835 + $0x169] sm:$0xff] %v3790
        %3867 = vst [vmem:[%s3835 + $0x171] sm:$0xff] %v3791
        %v3868 = vld [vmem:[#allocation2] sm:$0xff]
        %v3869 = vld [vmem:[#allocation2 + $0x8] sm:$0xff]
        %v3870 = vld [vmem:[#allocation2 + $0x18] sm:$0xff]
        %v3871 = vld [vmem:[#allocation2 + $0x20] sm:$0xff]
        %v3872 = vld [vmem:[#allocation2 + $0x30] sm:$0xff]
        %v3873 = vld [vmem:[#allocation2 + $0x38] sm:$0xff]
        %v3874 = vld [vmem:[#allocation2 + $0x48] sm:$0xff]
        %v3875 = vld [vmem:[#allocation2 + $0x50] sm:$0xff]
        %v3876 = vld [vmem:[#allocation2 + $0x60] sm:$0xff]
        %v3877 = vld [vmem:[#allocation2 + $0x68] sm:$0xff]
        %v3878 = vld [vmem:[#allocation2 + $0x78] sm:$0xff]
        %v3879 = vld [vmem:[#allocation2 + $0x80] sm:$0xff]
        %v3880 = vld [vmem:[#allocation2 + $0x90] sm:$0xff]
        %v3881 = vld [vmem:[#allocation2 + $0x98] sm:$0xff]
        %v3882 = vld [vmem:[#allocation2 + $0xa8] sm:$0xff]
        %v3883 = vld [vmem:[#allocation2 + $0xb0] sm:$0xff]
        %v3884 = vld [vmem:[#allocation2 + $0xc0] sm:$0xff]
        %v3885 = vld [vmem:[#allocation2 + $0xc8] sm:$0xff]
        %v3886 = vld [vmem:[#allocation2 + $0xd8] sm:$0xff]
        %v3887 = vld [vmem:[#allocation2 + $0xe0] sm:$0xff]
        %v3888 = vld [vmem:[#allocation2 + $0xf0] sm:$0xff]
        %v3889 = vld [vmem:[#allocation2 + $0xf8] sm:$0xff]
        %v3890 = vld [vmem:[#allocation2 + $0x108] sm:$0xff]
        %v3891 = vld [vmem:[#allocation2 + $0x110] sm:$0xff]
        %v3892 = vld [vmem:[#allocation2 + $0x120] sm:$0xff]
        %v3893 = vld [vmem:[#allocation2 + $0x128] sm:$0xff]
        %v3894 = vld [vmem:[#allocation2 + $0x138] sm:$0xff]
        %v3895 = vld [vmem:[#allocation2 + $0x140] sm:$0xff]
        %v3896 = vld [vmem:[#allocation2 + $0x150] sm:$0xff]
        %v3897 = vld [vmem:[#allocation2 + $0x158] sm:$0xff]
        %v3898 = vld [vmem:[#allocation2 + $0x168] sm:$0xff]
        %v3899 = vld [vmem:[#allocation2 + $0x170] sm:$0xff]
        %v3900 = vld [vmem:[#allocation2 + $0x180] sm:$0xff]
        %v3901 = vld [vmem:[#allocation2 + $0x188] sm:$0xff]
        %v3902 = vld [vmem:[#allocation2 + $0x198] sm:$0xff]
        %v3903 = vld [vmem:[#allocation2 + $0x1a0] sm:$0xff]
        %v3904 = vld [vmem:[%s14] sm:$0xff]
        %v3905 = vld [vmem:[%s14 + $0x8] sm:$0xff]
        %v3906 = vld [vmem:[%s14 + $0x10] sm:$0xff]
        %v3907 = vld [vmem:[%s14 + $0x18] sm:$0xff]
        %v3908 = vld [vmem:[%s14 + $0x20] sm:$0xff]
        %v3909 = vld [vmem:[%s14 + $0x28] sm:$0xff]
        %v3910 = vld [vmem:[%s14 + $0x30] sm:$0xff]
        %v3911 = vld [vmem:[%s14 + $0x38] sm:$0xff]
        %v3912 = vld [vmem:[%s14 + $0x40] sm:$0xff]
        %v3913 = vld [vmem:[%s14 + $0x48] sm:$0xff]
        %v3914 = vld [vmem:[%s14 + $0x50] sm:$0xff]
        %v3915 = vld [vmem:[%s14 + $0x58] sm:$0xff]
        %v3916 = vld [vmem:[%s14 + $0x60] sm:$0xff]
        %v3917 = vld [vmem:[%s14 + $0x68] sm:$0xff]
        %v3918 = vld [vmem:[%s14 + $0x70] sm:$0xff]
        %v3919 = vld [vmem:[%s14 + $0x78] sm:$0xff]
        %s3920 = scalar_lea.vmem %s14, 384
        %v3921 = vld [vmem:[%s3920] sm:$0xff]
        %v3922 = vld [vmem:[%s3920 + $0x8] sm:$0xff]
        %v3923 = vld [vmem:[%s3920 + $0x10] sm:$0xff]
        %v3924 = vld [vmem:[%s3920 + $0x18] sm:$0xff]
        %v3925 = vld [vmem:[%s3920 + $0x20] sm:$0xff]
        %v3926 = vld [vmem:[%s3920 + $0x28] sm:$0xff]
        %v3927 = vld [vmem:[%s3920 + $0x30] sm:$0xff]
        %v3928 = vld [vmem:[%s3920 + $0x38] sm:$0xff]
        %v3929 = vld [vmem:[%s3920 + $0x40] sm:$0xff]
        %v3930 = vld [vmem:[%s3920 + $0x48] sm:$0xff]
        %v3931 = vld [vmem:[%s3920 + $0x50] sm:$0xff]
        %v3932 = vld [vmem:[%s3920 + $0x58] sm:$0xff]
        %v3933 = vld [vmem:[%s3920 + $0x60] sm:$0xff]
        %v3934 = vld [vmem:[%s3920 + $0x68] sm:$0xff]
        %v3935 = vld [vmem:[%s3920 + $0x70] sm:$0xff]
        %v3936 = vld [vmem:[%s3920 + $0x78] sm:$0xff]
        %3937 = vmatprep.subr.mxu0 0.0
        %3938 = vmatpush1.msra.mxu0 %v3936
        %3939 = vmatprep.subr.mxu0 0.0
        %3940 = vmatpush1.msra.mxu0 %v3935
        %3941 = vmatprep.subr.mxu0 0.0
        %3942 = vmatpush1.msra.mxu0 %v3934
        %3943 = vmatprep.subr.mxu0 0.0
        %3944 = vmatpush1.msra.mxu0 %v3933
        %3945 = vmatprep.subr.mxu0 0.0
        %3946 = vmatpush1.msra.mxu0 %v3932
        %3947 = vmatprep.subr.mxu0 0.0
        %3948 = vmatpush1.msra.mxu0 %v3931
        %3949 = vmatprep.subr.mxu0 0.0
        %3950 = vmatpush1.msra.mxu0 %v3930
        %3951 = vmatprep.subr.mxu0 0.0
        %3952 = vmatpush1.msra.mxu0 %v3929
        %3953 = vmatprep.subr.mxu0 0.0
        %3954 = vmatpush1.msra.mxu0 %v3928
        %3955 = vmatprep.subr.mxu0 0.0
        %3956 = vmatpush1.msra.mxu0 %v3927
        %3957 = vmatprep.subr.mxu0 0.0
        %3958 = vmatpush1.msra.mxu0 %v3926
        %3959 = vmatprep.subr.mxu0 0.0
        %3960 = vmatpush1.msra.mxu0 %v3925
        %3961 = vmatprep.subr.mxu0 0.0
        %3962 = vmatpush1.msra.mxu0 %v3924
        %3963 = vmatprep.subr.mxu0 0.0
        %3964 = vmatpush1.msra.mxu0 %v3923
        %3965 = vmatprep.subr.mxu0 0.0
        %3966 = vmatpush1.msra.mxu0 %v3922
        %3967 = vmatprep.subr.mxu0 0.0
        %3968 = vmatpush1.msra.mxu0 %v3921
        %3969 = vmatprep.subr.mxu0 0.0
        %3970 = vmatpush2.msra.mxu0 0.0
        %3971 = vmatprep.subr.mxu0 0.0
        %3972 = vmatpush2.msra.mxu0 0.0
        %3973 = vmatprep.subr.mxu0 0.0
        %3974 = vmatpush2.msra.mxu0 0.0
        %3975 = vmatprep.subr.mxu0 0.0
        %3976 = vmatpush2.msra.mxu0 0.0
        %3977 = vmatprep.subr.mxu0 0.0
        %3978 = vmatpush2.msra.mxu0 0.0
        %3979 = vmatprep.subr.mxu0 0.0
        %3980 = vmatpush2.msra.mxu0 0.0
        %3981 = vmatprep.subr.mxu0 0.0
        %3982 = vmatpush2.msra.mxu0 0.0
        %3983 = vmatprep.subr.mxu0 0.0
        %3984 = vmatpush2.msra.mxu0 0.0
        %3985 = vmatprep.subr.mxu0 0.0
        %3986 = vmatpush2.msra.mxu0 0.0
        %3987 = vmatprep.subr.mxu0 0.0
        %3988 = vmatpush2.msra.mxu0 0.0
        %3989 = vmatprep.subr.mxu0 0.0
        %3990 = vmatpush2.msra.mxu0 0.0
        %3991 = vmatprep.subr.mxu0 0.0
        %3992 = vmatpush2.msra.mxu0 0.0
        %3993 = vmatprep.subr.mxu0 0.0
        %3994 = vmatpush2.msra.mxu0 0.0
        %3995 = vmatprep.subr.mxu0 0.0
        %3996 = vmatpush2.msra.mxu0 0.0
        %3997 = vmatprep.subr.mxu0 0.0
        %3998 = vmatpush2.msra.mxu0 0.0
        %3999 = vmatprep.subr.mxu0 0.0
        %4000 = vmatpush2.msra.mxu0 0.0
        %4001 = vmatprep.mubr.f32.mxu0 0.0
        %4002 = vmatmul.mubr.f32.gmra.mxu0 %v3870
        %v4003 = vpop.f32.mrf.mxu0
        %v4004 = vadd.f32 0.0, %v4003
        %v4005 = vpop.f32.mrf.mxu0
        %4006 = vmatprep.mubr.f32.mxu0 0.0
        %4007 = vmatmul.mubr.f32.gmra.mxu0 %v3871
        %v4008 = vpop.f32.mrf.mxu0
        %v4009 = vadd.f32 0.0, %v4008
        %v4010 = vpop.f32.mrf.mxu0
        %4011 = vmatprep.mubr.f32.mxu0 0.0
        %4012 = vmatmul.mubr.f32.gmra.mxu0 %v3872
        %v4013 = vpop.f32.mrf.mxu0
        %v4014 = vadd.f32 0.0, %v4013
        %v4015 = vpop.f32.mrf.mxu0
        %4016 = vmatprep.mubr.f32.mxu0 0.0
        %4017 = vmatmul.mubr.f32.gmra.mxu0 %v3873
        %v4018 = vpop.f32.mrf.mxu0
        %v4019 = vadd.f32 0.0, %v4018
        %v4020 = vpop.f32.mrf.mxu0
        %4021 = vmatprep.mubr.f32.mxu0 0.0
        %4022 = vmatmul.mubr.f32.gmra.mxu0 %v3874
        %v4023 = vpop.f32.mrf.mxu0
        %v4024 = vadd.f32 0.0, %v4023
        %v4025 = vpop.f32.mrf.mxu0
        %4026 = vmatprep.mubr.f32.mxu0 0.0
        %4027 = vmatmul.mubr.f32.gmra.mxu0 %v3875
        %v4028 = vpop.f32.mrf.mxu0
        %v4029 = vadd.f32 0.0, %v4028
        %v4030 = vpop.f32.mrf.mxu0
        %4031 = vmatprep.mubr.f32.mxu0 0.0
        %4032 = vmatmul.mubr.f32.gmra.mxu0 %v3876
        %v4033 = vpop.f32.mrf.mxu0
        %v4034 = vadd.f32 0.0, %v4033
        %v4035 = vpop.f32.mrf.mxu0
        %4036 = vmatprep.mubr.f32.mxu0 0.0
        %4037 = vmatmul.mubr.f32.gmra.mxu0 %v3877
        %v4038 = vpop.f32.mrf.mxu0
        %v4039 = vadd.f32 0.0, %v4038
        %v4040 = vpop.f32.mrf.mxu0
        %4041 = vmatprep.mubr.f32.mxu0 0.0
        %4042 = vmatmul.mubr.f32.gmra.mxu0 %v3878
        %v4043 = vpop.f32.mrf.mxu0
        %v4044 = vadd.f32 0.0, %v4043
        %v4045 = vpop.f32.mrf.mxu0
        %4046 = vmatprep.mubr.f32.mxu0 0.0
        %4047 = vmatmul.mubr.f32.gmra.mxu0 %v3879
        %v4048 = vpop.f32.mrf.mxu0
        %v4049 = vadd.f32 0.0, %v4048
        %v4050 = vpop.f32.mrf.mxu0
        %4051 = vmatprep.mubr.f32.mxu0 0.0
        %4052 = vmatmul.mubr.f32.gmra.mxu0 %v3880
        %v4053 = vpop.f32.mrf.mxu0
        %v4054 = vadd.f32 0.0, %v4053
        %v4055 = vpop.f32.mrf.mxu0
        %4056 = vmatprep.mubr.f32.mxu0 0.0
        %4057 = vmatmul.mubr.f32.gmra.mxu0 %v3881
        %v4058 = vpop.f32.mrf.mxu0
        %v4059 = vadd.f32 0.0, %v4058
        %v4060 = vpop.f32.mrf.mxu0
        %4061 = vmatprep.mubr.f32.mxu0 0.0
        %4062 = vmatmul.mubr.f32.gmra.mxu0 %v3882
        %v4063 = vpop.f32.mrf.mxu0
        %v4064 = vadd.f32 0.0, %v4063
        %v4065 = vpop.f32.mrf.mxu0
        %4066 = vmatprep.mubr.f32.mxu0 0.0
        %4067 = vmatmul.mubr.f32.gmra.mxu0 %v3883
        %v4068 = vpop.f32.mrf.mxu0
        %v4069 = vadd.f32 0.0, %v4068
        %v4070 = vpop.f32.mrf.mxu0
        %4071 = vmatprep.mubr.f32.mxu0 0.0
        %4072 = vmatmul.mubr.f32.gmra.mxu0 %v3884
        %v4073 = vpop.f32.mrf.mxu0
        %v4074 = vadd.f32 0.0, %v4073
        %v4075 = vpop.f32.mrf.mxu0
        %4076 = vmatprep.mubr.f32.mxu0 0.0
        %4077 = vmatmul.mubr.f32.gmra.mxu0 %v3885
        %v4078 = vpop.f32.mrf.mxu0
        %v4079 = vadd.f32 0.0, %v4078
        %v4080 = vpop.f32.mrf.mxu0
        %4081 = vmatprep.mubr.f32.mxu0 0.0
        %4082 = vmatmul.mubr.f32.gmra.mxu0 %v3886
        %v4083 = vpop.f32.mrf.mxu0
        %v4084 = vadd.f32 0.0, %v4083
        %v4085 = vpop.f32.mrf.mxu0
        %4086 = vmatprep.mubr.f32.mxu0 0.0
        %4087 = vmatmul.mubr.f32.gmra.mxu0 %v3887
        %v4088 = vpop.f32.mrf.mxu0
        %v4089 = vadd.f32 0.0, %v4088
        %v4090 = vpop.f32.mrf.mxu0
        %4091 = vmatprep.mubr.f32.mxu0 0.0
        %4092 = vmatmul.mubr.f32.gmra.mxu0 %v3888
        %v4093 = vpop.f32.mrf.mxu0
        %v4094 = vadd.f32 0.0, %v4093
        %v4095 = vpop.f32.mrf.mxu0
        %4096 = vmatprep.mubr.f32.mxu0 0.0
        %4097 = vmatmul.mubr.f32.gmra.mxu0 %v3889
        %v4098 = vpop.f32.mrf.mxu0
        %v4099 = vadd.f32 0.0, %v4098
        %v4100 = vpop.f32.mrf.mxu0
        %4101 = vmatprep.mubr.f32.mxu0 0.0
        %4102 = vmatmul.mubr.f32.gmra.mxu0 %v3890
        %v4103 = vpop.f32.mrf.mxu0
        %v4104 = vadd.f32 0.0, %v4103
        %v4105 = vpop.f32.mrf.mxu0
        %4106 = vmatprep.mubr.f32.mxu0 0.0
        %4107 = vmatmul.mubr.f32.gmra.mxu0 %v3891
        %v4108 = vpop.f32.mrf.mxu0
        %v4109 = vadd.f32 0.0, %v4108
        %v4110 = vpop.f32.mrf.mxu0
        %4111 = vmatprep.mubr.f32.mxu0 0.0
        %4112 = vmatmul.mubr.f32.gmra.mxu0 %v3892
        %v4113 = vpop.f32.mrf.mxu0
        %v4114 = vadd.f32 0.0, %v4113
        %v4115 = vpop.f32.mrf.mxu0
        %4116 = vmatprep.mubr.f32.mxu0 0.0
        %4117 = vmatmul.mubr.f32.gmra.mxu0 %v3893
        %v4118 = vpop.f32.mrf.mxu0
        %v4119 = vadd.f32 0.0, %v4118
        %v4120 = vpop.f32.mrf.mxu0
        %4121 = vmatprep.mubr.f32.mxu0 0.0
        %4122 = vmatmul.mubr.f32.gmra.mxu0 %v3894
        %v4123 = vpop.f32.mrf.mxu0
        %v4124 = vadd.f32 0.0, %v4123
        %v4125 = vpop.f32.mrf.mxu0
        %4126 = vmatprep.mubr.f32.mxu0 0.0
        %4127 = vmatmul.mubr.f32.gmra.mxu0 %v3895
        %v4128 = vpop.f32.mrf.mxu0
        %v4129 = vadd.f32 0.0, %v4128
        %v4130 = vpop.f32.mrf.mxu0
        %4131 = vmatprep.mubr.f32.mxu0 0.0
        %4132 = vmatmul.mubr.f32.gmra.mxu0 %v3896
        %v4133 = vpop.f32.mrf.mxu0
        %v4134 = vadd.f32 0.0, %v4133
        %v4135 = vpop.f32.mrf.mxu0
        %4136 = vmatprep.mubr.f32.mxu0 0.0
        %4137 = vmatmul.mubr.f32.gmra.mxu0 %v3897
        %v4138 = vpop.f32.mrf.mxu0
        %v4139 = vadd.f32 0.0, %v4138
        %v4140 = vpop.f32.mrf.mxu0
        %4141 = vmatprep.mubr.f32.mxu0 0.0
        %4142 = vmatmul.mubr.f32.gmra.mxu0 %v3898
        %v4143 = vpop.f32.mrf.mxu0
        %v4144 = vadd.f32 0.0, %v4143
        %v4145 = vpop.f32.mrf.mxu0
        %4146 = vmatprep.mubr.f32.mxu0 0.0
        %4147 = vmatmul.mubr.f32.gmra.mxu0 %v3899
        %v4148 = vpop.f32.mrf.mxu0
        %v4149 = vadd.f32 0.0, %v4148
        %v4150 = vpop.f32.mrf.mxu0
        %4151 = vmatprep.mubr.f32.mxu0 0.0
        %4152 = vmatmul.mubr.f32.gmra.mxu0 %v3900
        %v4153 = vpop.f32.mrf.mxu0
        %v4154 = vadd.f32 0.0, %v4153
        %v4155 = vpop.f32.mrf.mxu0
        %4156 = vmatprep.mubr.f32.mxu0 0.0
        %4157 = vmatmul.mubr.f32.gmra.mxu0 %v3901
        %v4158 = vpop.f32.mrf.mxu0
        %v4159 = vadd.f32 0.0, %v4158
        %v4160 = vpop.f32.mrf.mxu0
        %4161 = vdwg.mxu0
        %4162 = vmatprep.subr.mxu0 0.0
        %4163 = vmatpush1.msra.mxu0 %v3919
        %4164 = vmatprep.subr.mxu0 0.0
        %4165 = vmatpush1.msra.mxu0 %v3918
        %4166 = vmatprep.subr.mxu0 0.0
        %4167 = vmatpush1.msra.mxu0 %v3917
        %4168 = vmatprep.subr.mxu0 0.0
        %4169 = vmatpush1.msra.mxu0 %v3916
        %4170 = vmatprep.subr.mxu0 0.0
        %4171 = vmatpush1.msra.mxu0 %v3915
        %4172 = vmatprep.subr.mxu0 0.0
        %4173 = vmatpush1.msra.mxu0 %v3914
        %4174 = vmatprep.subr.mxu0 0.0
        %4175 = vmatpush1.msra.mxu0 %v3913
        %4176 = vmatprep.subr.mxu0 0.0
        %4177 = vmatpush1.msra.mxu0 %v3912
        %4178 = vmatprep.subr.mxu0 0.0
        %4179 = vmatpush1.msra.mxu0 %v3911
        %4180 = vmatprep.subr.mxu0 0.0
        %4181 = vmatpush1.msra.mxu0 %v3910
        %4182 = vmatprep.subr.mxu0 0.0
        %4183 = vmatpush1.msra.mxu0 %v3909
        %4184 = vmatprep.subr.mxu0 0.0
        %4185 = vmatpush1.msra.mxu0 %v3908
        %4186 = vmatprep.subr.mxu0 0.0
        %4187 = vmatpush1.msra.mxu0 %v3907
        %4188 = vmatprep.subr.mxu0 0.0
        %4189 = vmatpush1.msra.mxu0 %v3906
        %4190 = vmatprep.subr.mxu0 0.0
        %4191 = vmatpush1.msra.mxu0 %v3905
        %4192 = vmatprep.subr.mxu0 0.0
        %4193 = vmatpush1.msra.mxu0 %v3904
        %4194 = vmatprep.subr.mxu0 0.0
        %4195 = vmatpush2.msra.mxu0 0.0
        %4196 = vmatprep.subr.mxu0 0.0
        %4197 = vmatpush2.msra.mxu0 0.0
        %4198 = vmatprep.subr.mxu0 0.0
        %4199 = vmatpush2.msra.mxu0 0.0
        %4200 = vmatprep.subr.mxu0 0.0
        %4201 = vmatpush2.msra.mxu0 0.0
        %4202 = vmatprep.subr.mxu0 0.0
        %4203 = vmatpush2.msra.mxu0 0.0
        %4204 = vmatprep.subr.mxu0 0.0
        %4205 = vmatpush2.msra.mxu0 0.0
        %4206 = vmatprep.subr.mxu0 0.0
        %4207 = vmatpush2.msra.mxu0 0.0
        %4208 = vmatprep.subr.mxu0 0.0
        %4209 = vmatpush2.msra.mxu0 0.0
        %4210 = vmatprep.subr.mxu0 0.0
        %4211 = vmatpush2.msra.mxu0 0.0
        %4212 = vmatprep.subr.mxu0 0.0
        %4213 = vmatpush2.msra.mxu0 0.0
        %4214 = vmatprep.subr.mxu0 0.0
        %4215 = vmatpush2.msra.mxu0 0.0
        %4216 = vmatprep.subr.mxu0 0.0
        %4217 = vmatpush2.msra.mxu0 0.0
        %4218 = vmatprep.subr.mxu0 0.0
        %4219 = vmatpush2.msra.mxu0 0.0
        %4220 = vmatprep.subr.mxu0 0.0
        %4221 = vmatpush2.msra.mxu0 0.0
        %4222 = vmatprep.subr.mxu0 0.0
        %4223 = vmatpush2.msra.mxu0 0.0
        %4224 = vmatprep.subr.mxu0 0.0
        %4225 = vmatpush2.msra.mxu0 0.0
        %4226 = vmatprep.mubr.f32.mxu0 0.0
        %4227 = vmatmul.mubr.f32.gmra.mxu0 %v3868
        %v4228 = vpop.f32.mrf.mxu0
        %v4229 = vadd.f32 %v4004, %v4228
        %v4230 = vpop.f32.mrf.mxu0
        %4231 = vmatprep.mubr.f32.mxu0 0.0
        %4232 = vmatmul.mubr.f32.gmra.mxu0 %v3869
        %v4233 = vpop.f32.mrf.mxu0
        %v4234 = vadd.f32 %v4009, %v4233
        %v4235 = vpop.f32.mrf.mxu0
        %4236 = vmatprep.mubr.f32.mxu0 0.0
        %4237 = vmatmul.mubr.f32.gmra.mxu0 %v3870
        %v4238 = vpop.f32.mrf.mxu0
        %v4239 = vadd.f32 %v4014, %v4238
        %v4240 = vpop.f32.mrf.mxu0
        %4241 = vmatprep.mubr.f32.mxu0 0.0
        %4242 = vmatmul.mubr.f32.gmra.mxu0 %v3871
        %v4243 = vpop.f32.mrf.mxu0
        %v4244 = vadd.f32 %v4019, %v4243
        %v4245 = vpop.f32.mrf.mxu0
        %4246 = vmatprep.mubr.f32.mxu0 0.0
        %4247 = vmatmul.mubr.f32.gmra.mxu0 %v3872
        %v4248 = vpop.f32.mrf.mxu0
        %v4249 = vadd.f32 %v4024, %v4248
        %v4250 = vpop.f32.mrf.mxu0
        %4251 = vmatprep.mubr.f32.mxu0 0.0
        %4252 = vmatmul.mubr.f32.gmra.mxu0 %v3873
        %v4253 = vpop.f32.mrf.mxu0
        %v4254 = vadd.f32 %v4029, %v4253
        %v4255 = vpop.f32.mrf.mxu0
        %4256 = vmatprep.mubr.f32.mxu0 0.0
        %4257 = vmatmul.mubr.f32.gmra.mxu0 %v3874
        %v4258 = vpop.f32.mrf.mxu0
        %v4259 = vadd.f32 %v4034, %v4258
        %v4260 = vpop.f32.mrf.mxu0
        %4261 = vmatprep.mubr.f32.mxu0 0.0
        %4262 = vmatmul.mubr.f32.gmra.mxu0 %v3875
        %v4263 = vpop.f32.mrf.mxu0
        %v4264 = vadd.f32 %v4039, %v4263
        %v4265 = vpop.f32.mrf.mxu0
        %4266 = vmatprep.mubr.f32.mxu0 0.0
        %4267 = vmatmul.mubr.f32.gmra.mxu0 %v3876
        %v4268 = vpop.f32.mrf.mxu0
        %v4269 = vadd.f32 %v4044, %v4268
        %v4270 = vpop.f32.mrf.mxu0
        %4271 = vmatprep.mubr.f32.mxu0 0.0
        %4272 = vmatmul.mubr.f32.gmra.mxu0 %v3877
        %v4273 = vpop.f32.mrf.mxu0
        %v4274 = vadd.f32 %v4049, %v4273
        %v4275 = vpop.f32.mrf.mxu0
        %4276 = vmatprep.mubr.f32.mxu0 0.0
        %4277 = vmatmul.mubr.f32.gmra.mxu0 %v3878
        %v4278 = vpop.f32.mrf.mxu0
        %v4279 = vadd.f32 %v4054, %v4278
        %v4280 = vpop.f32.mrf.mxu0
        %4281 = vmatprep.mubr.f32.mxu0 0.0
        %4282 = vmatmul.mubr.f32.gmra.mxu0 %v3879
        %v4283 = vpop.f32.mrf.mxu0
        %v4284 = vadd.f32 %v4059, %v4283
        %v4285 = vpop.f32.mrf.mxu0
        %4286 = vmatprep.mubr.f32.mxu0 0.0
        %4287 = vmatmul.mubr.f32.gmra.mxu0 %v3880
        %v4288 = vpop.f32.mrf.mxu0
        %v4289 = vadd.f32 %v4064, %v4288
        %v4290 = vpop.f32.mrf.mxu0
        %4291 = vmatprep.mubr.f32.mxu0 0.0
        %4292 = vmatmul.mubr.f32.gmra.mxu0 %v3881
        %v4293 = vpop.f32.mrf.mxu0
        %v4294 = vadd.f32 %v4069, %v4293
        %v4295 = vpop.f32.mrf.mxu0
        %4296 = vmatprep.mubr.f32.mxu0 0.0
        %4297 = vmatmul.mubr.f32.gmra.mxu0 %v3882
        %v4298 = vpop.f32.mrf.mxu0
        %v4299 = vadd.f32 %v4074, %v4298
        %v4300 = vpop.f32.mrf.mxu0
        %4301 = vmatprep.mubr.f32.mxu0 0.0
        %4302 = vmatmul.mubr.f32.gmra.mxu0 %v3883
        %v4303 = vpop.f32.mrf.mxu0
        %v4304 = vadd.f32 %v4079, %v4303
        %v4305 = vpop.f32.mrf.mxu0
        %4306 = vmatprep.mubr.f32.mxu0 0.0
        %4307 = vmatmul.mubr.f32.gmra.mxu0 %v3884
        %v4308 = vpop.f32.mrf.mxu0
        %v4309 = vadd.f32 %v4084, %v4308
        %v4310 = vpop.f32.mrf.mxu0
        %4311 = vmatprep.mubr.f32.mxu0 0.0
        %4312 = vmatmul.mubr.f32.gmra.mxu0 %v3885
        %v4313 = vpop.f32.mrf.mxu0
        %v4314 = vadd.f32 %v4089, %v4313
        %v4315 = vpop.f32.mrf.mxu0
        %4316 = vmatprep.mubr.f32.mxu0 0.0
        %4317 = vmatmul.mubr.f32.gmra.mxu0 %v3886
        %v4318 = vpop.f32.mrf.mxu0
        %v4319 = vadd.f32 %v4094, %v4318
        %v4320 = vpop.f32.mrf.mxu0
        %4321 = vmatprep.mubr.f32.mxu0 0.0
        %4322 = vmatmul.mubr.f32.gmra.mxu0 %v3887
        %v4323 = vpop.f32.mrf.mxu0
        %v4324 = vadd.f32 %v4099, %v4323
        %v4325 = vpop.f32.mrf.mxu0
        %4326 = vmatprep.mubr.f32.mxu0 0.0
        %4327 = vmatmul.mubr.f32.gmra.mxu0 %v3888
        %v4328 = vpop.f32.mrf.mxu0
        %v4329 = vadd.f32 %v4104, %v4328
        %v4330 = vpop.f32.mrf.mxu0
        %4331 = vmatprep.mubr.f32.mxu0 0.0
        %4332 = vmatmul.mubr.f32.gmra.mxu0 %v3889
        %v4333 = vpop.f32.mrf.mxu0
        %v4334 = vadd.f32 %v4109, %v4333
        %v4335 = vpop.f32.mrf.mxu0
        %4336 = vmatprep.mubr.f32.mxu0 0.0
        %4337 = vmatmul.mubr.f32.gmra.mxu0 %v3890
        %v4338 = vpop.f32.mrf.mxu0
        %v4339 = vadd.f32 %v4114, %v4338
        %v4340 = vpop.f32.mrf.mxu0
        %4341 = vmatprep.mubr.f32.mxu0 0.0
        %4342 = vmatmul.mubr.f32.gmra.mxu0 %v3891
        %v4343 = vpop.f32.mrf.mxu0
        %v4344 = vadd.f32 %v4119, %v4343
        %v4345 = vpop.f32.mrf.mxu0
        %4346 = vmatprep.mubr.f32.mxu0 0.0
        %4347 = vmatmul.mubr.f32.gmra.mxu0 %v3892
        %v4348 = vpop.f32.mrf.mxu0
        %v4349 = vadd.f32 %v4124, %v4348
        %v4350 = vpop.f32.mrf.mxu0
        %4351 = vmatprep.mubr.f32.mxu0 0.0
        %4352 = vmatmul.mubr.f32.gmra.mxu0 %v3893
        %v4353 = vpop.f32.mrf.mxu0
        %v4354 = vadd.f32 %v4129, %v4353
        %v4355 = vpop.f32.mrf.mxu0
        %4356 = vmatprep.mubr.f32.mxu0 0.0
        %4357 = vmatmul.mubr.f32.gmra.mxu0 %v3894
        %v4358 = vpop.f32.mrf.mxu0
        %v4359 = vadd.f32 %v4134, %v4358
        %v4360 = vpop.f32.mrf.mxu0
        %4361 = vmatprep.mubr.f32.mxu0 0.0
        %4362 = vmatmul.mubr.f32.gmra.mxu0 %v3895
        %v4363 = vpop.f32.mrf.mxu0
        %v4364 = vadd.f32 %v4139, %v4363
        %v4365 = vpop.f32.mrf.mxu0
        %4366 = vmatprep.mubr.f32.mxu0 0.0
        %4367 = vmatmul.mubr.f32.gmra.mxu0 %v3896
        %v4368 = vpop.f32.mrf.mxu0
        %v4369 = vadd.f32 %v4144, %v4368
        %v4370 = vpop.f32.mrf.mxu0
        %4371 = vmatprep.mubr.f32.mxu0 0.0
        %4372 = vmatmul.mubr.f32.gmra.mxu0 %v3897
        %v4373 = vpop.f32.mrf.mxu0
        %v4374 = vadd.f32 %v4149, %v4373
        %v4375 = vpop.f32.mrf.mxu0
        %4376 = vmatprep.mubr.f32.mxu0 0.0
        %4377 = vmatmul.mubr.f32.gmra.mxu0 %v3898
        %v4378 = vpop.f32.mrf.mxu0
        %v4379 = vadd.f32 %v4154, %v4378
        %v4380 = vpop.f32.mrf.mxu0
        %4381 = vmatprep.mubr.f32.mxu0 0.0
        %4382 = vmatmul.mubr.f32.gmra.mxu0 %v3899
        %v4383 = vpop.f32.mrf.mxu0
        %v4384 = vadd.f32 %v4159, %v4383
        %v4385 = vpop.f32.mrf.mxu0
        %4386 = vdwg.mxu0
        %s4387 = scalar_lea.vmem %s14, 768
        %v4388 = vld [vmem:[%s4387] sm:$0xff]
        %v4389 = vld [vmem:[%s4387 + $0x8] sm:$0xff]
        %v4390 = vld [vmem:[%s4387 + $0x10] sm:$0xff]
        %v4391 = vld [vmem:[%s4387 + $0x18] sm:$0xff]
        %v4392 = vld [vmem:[%s4387 + $0x20] sm:$0xff]
        %v4393 = vld [vmem:[%s4387 + $0x28] sm:$0xff]
        %v4394 = vld [vmem:[%s4387 + $0x30] sm:$0xff]
        %v4395 = vld [vmem:[%s4387 + $0x38] sm:$0xff]
        %v4396 = vld [vmem:[%s4387 + $0x40] sm:$0xff]
        %v4397 = vld [vmem:[%s4387 + $0x48] sm:$0xff]
        %v4398 = vld [vmem:[%s4387 + $0x50] sm:$0xff]
        %v4399 = vld [vmem:[%s4387 + $0x58] sm:$0xff]
        %v4400 = vld [vmem:[%s4387 + $0x60] sm:$0xff]
        %v4401 = vld [vmem:[%s4387 + $0x68] sm:$0xff]
        %v4402 = vld [vmem:[%s4387 + $0x70] sm:$0xff]
        %v4403 = vld [vmem:[%s4387 + $0x78] sm:$0xff]
        %4404 = vmatprep.subr.mxu0 0.0
        %4405 = vmatpush1.msra.mxu0 %v4403
        %4406 = vmatprep.subr.mxu0 0.0
        %4407 = vmatpush1.msra.mxu0 %v4402
        %4408 = vmatprep.subr.mxu0 0.0
        %4409 = vmatpush1.msra.mxu0 %v4401
        %4410 = vmatprep.subr.mxu0 0.0
        %4411 = vmatpush1.msra.mxu0 %v4400
        %4412 = vmatprep.subr.mxu0 0.0
        %4413 = vmatpush1.msra.mxu0 %v4399
        %4414 = vmatprep.subr.mxu0 0.0
        %4415 = vmatpush1.msra.mxu0 %v4398
        %4416 = vmatprep.subr.mxu0 0.0
        %4417 = vmatpush1.msra.mxu0 %v4397
        %4418 = vmatprep.subr.mxu0 0.0
        %4419 = vmatpush1.msra.mxu0 %v4396
        %4420 = vmatprep.subr.mxu0 0.0
        %4421 = vmatpush1.msra.mxu0 %v4395
        %4422 = vmatprep.subr.mxu0 0.0
        %4423 = vmatpush1.msra.mxu0 %v4394
        %4424 = vmatprep.subr.mxu0 0.0
        %4425 = vmatpush1.msra.mxu0 %v4393
        %4426 = vmatprep.subr.mxu0 0.0
        %4427 = vmatpush1.msra.mxu0 %v4392
        %4428 = vmatprep.subr.mxu0 0.0
        %4429 = vmatpush1.msra.mxu0 %v4391
        %4430 = vmatprep.subr.mxu0 0.0
        %4431 = vmatpush1.msra.mxu0 %v4390
        %4432 = vmatprep.subr.mxu0 0.0
        %4433 = vmatpush1.msra.mxu0 %v4389
        %4434 = vmatprep.subr.mxu0 0.0
        %4435 = vmatpush1.msra.mxu0 %v4388
        %4436 = vmatprep.subr.mxu0 0.0
        %4437 = vmatpush2.msra.mxu0 0.0
        %4438 = vmatprep.subr.mxu0 0.0
        %4439 = vmatpush2.msra.mxu0 0.0
        %4440 = vmatprep.subr.mxu0 0.0
        %4441 = vmatpush2.msra.mxu0 0.0
        %4442 = vmatprep.subr.mxu0 0.0
        %4443 = vmatpush2.msra.mxu0 0.0
        %4444 = vmatprep.subr.mxu0 0.0
        %4445 = vmatpush2.msra.mxu0 0.0
        %4446 = vmatprep.subr.mxu0 0.0
        %4447 = vmatpush2.msra.mxu0 0.0
        %4448 = vmatprep.subr.mxu0 0.0
        %4449 = vmatpush2.msra.mxu0 0.0
        %4450 = vmatprep.subr.mxu0 0.0
        %4451 = vmatpush2.msra.mxu0 0.0
        %4452 = vmatprep.subr.mxu0 0.0
        %4453 = vmatpush2.msra.mxu0 0.0
        %4454 = vmatprep.subr.mxu0 0.0
        %4455 = vmatpush2.msra.mxu0 0.0
        %4456 = vmatprep.subr.mxu0 0.0
        %4457 = vmatpush2.msra.mxu0 0.0
        %4458 = vmatprep.subr.mxu0 0.0
        %4459 = vmatpush2.msra.mxu0 0.0
        %4460 = vmatprep.subr.mxu0 0.0
        %4461 = vmatpush2.msra.mxu0 0.0
        %4462 = vmatprep.subr.mxu0 0.0
        %4463 = vmatpush2.msra.mxu0 0.0
        %4464 = vmatprep.subr.mxu0 0.0
        %4465 = vmatpush2.msra.mxu0 0.0
        %4466 = vmatprep.subr.mxu0 0.0
        %4467 = vmatpush2.msra.mxu0 0.0
        %4468 = vmatprep.mubr.f32.mxu0 0.0
        %4469 = vmatmul.mubr.f32.gmra.mxu0 %v3872
        %v4470 = vpop.f32.mrf.mxu0
        %v4471 = vadd.f32 0.0, %v4470
        %v4472 = vpop.f32.mrf.mxu0
        %4473 = vmatprep.mubr.f32.mxu0 0.0
        %4474 = vmatmul.mubr.f32.gmra.mxu0 %v3873
        %v4475 = vpop.f32.mrf.mxu0
        %v4476 = vadd.f32 0.0, %v4475
        %v4477 = vpop.f32.mrf.mxu0
        %4478 = vmatprep.mubr.f32.mxu0 0.0
        %4479 = vmatmul.mubr.f32.gmra.mxu0 %v3874
        %v4480 = vpop.f32.mrf.mxu0
        %v4481 = vadd.f32 0.0, %v4480
        %v4482 = vpop.f32.mrf.mxu0
        %4483 = vmatprep.mubr.f32.mxu0 0.0
        %4484 = vmatmul.mubr.f32.gmra.mxu0 %v3875
        %v4485 = vpop.f32.mrf.mxu0
        %v4486 = vadd.f32 0.0, %v4485
        %v4487 = vpop.f32.mrf.mxu0
        %4488 = vmatprep.mubr.f32.mxu0 0.0
        %4489 = vmatmul.mubr.f32.gmra.mxu0 %v3876
        %v4490 = vpop.f32.mrf.mxu0
        %v4491 = vadd.f32 0.0, %v4490
        %v4492 = vpop.f32.mrf.mxu0
        %4493 = vmatprep.mubr.f32.mxu0 0.0
        %4494 = vmatmul.mubr.f32.gmra.mxu0 %v3877
        %v4495 = vpop.f32.mrf.mxu0
        %v4496 = vadd.f32 0.0, %v4495
        %v4497 = vpop.f32.mrf.mxu0
        %4498 = vmatprep.mubr.f32.mxu0 0.0
        %4499 = vmatmul.mubr.f32.gmra.mxu0 %v3878
        %v4500 = vpop.f32.mrf.mxu0
        %v4501 = vadd.f32 0.0, %v4500
        %v4502 = vpop.f32.mrf.mxu0
        %4503 = vmatprep.mubr.f32.mxu0 0.0
        %4504 = vmatmul.mubr.f32.gmra.mxu0 %v3879
        %v4505 = vpop.f32.mrf.mxu0
        %v4506 = vadd.f32 0.0, %v4505
        %v4507 = vpop.f32.mrf.mxu0
        %4508 = vmatprep.mubr.f32.mxu0 0.0
        %4509 = vmatmul.mubr.f32.gmra.mxu0 %v3880
        %v4510 = vpop.f32.mrf.mxu0
        %v4511 = vadd.f32 0.0, %v4510
        %v4512 = vpop.f32.mrf.mxu0
        %4513 = vmatprep.mubr.f32.mxu0 0.0
        %4514 = vmatmul.mubr.f32.gmra.mxu0 %v3881
        %v4515 = vpop.f32.mrf.mxu0
        %v4516 = vadd.f32 0.0, %v4515
        %v4517 = vpop.f32.mrf.mxu0
        %4518 = vmatprep.mubr.f32.mxu0 0.0
        %4519 = vmatmul.mubr.f32.gmra.mxu0 %v3882
        %v4520 = vpop.f32.mrf.mxu0
        %v4521 = vadd.f32 0.0, %v4520
        %v4522 = vpop.f32.mrf.mxu0
        %4523 = vmatprep.mubr.f32.mxu0 0.0
        %4524 = vmatmul.mubr.f32.gmra.mxu0 %v3883
        %v4525 = vpop.f32.mrf.mxu0
        %v4526 = vadd.f32 0.0, %v4525
        %v4527 = vpop.f32.mrf.mxu0
        %4528 = vmatprep.mubr.f32.mxu0 0.0
        %4529 = vmatmul.mubr.f32.gmra.mxu0 %v3884
        %v4530 = vpop.f32.mrf.mxu0
        %v4531 = vadd.f32 0.0, %v4530
        %v4532 = vpop.f32.mrf.mxu0
        %4533 = vmatprep.mubr.f32.mxu0 0.0
        %4534 = vmatmul.mubr.f32.gmra.mxu0 %v3885
        %v4535 = vpop.f32.mrf.mxu0
        %v4536 = vadd.f32 0.0, %v4535
        %v4537 = vpop.f32.mrf.mxu0
        %4538 = vmatprep.mubr.f32.mxu0 0.0
        %4539 = vmatmul.mubr.f32.gmra.mxu0 %v3886
        %v4540 = vpop.f32.mrf.mxu0
        %v4541 = vadd.f32 0.0, %v4540
        %v4542 = vpop.f32.mrf.mxu0
        %4543 = vmatprep.mubr.f32.mxu0 0.0
        %4544 = vmatmul.mubr.f32.gmra.mxu0 %v3887
        %v4545 = vpop.f32.mrf.mxu0
        %v4546 = vadd.f32 0.0, %v4545
        %v4547 = vpop.f32.mrf.mxu0
        %4548 = vmatprep.mubr.f32.mxu0 0.0
        %4549 = vmatmul.mubr.f32.gmra.mxu0 %v3888
        %v4550 = vpop.f32.mrf.mxu0
        %v4551 = vadd.f32 0.0, %v4550
        %v4552 = vpop.f32.mrf.mxu0
        %4553 = vmatprep.mubr.f32.mxu0 0.0
        %4554 = vmatmul.mubr.f32.gmra.mxu0 %v3889
        %v4555 = vpop.f32.mrf.mxu0
        %v4556 = vadd.f32 0.0, %v4555
        %v4557 = vpop.f32.mrf.mxu0
        %4558 = vmatprep.mubr.f32.mxu0 0.0
        %4559 = vmatmul.mubr.f32.gmra.mxu0 %v3890
        %v4560 = vpop.f32.mrf.mxu0
        %v4561 = vadd.f32 0.0, %v4560
        %v4562 = vpop.f32.mrf.mxu0
        %4563 = vmatprep.mubr.f32.mxu0 0.0
        %4564 = vmatmul.mubr.f32.gmra.mxu0 %v3891
        %v4565 = vpop.f32.mrf.mxu0
        %v4566 = vadd.f32 0.0, %v4565
        %v4567 = vpop.f32.mrf.mxu0
        %4568 = vmatprep.mubr.f32.mxu0 0.0
        %4569 = vmatmul.mubr.f32.gmra.mxu0 %v3892
        %v4570 = vpop.f32.mrf.mxu0
        %v4571 = vadd.f32 0.0, %v4570
        %v4572 = vpop.f32.mrf.mxu0
        %4573 = vmatprep.mubr.f32.mxu0 0.0
        %4574 = vmatmul.mubr.f32.gmra.mxu0 %v3893
        %v4575 = vpop.f32.mrf.mxu0
        %v4576 = vadd.f32 0.0, %v4575
        %v4577 = vpop.f32.mrf.mxu0
        %4578 = vmatprep.mubr.f32.mxu0 0.0
        %4579 = vmatmul.mubr.f32.gmra.mxu0 %v3894
        %v4580 = vpop.f32.mrf.mxu0
        %v4581 = vadd.f32 0.0, %v4580
        %v4582 = vpop.f32.mrf.mxu0
        %4583 = vmatprep.mubr.f32.mxu0 0.0
        %4584 = vmatmul.mubr.f32.gmra.mxu0 %v3895
        %v4585 = vpop.f32.mrf.mxu0
        %v4586 = vadd.f32 0.0, %v4585
        %v4587 = vpop.f32.mrf.mxu0
        %4588 = vmatprep.mubr.f32.mxu0 0.0
        %4589 = vmatmul.mubr.f32.gmra.mxu0 %v3896
        %v4590 = vpop.f32.mrf.mxu0
        %v4591 = vadd.f32 0.0, %v4590
        %v4592 = vpop.f32.mrf.mxu0
        %4593 = vmatprep.mubr.f32.mxu0 0.0
        %4594 = vmatmul.mubr.f32.gmra.mxu0 %v3897
        %v4595 = vpop.f32.mrf.mxu0
        %v4596 = vadd.f32 0.0, %v4595
        %v4597 = vpop.f32.mrf.mxu0
        %4598 = vmatprep.mubr.f32.mxu0 0.0
        %4599 = vmatmul.mubr.f32.gmra.mxu0 %v3898
        %v4600 = vpop.f32.mrf.mxu0
        %v4601 = vadd.f32 0.0, %v4600
        %v4602 = vpop.f32.mrf.mxu0
        %4603 = vmatprep.mubr.f32.mxu0 0.0
        %4604 = vmatmul.mubr.f32.gmra.mxu0 %v3899
        %v4605 = vpop.f32.mrf.mxu0
        %v4606 = vadd.f32 0.0, %v4605
        %v4607 = vpop.f32.mrf.mxu0
        %4608 = vmatprep.mubr.f32.mxu0 0.0
        %4609 = vmatmul.mubr.f32.gmra.mxu0 %v3900
        %v4610 = vpop.f32.mrf.mxu0
        %v4611 = vadd.f32 0.0, %v4610
        %v4612 = vpop.f32.mrf.mxu0
        %4613 = vmatprep.mubr.f32.mxu0 0.0
        %4614 = vmatmul.mubr.f32.gmra.mxu0 %v3901
        %v4615 = vpop.f32.mrf.mxu0
        %v4616 = vadd.f32 0.0, %v4615
        %v4617 = vpop.f32.mrf.mxu0
        %4618 = vmatprep.mubr.f32.mxu0 0.0
        %4619 = vmatmul.mubr.f32.gmra.mxu0 %v3902
        %v4620 = vpop.f32.mrf.mxu0
        %v4621 = vadd.f32 0.0, %v4620
        %v4622 = vpop.f32.mrf.mxu0
        %4623 = vmatprep.mubr.f32.mxu0 0.0
        %4624 = vmatmul.mubr.f32.gmra.mxu0 %v3903
        %v4625 = vpop.f32.mrf.mxu0
        %v4626 = vadd.f32 0.0, %v4625
        %v4627 = vpop.f32.mrf.mxu0
        %4628 = vdwg.mxu0
        %v4629 = vadd.f32 %v4229, %v4471
        %v4630 = vadd.f32 %v4234, %v4476
        %v4631 = vadd.f32 %v4239, %v4481
        %v4632 = vadd.f32 %v4244, %v4486
        %v4633 = vadd.f32 %v4249, %v4491
        %v4634 = vadd.f32 %v4254, %v4496
        %v4635 = vadd.f32 %v4259, %v4501
        %v4636 = vadd.f32 %v4264, %v4506
        %v4637 = vadd.f32 %v4269, %v4511
        %v4638 = vadd.f32 %v4274, %v4516
        %v4639 = vadd.f32 %v4279, %v4521
        %v4640 = vadd.f32 %v4284, %v4526
        %v4641 = vadd.f32 %v4289, %v4531
        %v4642 = vadd.f32 %v4294, %v4536
        %v4643 = vadd.f32 %v4299, %v4541
        %v4644 = vadd.f32 %v4304, %v4546
        %v4645 = vadd.f32 %v4309, %v4551
        %v4646 = vadd.f32 %v4314, %v4556
        %v4647 = vadd.f32 %v4319, %v4561
        %v4648 = vadd.f32 %v4324, %v4566
        %v4649 = vadd.f32 %v4329, %v4571
        %v4650 = vadd.f32 %v4334, %v4576
        %v4651 = vadd.f32 %v4339, %v4581
        %v4652 = vadd.f32 %v4344, %v4586
        %v4653 = vadd.f32 %v4349, %v4591
        %v4654 = vadd.f32 %v4354, %v4596
        %v4655 = vadd.f32 %v4359, %v4601
        %v4656 = vadd.f32 %v4364, %v4606
        %v4657 = vadd.f32 %v4369, %v4611
        %v4658 = vadd.f32 %v4374, %v4616
        %v4659 = vadd.f32 %v4379, %v4621
        %v4660 = vadd.f32 %v4384, %v4626
        %v4661 = vld [vmem:[#allocation2 + $0x1] sm:$0xff]
        %v4662 = vld [vmem:[#allocation2 + $0x9] sm:$0xff]
        %v4663 = vld [vmem:[#allocation2 + $0x19] sm:$0xff]
        %v4664 = vld [vmem:[#allocation2 + $0x21] sm:$0xff]
        %v4665 = vld [vmem:[#allocation2 + $0x31] sm:$0xff]
        %v4666 = vld [vmem:[#allocation2 + $0x39] sm:$0xff]
        %v4667 = vld [vmem:[#allocation2 + $0x49] sm:$0xff]
        %v4668 = vld [vmem:[#allocation2 + $0x51] sm:$0xff]
        %v4669 = vld [vmem:[#allocation2 + $0x61] sm:$0xff]
        %v4670 = vld [vmem:[#allocation2 + $0x69] sm:$0xff]
        %v4671 = vld [vmem:[#allocation2 + $0x79] sm:$0xff]
        %v4672 = vld [vmem:[#allocation2 + $0x81] sm:$0xff]
        %v4673 = vld [vmem:[#allocation2 + $0x91] sm:$0xff]
        %v4674 = vld [vmem:[#allocation2 + $0x99] sm:$0xff]
        %v4675 = vld [vmem:[#allocation2 + $0xa9] sm:$0xff]
        %v4676 = vld [vmem:[#allocation2 + $0xb1] sm:$0xff]
        %v4677 = vld [vmem:[#allocation2 + $0xc1] sm:$0xff]
        %v4678 = vld [vmem:[#allocation2 + $0xc9] sm:$0xff]
        %v4679 = vld [vmem:[#allocation2 + $0xd9] sm:$0xff]
        %v4680 = vld [vmem:[#allocation2 + $0xe1] sm:$0xff]
        %v4681 = vld [vmem:[#allocation2 + $0xf1] sm:$0xff]
        %v4682 = vld [vmem:[#allocation2 + $0xf9] sm:$0xff]
        %v4683 = vld [vmem:[#allocation2 + $0x109] sm:$0xff]
        %v4684 = vld [vmem:[#allocation2 + $0x111] sm:$0xff]
        %v4685 = vld [vmem:[#allocation2 + $0x121] sm:$0xff]
        %v4686 = vld [vmem:[#allocation2 + $0x129] sm:$0xff]
        %v4687 = vld [vmem:[#allocation2 + $0x139] sm:$0xff]
        %v4688 = vld [vmem:[#allocation2 + $0x141] sm:$0xff]
        %v4689 = vld [vmem:[#allocation2 + $0x151] sm:$0xff]
        %v4690 = vld [vmem:[#allocation2 + $0x159] sm:$0xff]
        %v4691 = vld [vmem:[#allocation2 + $0x169] sm:$0xff]
        %v4692 = vld [vmem:[#allocation2 + $0x171] sm:$0xff]
        %v4693 = vld [vmem:[#allocation2 + $0x181] sm:$0xff]
        %v4694 = vld [vmem:[#allocation2 + $0x189] sm:$0xff]
        %v4695 = vld [vmem:[#allocation2 + $0x199] sm:$0xff]
        %v4696 = vld [vmem:[#allocation2 + $0x1a1] sm:$0xff]
        %s4697 = scalar_lea.vmem %s14, 128
        %v4698 = vld [vmem:[%s4697] sm:$0xff]
        %v4699 = vld [vmem:[%s4697 + $0x8] sm:$0xff]
        %v4700 = vld [vmem:[%s4697 + $0x10] sm:$0xff]
        %v4701 = vld [vmem:[%s4697 + $0x18] sm:$0xff]
        %v4702 = vld [vmem:[%s4697 + $0x20] sm:$0xff]
        %v4703 = vld [vmem:[%s4697 + $0x28] sm:$0xff]
        %v4704 = vld [vmem:[%s4697 + $0x30] sm:$0xff]
        %v4705 = vld [vmem:[%s4697 + $0x38] sm:$0xff]
        %v4706 = vld [vmem:[%s4697 + $0x40] sm:$0xff]
        %v4707 = vld [vmem:[%s4697 + $0x48] sm:$0xff]
        %v4708 = vld [vmem:[%s4697 + $0x50] sm:$0xff]
        %v4709 = vld [vmem:[%s4697 + $0x58] sm:$0xff]
        %v4710 = vld [vmem:[%s4697 + $0x60] sm:$0xff]
        %v4711 = vld [vmem:[%s4697 + $0x68] sm:$0xff]
        %v4712 = vld [vmem:[%s4697 + $0x70] sm:$0xff]
        %v4713 = vld [vmem:[%s4697 + $0x78] sm:$0xff]
        %4714 = vmatprep.subr.mxu0 0.0
        %4715 = vmatpush1.msra.mxu0 %v4713
        %4716 = vmatprep.subr.mxu0 0.0
        %4717 = vmatpush1.msra.mxu0 %v4712
        %4718 = vmatprep.subr.mxu0 0.0
        %4719 = vmatpush1.msra.mxu0 %v4711
        %4720 = vmatprep.subr.mxu0 0.0
        %4721 = vmatpush1.msra.mxu0 %v4710
        %4722 = vmatprep.subr.mxu0 0.0
        %4723 = vmatpush1.msra.mxu0 %v4709
        %4724 = vmatprep.subr.mxu0 0.0
        %4725 = vmatpush1.msra.mxu0 %v4708
        %4726 = vmatprep.subr.mxu0 0.0
        %4727 = vmatpush1.msra.mxu0 %v4707
        %4728 = vmatprep.subr.mxu0 0.0
        %4729 = vmatpush1.msra.mxu0 %v4706
        %4730 = vmatprep.subr.mxu0 0.0
        %4731 = vmatpush1.msra.mxu0 %v4705
        %4732 = vmatprep.subr.mxu0 0.0
        %4733 = vmatpush1.msra.mxu0 %v4704
        %4734 = vmatprep.subr.mxu0 0.0
        %4735 = vmatpush1.msra.mxu0 %v4703
        %4736 = vmatprep.subr.mxu0 0.0
        %4737 = vmatpush1.msra.mxu0 %v4702
        %4738 = vmatprep.subr.mxu0 0.0
        %4739 = vmatpush1.msra.mxu0 %v4701
        %4740 = vmatprep.subr.mxu0 0.0
        %4741 = vmatpush1.msra.mxu0 %v4700
        %4742 = vmatprep.subr.mxu0 0.0
        %4743 = vmatpush1.msra.mxu0 %v4699
        %4744 = vmatprep.subr.mxu0 0.0
        %4745 = vmatpush1.msra.mxu0 %v4698
        %4746 = vmatprep.subr.mxu0 0.0
        %4747 = vmatpush2.msra.mxu0 0.0
        %4748 = vmatprep.subr.mxu0 0.0
        %4749 = vmatpush2.msra.mxu0 0.0
        %4750 = vmatprep.subr.mxu0 0.0
        %4751 = vmatpush2.msra.mxu0 0.0
        %4752 = vmatprep.subr.mxu0 0.0
        %4753 = vmatpush2.msra.mxu0 0.0
        %4754 = vmatprep.subr.mxu0 0.0
        %4755 = vmatpush2.msra.mxu0 0.0
        %4756 = vmatprep.subr.mxu0 0.0
        %4757 = vmatpush2.msra.mxu0 0.0
        %4758 = vmatprep.subr.mxu0 0.0
        %4759 = vmatpush2.msra.mxu0 0.0
        %4760 = vmatprep.subr.mxu0 0.0
        %4761 = vmatpush2.msra.mxu0 0.0
        %4762 = vmatprep.subr.mxu0 0.0
        %4763 = vmatpush2.msra.mxu0 0.0
        %4764 = vmatprep.subr.mxu0 0.0
        %4765 = vmatpush2.msra.mxu0 0.0
        %4766 = vmatprep.subr.mxu0 0.0
        %4767 = vmatpush2.msra.mxu0 0.0
        %4768 = vmatprep.subr.mxu0 0.0
        %4769 = vmatpush2.msra.mxu0 0.0
        %4770 = vmatprep.subr.mxu0 0.0
        %4771 = vmatpush2.msra.mxu0 0.0
        %4772 = vmatprep.subr.mxu0 0.0
        %4773 = vmatpush2.msra.mxu0 0.0
        %4774 = vmatprep.subr.mxu0 0.0
        %4775 = vmatpush2.msra.mxu0 0.0
        %4776 = vmatprep.subr.mxu0 0.0
        %4777 = vmatpush2.msra.mxu0 0.0
        %4778 = vmatprep.mubr.f32.mxu0 0.0
        %4779 = vmatmul.mubr.f32.gmra.mxu0 %v4661
        %v4780 = vpop.f32.mrf.mxu0
        %v4781 = vadd.f32 0.0, %v4780
        %v4782 = vpop.f32.mrf.mxu0
        %4783 = vmatprep.mubr.f32.mxu0 0.0
        %4784 = vmatmul.mubr.f32.gmra.mxu0 %v4662
        %v4785 = vpop.f32.mrf.mxu0
        %v4786 = vadd.f32 0.0, %v4785
        %v4787 = vpop.f32.mrf.mxu0
        %4788 = vmatprep.mubr.f32.mxu0 0.0
        %4789 = vmatmul.mubr.f32.gmra.mxu0 %v4663
        %v4790 = vpop.f32.mrf.mxu0
        %v4791 = vadd.f32 0.0, %v4790
        %v4792 = vpop.f32.mrf.mxu0
        %4793 = vmatprep.mubr.f32.mxu0 0.0
        %4794 = vmatmul.mubr.f32.gmra.mxu0 %v4664
        %v4795 = vpop.f32.mrf.mxu0
        %v4796 = vadd.f32 0.0, %v4795
        %v4797 = vpop.f32.mrf.mxu0
        %4798 = vmatprep.mubr.f32.mxu0 0.0
        %4799 = vmatmul.mubr.f32.gmra.mxu0 %v4665
        %v4800 = vpop.f32.mrf.mxu0
        %v4801 = vadd.f32 0.0, %v4800
        %v4802 = vpop.f32.mrf.mxu0
        %4803 = vmatprep.mubr.f32.mxu0 0.0
        %4804 = vmatmul.mubr.f32.gmra.mxu0 %v4666
        %v4805 = vpop.f32.mrf.mxu0
        %v4806 = vadd.f32 0.0, %v4805
        %v4807 = vpop.f32.mrf.mxu0
        %4808 = vmatprep.mubr.f32.mxu0 0.0
        %4809 = vmatmul.mubr.f32.gmra.mxu0 %v4667
        %v4810 = vpop.f32.mrf.mxu0
        %v4811 = vadd.f32 0.0, %v4810
        %v4812 = vpop.f32.mrf.mxu0
        %4813 = vmatprep.mubr.f32.mxu0 0.0
        %4814 = vmatmul.mubr.f32.gmra.mxu0 %v4668
        %v4815 = vpop.f32.mrf.mxu0
        %v4816 = vadd.f32 0.0, %v4815
        %v4817 = vpop.f32.mrf.mxu0
        %4818 = vmatprep.mubr.f32.mxu0 0.0
        %4819 = vmatmul.mubr.f32.gmra.mxu0 %v4669
        %v4820 = vpop.f32.mrf.mxu0
        %v4821 = vadd.f32 0.0, %v4820
        %v4822 = vpop.f32.mrf.mxu0
        %4823 = vmatprep.mubr.f32.mxu0 0.0
        %4824 = vmatmul.mubr.f32.gmra.mxu0 %v4670
        %v4825 = vpop.f32.mrf.mxu0
        %v4826 = vadd.f32 0.0, %v4825
        %v4827 = vpop.f32.mrf.mxu0
        %4828 = vmatprep.mubr.f32.mxu0 0.0
        %4829 = vmatmul.mubr.f32.gmra.mxu0 %v4671
        %v4830 = vpop.f32.mrf.mxu0
        %v4831 = vadd.f32 0.0, %v4830
        %v4832 = vpop.f32.mrf.mxu0
        %4833 = vmatprep.mubr.f32.mxu0 0.0
        %4834 = vmatmul.mubr.f32.gmra.mxu0 %v4672
        %v4835 = vpop.f32.mrf.mxu0
        %v4836 = vadd.f32 0.0, %v4835
        %v4837 = vpop.f32.mrf.mxu0
        %4838 = vmatprep.mubr.f32.mxu0 0.0
        %4839 = vmatmul.mubr.f32.gmra.mxu0 %v4673
        %v4840 = vpop.f32.mrf.mxu0
        %v4841 = vadd.f32 0.0, %v4840
        %v4842 = vpop.f32.mrf.mxu0
        %4843 = vmatprep.mubr.f32.mxu0 0.0
        %4844 = vmatmul.mubr.f32.gmra.mxu0 %v4674
        %v4845 = vpop.f32.mrf.mxu0
        %v4846 = vadd.f32 0.0, %v4845
        %v4847 = vpop.f32.mrf.mxu0
        %4848 = vmatprep.mubr.f32.mxu0 0.0
        %4849 = vmatmul.mubr.f32.gmra.mxu0 %v4675
        %v4850 = vpop.f32.mrf.mxu0
        %v4851 = vadd.f32 0.0, %v4850
        %v4852 = vpop.f32.mrf.mxu0
        %4853 = vmatprep.mubr.f32.mxu0 0.0
        %4854 = vmatmul.mubr.f32.gmra.mxu0 %v4676
        %v4855 = vpop.f32.mrf.mxu0
        %v4856 = vadd.f32 0.0, %v4855
        %v4857 = vpop.f32.mrf.mxu0
        %4858 = vmatprep.mubr.f32.mxu0 0.0
        %4859 = vmatmul.mubr.f32.gmra.mxu0 %v4677
        %v4860 = vpop.f32.mrf.mxu0
        %v4861 = vadd.f32 0.0, %v4860
        %v4862 = vpop.f32.mrf.mxu0
        %4863 = vmatprep.mubr.f32.mxu0 0.0
        %4864 = vmatmul.mubr.f32.gmra.mxu0 %v4678
        %v4865 = vpop.f32.mrf.mxu0
        %v4866 = vadd.f32 0.0, %v4865
        %v4867 = vpop.f32.mrf.mxu0
        %4868 = vmatprep.mubr.f32.mxu0 0.0
        %4869 = vmatmul.mubr.f32.gmra.mxu0 %v4679
        %v4870 = vpop.f32.mrf.mxu0
        %v4871 = vadd.f32 0.0, %v4870
        %v4872 = vpop.f32.mrf.mxu0
        %4873 = vmatprep.mubr.f32.mxu0 0.0
        %4874 = vmatmul.mubr.f32.gmra.mxu0 %v4680
        %v4875 = vpop.f32.mrf.mxu0
        %v4876 = vadd.f32 0.0, %v4875
        %v4877 = vpop.f32.mrf.mxu0
        %4878 = vmatprep.mubr.f32.mxu0 0.0
        %4879 = vmatmul.mubr.f32.gmra.mxu0 %v4681
        %v4880 = vpop.f32.mrf.mxu0
        %v4881 = vadd.f32 0.0, %v4880
        %v4882 = vpop.f32.mrf.mxu0
        %4883 = vmatprep.mubr.f32.mxu0 0.0
        %4884 = vmatmul.mubr.f32.gmra.mxu0 %v4682
        %v4885 = vpop.f32.mrf.mxu0
        %v4886 = vadd.f32 0.0, %v4885
        %v4887 = vpop.f32.mrf.mxu0
        %4888 = vmatprep.mubr.f32.mxu0 0.0
        %4889 = vmatmul.mubr.f32.gmra.mxu0 %v4683
        %v4890 = vpop.f32.mrf.mxu0
        %v4891 = vadd.f32 0.0, %v4890
        %v4892 = vpop.f32.mrf.mxu0
        %4893 = vmatprep.mubr.f32.mxu0 0.0
        %4894 = vmatmul.mubr.f32.gmra.mxu0 %v4684
        %v4895 = vpop.f32.mrf.mxu0
        %v4896 = vadd.f32 0.0, %v4895
        %v4897 = vpop.f32.mrf.mxu0
        %4898 = vmatprep.mubr.f32.mxu0 0.0
        %4899 = vmatmul.mubr.f32.gmra.mxu0 %v4685
        %v4900 = vpop.f32.mrf.mxu0
        %v4901 = vadd.f32 0.0, %v4900
        %v4902 = vpop.f32.mrf.mxu0
        %4903 = vmatprep.mubr.f32.mxu0 0.0
        %4904 = vmatmul.mubr.f32.gmra.mxu0 %v4686
        %v4905 = vpop.f32.mrf.mxu0
        %v4906 = vadd.f32 0.0, %v4905
        %v4907 = vpop.f32.mrf.mxu0
        %4908 = vmatprep.mubr.f32.mxu0 0.0
        %4909 = vmatmul.mubr.f32.gmra.mxu0 %v4687
        %v4910 = vpop.f32.mrf.mxu0
        %v4911 = vadd.f32 0.0, %v4910
        %v4912 = vpop.f32.mrf.mxu0
        %4913 = vmatprep.mubr.f32.mxu0 0.0
        %4914 = vmatmul.mubr.f32.gmra.mxu0 %v4688
        %v4915 = vpop.f32.mrf.mxu0
        %v4916 = vadd.f32 0.0, %v4915
        %v4917 = vpop.f32.mrf.mxu0
        %4918 = vmatprep.mubr.f32.mxu0 0.0
        %4919 = vmatmul.mubr.f32.gmra.mxu0 %v4689
        %v4920 = vpop.f32.mrf.mxu0
        %v4921 = vadd.f32 0.0, %v4920
        %v4922 = vpop.f32.mrf.mxu0
        %4923 = vmatprep.mubr.f32.mxu0 0.0
        %4924 = vmatmul.mubr.f32.gmra.mxu0 %v4690
        %v4925 = vpop.f32.mrf.mxu0
        %v4926 = vadd.f32 0.0, %v4925
        %v4927 = vpop.f32.mrf.mxu0
        %4928 = vmatprep.mubr.f32.mxu0 0.0
        %4929 = vmatmul.mubr.f32.gmra.mxu0 %v4691
        %v4930 = vpop.f32.mrf.mxu0
        %v4931 = vadd.f32 0.0, %v4930
        %v4932 = vpop.f32.mrf.mxu0
        %4933 = vmatprep.mubr.f32.mxu0 0.0
        %4934 = vmatmul.mubr.f32.gmra.mxu0 %v4692
        %v4935 = vpop.f32.mrf.mxu0
        %v4936 = vadd.f32 0.0, %v4935
        %v4937 = vpop.f32.mrf.mxu0
        %4938 = vdwg.mxu0
        %v4939 = vadd.f32 %v4629, %v4781
        %v4940 = vadd.f32 %v4630, %v4786
        %v4941 = vadd.f32 %v4631, %v4791
        %v4942 = vadd.f32 %v4632, %v4796
        %v4943 = vadd.f32 %v4633, %v4801
        %v4944 = vadd.f32 %v4634, %v4806
        %v4945 = vadd.f32 %v4635, %v4811
        %v4946 = vadd.f32 %v4636, %v4816
        %v4947 = vadd.f32 %v4637, %v4821
        %v4948 = vadd.f32 %v4638, %v4826
        %v4949 = vadd.f32 %v4639, %v4831
        %v4950 = vadd.f32 %v4640, %v4836
        %v4951 = vadd.f32 %v4641, %v4841
        %v4952 = vadd.f32 %v4642, %v4846
        %v4953 = vadd.f32 %v4643, %v4851
        %v4954 = vadd.f32 %v4644, %v4856
        %v4955 = vadd.f32 %v4645, %v4861
        %v4956 = vadd.f32 %v4646, %v4866
        %v4957 = vadd.f32 %v4647, %v4871
        %v4958 = vadd.f32 %v4648, %v4876
        %v4959 = vadd.f32 %v4649, %v4881
        %v4960 = vadd.f32 %v4650, %v4886
        %v4961 = vadd.f32 %v4651, %v4891
        %v4962 = vadd.f32 %v4652, %v4896
        %v4963 = vadd.f32 %v4653, %v4901
        %v4964 = vadd.f32 %v4654, %v4906
        %v4965 = vadd.f32 %v4655, %v4911
        %v4966 = vadd.f32 %v4656, %v4916
        %v4967 = vadd.f32 %v4657, %v4921
        %v4968 = vadd.f32 %v4658, %v4926
        %v4969 = vadd.f32 %v4659, %v4931
        %v4970 = vadd.f32 %v4660, %v4936
        %s4971 = scalar_lea.vmem %s14, 512
        %v4972 = vld [vmem:[%s4971] sm:$0xff]
        %v4973 = vld [vmem:[%s4971 + $0x8] sm:$0xff]
        %v4974 = vld [vmem:[%s4971 + $0x10] sm:$0xff]
        %v4975 = vld [vmem:[%s4971 + $0x18] sm:$0xff]
        %v4976 = vld [vmem:[%s4971 + $0x20] sm:$0xff]
        %v4977 = vld [vmem:[%s4971 + $0x28] sm:$0xff]
        %v4978 = vld [vmem:[%s4971 + $0x30] sm:$0xff]
        %v4979 = vld [vmem:[%s4971 + $0x38] sm:$0xff]
        %v4980 = vld [vmem:[%s4971 + $0x40] sm:$0xff]
        %v4981 = vld [vmem:[%s4971 + $0x48] sm:$0xff]
        %v4982 = vld [vmem:[%s4971 + $0x50] sm:$0xff]
        %v4983 = vld [vmem:[%s4971 + $0x58] sm:$0xff]
        %v4984 = vld [vmem:[%s4971 + $0x60] sm:$0xff]
        %v4985 = vld [vmem:[%s4971 + $0x68] sm:$0xff]
        %v4986 = vld [vmem:[%s4971 + $0x70] sm:$0xff]
        %v4987 = vld [vmem:[%s4971 + $0x78] sm:$0xff]
        %4988 = vmatprep.subr.mxu0 0.0
        %4989 = vmatpush1.msra.mxu0 %v4987
        %4990 = vmatprep.subr.mxu0 0.0
        %4991 = vmatpush1.msra.mxu0 %v4986
        %4992 = vmatprep.subr.mxu0 0.0
        %4993 = vmatpush1.msra.mxu0 %v4985
        %4994 = vmatprep.subr.mxu0 0.0
        %4995 = vmatpush1.msra.mxu0 %v4984
        %4996 = vmatprep.subr.mxu0 0.0
        %4997 = vmatpush1.msra.mxu0 %v4983
        %4998 = vmatprep.subr.mxu0 0.0
        %4999 = vmatpush1.msra.mxu0 %v4982
        %5000 = vmatprep.subr.mxu0 0.0
        %5001 = vmatpush1.msra.mxu0 %v4981
        %5002 = vmatprep.subr.mxu0 0.0
        %5003 = vmatpush1.msra.mxu0 %v4980
        %5004 = vmatprep.subr.mxu0 0.0
        %5005 = vmatpush1.msra.mxu0 %v4979
        %5006 = vmatprep.subr.mxu0 0.0
        %5007 = vmatpush1.msra.mxu0 %v4978
        %5008 = vmatprep.subr.mxu0 0.0
        %5009 = vmatpush1.msra.mxu0 %v4977
        %5010 = vmatprep.subr.mxu0 0.0
        %5011 = vmatpush1.msra.mxu0 %v4976
        %5012 = vmatprep.subr.mxu0 0.0
        %5013 = vmatpush1.msra.mxu0 %v4975
        %5014 = vmatprep.subr.mxu0 0.0
        %5015 = vmatpush1.msra.mxu0 %v4974
        %5016 = vmatprep.subr.mxu0 0.0
        %5017 = vmatpush1.msra.mxu0 %v4973
        %5018 = vmatprep.subr.mxu0 0.0
        %5019 = vmatpush1.msra.mxu0 %v4972
        %5020 = vmatprep.subr.mxu0 0.0
        %5021 = vmatpush2.msra.mxu0 0.0
        %5022 = vmatprep.subr.mxu0 0.0
        %5023 = vmatpush2.msra.mxu0 0.0
        %5024 = vmatprep.subr.mxu0 0.0
        %5025 = vmatpush2.msra.mxu0 0.0
        %5026 = vmatprep.subr.mxu0 0.0
        %5027 = vmatpush2.msra.mxu0 0.0
        %5028 = vmatprep.subr.mxu0 0.0
        %5029 = vmatpush2.msra.mxu0 0.0
        %5030 = vmatprep.subr.mxu0 0.0
        %5031 = vmatpush2.msra.mxu0 0.0
        %5032 = vmatprep.subr.mxu0 0.0
        %5033 = vmatpush2.msra.mxu0 0.0
        %5034 = vmatprep.subr.mxu0 0.0
        %5035 = vmatpush2.msra.mxu0 0.0
        %5036 = vmatprep.subr.mxu0 0.0
        %5037 = vmatpush2.msra.mxu0 0.0
        %5038 = vmatprep.subr.mxu0 0.0
        %5039 = vmatpush2.msra.mxu0 0.0
        %5040 = vmatprep.subr.mxu0 0.0
        %5041 = vmatpush2.msra.mxu0 0.0
        %5042 = vmatprep.subr.mxu0 0.0
        %5043 = vmatpush2.msra.mxu0 0.0
        %5044 = vmatprep.subr.mxu0 0.0
        %5045 = vmatpush2.msra.mxu0 0.0
        %5046 = vmatprep.subr.mxu0 0.0
        %5047 = vmatpush2.msra.mxu0 0.0
        %5048 = vmatprep.subr.mxu0 0.0
        %5049 = vmatpush2.msra.mxu0 0.0
        %5050 = vmatprep.subr.mxu0 0.0
        %5051 = vmatpush2.msra.mxu0 0.0
        %5052 = vmatprep.mubr.f32.mxu0 0.0
        %5053 = vmatmul.mubr.f32.gmra.mxu0 %v4663
        %v5054 = vpop.f32.mrf.mxu0
        %v5055 = vadd.f32 0.0, %v5054
        %v5056 = vpop.f32.mrf.mxu0
        %5057 = vmatprep.mubr.f32.mxu0 0.0
        %5058 = vmatmul.mubr.f32.gmra.mxu0 %v4664
        %v5059 = vpop.f32.mrf.mxu0
        %v5060 = vadd.f32 0.0, %v5059
        %v5061 = vpop.f32.mrf.mxu0
        %5062 = vmatprep.mubr.f32.mxu0 0.0
        %5063 = vmatmul.mubr.f32.gmra.mxu0 %v4665
        %v5064 = vpop.f32.mrf.mxu0
        %v5065 = vadd.f32 0.0, %v5064
        %v5066 = vpop.f32.mrf.mxu0
        %5067 = vmatprep.mubr.f32.mxu0 0.0
        %5068 = vmatmul.mubr.f32.gmra.mxu0 %v4666
        %v5069 = vpop.f32.mrf.mxu0
        %v5070 = vadd.f32 0.0, %v5069
        %v5071 = vpop.f32.mrf.mxu0
        %5072 = vmatprep.mubr.f32.mxu0 0.0
        %5073 = vmatmul.mubr.f32.gmra.mxu0 %v4667
        %v5074 = vpop.f32.mrf.mxu0
        %v5075 = vadd.f32 0.0, %v5074
        %v5076 = vpop.f32.mrf.mxu0
        %5077 = vmatprep.mubr.f32.mxu0 0.0
        %5078 = vmatmul.mubr.f32.gmra.mxu0 %v4668
        %v5079 = vpop.f32.mrf.mxu0
        %v5080 = vadd.f32 0.0, %v5079
        %v5081 = vpop.f32.mrf.mxu0
        %5082 = vmatprep.mubr.f32.mxu0 0.0
        %5083 = vmatmul.mubr.f32.gmra.mxu0 %v4669
        %v5084 = vpop.f32.mrf.mxu0
        %v5085 = vadd.f32 0.0, %v5084
        %v5086 = vpop.f32.mrf.mxu0
        %5087 = vmatprep.mubr.f32.mxu0 0.0
        %5088 = vmatmul.mubr.f32.gmra.mxu0 %v4670
        %v5089 = vpop.f32.mrf.mxu0
        %v5090 = vadd.f32 0.0, %v5089
        %v5091 = vpop.f32.mrf.mxu0
        %5092 = vmatprep.mubr.f32.mxu0 0.0
        %5093 = vmatmul.mubr.f32.gmra.mxu0 %v4671
        %v5094 = vpop.f32.mrf.mxu0
        %v5095 = vadd.f32 0.0, %v5094
        %v5096 = vpop.f32.mrf.mxu0
        %5097 = vmatprep.mubr.f32.mxu0 0.0
        %5098 = vmatmul.mubr.f32.gmra.mxu0 %v4672
        %v5099 = vpop.f32.mrf.mxu0
        %v5100 = vadd.f32 0.0, %v5099
        %v5101 = vpop.f32.mrf.mxu0
        %5102 = vmatprep.mubr.f32.mxu0 0.0
        %5103 = vmatmul.mubr.f32.gmra.mxu0 %v4673
        %v5104 = vpop.f32.mrf.mxu0
        %v5105 = vadd.f32 0.0, %v5104
        %v5106 = vpop.f32.mrf.mxu0
        %5107 = vmatprep.mubr.f32.mxu0 0.0
        %5108 = vmatmul.mubr.f32.gmra.mxu0 %v4674
        %v5109 = vpop.f32.mrf.mxu0
        %v5110 = vadd.f32 0.0, %v5109
        %v5111 = vpop.f32.mrf.mxu0
        %5112 = vmatprep.mubr.f32.mxu0 0.0
        %5113 = vmatmul.mubr.f32.gmra.mxu0 %v4675
        %v5114 = vpop.f32.mrf.mxu0
        %v5115 = vadd.f32 0.0, %v5114
        %v5116 = vpop.f32.mrf.mxu0
        %5117 = vmatprep.mubr.f32.mxu0 0.0
        %5118 = vmatmul.mubr.f32.gmra.mxu0 %v4676
        %v5119 = vpop.f32.mrf.mxu0
        %v5120 = vadd.f32 0.0, %v5119
        %v5121 = vpop.f32.mrf.mxu0
        %5122 = vmatprep.mubr.f32.mxu0 0.0
        %5123 = vmatmul.mubr.f32.gmra.mxu0 %v4677
        %v5124 = vpop.f32.mrf.mxu0
        %v5125 = vadd.f32 0.0, %v5124
        %v5126 = vpop.f32.mrf.mxu0
        %5127 = vmatprep.mubr.f32.mxu0 0.0
        %5128 = vmatmul.mubr.f32.gmra.mxu0 %v4678
        %v5129 = vpop.f32.mrf.mxu0
        %v5130 = vadd.f32 0.0, %v5129
        %v5131 = vpop.f32.mrf.mxu0
        %5132 = vmatprep.mubr.f32.mxu0 0.0
        %5133 = vmatmul.mubr.f32.gmra.mxu0 %v4679
        %v5134 = vpop.f32.mrf.mxu0
        %v5135 = vadd.f32 0.0, %v5134
        %v5136 = vpop.f32.mrf.mxu0
        %5137 = vmatprep.mubr.f32.mxu0 0.0
        %5138 = vmatmul.mubr.f32.gmra.mxu0 %v4680
        %v5139 = vpop.f32.mrf.mxu0
        %v5140 = vadd.f32 0.0, %v5139
        %v5141 = vpop.f32.mrf.mxu0
        %5142 = vmatprep.mubr.f32.mxu0 0.0
        %5143 = vmatmul.mubr.f32.gmra.mxu0 %v4681
        %v5144 = vpop.f32.mrf.mxu0
        %v5145 = vadd.f32 0.0, %v5144
        %v5146 = vpop.f32.mrf.mxu0
        %5147 = vmatprep.mubr.f32.mxu0 0.0
        %5148 = vmatmul.mubr.f32.gmra.mxu0 %v4682
        %v5149 = vpop.f32.mrf.mxu0
        %v5150 = vadd.f32 0.0, %v5149
        %v5151 = vpop.f32.mrf.mxu0
        %5152 = vmatprep.mubr.f32.mxu0 0.0
        %5153 = vmatmul.mubr.f32.gmra.mxu0 %v4683
        %v5154 = vpop.f32.mrf.mxu0
        %v5155 = vadd.f32 0.0, %v5154
        %v5156 = vpop.f32.mrf.mxu0
        %5157 = vmatprep.mubr.f32.mxu0 0.0
        %5158 = vmatmul.mubr.f32.gmra.mxu0 %v4684
        %v5159 = vpop.f32.mrf.mxu0
        %v5160 = vadd.f32 0.0, %v5159
        %v5161 = vpop.f32.mrf.mxu0
        %5162 = vmatprep.mubr.f32.mxu0 0.0
        %5163 = vmatmul.mubr.f32.gmra.mxu0 %v4685
        %v5164 = vpop.f32.mrf.mxu0
        %v5165 = vadd.f32 0.0, %v5164
        %v5166 = vpop.f32.mrf.mxu0
        %5167 = vmatprep.mubr.f32.mxu0 0.0
        %5168 = vmatmul.mubr.f32.gmra.mxu0 %v4686
        %v5169 = vpop.f32.mrf.mxu0
        %v5170 = vadd.f32 0.0, %v5169
        %v5171 = vpop.f32.mrf.mxu0
        %5172 = vmatprep.mubr.f32.mxu0 0.0
        %5173 = vmatmul.mubr.f32.gmra.mxu0 %v4687
        %v5174 = vpop.f32.mrf.mxu0
        %v5175 = vadd.f32 0.0, %v5174
        %v5176 = vpop.f32.mrf.mxu0
        %5177 = vmatprep.mubr.f32.mxu0 0.0
        %5178 = vmatmul.mubr.f32.gmra.mxu0 %v4688
        %v5179 = vpop.f32.mrf.mxu0
        %v5180 = vadd.f32 0.0, %v5179
        %v5181 = vpop.f32.mrf.mxu0
        %5182 = vmatprep.mubr.f32.mxu0 0.0
        %5183 = vmatmul.mubr.f32.gmra.mxu0 %v4689
        %v5184 = vpop.f32.mrf.mxu0
        %v5185 = vadd.f32 0.0, %v5184
        %v5186 = vpop.f32.mrf.mxu0
        %5187 = vmatprep.mubr.f32.mxu0 0.0
        %5188 = vmatmul.mubr.f32.gmra.mxu0 %v4690
        %v5189 = vpop.f32.mrf.mxu0
        %v5190 = vadd.f32 0.0, %v5189
        %v5191 = vpop.f32.mrf.mxu0
        %5192 = vmatprep.mubr.f32.mxu0 0.0
        %5193 = vmatmul.mubr.f32.gmra.mxu0 %v4691
        %v5194 = vpop.f32.mrf.mxu0
        %v5195 = vadd.f32 0.0, %v5194
        %v5196 = vpop.f32.mrf.mxu0
        %5197 = vmatprep.mubr.f32.mxu0 0.0
        %5198 = vmatmul.mubr.f32.gmra.mxu0 %v4692
        %v5199 = vpop.f32.mrf.mxu0
        %v5200 = vadd.f32 0.0, %v5199
        %v5201 = vpop.f32.mrf.mxu0
        %5202 = vmatprep.mubr.f32.mxu0 0.0
        %5203 = vmatmul.mubr.f32.gmra.mxu0 %v4693
        %v5204 = vpop.f32.mrf.mxu0
        %v5205 = vadd.f32 0.0, %v5204
        %v5206 = vpop.f32.mrf.mxu0
        %5207 = vmatprep.mubr.f32.mxu0 0.0
        %5208 = vmatmul.mubr.f32.gmra.mxu0 %v4694
        %v5209 = vpop.f32.mrf.mxu0
        %v5210 = vadd.f32 0.0, %v5209
        %v5211 = vpop.f32.mrf.mxu0
        %5212 = vdwg.mxu0
        %v5213 = vadd.f32 %v4939, %v5055
        %v5214 = vadd.f32 %v4940, %v5060
        %v5215 = vadd.f32 %v4941, %v5065
        %v5216 = vadd.f32 %v4942, %v5070
        %v5217 = vadd.f32 %v4943, %v5075
        %v5218 = vadd.f32 %v4944, %v5080
        %v5219 = vadd.f32 %v4945, %v5085
        %v5220 = vadd.f32 %v4946, %v5090
        %v5221 = vadd.f32 %v4947, %v5095
        %v5222 = vadd.f32 %v4948, %v5100
        %v5223 = vadd.f32 %v4949, %v5105
        %v5224 = vadd.f32 %v4950, %v5110
        %v5225 = vadd.f32 %v4951, %v5115
        %v5226 = vadd.f32 %v4952, %v5120
        %v5227 = vadd.f32 %v4953, %v5125
        %v5228 = vadd.f32 %v4954, %v5130
        %v5229 = vadd.f32 %v4955, %v5135
        %v5230 = vadd.f32 %v4956, %v5140
        %v5231 = vadd.f32 %v4957, %v5145
        %v5232 = vadd.f32 %v4958, %v5150
        %v5233 = vadd.f32 %v4959, %v5155
        %v5234 = vadd.f32 %v4960, %v5160
        %v5235 = vadd.f32 %v4961, %v5165
        %v5236 = vadd.f32 %v4962, %v5170
        %v5237 = vadd.f32 %v4963, %v5175
        %v5238 = vadd.f32 %v4964, %v5180
        %v5239 = vadd.f32 %v4965, %v5185
        %v5240 = vadd.f32 %v4966, %v5190
        %v5241 = vadd.f32 %v4967, %v5195
        %v5242 = vadd.f32 %v4968, %v5200
        %v5243 = vadd.f32 %v4969, %v5205
        %v5244 = vadd.f32 %v4970, %v5210
        %s5245 = scalar_lea.vmem %s14, 896
        %v5246 = vld [vmem:[%s5245] sm:$0xff]
        %v5247 = vld [vmem:[%s5245 + $0x8] sm:$0xff]
        %v5248 = vld [vmem:[%s5245 + $0x10] sm:$0xff]
        %v5249 = vld [vmem:[%s5245 + $0x18] sm:$0xff]
        %v5250 = vld [vmem:[%s5245 + $0x20] sm:$0xff]
        %v5251 = vld [vmem:[%s5245 + $0x28] sm:$0xff]
        %v5252 = vld [vmem:[%s5245 + $0x30] sm:$0xff]
        %v5253 = vld [vmem:[%s5245 + $0x38] sm:$0xff]
        %v5254 = vld [vmem:[%s5245 + $0x40] sm:$0xff]
        %v5255 = vld [vmem:[%s5245 + $0x48] sm:$0xff]
        %v5256 = vld [vmem:[%s5245 + $0x50] sm:$0xff]
        %v5257 = vld [vmem:[%s5245 + $0x58] sm:$0xff]
        %v5258 = vld [vmem:[%s5245 + $0x60] sm:$0xff]
        %v5259 = vld [vmem:[%s5245 + $0x68] sm:$0xff]
        %v5260 = vld [vmem:[%s5245 + $0x70] sm:$0xff]
        %v5261 = vld [vmem:[%s5245 + $0x78] sm:$0xff]
        %5262 = vmatprep.subr.mxu0 0.0
        %5263 = vmatpush1.msra.mxu0 %v5261
        %5264 = vmatprep.subr.mxu0 0.0
        %5265 = vmatpush1.msra.mxu0 %v5260
        %5266 = vmatprep.subr.mxu0 0.0
        %5267 = vmatpush1.msra.mxu0 %v5259
        %5268 = vmatprep.subr.mxu0 0.0
        %5269 = vmatpush1.msra.mxu0 %v5258
        %5270 = vmatprep.subr.mxu0 0.0
        %5271 = vmatpush1.msra.mxu0 %v5257
        %5272 = vmatprep.subr.mxu0 0.0
        %5273 = vmatpush1.msra.mxu0 %v5256
        %5274 = vmatprep.subr.mxu0 0.0
        %5275 = vmatpush1.msra.mxu0 %v5255
        %5276 = vmatprep.subr.mxu0 0.0
        %5277 = vmatpush1.msra.mxu0 %v5254
        %5278 = vmatprep.subr.mxu0 0.0
        %5279 = vmatpush1.msra.mxu0 %v5253
        %5280 = vmatprep.subr.mxu0 0.0
        %5281 = vmatpush1.msra.mxu0 %v5252
        %5282 = vmatprep.subr.mxu0 0.0
        %5283 = vmatpush1.msra.mxu0 %v5251
        %5284 = vmatprep.subr.mxu0 0.0
        %5285 = vmatpush1.msra.mxu0 %v5250
        %5286 = vmatprep.subr.mxu0 0.0
        %5287 = vmatpush1.msra.mxu0 %v5249
        %5288 = vmatprep.subr.mxu0 0.0
        %5289 = vmatpush1.msra.mxu0 %v5248
        %5290 = vmatprep.subr.mxu0 0.0
        %5291 = vmatpush1.msra.mxu0 %v5247
        %5292 = vmatprep.subr.mxu0 0.0
        %5293 = vmatpush1.msra.mxu0 %v5246
        %5294 = vmatprep.subr.mxu0 0.0
        %5295 = vmatpush2.msra.mxu0 0.0
        %5296 = vmatprep.subr.mxu0 0.0
        %5297 = vmatpush2.msra.mxu0 0.0
        %5298 = vmatprep.subr.mxu0 0.0
        %5299 = vmatpush2.msra.mxu0 0.0
        %5300 = vmatprep.subr.mxu0 0.0
        %5301 = vmatpush2.msra.mxu0 0.0
        %5302 = vmatprep.subr.mxu0 0.0
        %5303 = vmatpush2.msra.mxu0 0.0
        %5304 = vmatprep.subr.mxu0 0.0
        %5305 = vmatpush2.msra.mxu0 0.0
        %5306 = vmatprep.subr.mxu0 0.0
        %5307 = vmatpush2.msra.mxu0 0.0
        %5308 = vmatprep.subr.mxu0 0.0
        %5309 = vmatpush2.msra.mxu0 0.0
        %5310 = vmatprep.subr.mxu0 0.0
        %5311 = vmatpush2.msra.mxu0 0.0
        %5312 = vmatprep.subr.mxu0 0.0
        %5313 = vmatpush2.msra.mxu0 0.0
        %5314 = vmatprep.subr.mxu0 0.0
        %5315 = vmatpush2.msra.mxu0 0.0
        %5316 = vmatprep.subr.mxu0 0.0
        %5317 = vmatpush2.msra.mxu0 0.0
        %5318 = vmatprep.subr.mxu0 0.0
        %5319 = vmatpush2.msra.mxu0 0.0
        %5320 = vmatprep.subr.mxu0 0.0
        %5321 = vmatpush2.msra.mxu0 0.0
        %5322 = vmatprep.subr.mxu0 0.0
        %5323 = vmatpush2.msra.mxu0 0.0
        %5324 = vmatprep.subr.mxu0 0.0
        %5325 = vmatpush2.msra.mxu0 0.0
        %5326 = vmatprep.mubr.f32.mxu0 0.0
        %5327 = vmatmul.mubr.f32.gmra.mxu0 %v4665
        %v5328 = vpop.f32.mrf.mxu0
        %v5329 = vadd.f32 0.0, %v5328
        %v5330 = vpop.f32.mrf.mxu0
        %5331 = vmatprep.mubr.f32.mxu0 0.0
        %5332 = vmatmul.mubr.f32.gmra.mxu0 %v4666
        %v5333 = vpop.f32.mrf.mxu0
        %v5334 = vadd.f32 0.0, %v5333
        %v5335 = vpop.f32.mrf.mxu0
        %5336 = vmatprep.mubr.f32.mxu0 0.0
        %5337 = vmatmul.mubr.f32.gmra.mxu0 %v4667
        %v5338 = vpop.f32.mrf.mxu0
        %v5339 = vadd.f32 0.0, %v5338
        %v5340 = vpop.f32.mrf.mxu0
        %5341 = vmatprep.mubr.f32.mxu0 0.0
        %5342 = vmatmul.mubr.f32.gmra.mxu0 %v4668
        %v5343 = vpop.f32.mrf.mxu0
        %v5344 = vadd.f32 0.0, %v5343
        %v5345 = vpop.f32.mrf.mxu0
        %5346 = vmatprep.mubr.f32.mxu0 0.0
        %5347 = vmatmul.mubr.f32.gmra.mxu0 %v4669
        %v5348 = vpop.f32.mrf.mxu0
        %v5349 = vadd.f32 0.0, %v5348
        %v5350 = vpop.f32.mrf.mxu0
        %5351 = vmatprep.mubr.f32.mxu0 0.0
        %5352 = vmatmul.mubr.f32.gmra.mxu0 %v4670
        %v5353 = vpop.f32.mrf.mxu0
        %v5354 = vadd.f32 0.0, %v5353
        %v5355 = vpop.f32.mrf.mxu0
        %5356 = vmatprep.mubr.f32.mxu0 0.0
        %5357 = vmatmul.mubr.f32.gmra.mxu0 %v4671
        %v5358 = vpop.f32.mrf.mxu0
        %v5359 = vadd.f32 0.0, %v5358
        %v5360 = vpop.f32.mrf.mxu0
        %5361 = vmatprep.mubr.f32.mxu0 0.0
        %5362 = vmatmul.mubr.f32.gmra.mxu0 %v4672
        %v5363 = vpop.f32.mrf.mxu0
        %v5364 = vadd.f32 0.0, %v5363
        %v5365 = vpop.f32.mrf.mxu0
        %5366 = vmatprep.mubr.f32.mxu0 0.0
        %5367 = vmatmul.mubr.f32.gmra.mxu0 %v4673
        %v5368 = vpop.f32.mrf.mxu0
        %v5369 = vadd.f32 0.0, %v5368
        %v5370 = vpop.f32.mrf.mxu0
        %5371 = vmatprep.mubr.f32.mxu0 0.0
        %5372 = vmatmul.mubr.f32.gmra.mxu0 %v4674
        %v5373 = vpop.f32.mrf.mxu0
        %v5374 = vadd.f32 0.0, %v5373
        %v5375 = vpop.f32.mrf.mxu0
        %5376 = vmatprep.mubr.f32.mxu0 0.0
        %5377 = vmatmul.mubr.f32.gmra.mxu0 %v4675
        %v5378 = vpop.f32.mrf.mxu0
        %v5379 = vadd.f32 0.0, %v5378
        %v5380 = vpop.f32.mrf.mxu0
        %5381 = vmatprep.mubr.f32.mxu0 0.0
        %5382 = vmatmul.mubr.f32.gmra.mxu0 %v4676
        %v5383 = vpop.f32.mrf.mxu0
        %v5384 = vadd.f32 0.0, %v5383
        %v5385 = vpop.f32.mrf.mxu0
        %5386 = vmatprep.mubr.f32.mxu0 0.0
        %5387 = vmatmul.mubr.f32.gmra.mxu0 %v4677
        %v5388 = vpop.f32.mrf.mxu0
        %v5389 = vadd.f32 0.0, %v5388
        %v5390 = vpop.f32.mrf.mxu0
        %5391 = vmatprep.mubr.f32.mxu0 0.0
        %5392 = vmatmul.mubr.f32.gmra.mxu0 %v4678
        %v5393 = vpop.f32.mrf.mxu0
        %v5394 = vadd.f32 0.0, %v5393
        %v5395 = vpop.f32.mrf.mxu0
        %5396 = vmatprep.mubr.f32.mxu0 0.0
        %5397 = vmatmul.mubr.f32.gmra.mxu0 %v4679
        %v5398 = vpop.f32.mrf.mxu0
        %v5399 = vadd.f32 0.0, %v5398
        %v5400 = vpop.f32.mrf.mxu0
        %5401 = vmatprep.mubr.f32.mxu0 0.0
        %5402 = vmatmul.mubr.f32.gmra.mxu0 %v4680
        %v5403 = vpop.f32.mrf.mxu0
        %v5404 = vadd.f32 0.0, %v5403
        %v5405 = vpop.f32.mrf.mxu0
        %5406 = vmatprep.mubr.f32.mxu0 0.0
        %5407 = vmatmul.mubr.f32.gmra.mxu0 %v4681
        %v5408 = vpop.f32.mrf.mxu0
        %v5409 = vadd.f32 0.0, %v5408
        %v5410 = vpop.f32.mrf.mxu0
        %5411 = vmatprep.mubr.f32.mxu0 0.0
        %5412 = vmatmul.mubr.f32.gmra.mxu0 %v4682
        %v5413 = vpop.f32.mrf.mxu0
        %v5414 = vadd.f32 0.0, %v5413
        %v5415 = vpop.f32.mrf.mxu0
        %5416 = vmatprep.mubr.f32.mxu0 0.0
        %5417 = vmatmul.mubr.f32.gmra.mxu0 %v4683
        %v5418 = vpop.f32.mrf.mxu0
        %v5419 = vadd.f32 0.0, %v5418
        %v5420 = vpop.f32.mrf.mxu0
        %5421 = vmatprep.mubr.f32.mxu0 0.0
        %5422 = vmatmul.mubr.f32.gmra.mxu0 %v4684
        %v5423 = vpop.f32.mrf.mxu0
        %v5424 = vadd.f32 0.0, %v5423
        %v5425 = vpop.f32.mrf.mxu0
        %5426 = vmatprep.mubr.f32.mxu0 0.0
        %5427 = vmatmul.mubr.f32.gmra.mxu0 %v4685
        %v5428 = vpop.f32.mrf.mxu0
        %v5429 = vadd.f32 0.0, %v5428
        %v5430 = vpop.f32.mrf.mxu0
        %5431 = vmatprep.mubr.f32.mxu0 0.0
        %5432 = vmatmul.mubr.f32.gmra.mxu0 %v4686
        %v5433 = vpop.f32.mrf.mxu0
        %v5434 = vadd.f32 0.0, %v5433
        %v5435 = vpop.f32.mrf.mxu0
        %5436 = vmatprep.mubr.f32.mxu0 0.0
        %5437 = vmatmul.mubr.f32.gmra.mxu0 %v4687
        %v5438 = vpop.f32.mrf.mxu0
        %v5439 = vadd.f32 0.0, %v5438
        %v5440 = vpop.f32.mrf.mxu0
        %5441 = vmatprep.mubr.f32.mxu0 0.0
        %5442 = vmatmul.mubr.f32.gmra.mxu0 %v4688
        %v5443 = vpop.f32.mrf.mxu0
        %v5444 = vadd.f32 0.0, %v5443
        %v5445 = vpop.f32.mrf.mxu0
        %5446 = vmatprep.mubr.f32.mxu0 0.0
        %5447 = vmatmul.mubr.f32.gmra.mxu0 %v4689
        %v5448 = vpop.f32.mrf.mxu0
        %v5449 = vadd.f32 0.0, %v5448
        %v5450 = vpop.f32.mrf.mxu0
        %5451 = vmatprep.mubr.f32.mxu0 0.0
        %5452 = vmatmul.mubr.f32.gmra.mxu0 %v4690
        %v5453 = vpop.f32.mrf.mxu0
        %v5454 = vadd.f32 0.0, %v5453
        %v5455 = vpop.f32.mrf.mxu0
        %5456 = vmatprep.mubr.f32.mxu0 0.0
        %5457 = vmatmul.mubr.f32.gmra.mxu0 %v4691
        %v5458 = vpop.f32.mrf.mxu0
        %v5459 = vadd.f32 0.0, %v5458
        %v5460 = vpop.f32.mrf.mxu0
        %5461 = vmatprep.mubr.f32.mxu0 0.0
        %5462 = vmatmul.mubr.f32.gmra.mxu0 %v4692
        %v5463 = vpop.f32.mrf.mxu0
        %v5464 = vadd.f32 0.0, %v5463
        %v5465 = vpop.f32.mrf.mxu0
        %5466 = vmatprep.mubr.f32.mxu0 0.0
        %5467 = vmatmul.mubr.f32.gmra.mxu0 %v4693
        %v5468 = vpop.f32.mrf.mxu0
        %v5469 = vadd.f32 0.0, %v5468
        %v5470 = vpop.f32.mrf.mxu0
        %5471 = vmatprep.mubr.f32.mxu0 0.0
        %5472 = vmatmul.mubr.f32.gmra.mxu0 %v4694
        %v5473 = vpop.f32.mrf.mxu0
        %v5474 = vadd.f32 0.0, %v5473
        %v5475 = vpop.f32.mrf.mxu0
        %5476 = vmatprep.mubr.f32.mxu0 0.0
        %5477 = vmatmul.mubr.f32.gmra.mxu0 %v4695
        %v5478 = vpop.f32.mrf.mxu0
        %v5479 = vadd.f32 0.0, %v5478
        %v5480 = vpop.f32.mrf.mxu0
        %5481 = vmatprep.mubr.f32.mxu0 0.0
        %5482 = vmatmul.mubr.f32.gmra.mxu0 %v4696
        %v5483 = vpop.f32.mrf.mxu0
        %v5484 = vadd.f32 0.0, %v5483
        %v5485 = vpop.f32.mrf.mxu0
        %5486 = vdwg.mxu0
        %v5487 = vadd.f32 %v5213, %v5329
        %v5488 = vadd.f32 %v5214, %v5334
        %v5489 = vadd.f32 %v5215, %v5339
        %v5490 = vadd.f32 %v5216, %v5344
        %v5491 = vadd.f32 %v5217, %v5349
        %v5492 = vadd.f32 %v5218, %v5354
        %v5493 = vadd.f32 %v5219, %v5359
        %v5494 = vadd.f32 %v5220, %v5364
        %v5495 = vadd.f32 %v5221, %v5369
        %v5496 = vadd.f32 %v5222, %v5374
        %v5497 = vadd.f32 %v5223, %v5379
        %v5498 = vadd.f32 %v5224, %v5384
        %v5499 = vadd.f32 %v5225, %v5389
        %v5500 = vadd.f32 %v5226, %v5394
        %v5501 = vadd.f32 %v5227, %v5399
        %v5502 = vadd.f32 %v5228, %v5404
        %v5503 = vadd.f32 %v5229, %v5409
        %v5504 = vadd.f32 %v5230, %v5414
        %v5505 = vadd.f32 %v5231, %v5419
        %v5506 = vadd.f32 %v5232, %v5424
        %v5507 = vadd.f32 %v5233, %v5429
        %v5508 = vadd.f32 %v5234, %v5434
        %v5509 = vadd.f32 %v5235, %v5439
        %v5510 = vadd.f32 %v5236, %v5444
        %v5511 = vadd.f32 %v5237, %v5449
        %v5512 = vadd.f32 %v5238, %v5454
        %v5513 = vadd.f32 %v5239, %v5459
        %v5514 = vadd.f32 %v5240, %v5464
        %v5515 = vadd.f32 %v5241, %v5469
        %v5516 = vadd.f32 %v5242, %v5474
        %v5517 = vadd.f32 %v5243, %v5479
        %v5518 = vadd.f32 %v5244, %v5484
        %v5519 = vld [vmem:[#allocation2 + $0x2] sm:$0xff]
        %v5520 = vld [vmem:[#allocation2 + $0xa] sm:$0xff]
        %v5521 = vld [vmem:[#allocation2 + $0x1a] sm:$0xff]
        %v5522 = vld [vmem:[#allocation2 + $0x22] sm:$0xff]
        %v5523 = vld [vmem:[#allocation2 + $0x32] sm:$0xff]
        %v5524 = vld [vmem:[#allocation2 + $0x3a] sm:$0xff]
        %v5525 = vld [vmem:[#allocation2 + $0x4a] sm:$0xff]
        %v5526 = vld [vmem:[#allocation2 + $0x52] sm:$0xff]
        %v5527 = vld [vmem:[#allocation2 + $0x62] sm:$0xff]
        %v5528 = vld [vmem:[#allocation2 + $0x6a] sm:$0xff]
        %v5529 = vld [vmem:[#allocation2 + $0x7a] sm:$0xff]
        %v5530 = vld [vmem:[#allocation2 + $0x82] sm:$0xff]
        %v5531 = vld [vmem:[#allocation2 + $0x92] sm:$0xff]
        %v5532 = vld [vmem:[#allocation2 + $0x9a] sm:$0xff]
        %v5533 = vld [vmem:[#allocation2 + $0xaa] sm:$0xff]
        %v5534 = vld [vmem:[#allocation2 + $0xb2] sm:$0xff]
        %v5535 = vld [vmem:[#allocation2 + $0xc2] sm:$0xff]
        %v5536 = vld [vmem:[#allocation2 + $0xca] sm:$0xff]
        %v5537 = vld [vmem:[#allocation2 + $0xda] sm:$0xff]
        %v5538 = vld [vmem:[#allocation2 + $0xe2] sm:$0xff]
        %v5539 = vld [vmem:[#allocation2 + $0xf2] sm:$0xff]
        %v5540 = vld [vmem:[#allocation2 + $0xfa] sm:$0xff]
        %v5541 = vld [vmem:[#allocation2 + $0x10a] sm:$0xff]
        %v5542 = vld [vmem:[#allocation2 + $0x112] sm:$0xff]
        %v5543 = vld [vmem:[#allocation2 + $0x122] sm:$0xff]
        %v5544 = vld [vmem:[#allocation2 + $0x12a] sm:$0xff]
        %v5545 = vld [vmem:[#allocation2 + $0x13a] sm:$0xff]
        %v5546 = vld [vmem:[#allocation2 + $0x142] sm:$0xff]
        %v5547 = vld [vmem:[#allocation2 + $0x152] sm:$0xff]
        %v5548 = vld [vmem:[#allocation2 + $0x15a] sm:$0xff]
        %v5549 = vld [vmem:[#allocation2 + $0x16a] sm:$0xff]
        %v5550 = vld [vmem:[#allocation2 + $0x172] sm:$0xff]
        %v5551 = vld [vmem:[#allocation2 + $0x182] sm:$0xff]
        %v5552 = vld [vmem:[#allocation2 + $0x18a] sm:$0xff]
        %v5553 = vld [vmem:[#allocation2 + $0x19a] sm:$0xff]
        %v5554 = vld [vmem:[#allocation2 + $0x1a2] sm:$0xff]
        %s5555 = scalar_lea.vmem %s14, 256
        %v5556 = vld [vmem:[%s5555] sm:$0xff]
        %v5557 = vld [vmem:[%s5555 + $0x8] sm:$0xff]
        %v5558 = vld [vmem:[%s5555 + $0x10] sm:$0xff]
        %v5559 = vld [vmem:[%s5555 + $0x18] sm:$0xff]
        %v5560 = vld [vmem:[%s5555 + $0x20] sm:$0xff]
        %v5561 = vld [vmem:[%s5555 + $0x28] sm:$0xff]
        %v5562 = vld [vmem:[%s5555 + $0x30] sm:$0xff]
        %v5563 = vld [vmem:[%s5555 + $0x38] sm:$0xff]
        %v5564 = vld [vmem:[%s5555 + $0x40] sm:$0xff]
        %v5565 = vld [vmem:[%s5555 + $0x48] sm:$0xff]
        %v5566 = vld [vmem:[%s5555 + $0x50] sm:$0xff]
        %v5567 = vld [vmem:[%s5555 + $0x58] sm:$0xff]
        %v5568 = vld [vmem:[%s5555 + $0x60] sm:$0xff]
        %v5569 = vld [vmem:[%s5555 + $0x68] sm:$0xff]
        %v5570 = vld [vmem:[%s5555 + $0x70] sm:$0xff]
        %v5571 = vld [vmem:[%s5555 + $0x78] sm:$0xff]
        %5572 = vmatprep.subr.mxu0 0.0
        %5573 = vmatpush1.msra.mxu0 %v5571
        %5574 = vmatprep.subr.mxu0 0.0
        %5575 = vmatpush1.msra.mxu0 %v5570
        %5576 = vmatprep.subr.mxu0 0.0
        %5577 = vmatpush1.msra.mxu0 %v5569
        %5578 = vmatprep.subr.mxu0 0.0
        %5579 = vmatpush1.msra.mxu0 %v5568
        %5580 = vmatprep.subr.mxu0 0.0
        %5581 = vmatpush1.msra.mxu0 %v5567
        %5582 = vmatprep.subr.mxu0 0.0
        %5583 = vmatpush1.msra.mxu0 %v5566
        %5584 = vmatprep.subr.mxu0 0.0
        %5585 = vmatpush1.msra.mxu0 %v5565
        %5586 = vmatprep.subr.mxu0 0.0
        %5587 = vmatpush1.msra.mxu0 %v5564
        %5588 = vmatprep.subr.mxu0 0.0
        %5589 = vmatpush1.msra.mxu0 %v5563
        %5590 = vmatprep.subr.mxu0 0.0
        %5591 = vmatpush1.msra.mxu0 %v5562
        %5592 = vmatprep.subr.mxu0 0.0
        %5593 = vmatpush1.msra.mxu0 %v5561
        %5594 = vmatprep.subr.mxu0 0.0
        %5595 = vmatpush1.msra.mxu0 %v5560
        %5596 = vmatprep.subr.mxu0 0.0
        %5597 = vmatpush1.msra.mxu0 %v5559
        %5598 = vmatprep.subr.mxu0 0.0
        %5599 = vmatpush1.msra.mxu0 %v5558
        %5600 = vmatprep.subr.mxu0 0.0
        %5601 = vmatpush1.msra.mxu0 %v5557
        %5602 = vmatprep.subr.mxu0 0.0
        %5603 = vmatpush1.msra.mxu0 %v5556
        %5604 = vmatprep.subr.mxu0 0.0
        %5605 = vmatpush2.msra.mxu0 0.0
        %5606 = vmatprep.subr.mxu0 0.0
        %5607 = vmatpush2.msra.mxu0 0.0
        %5608 = vmatprep.subr.mxu0 0.0
        %5609 = vmatpush2.msra.mxu0 0.0
        %5610 = vmatprep.subr.mxu0 0.0
        %5611 = vmatpush2.msra.mxu0 0.0
        %5612 = vmatprep.subr.mxu0 0.0
        %5613 = vmatpush2.msra.mxu0 0.0
        %5614 = vmatprep.subr.mxu0 0.0
        %5615 = vmatpush2.msra.mxu0 0.0
        %5616 = vmatprep.subr.mxu0 0.0
        %5617 = vmatpush2.msra.mxu0 0.0
        %5618 = vmatprep.subr.mxu0 0.0
        %5619 = vmatpush2.msra.mxu0 0.0
        %5620 = vmatprep.subr.mxu0 0.0
        %5621 = vmatpush2.msra.mxu0 0.0
        %5622 = vmatprep.subr.mxu0 0.0
        %5623 = vmatpush2.msra.mxu0 0.0
        %5624 = vmatprep.subr.mxu0 0.0
        %5625 = vmatpush2.msra.mxu0 0.0
        %5626 = vmatprep.subr.mxu0 0.0
        %5627 = vmatpush2.msra.mxu0 0.0
        %5628 = vmatprep.subr.mxu0 0.0
        %5629 = vmatpush2.msra.mxu0 0.0
        %5630 = vmatprep.subr.mxu0 0.0
        %5631 = vmatpush2.msra.mxu0 0.0
        %5632 = vmatprep.subr.mxu0 0.0
        %5633 = vmatpush2.msra.mxu0 0.0
        %5634 = vmatprep.subr.mxu0 0.0
        %5635 = vmatpush2.msra.mxu0 0.0
        %5636 = vmatprep.mubr.f32.mxu0 0.0
        %5637 = vmatmul.mubr.f32.gmra.mxu0 %v5519
        %v5638 = vpop.f32.mrf.mxu0
        %v5639 = vadd.f32 0.0, %v5638
        %v5640 = vpop.f32.mrf.mxu0
        %5641 = vmatprep.mubr.f32.mxu0 0.0
        %5642 = vmatmul.mubr.f32.gmra.mxu0 %v5520
        %v5643 = vpop.f32.mrf.mxu0
        %v5644 = vadd.f32 0.0, %v5643
        %v5645 = vpop.f32.mrf.mxu0
        %5646 = vmatprep.mubr.f32.mxu0 0.0
        %5647 = vmatmul.mubr.f32.gmra.mxu0 %v5521
        %v5648 = vpop.f32.mrf.mxu0
        %v5649 = vadd.f32 0.0, %v5648
        %v5650 = vpop.f32.mrf.mxu0
        %5651 = vmatprep.mubr.f32.mxu0 0.0
        %5652 = vmatmul.mubr.f32.gmra.mxu0 %v5522
        %v5653 = vpop.f32.mrf.mxu0
        %v5654 = vadd.f32 0.0, %v5653
        %v5655 = vpop.f32.mrf.mxu0
        %5656 = vmatprep.mubr.f32.mxu0 0.0
        %5657 = vmatmul.mubr.f32.gmra.mxu0 %v5523
        %v5658 = vpop.f32.mrf.mxu0
        %v5659 = vadd.f32 0.0, %v5658
        %v5660 = vpop.f32.mrf.mxu0
        %5661 = vmatprep.mubr.f32.mxu0 0.0
        %5662 = vmatmul.mubr.f32.gmra.mxu0 %v5524
        %v5663 = vpop.f32.mrf.mxu0
        %v5664 = vadd.f32 0.0, %v5663
        %v5665 = vpop.f32.mrf.mxu0
        %5666 = vmatprep.mubr.f32.mxu0 0.0
        %5667 = vmatmul.mubr.f32.gmra.mxu0 %v5525
        %v5668 = vpop.f32.mrf.mxu0
        %v5669 = vadd.f32 0.0, %v5668
        %v5670 = vpop.f32.mrf.mxu0
        %5671 = vmatprep.mubr.f32.mxu0 0.0
        %5672 = vmatmul.mubr.f32.gmra.mxu0 %v5526
        %v5673 = vpop.f32.mrf.mxu0
        %v5674 = vadd.f32 0.0, %v5673
        %v5675 = vpop.f32.mrf.mxu0
        %5676 = vmatprep.mubr.f32.mxu0 0.0
        %5677 = vmatmul.mubr.f32.gmra.mxu0 %v5527
        %v5678 = vpop.f32.mrf.mxu0
        %v5679 = vadd.f32 0.0, %v5678
        %v5680 = vpop.f32.mrf.mxu0
        %5681 = vmatprep.mubr.f32.mxu0 0.0
        %5682 = vmatmul.mubr.f32.gmra.mxu0 %v5528
        %v5683 = vpop.f32.mrf.mxu0
        %v5684 = vadd.f32 0.0, %v5683
        %v5685 = vpop.f32.mrf.mxu0
        %5686 = vmatprep.mubr.f32.mxu0 0.0
        %5687 = vmatmul.mubr.f32.gmra.mxu0 %v5529
        %v5688 = vpop.f32.mrf.mxu0
        %v5689 = vadd.f32 0.0, %v5688
        %v5690 = vpop.f32.mrf.mxu0
        %5691 = vmatprep.mubr.f32.mxu0 0.0
        %5692 = vmatmul.mubr.f32.gmra.mxu0 %v5530
        %v5693 = vpop.f32.mrf.mxu0
        %v5694 = vadd.f32 0.0, %v5693
        %v5695 = vpop.f32.mrf.mxu0
        %5696 = vmatprep.mubr.f32.mxu0 0.0
        %5697 = vmatmul.mubr.f32.gmra.mxu0 %v5531
        %v5698 = vpop.f32.mrf.mxu0
        %v5699 = vadd.f32 0.0, %v5698
        %v5700 = vpop.f32.mrf.mxu0
        %5701 = vmatprep.mubr.f32.mxu0 0.0
        %5702 = vmatmul.mubr.f32.gmra.mxu0 %v5532
        %v5703 = vpop.f32.mrf.mxu0
        %v5704 = vadd.f32 0.0, %v5703
        %v5705 = vpop.f32.mrf.mxu0
        %5706 = vmatprep.mubr.f32.mxu0 0.0
        %5707 = vmatmul.mubr.f32.gmra.mxu0 %v5533
        %v5708 = vpop.f32.mrf.mxu0
        %v5709 = vadd.f32 0.0, %v5708
        %v5710 = vpop.f32.mrf.mxu0
        %5711 = vmatprep.mubr.f32.mxu0 0.0
        %5712 = vmatmul.mubr.f32.gmra.mxu0 %v5534
        %v5713 = vpop.f32.mrf.mxu0
        %v5714 = vadd.f32 0.0, %v5713
        %v5715 = vpop.f32.mrf.mxu0
        %5716 = vmatprep.mubr.f32.mxu0 0.0
        %5717 = vmatmul.mubr.f32.gmra.mxu0 %v5535
        %v5718 = vpop.f32.mrf.mxu0
        %v5719 = vadd.f32 0.0, %v5718
        %v5720 = vpop.f32.mrf.mxu0
        %5721 = vmatprep.mubr.f32.mxu0 0.0
        %5722 = vmatmul.mubr.f32.gmra.mxu0 %v5536
        %v5723 = vpop.f32.mrf.mxu0
        %v5724 = vadd.f32 0.0, %v5723
        %v5725 = vpop.f32.mrf.mxu0
        %5726 = vmatprep.mubr.f32.mxu0 0.0
        %5727 = vmatmul.mubr.f32.gmra.mxu0 %v5537
        %v5728 = vpop.f32.mrf.mxu0
        %v5729 = vadd.f32 0.0, %v5728
        %v5730 = vpop.f32.mrf.mxu0
        %5731 = vmatprep.mubr.f32.mxu0 0.0
        %5732 = vmatmul.mubr.f32.gmra.mxu0 %v5538
        %v5733 = vpop.f32.mrf.mxu0
        %v5734 = vadd.f32 0.0, %v5733
        %v5735 = vpop.f32.mrf.mxu0
        %5736 = vmatprep.mubr.f32.mxu0 0.0
        %5737 = vmatmul.mubr.f32.gmra.mxu0 %v5539
        %v5738 = vpop.f32.mrf.mxu0
        %v5739 = vadd.f32 0.0, %v5738
        %v5740 = vpop.f32.mrf.mxu0
        %5741 = vmatprep.mubr.f32.mxu0 0.0
        %5742 = vmatmul.mubr.f32.gmra.mxu0 %v5540
        %v5743 = vpop.f32.mrf.mxu0
        %v5744 = vadd.f32 0.0, %v5743
        %v5745 = vpop.f32.mrf.mxu0
        %5746 = vmatprep.mubr.f32.mxu0 0.0
        %5747 = vmatmul.mubr.f32.gmra.mxu0 %v5541
        %v5748 = vpop.f32.mrf.mxu0
        %v5749 = vadd.f32 0.0, %v5748
        %v5750 = vpop.f32.mrf.mxu0
        %5751 = vmatprep.mubr.f32.mxu0 0.0
        %5752 = vmatmul.mubr.f32.gmra.mxu0 %v5542
        %v5753 = vpop.f32.mrf.mxu0
        %v5754 = vadd.f32 0.0, %v5753
        %v5755 = vpop.f32.mrf.mxu0
        %5756 = vmatprep.mubr.f32.mxu0 0.0
        %5757 = vmatmul.mubr.f32.gmra.mxu0 %v5543
        %v5758 = vpop.f32.mrf.mxu0
        %v5759 = vadd.f32 0.0, %v5758
        %v5760 = vpop.f32.mrf.mxu0
        %5761 = vmatprep.mubr.f32.mxu0 0.0
        %5762 = vmatmul.mubr.f32.gmra.mxu0 %v5544
        %v5763 = vpop.f32.mrf.mxu0
        %v5764 = vadd.f32 0.0, %v5763
        %v5765 = vpop.f32.mrf.mxu0
        %5766 = vmatprep.mubr.f32.mxu0 0.0
        %5767 = vmatmul.mubr.f32.gmra.mxu0 %v5545
        %v5768 = vpop.f32.mrf.mxu0
        %v5769 = vadd.f32 0.0, %v5768
        %v5770 = vpop.f32.mrf.mxu0
        %5771 = vmatprep.mubr.f32.mxu0 0.0
        %5772 = vmatmul.mubr.f32.gmra.mxu0 %v5546
        %v5773 = vpop.f32.mrf.mxu0
        %v5774 = vadd.f32 0.0, %v5773
        %v5775 = vpop.f32.mrf.mxu0
        %5776 = vmatprep.mubr.f32.mxu0 0.0
        %5777 = vmatmul.mubr.f32.gmra.mxu0 %v5547
        %v5778 = vpop.f32.mrf.mxu0
        %v5779 = vadd.f32 0.0, %v5778
        %v5780 = vpop.f32.mrf.mxu0
        %5781 = vmatprep.mubr.f32.mxu0 0.0
        %5782 = vmatmul.mubr.f32.gmra.mxu0 %v5548
        %v5783 = vpop.f32.mrf.mxu0
        %v5784 = vadd.f32 0.0, %v5783
        %v5785 = vpop.f32.mrf.mxu0
        %5786 = vmatprep.mubr.f32.mxu0 0.0
        %5787 = vmatmul.mubr.f32.gmra.mxu0 %v5549
        %v5788 = vpop.f32.mrf.mxu0
        %v5789 = vadd.f32 0.0, %v5788
        %v5790 = vpop.f32.mrf.mxu0
        %5791 = vmatprep.mubr.f32.mxu0 0.0
        %5792 = vmatmul.mubr.f32.gmra.mxu0 %v5550
        %v5793 = vpop.f32.mrf.mxu0
        %v5794 = vadd.f32 0.0, %v5793
        %v5795 = vpop.f32.mrf.mxu0
        %5796 = vdwg.mxu0
        %v5797 = vadd.f32 %v5487, %v5639
        %v5798 = vadd.f32 %v5488, %v5644
        %v5799 = vadd.f32 %v5489, %v5649
        %v5800 = vadd.f32 %v5490, %v5654
        %v5801 = vadd.f32 %v5491, %v5659
        %v5802 = vadd.f32 %v5492, %v5664
        %v5803 = vadd.f32 %v5493, %v5669
        %v5804 = vadd.f32 %v5494, %v5674
        %v5805 = vadd.f32 %v5495, %v5679
        %v5806 = vadd.f32 %v5496, %v5684
        %v5807 = vadd.f32 %v5497, %v5689
        %v5808 = vadd.f32 %v5498, %v5694
        %v5809 = vadd.f32 %v5499, %v5699
        %v5810 = vadd.f32 %v5500, %v5704
        %v5811 = vadd.f32 %v5501, %v5709
        %v5812 = vadd.f32 %v5502, %v5714
        %v5813 = vadd.f32 %v5503, %v5719
        %v5814 = vadd.f32 %v5504, %v5724
        %v5815 = vadd.f32 %v5505, %v5729
        %v5816 = vadd.f32 %v5506, %v5734
        %v5817 = vadd.f32 %v5507, %v5739
        %v5818 = vadd.f32 %v5508, %v5744
        %v5819 = vadd.f32 %v5509, %v5749
        %v5820 = vadd.f32 %v5510, %v5754
        %v5821 = vadd.f32 %v5511, %v5759
        %v5822 = vadd.f32 %v5512, %v5764
        %v5823 = vadd.f32 %v5513, %v5769
        %v5824 = vadd.f32 %v5514, %v5774
        %v5825 = vadd.f32 %v5515, %v5779
        %v5826 = vadd.f32 %v5516, %v5784
        %v5827 = vadd.f32 %v5517, %v5789
        %v5828 = vadd.f32 %v5518, %v5794
        %s5829 = scalar_lea.vmem %s14, 640
        %v5830 = vld [vmem:[%s5829] sm:$0xff]
        %v5831 = vld [vmem:[%s5829 + $0x8] sm:$0xff]
        %v5832 = vld [vmem:[%s5829 + $0x10] sm:$0xff]
        %v5833 = vld [vmem:[%s5829 + $0x18] sm:$0xff]
        %v5834 = vld [vmem:[%s5829 + $0x20] sm:$0xff]
        %v5835 = vld [vmem:[%s5829 + $0x28] sm:$0xff]
        %v5836 = vld [vmem:[%s5829 + $0x30] sm:$0xff]
        %v5837 = vld [vmem:[%s5829 + $0x38] sm:$0xff]
        %v5838 = vld [vmem:[%s5829 + $0x40] sm:$0xff]
        %v5839 = vld [vmem:[%s5829 + $0x48] sm:$0xff]
        %v5840 = vld [vmem:[%s5829 + $0x50] sm:$0xff]
        %v5841 = vld [vmem:[%s5829 + $0x58] sm:$0xff]
        %v5842 = vld [vmem:[%s5829 + $0x60] sm:$0xff]
        %v5843 = vld [vmem:[%s5829 + $0x68] sm:$0xff]
        %v5844 = vld [vmem:[%s5829 + $0x70] sm:$0xff]
        %v5845 = vld [vmem:[%s5829 + $0x78] sm:$0xff]
        %5846 = vmatprep.subr.mxu0 0.0
        %5847 = vmatpush1.msra.mxu0 %v5845
        %5848 = vmatprep.subr.mxu0 0.0
        %5849 = vmatpush1.msra.mxu0 %v5844
        %5850 = vmatprep.subr.mxu0 0.0
        %5851 = vmatpush1.msra.mxu0 %v5843
        %5852 = vmatprep.subr.mxu0 0.0
        %5853 = vmatpush1.msra.mxu0 %v5842
        %5854 = vmatprep.subr.mxu0 0.0
        %5855 = vmatpush1.msra.mxu0 %v5841
        %5856 = vmatprep.subr.mxu0 0.0
        %5857 = vmatpush1.msra.mxu0 %v5840
        %5858 = vmatprep.subr.mxu0 0.0
        %5859 = vmatpush1.msra.mxu0 %v5839
        %5860 = vmatprep.subr.mxu0 0.0
        %5861 = vmatpush1.msra.mxu0 %v5838
        %5862 = vmatprep.subr.mxu0 0.0
        %5863 = vmatpush1.msra.mxu0 %v5837
        %5864 = vmatprep.subr.mxu0 0.0
        %5865 = vmatpush1.msra.mxu0 %v5836
        %5866 = vmatprep.subr.mxu0 0.0
        %5867 = vmatpush1.msra.mxu0 %v5835
        %5868 = vmatprep.subr.mxu0 0.0
        %5869 = vmatpush1.msra.mxu0 %v5834
        %5870 = vmatprep.subr.mxu0 0.0
        %5871 = vmatpush1.msra.mxu0 %v5833
        %5872 = vmatprep.subr.mxu0 0.0
        %5873 = vmatpush1.msra.mxu0 %v5832
        %5874 = vmatprep.subr.mxu0 0.0
        %5875 = vmatpush1.msra.mxu0 %v5831
        %5876 = vmatprep.subr.mxu0 0.0
        %5877 = vmatpush1.msra.mxu0 %v5830
        %5878 = vmatprep.subr.mxu0 0.0
        %5879 = vmatpush2.msra.mxu0 0.0
        %5880 = vmatprep.subr.mxu0 0.0
        %5881 = vmatpush2.msra.mxu0 0.0
        %5882 = vmatprep.subr.mxu0 0.0
        %5883 = vmatpush2.msra.mxu0 0.0
        %5884 = vmatprep.subr.mxu0 0.0
        %5885 = vmatpush2.msra.mxu0 0.0
        %5886 = vmatprep.subr.mxu0 0.0
        %5887 = vmatpush2.msra.mxu0 0.0
        %5888 = vmatprep.subr.mxu0 0.0
        %5889 = vmatpush2.msra.mxu0 0.0
        %5890 = vmatprep.subr.mxu0 0.0
        %5891 = vmatpush2.msra.mxu0 0.0
        %5892 = vmatprep.subr.mxu0 0.0
        %5893 = vmatpush2.msra.mxu0 0.0
        %5894 = vmatprep.subr.mxu0 0.0
        %5895 = vmatpush2.msra.mxu0 0.0
        %5896 = vmatprep.subr.mxu0 0.0
        %5897 = vmatpush2.msra.mxu0 0.0
        %5898 = vmatprep.subr.mxu0 0.0
        %5899 = vmatpush2.msra.mxu0 0.0
        %5900 = vmatprep.subr.mxu0 0.0
        %5901 = vmatpush2.msra.mxu0 0.0
        %5902 = vmatprep.subr.mxu0 0.0
        %5903 = vmatpush2.msra.mxu0 0.0
        %5904 = vmatprep.subr.mxu0 0.0
        %5905 = vmatpush2.msra.mxu0 0.0
        %5906 = vmatprep.subr.mxu0 0.0
        %5907 = vmatpush2.msra.mxu0 0.0
        %5908 = vmatprep.subr.mxu0 0.0
        %5909 = vmatpush2.msra.mxu0 0.0
        %5910 = vmatprep.mubr.f32.mxu0 0.0
        %5911 = vmatmul.mubr.f32.gmra.mxu0 %v5521
        %v5912 = vpop.f32.mrf.mxu0
        %v5913 = vadd.f32 0.0, %v5912
        %v5914 = vpop.f32.mrf.mxu0
        %5915 = vmatprep.mubr.f32.mxu0 0.0
        %5916 = vmatmul.mubr.f32.gmra.mxu0 %v5522
        %v5917 = vpop.f32.mrf.mxu0
        %v5918 = vadd.f32 0.0, %v5917
        %v5919 = vpop.f32.mrf.mxu0
        %5920 = vmatprep.mubr.f32.mxu0 0.0
        %5921 = vmatmul.mubr.f32.gmra.mxu0 %v5523
        %v5922 = vpop.f32.mrf.mxu0
        %v5923 = vadd.f32 0.0, %v5922
        %v5924 = vpop.f32.mrf.mxu0
        %5925 = vmatprep.mubr.f32.mxu0 0.0
        %5926 = vmatmul.mubr.f32.gmra.mxu0 %v5524
        %v5927 = vpop.f32.mrf.mxu0
        %v5928 = vadd.f32 0.0, %v5927
        %v5929 = vpop.f32.mrf.mxu0
        %5930 = vmatprep.mubr.f32.mxu0 0.0
        %5931 = vmatmul.mubr.f32.gmra.mxu0 %v5525
        %v5932 = vpop.f32.mrf.mxu0
        %v5933 = vadd.f32 0.0, %v5932
        %v5934 = vpop.f32.mrf.mxu0
        %5935 = vmatprep.mubr.f32.mxu0 0.0
        %5936 = vmatmul.mubr.f32.gmra.mxu0 %v5526
        %v5937 = vpop.f32.mrf.mxu0
        %v5938 = vadd.f32 0.0, %v5937
        %v5939 = vpop.f32.mrf.mxu0
        %5940 = vmatprep.mubr.f32.mxu0 0.0
        %5941 = vmatmul.mubr.f32.gmra.mxu0 %v5527
        %v5942 = vpop.f32.mrf.mxu0
        %v5943 = vadd.f32 0.0, %v5942
        %v5944 = vpop.f32.mrf.mxu0
        %5945 = vmatprep.mubr.f32.mxu0 0.0
        %5946 = vmatmul.mubr.f32.gmra.mxu0 %v5528
        %v5947 = vpop.f32.mrf.mxu0
        %v5948 = vadd.f32 0.0, %v5947
        %v5949 = vpop.f32.mrf.mxu0
        %5950 = vmatprep.mubr.f32.mxu0 0.0
        %5951 = vmatmul.mubr.f32.gmra.mxu0 %v5529
        %v5952 = vpop.f32.mrf.mxu0
        %v5953 = vadd.f32 0.0, %v5952
        %v5954 = vpop.f32.mrf.mxu0
        %5955 = vmatprep.mubr.f32.mxu0 0.0
        %5956 = vmatmul.mubr.f32.gmra.mxu0 %v5530
        %v5957 = vpop.f32.mrf.mxu0
        %v5958 = vadd.f32 0.0, %v5957
        %v5959 = vpop.f32.mrf.mxu0
        %5960 = vmatprep.mubr.f32.mxu0 0.0
        %5961 = vmatmul.mubr.f32.gmra.mxu0 %v5531
        %v5962 = vpop.f32.mrf.mxu0
        %v5963 = vadd.f32 0.0, %v5962
        %v5964 = vpop.f32.mrf.mxu0
        %5965 = vmatprep.mubr.f32.mxu0 0.0
        %5966 = vmatmul.mubr.f32.gmra.mxu0 %v5532
        %v5967 = vpop.f32.mrf.mxu0
        %v5968 = vadd.f32 0.0, %v5967
        %v5969 = vpop.f32.mrf.mxu0
        %5970 = vmatprep.mubr.f32.mxu0 0.0
        %5971 = vmatmul.mubr.f32.gmra.mxu0 %v5533
        %v5972 = vpop.f32.mrf.mxu0
        %v5973 = vadd.f32 0.0, %v5972
        %v5974 = vpop.f32.mrf.mxu0
        %5975 = vmatprep.mubr.f32.mxu0 0.0
        %5976 = vmatmul.mubr.f32.gmra.mxu0 %v5534
        %v5977 = vpop.f32.mrf.mxu0
        %v5978 = vadd.f32 0.0, %v5977
        %v5979 = vpop.f32.mrf.mxu0
        %5980 = vmatprep.mubr.f32.mxu0 0.0
        %5981 = vmatmul.mubr.f32.gmra.mxu0 %v5535
        %v5982 = vpop.f32.mrf.mxu0
        %v5983 = vadd.f32 0.0, %v5982
        %v5984 = vpop.f32.mrf.mxu0
        %5985 = vmatprep.mubr.f32.mxu0 0.0
        %5986 = vmatmul.mubr.f32.gmra.mxu0 %v5536
        %v5987 = vpop.f32.mrf.mxu0
        %v5988 = vadd.f32 0.0, %v5987
        %v5989 = vpop.f32.mrf.mxu0
        %5990 = vmatprep.mubr.f32.mxu0 0.0
        %5991 = vmatmul.mubr.f32.gmra.mxu0 %v5537
        %v5992 = vpop.f32.mrf.mxu0
        %v5993 = vadd.f32 0.0, %v5992
        %v5994 = vpop.f32.mrf.mxu0
        %5995 = vmatprep.mubr.f32.mxu0 0.0
        %5996 = vmatmul.mubr.f32.gmra.mxu0 %v5538
        %v5997 = vpop.f32.mrf.mxu0
        %v5998 = vadd.f32 0.0, %v5997
        %v5999 = vpop.f32.mrf.mxu0
        %6000 = vmatprep.mubr.f32.mxu0 0.0
        %6001 = vmatmul.mubr.f32.gmra.mxu0 %v5539
        %v6002 = vpop.f32.mrf.mxu0
        %v6003 = vadd.f32 0.0, %v6002
        %v6004 = vpop.f32.mrf.mxu0
        %6005 = vmatprep.mubr.f32.mxu0 0.0
        %6006 = vmatmul.mubr.f32.gmra.mxu0 %v5540
        %v6007 = vpop.f32.mrf.mxu0
        %v6008 = vadd.f32 0.0, %v6007
        %v6009 = vpop.f32.mrf.mxu0
        %6010 = vmatprep.mubr.f32.mxu0 0.0
        %6011 = vmatmul.mubr.f32.gmra.mxu0 %v5541
        %v6012 = vpop.f32.mrf.mxu0
        %v6013 = vadd.f32 0.0, %v6012
        %v6014 = vpop.f32.mrf.mxu0
        %6015 = vmatprep.mubr.f32.mxu0 0.0
        %6016 = vmatmul.mubr.f32.gmra.mxu0 %v5542
        %v6017 = vpop.f32.mrf.mxu0
        %v6018 = vadd.f32 0.0, %v6017
        %v6019 = vpop.f32.mrf.mxu0
        %6020 = vmatprep.mubr.f32.mxu0 0.0
        %6021 = vmatmul.mubr.f32.gmra.mxu0 %v5543
        %v6022 = vpop.f32.mrf.mxu0
        %v6023 = vadd.f32 0.0, %v6022
        %v6024 = vpop.f32.mrf.mxu0
        %6025 = vmatprep.mubr.f32.mxu0 0.0
        %6026 = vmatmul.mubr.f32.gmra.mxu0 %v5544
        %v6027 = vpop.f32.mrf.mxu0
        %v6028 = vadd.f32 0.0, %v6027
        %v6029 = vpop.f32.mrf.mxu0
        %6030 = vmatprep.mubr.f32.mxu0 0.0
        %6031 = vmatmul.mubr.f32.gmra.mxu0 %v5545
        %v6032 = vpop.f32.mrf.mxu0
        %v6033 = vadd.f32 0.0, %v6032
        %v6034 = vpop.f32.mrf.mxu0
        %6035 = vmatprep.mubr.f32.mxu0 0.0
        %6036 = vmatmul.mubr.f32.gmra.mxu0 %v5546
        %v6037 = vpop.f32.mrf.mxu0
        %v6038 = vadd.f32 0.0, %v6037
        %v6039 = vpop.f32.mrf.mxu0
        %6040 = vmatprep.mubr.f32.mxu0 0.0
        %6041 = vmatmul.mubr.f32.gmra.mxu0 %v5547
        %v6042 = vpop.f32.mrf.mxu0
        %v6043 = vadd.f32 0.0, %v6042
        %v6044 = vpop.f32.mrf.mxu0
        %6045 = vmatprep.mubr.f32.mxu0 0.0
        %6046 = vmatmul.mubr.f32.gmra.mxu0 %v5548
        %v6047 = vpop.f32.mrf.mxu0
        %v6048 = vadd.f32 0.0, %v6047
        %v6049 = vpop.f32.mrf.mxu0
        %6050 = vmatprep.mubr.f32.mxu0 0.0
        %6051 = vmatmul.mubr.f32.gmra.mxu0 %v5549
        %v6052 = vpop.f32.mrf.mxu0
        %v6053 = vadd.f32 0.0, %v6052
        %v6054 = vpop.f32.mrf.mxu0
        %6055 = vmatprep.mubr.f32.mxu0 0.0
        %6056 = vmatmul.mubr.f32.gmra.mxu0 %v5550
        %v6057 = vpop.f32.mrf.mxu0
        %v6058 = vadd.f32 0.0, %v6057
        %v6059 = vpop.f32.mrf.mxu0
        %6060 = vmatprep.mubr.f32.mxu0 0.0
        %6061 = vmatmul.mubr.f32.gmra.mxu0 %v5551
        %v6062 = vpop.f32.mrf.mxu0
        %v6063 = vadd.f32 0.0, %v6062
        %v6064 = vpop.f32.mrf.mxu0
        %6065 = vmatprep.mubr.f32.mxu0 0.0
        %6066 = vmatmul.mubr.f32.gmra.mxu0 %v5552
        %v6067 = vpop.f32.mrf.mxu0
        %v6068 = vadd.f32 0.0, %v6067
        %v6069 = vpop.f32.mrf.mxu0
        %6070 = vdwg.mxu0
        %v6071 = vadd.f32 %v5797, %v5913
        %v6072 = vadd.f32 %v5798, %v5918
        %v6073 = vadd.f32 %v5799, %v5923
        %v6074 = vadd.f32 %v5800, %v5928
        %v6075 = vadd.f32 %v5801, %v5933
        %v6076 = vadd.f32 %v5802, %v5938
        %v6077 = vadd.f32 %v5803, %v5943
        %v6078 = vadd.f32 %v5804, %v5948
        %v6079 = vadd.f32 %v5805, %v5953
        %v6080 = vadd.f32 %v5806, %v5958
        %v6081 = vadd.f32 %v5807, %v5963
        %v6082 = vadd.f32 %v5808, %v5968
        %v6083 = vadd.f32 %v5809, %v5973
        %v6084 = vadd.f32 %v5810, %v5978
        %v6085 = vadd.f32 %v5811, %v5983
        %v6086 = vadd.f32 %v5812, %v5988
        %v6087 = vadd.f32 %v5813, %v5993
        %v6088 = vadd.f32 %v5814, %v5998
        %v6089 = vadd.f32 %v5815, %v6003
        %v6090 = vadd.f32 %v5816, %v6008
        %v6091 = vadd.f32 %v5817, %v6013
        %v6092 = vadd.f32 %v5818, %v6018
        %v6093 = vadd.f32 %v5819, %v6023
        %v6094 = vadd.f32 %v5820, %v6028
        %v6095 = vadd.f32 %v5821, %v6033
        %v6096 = vadd.f32 %v5822, %v6038
        %v6097 = vadd.f32 %v5823, %v6043
        %v6098 = vadd.f32 %v5824, %v6048
        %v6099 = vadd.f32 %v5825, %v6053
        %v6100 = vadd.f32 %v5826, %v6058
        %v6101 = vadd.f32 %v5827, %v6063
        %v6102 = vadd.f32 %v5828, %v6068
        %s6103 = scalar_lea.vmem %s14, 1024
        %v6104 = vld [vmem:[%s6103] sm:$0xff]
        %v6105 = vld [vmem:[%s6103 + $0x8] sm:$0xff]
        %v6106 = vld [vmem:[%s6103 + $0x10] sm:$0xff]
        %v6107 = vld [vmem:[%s6103 + $0x18] sm:$0xff]
        %v6108 = vld [vmem:[%s6103 + $0x20] sm:$0xff]
        %v6109 = vld [vmem:[%s6103 + $0x28] sm:$0xff]
        %v6110 = vld [vmem:[%s6103 + $0x30] sm:$0xff]
        %v6111 = vld [vmem:[%s6103 + $0x38] sm:$0xff]
        %v6112 = vld [vmem:[%s6103 + $0x40] sm:$0xff]
        %v6113 = vld [vmem:[%s6103 + $0x48] sm:$0xff]
        %v6114 = vld [vmem:[%s6103 + $0x50] sm:$0xff]
        %v6115 = vld [vmem:[%s6103 + $0x58] sm:$0xff]
        %v6116 = vld [vmem:[%s6103 + $0x60] sm:$0xff]
        %v6117 = vld [vmem:[%s6103 + $0x68] sm:$0xff]
        %v6118 = vld [vmem:[%s6103 + $0x70] sm:$0xff]
        %v6119 = vld [vmem:[%s6103 + $0x78] sm:$0xff]
        %6120 = vmatprep.subr.mxu0 0.0
        %6121 = vmatpush1.msra.mxu0 %v6119
        %6122 = vmatprep.subr.mxu0 0.0
        %6123 = vmatpush1.msra.mxu0 %v6118
        %6124 = vmatprep.subr.mxu0 0.0
        %6125 = vmatpush1.msra.mxu0 %v6117
        %6126 = vmatprep.subr.mxu0 0.0
        %6127 = vmatpush1.msra.mxu0 %v6116
        %6128 = vmatprep.subr.mxu0 0.0
        %6129 = vmatpush1.msra.mxu0 %v6115
        %6130 = vmatprep.subr.mxu0 0.0
        %6131 = vmatpush1.msra.mxu0 %v6114
        %6132 = vmatprep.subr.mxu0 0.0
        %6133 = vmatpush1.msra.mxu0 %v6113
        %6134 = vmatprep.subr.mxu0 0.0
        %6135 = vmatpush1.msra.mxu0 %v6112
        %6136 = vmatprep.subr.mxu0 0.0
        %6137 = vmatpush1.msra.mxu0 %v6111
        %6138 = vmatprep.subr.mxu0 0.0
        %6139 = vmatpush1.msra.mxu0 %v6110
        %6140 = vmatprep.subr.mxu0 0.0
        %6141 = vmatpush1.msra.mxu0 %v6109
        %6142 = vmatprep.subr.mxu0 0.0
        %6143 = vmatpush1.msra.mxu0 %v6108
        %6144 = vmatprep.subr.mxu0 0.0
        %6145 = vmatpush1.msra.mxu0 %v6107
        %6146 = vmatprep.subr.mxu0 0.0
        %6147 = vmatpush1.msra.mxu0 %v6106
        %6148 = vmatprep.subr.mxu0 0.0
        %6149 = vmatpush1.msra.mxu0 %v6105
        %6150 = vmatprep.subr.mxu0 0.0
        %6151 = vmatpush1.msra.mxu0 %v6104
        %6152 = vmatprep.subr.mxu0 0.0
        %6153 = vmatpush2.msra.mxu0 0.0
        %6154 = vmatprep.subr.mxu0 0.0
        %6155 = vmatpush2.msra.mxu0 0.0
        %6156 = vmatprep.subr.mxu0 0.0
        %6157 = vmatpush2.msra.mxu0 0.0
        %6158 = vmatprep.subr.mxu0 0.0
        %6159 = vmatpush2.msra.mxu0 0.0
        %6160 = vmatprep.subr.mxu0 0.0
        %6161 = vmatpush2.msra.mxu0 0.0
        %6162 = vmatprep.subr.mxu0 0.0
        %6163 = vmatpush2.msra.mxu0 0.0
        %6164 = vmatprep.subr.mxu0 0.0
        %6165 = vmatpush2.msra.mxu0 0.0
        %6166 = vmatprep.subr.mxu0 0.0
        %6167 = vmatpush2.msra.mxu0 0.0
        %6168 = vmatprep.subr.mxu0 0.0
        %6169 = vmatpush2.msra.mxu0 0.0
        %6170 = vmatprep.subr.mxu0 0.0
        %6171 = vmatpush2.msra.mxu0 0.0
        %6172 = vmatprep.subr.mxu0 0.0
        %6173 = vmatpush2.msra.mxu0 0.0
        %6174 = vmatprep.subr.mxu0 0.0
        %6175 = vmatpush2.msra.mxu0 0.0
        %6176 = vmatprep.subr.mxu0 0.0
        %6177 = vmatpush2.msra.mxu0 0.0
        %6178 = vmatprep.subr.mxu0 0.0
        %6179 = vmatpush2.msra.mxu0 0.0
        %6180 = vmatprep.subr.mxu0 0.0
        %6181 = vmatpush2.msra.mxu0 0.0
        %6182 = vmatprep.subr.mxu0 0.0
        %6183 = vmatpush2.msra.mxu0 0.0
        %6184 = vmatprep.mubr.f32.mxu0 0.0
        %6185 = vmatmul.mubr.f32.gmra.mxu0 %v5523
        %v6186 = vpop.f32.mrf.mxu0
        %v6187 = vadd.f32 0.0, %v6186
        %v6188 = vpop.f32.mrf.mxu0
        %6189 = vmatprep.mubr.f32.mxu0 0.0
        %6190 = vmatmul.mubr.f32.gmra.mxu0 %v5524
        %v6191 = vpop.f32.mrf.mxu0
        %v6192 = vadd.f32 0.0, %v6191
        %v6193 = vpop.f32.mrf.mxu0
        %6194 = vmatprep.mubr.f32.mxu0 0.0
        %6195 = vmatmul.mubr.f32.gmra.mxu0 %v5525
        %v6196 = vpop.f32.mrf.mxu0
        %v6197 = vadd.f32 0.0, %v6196
        %v6198 = vpop.f32.mrf.mxu0
        %6199 = vmatprep.mubr.f32.mxu0 0.0
        %6200 = vmatmul.mubr.f32.gmra.mxu0 %v5526
        %v6201 = vpop.f32.mrf.mxu0
        %v6202 = vadd.f32 0.0, %v6201
        %v6203 = vpop.f32.mrf.mxu0
        %6204 = vmatprep.mubr.f32.mxu0 0.0
        %6205 = vmatmul.mubr.f32.gmra.mxu0 %v5527
        %v6206 = vpop.f32.mrf.mxu0
        %v6207 = vadd.f32 0.0, %v6206
        %v6208 = vpop.f32.mrf.mxu0
        %6209 = vmatprep.mubr.f32.mxu0 0.0
        %6210 = vmatmul.mubr.f32.gmra.mxu0 %v5528
        %v6211 = vpop.f32.mrf.mxu0
        %v6212 = vadd.f32 0.0, %v6211
        %v6213 = vpop.f32.mrf.mxu0
        %6214 = vmatprep.mubr.f32.mxu0 0.0
        %6215 = vmatmul.mubr.f32.gmra.mxu0 %v5529
        %v6216 = vpop.f32.mrf.mxu0
        %v6217 = vadd.f32 0.0, %v6216
        %v6218 = vpop.f32.mrf.mxu0
        %6219 = vmatprep.mubr.f32.mxu0 0.0
        %6220 = vmatmul.mubr.f32.gmra.mxu0 %v5530
        %v6221 = vpop.f32.mrf.mxu0
        %v6222 = vadd.f32 0.0, %v6221
        %v6223 = vpop.f32.mrf.mxu0
        %6224 = vmatprep.mubr.f32.mxu0 0.0
        %6225 = vmatmul.mubr.f32.gmra.mxu0 %v5531
        %v6226 = vpop.f32.mrf.mxu0
        %v6227 = vadd.f32 0.0, %v6226
        %v6228 = vpop.f32.mrf.mxu0
        %6229 = vmatprep.mubr.f32.mxu0 0.0
        %6230 = vmatmul.mubr.f32.gmra.mxu0 %v5532
        %v6231 = vpop.f32.mrf.mxu0
        %v6232 = vadd.f32 0.0, %v6231
        %v6233 = vpop.f32.mrf.mxu0
        %6234 = vmatprep.mubr.f32.mxu0 0.0
        %6235 = vmatmul.mubr.f32.gmra.mxu0 %v5533
        %v6236 = vpop.f32.mrf.mxu0
        %v6237 = vadd.f32 0.0, %v6236
        %v6238 = vpop.f32.mrf.mxu0
        %6239 = vmatprep.mubr.f32.mxu0 0.0
        %6240 = vmatmul.mubr.f32.gmra.mxu0 %v5534
        %v6241 = vpop.f32.mrf.mxu0
        %v6242 = vadd.f32 0.0, %v6241
        %v6243 = vpop.f32.mrf.mxu0
        %6244 = vmatprep.mubr.f32.mxu0 0.0
        %6245 = vmatmul.mubr.f32.gmra.mxu0 %v5535
        %v6246 = vpop.f32.mrf.mxu0
        %v6247 = vadd.f32 0.0, %v6246
        %v6248 = vpop.f32.mrf.mxu0
        %6249 = vmatprep.mubr.f32.mxu0 0.0
        %6250 = vmatmul.mubr.f32.gmra.mxu0 %v5536
        %v6251 = vpop.f32.mrf.mxu0
        %v6252 = vadd.f32 0.0, %v6251
        %v6253 = vpop.f32.mrf.mxu0
        %6254 = vmatprep.mubr.f32.mxu0 0.0
        %6255 = vmatmul.mubr.f32.gmra.mxu0 %v5537
        %v6256 = vpop.f32.mrf.mxu0
        %v6257 = vadd.f32 0.0, %v6256
        %v6258 = vpop.f32.mrf.mxu0
        %6259 = vmatprep.mubr.f32.mxu0 0.0
        %6260 = vmatmul.mubr.f32.gmra.mxu0 %v5538
        %v6261 = vpop.f32.mrf.mxu0
        %v6262 = vadd.f32 0.0, %v6261
        %v6263 = vpop.f32.mrf.mxu0
        %6264 = vmatprep.mubr.f32.mxu0 0.0
        %6265 = vmatmul.mubr.f32.gmra.mxu0 %v5539
        %v6266 = vpop.f32.mrf.mxu0
        %v6267 = vadd.f32 0.0, %v6266
        %v6268 = vpop.f32.mrf.mxu0
        %6269 = vmatprep.mubr.f32.mxu0 0.0
        %6270 = vmatmul.mubr.f32.gmra.mxu0 %v5540
        %v6271 = vpop.f32.mrf.mxu0
        %v6272 = vadd.f32 0.0, %v6271
        %v6273 = vpop.f32.mrf.mxu0
        %6274 = vmatprep.mubr.f32.mxu0 0.0
        %6275 = vmatmul.mubr.f32.gmra.mxu0 %v5541
        %v6276 = vpop.f32.mrf.mxu0
        %v6277 = vadd.f32 0.0, %v6276
        %v6278 = vpop.f32.mrf.mxu0
        %6279 = vmatprep.mubr.f32.mxu0 0.0
        %6280 = vmatmul.mubr.f32.gmra.mxu0 %v5542
        %v6281 = vpop.f32.mrf.mxu0
        %v6282 = vadd.f32 0.0, %v6281
        %v6283 = vpop.f32.mrf.mxu0
        %6284 = vmatprep.mubr.f32.mxu0 0.0
        %6285 = vmatmul.mubr.f32.gmra.mxu0 %v5543
        %v6286 = vpop.f32.mrf.mxu0
        %v6287 = vadd.f32 0.0, %v6286
        %v6288 = vpop.f32.mrf.mxu0
        %6289 = vmatprep.mubr.f32.mxu0 0.0
        %6290 = vmatmul.mubr.f32.gmra.mxu0 %v5544
        %v6291 = vpop.f32.mrf.mxu0
        %v6292 = vadd.f32 0.0, %v6291
        %v6293 = vpop.f32.mrf.mxu0
        %6294 = vmatprep.mubr.f32.mxu0 0.0
        %6295 = vmatmul.mubr.f32.gmra.mxu0 %v5545
        %v6296 = vpop.f32.mrf.mxu0
        %v6297 = vadd.f32 0.0, %v6296
        %v6298 = vpop.f32.mrf.mxu0
        %6299 = vmatprep.mubr.f32.mxu0 0.0
        %6300 = vmatmul.mubr.f32.gmra.mxu0 %v5546
        %v6301 = vpop.f32.mrf.mxu0
        %v6302 = vadd.f32 0.0, %v6301
        %v6303 = vpop.f32.mrf.mxu0
        %6304 = vmatprep.mubr.f32.mxu0 0.0
        %6305 = vmatmul.mubr.f32.gmra.mxu0 %v5547
        %v6306 = vpop.f32.mrf.mxu0
        %v6307 = vadd.f32 0.0, %v6306
        %v6308 = vpop.f32.mrf.mxu0
        %6309 = vmatprep.mubr.f32.mxu0 0.0
        %6310 = vmatmul.mubr.f32.gmra.mxu0 %v5548
        %v6311 = vpop.f32.mrf.mxu0
        %v6312 = vadd.f32 0.0, %v6311
        %v6313 = vpop.f32.mrf.mxu0
        %6314 = vmatprep.mubr.f32.mxu0 0.0
        %6315 = vmatmul.mubr.f32.gmra.mxu0 %v5549
        %v6316 = vpop.f32.mrf.mxu0
        %v6317 = vadd.f32 0.0, %v6316
        %v6318 = vpop.f32.mrf.mxu0
        %6319 = vmatprep.mubr.f32.mxu0 0.0
        %6320 = vmatmul.mubr.f32.gmra.mxu0 %v5550
        %v6321 = vpop.f32.mrf.mxu0
        %v6322 = vadd.f32 0.0, %v6321
        %v6323 = vpop.f32.mrf.mxu0
        %6324 = vmatprep.mubr.f32.mxu0 0.0
        %6325 = vmatmul.mubr.f32.gmra.mxu0 %v5551
        %v6326 = vpop.f32.mrf.mxu0
        %v6327 = vadd.f32 0.0, %v6326
        %v6328 = vpop.f32.mrf.mxu0
        %6329 = vmatprep.mubr.f32.mxu0 0.0
        %6330 = vmatmul.mubr.f32.gmra.mxu0 %v5552
        %v6331 = vpop.f32.mrf.mxu0
        %v6332 = vadd.f32 0.0, %v6331
        %v6333 = vpop.f32.mrf.mxu0
        %6334 = vmatprep.mubr.f32.mxu0 0.0
        %6335 = vmatmul.mubr.f32.gmra.mxu0 %v5553
        %v6336 = vpop.f32.mrf.mxu0
        %v6337 = vadd.f32 0.0, %v6336
        %v6338 = vpop.f32.mrf.mxu0
        %6339 = vmatprep.mubr.f32.mxu0 0.0
        %6340 = vmatmul.mubr.f32.gmra.mxu0 %v5554
        %v6341 = vpop.f32.mrf.mxu0
        %v6342 = vadd.f32 0.0, %v6341
        %v6343 = vpop.f32.mrf.mxu0
        %6344 = vdwg.mxu0
        %v6345 = vadd.f32 %v6071, %v6187
        %v6346 = vadd.f32 %v6072, %v6192
        %v6347 = vadd.f32 %v6073, %v6197
        %v6348 = vadd.f32 %v6074, %v6202
        %v6349 = vadd.f32 %v6075, %v6207
        %v6350 = vadd.f32 %v6076, %v6212
        %v6351 = vadd.f32 %v6077, %v6217
        %v6352 = vadd.f32 %v6078, %v6222
        %v6353 = vadd.f32 %v6079, %v6227
        %v6354 = vadd.f32 %v6080, %v6232
        %v6355 = vadd.f32 %v6081, %v6237
        %v6356 = vadd.f32 %v6082, %v6242
        %v6357 = vadd.f32 %v6083, %v6247
        %v6358 = vadd.f32 %v6084, %v6252
        %v6359 = vadd.f32 %v6085, %v6257
        %v6360 = vadd.f32 %v6086, %v6262
        %v6361 = vadd.f32 %v6087, %v6267
        %v6362 = vadd.f32 %v6088, %v6272
        %v6363 = vadd.f32 %v6089, %v6277
        %v6364 = vadd.f32 %v6090, %v6282
        %v6365 = vadd.f32 %v6091, %v6287
        %v6366 = vadd.f32 %v6092, %v6292
        %v6367 = vadd.f32 %v6093, %v6297
        %v6368 = vadd.f32 %v6094, %v6302
        %v6369 = vadd.f32 %v6095, %v6307
        %v6370 = vadd.f32 %v6096, %v6312
        %v6371 = vadd.f32 %v6097, %v6317
        %v6372 = vadd.f32 %v6098, %v6322
        %v6373 = vadd.f32 %v6099, %v6327
        %v6374 = vadd.f32 %v6100, %v6332
        %v6375 = vadd.f32 %v6101, %v6337
        %v6376 = vadd.f32 %v6102, %v6342
        %v6377 = vld [vmem:[%s15] sm:$0x1]
        %v6379 = vlaneseq
        %v6380 = vshrl.u32 %v6379, 7
        %v6381 = vsub.s32 0, %v6380
        %v6382 = vrot.slane %v6377, %v6381
        %v6384 = vmul.f32 %v6345, %v6382
        %v6385 = vmul.f32 %v6346, %v6382
        %v6386 = vmul.f32 %v6347, %v6382
        %v6387 = vmul.f32 %v6348, %v6382
        %v6388 = vmul.f32 %v6349, %v6382
        %v6389 = vmul.f32 %v6350, %v6382
        %v6390 = vmul.f32 %v6351, %v6382
        %v6391 = vmul.f32 %v6352, %v6382
        %v6392 = vmul.f32 %v6353, %v6382
        %v6393 = vmul.f32 %v6354, %v6382
        %v6394 = vmul.f32 %v6355, %v6382
        %v6395 = vmul.f32 %v6356, %v6382
        %v6396 = vmul.f32 %v6357, %v6382
        %v6397 = vmul.f32 %v6358, %v6382
        %v6398 = vmul.f32 %v6359, %v6382
        %v6399 = vmul.f32 %v6360, %v6382
        %v6400 = vmul.f32 %v6361, %v6382
        %v6401 = vmul.f32 %v6362, %v6382
        %v6402 = vmul.f32 %v6363, %v6382
        %v6403 = vmul.f32 %v6364, %v6382
        %v6404 = vmul.f32 %v6365, %v6382
        %v6405 = vmul.f32 %v6366, %v6382
        %v6406 = vmul.f32 %v6367, %v6382
        %v6407 = vmul.f32 %v6368, %v6382
        %v6408 = vmul.f32 %v6369, %v6382
        %v6409 = vmul.f32 %v6370, %v6382
        %v6410 = vmul.f32 %v6371, %v6382
        %v6411 = vmul.f32 %v6372, %v6382
        %v6412 = vmul.f32 %v6373, %v6382
        %v6413 = vmul.f32 %v6374, %v6382
        %v6414 = vmul.f32 %v6375, %v6382
        %v6415 = vmul.f32 %v6376, %v6382
        %v6416 = vld [vmem:[%s16] sm:$0x1]
        %v6418 = vlaneseq
        %v6419 = vshrl.u32 %v6418, 7
        %v6420 = vsub.s32 0, %v6419
        %v6421 = vrot.slane %v6416, %v6420
        %v6423 = vadd.f32 %v6384, %v6421
        %v6424 = vadd.f32 %v6385, %v6421
        %v6425 = vadd.f32 %v6386, %v6421
        %v6426 = vadd.f32 %v6387, %v6421
        %v6427 = vadd.f32 %v6388, %v6421
        %v6428 = vadd.f32 %v6389, %v6421
        %v6429 = vadd.f32 %v6390, %v6421
        %v6430 = vadd.f32 %v6391, %v6421
        %v6431 = vadd.f32 %v6392, %v6421
        %v6432 = vadd.f32 %v6393, %v6421
        %v6433 = vadd.f32 %v6394, %v6421
        %v6434 = vadd.f32 %v6395, %v6421
        %v6435 = vadd.f32 %v6396, %v6421
        %v6436 = vadd.f32 %v6397, %v6421
        %v6437 = vadd.f32 %v6398, %v6421
        %v6438 = vadd.f32 %v6399, %v6421
        %v6439 = vadd.f32 %v6400, %v6421
        %v6440 = vadd.f32 %v6401, %v6421
        %v6441 = vadd.f32 %v6402, %v6421
        %v6442 = vadd.f32 %v6403, %v6421
        %v6443 = vadd.f32 %v6404, %v6421
        %v6444 = vadd.f32 %v6405, %v6421
        %v6445 = vadd.f32 %v6406, %v6421
        %v6446 = vadd.f32 %v6407, %v6421
        %v6447 = vadd.f32 %v6408, %v6421
        %v6448 = vadd.f32 %v6409, %v6421
        %v6449 = vadd.f32 %v6410, %v6421
        %v6450 = vadd.f32 %v6411, %v6421
        %v6451 = vadd.f32 %v6412, %v6421
        %v6452 = vadd.f32 %v6413, %v6421
        %v6453 = vadd.f32 %v6414, %v6421
        %v6454 = vadd.f32 %v6415, %v6421
        %v6455 = vxor.u32 %v6423, 2147483648
        %v6456 = vxor.u32 %v6424, 2147483648
        %v6457 = vxor.u32 %v6425, 2147483648
        %v6458 = vxor.u32 %v6426, 2147483648
        %v6459 = vxor.u32 %v6427, 2147483648
        %v6460 = vxor.u32 %v6428, 2147483648
        %v6461 = vxor.u32 %v6429, 2147483648
        %v6462 = vxor.u32 %v6430, 2147483648
        %v6463 = vxor.u32 %v6431, 2147483648
        %v6464 = vxor.u32 %v6432, 2147483648
        %v6465 = vxor.u32 %v6433, 2147483648
        %v6466 = vxor.u32 %v6434, 2147483648
        %v6467 = vxor.u32 %v6435, 2147483648
        %v6468 = vxor.u32 %v6436, 2147483648
        %v6469 = vxor.u32 %v6437, 2147483648
        %v6470 = vxor.u32 %v6438, 2147483648
        %v6471 = vxor.u32 %v6439, 2147483648
        %v6472 = vxor.u32 %v6440, 2147483648
        %v6473 = vxor.u32 %v6441, 2147483648
        %v6474 = vxor.u32 %v6442, 2147483648
        %v6475 = vxor.u32 %v6443, 2147483648
        %v6476 = vxor.u32 %v6444, 2147483648
        %v6477 = vxor.u32 %v6445, 2147483648
        %v6478 = vxor.u32 %v6446, 2147483648
        %v6479 = vxor.u32 %v6447, 2147483648
        %v6480 = vxor.u32 %v6448, 2147483648
        %v6481 = vxor.u32 %v6449, 2147483648
        %v6482 = vxor.u32 %v6450, 2147483648
        %v6483 = vxor.u32 %v6451, 2147483648
        %v6484 = vxor.u32 %v6452, 2147483648
        %v6485 = vxor.u32 %v6453, 2147483648
        %v6486 = vxor.u32 %v6454, 2147483648
        %v6487 = vmul.f32 %v6455, 1.442695
        %v6488 = vpow.pop %v6487
        %v6489 = vmul.f32 %v6456, 1.442695
        %v6490 = vpow.pop %v6489
        %v6491 = vmul.f32 %v6457, 1.442695
        %v6492 = vpow.pop %v6491
        %v6493 = vmul.f32 %v6458, 1.442695
        %v6494 = vpow.pop %v6493
        %v6495 = vmul.f32 %v6459, 1.442695
        %v6496 = vpow.pop %v6495
        %v6497 = vmul.f32 %v6460, 1.442695
        %v6498 = vpow.pop %v6497
        %v6499 = vmul.f32 %v6461, 1.442695
        %v6500 = vpow.pop %v6499
        %v6501 = vmul.f32 %v6462, 1.442695
        %v6502 = vpow.pop %v6501
        %v6503 = vmul.f32 %v6463, 1.442695
        %v6504 = vpow.pop %v6503
        %v6505 = vmul.f32 %v6464, 1.442695
        %v6506 = vpow.pop %v6505
        %v6507 = vmul.f32 %v6465, 1.442695
        %v6508 = vpow.pop %v6507
        %v6509 = vmul.f32 %v6466, 1.442695
        %v6510 = vpow.pop %v6509
        %v6511 = vmul.f32 %v6467, 1.442695
        %v6512 = vpow.pop %v6511
        %v6513 = vmul.f32 %v6468, 1.442695
        %v6514 = vpow.pop %v6513
        %v6515 = vmul.f32 %v6469, 1.442695
        %v6516 = vpow.pop %v6515
        %v6517 = vmul.f32 %v6470, 1.442695
        %v6518 = vpow.pop %v6517
        %v6519 = vmul.f32 %v6471, 1.442695
        %v6520 = vpow.pop %v6519
        %v6521 = vmul.f32 %v6472, 1.442695
        %v6522 = vpow.pop %v6521
        %v6523 = vmul.f32 %v6473, 1.442695
        %v6524 = vpow.pop %v6523
        %v6525 = vmul.f32 %v6474, 1.442695
        %v6526 = vpow.pop %v6525
        %v6527 = vmul.f32 %v6475, 1.442695
        %v6528 = vpow.pop %v6527
        %v6529 = vmul.f32 %v6476, 1.442695
        %v6530 = vpow.pop %v6529
        %v6531 = vmul.f32 %v6477, 1.442695
        %v6532 = vpow.pop %v6531
        %v6533 = vmul.f32 %v6478, 1.442695
        %v6534 = vpow.pop %v6533
        %v6535 = vmul.f32 %v6479, 1.442695
        %v6536 = vpow.pop %v6535
        %v6537 = vmul.f32 %v6480, 1.442695
        %v6538 = vpow.pop %v6537
        %v6539 = vmul.f32 %v6481, 1.442695
        %v6540 = vpow.pop %v6539
        %v6541 = vmul.f32 %v6482, 1.442695
        %v6542 = vpow.pop %v6541
        %v6543 = vmul.f32 %v6483, 1.442695
        %v6544 = vpow.pop %v6543
        %v6545 = vmul.f32 %v6484, 1.442695
        %v6546 = vpow.pop %v6545
        %v6547 = vmul.f32 %v6485, 1.442695
        %v6548 = vpow.pop %v6547
        %v6549 = vmul.f32 %v6486, 1.442695
        %v6550 = vpow.pop %v6549
        %v6551 = vadd.f32 %v6488, 1.0
        %v6552 = vadd.f32 %v6490, 1.0
        %v6553 = vadd.f32 %v6492, 1.0
        %v6554 = vadd.f32 %v6494, 1.0
        %v6555 = vadd.f32 %v6496, 1.0
        %v6556 = vadd.f32 %v6498, 1.0
        %v6557 = vadd.f32 %v6500, 1.0
        %v6558 = vadd.f32 %v6502, 1.0
        %v6559 = vadd.f32 %v6504, 1.0
        %v6560 = vadd.f32 %v6506, 1.0
        %v6561 = vadd.f32 %v6508, 1.0
        %v6562 = vadd.f32 %v6510, 1.0
        %v6563 = vadd.f32 %v6512, 1.0
        %v6564 = vadd.f32 %v6514, 1.0
        %v6565 = vadd.f32 %v6516, 1.0
        %v6566 = vadd.f32 %v6518, 1.0
        %v6567 = vadd.f32 %v6520, 1.0
        %v6568 = vadd.f32 %v6522, 1.0
        %v6569 = vadd.f32 %v6524, 1.0
        %v6570 = vadd.f32 %v6526, 1.0
        %v6571 = vadd.f32 %v6528, 1.0
        %v6572 = vadd.f32 %v6530, 1.0
        %v6573 = vadd.f32 %v6532, 1.0
        %v6574 = vadd.f32 %v6534, 1.0
        %v6575 = vadd.f32 %v6536, 1.0
        %v6576 = vadd.f32 %v6538, 1.0
        %v6577 = vadd.f32 %v6540, 1.0
        %v6578 = vadd.f32 %v6542, 1.0
        %v6579 = vadd.f32 %v6544, 1.0
        %v6580 = vadd.f32 %v6546, 1.0
        %v6581 = vadd.f32 %v6548, 1.0
        %v6582 = vadd.f32 %v6550, 1.0
        %v6583 = vrcp.pop %v6551
        %v6584 = vmul.f32 1.0, %v6583
        %v6585 = vrcp.pop %v6552
        %v6586 = vmul.f32 1.0, %v6585
        %v6587 = vrcp.pop %v6553
        %v6588 = vmul.f32 1.0, %v6587
        %v6589 = vrcp.pop %v6554
        %v6590 = vmul.f32 1.0, %v6589
        %v6591 = vrcp.pop %v6555
        %v6592 = vmul.f32 1.0, %v6591
        %v6593 = vrcp.pop %v6556
        %v6594 = vmul.f32 1.0, %v6593
        %v6595 = vrcp.pop %v6557
        %v6596 = vmul.f32 1.0, %v6595
        %v6597 = vrcp.pop %v6558
        %v6598 = vmul.f32 1.0, %v6597
        %v6599 = vrcp.pop %v6559
        %v6600 = vmul.f32 1.0, %v6599
        %v6601 = vrcp.pop %v6560
        %v6602 = vmul.f32 1.0, %v6601
        %v6603 = vrcp.pop %v6561
        %v6604 = vmul.f32 1.0, %v6603
        %v6605 = vrcp.pop %v6562
        %v6606 = vmul.f32 1.0, %v6605
        %v6607 = vrcp.pop %v6563
        %v6608 = vmul.f32 1.0, %v6607
        %v6609 = vrcp.pop %v6564
        %v6610 = vmul.f32 1.0, %v6609
        %v6611 = vrcp.pop %v6565
        %v6612 = vmul.f32 1.0, %v6611
        %v6613 = vrcp.pop %v6566
        %v6614 = vmul.f32 1.0, %v6613
        %v6615 = vrcp.pop %v6567
        %v6616 = vmul.f32 1.0, %v6615
        %v6617 = vrcp.pop %v6568
        %v6618 = vmul.f32 1.0, %v6617
        %v6619 = vrcp.pop %v6569
        %v6620 = vmul.f32 1.0, %v6619
        %v6621 = vrcp.pop %v6570
        %v6622 = vmul.f32 1.0, %v6621
        %v6623 = vrcp.pop %v6571
        %v6624 = vmul.f32 1.0, %v6623
        %v6625 = vrcp.pop %v6572
        %v6626 = vmul.f32 1.0, %v6625
        %v6627 = vrcp.pop %v6573
        %v6628 = vmul.f32 1.0, %v6627
        %v6629 = vrcp.pop %v6574
        %v6630 = vmul.f32 1.0, %v6629
        %v6631 = vrcp.pop %v6575
        %v6632 = vmul.f32 1.0, %v6631
        %v6633 = vrcp.pop %v6576
        %v6634 = vmul.f32 1.0, %v6633
        %v6635 = vrcp.pop %v6577
        %v6636 = vmul.f32 1.0, %v6635
        %v6637 = vrcp.pop %v6578
        %v6638 = vmul.f32 1.0, %v6637
        %v6639 = vrcp.pop %v6579
        %v6640 = vmul.f32 1.0, %v6639
        %v6641 = vrcp.pop %v6580
        %v6642 = vmul.f32 1.0, %v6641
        %v6643 = vrcp.pop %v6581
        %v6644 = vmul.f32 1.0, %v6643
        %v6645 = vrcp.pop %v6582
        %v6646 = vmul.f32 1.0, %v6645
        %v6647 = vmul.f32 %v6423, %v6584
        %v6648 = vmul.f32 %v6424, %v6586
        %v6649 = vmul.f32 %v6425, %v6588
        %v6650 = vmul.f32 %v6426, %v6590
        %v6651 = vmul.f32 %v6427, %v6592
        %v6652 = vmul.f32 %v6428, %v6594
        %v6653 = vmul.f32 %v6429, %v6596
        %v6654 = vmul.f32 %v6430, %v6598
        %v6655 = vmul.f32 %v6431, %v6600
        %v6656 = vmul.f32 %v6432, %v6602
        %v6657 = vmul.f32 %v6433, %v6604
        %v6658 = vmul.f32 %v6434, %v6606
        %v6659 = vmul.f32 %v6435, %v6608
        %v6660 = vmul.f32 %v6436, %v6610
        %v6661 = vmul.f32 %v6437, %v6612
        %v6662 = vmul.f32 %v6438, %v6614
        %v6663 = vmul.f32 %v6439, %v6616
        %v6664 = vmul.f32 %v6440, %v6618
        %v6665 = vmul.f32 %v6441, %v6620
        %v6666 = vmul.f32 %v6442, %v6622
        %v6667 = vmul.f32 %v6443, %v6624
        %v6668 = vmul.f32 %v6444, %v6626
        %v6669 = vmul.f32 %v6445, %v6628
        %v6670 = vmul.f32 %v6446, %v6630
        %v6671 = vmul.f32 %v6447, %v6632
        %v6672 = vmul.f32 %v6448, %v6634
        %v6673 = vmul.f32 %v6449, %v6636
        %v6674 = vmul.f32 %v6450, %v6638
        %v6675 = vmul.f32 %v6451, %v6640
        %v6676 = vmul.f32 %v6452, %v6642
        %v6677 = vmul.f32 %v6453, %v6644
        %v6678 = vmul.f32 %v6454, %v6646
        %6679 = vst [vmem:[%s556] sm:$0xff] %v6647
        %6680 = vst [vmem:[%s556 + $0x8] sm:$0xff] %v6648
        %6681 = vst [vmem:[%s556 + $0x10] sm:$0xff] %v6649
        %6682 = vst [vmem:[%s556 + $0x18] sm:$0xff] %v6650
        %6683 = vst [vmem:[%s556 + $0x20] sm:$0xff] %v6651
        %6684 = vst [vmem:[%s556 + $0x28] sm:$0xff] %v6652
        %6685 = vst [vmem:[%s556 + $0x30] sm:$0xff] %v6653
        %6686 = vst [vmem:[%s556 + $0x38] sm:$0xff] %v6654
        %6687 = vst [vmem:[%s556 + $0x40] sm:$0xff] %v6655
        %6688 = vst [vmem:[%s556 + $0x48] sm:$0xff] %v6656
        %6689 = vst [vmem:[%s556 + $0x50] sm:$0xff] %v6657
        %6690 = vst [vmem:[%s556 + $0x58] sm:$0xff] %v6658
        %6691 = vst [vmem:[%s556 + $0x60] sm:$0xff] %v6659
        %6692 = vst [vmem:[%s556 + $0x68] sm:$0xff] %v6660
        %6693 = vst [vmem:[%s556 + $0x70] sm:$0xff] %v6661
        %6694 = vst [vmem:[%s556 + $0x78] sm:$0xff] %v6662
        %6695 = vst [vmem:[%s556 + $0x80] sm:$0xff] %v6663
        %6696 = vst [vmem:[%s556 + $0x88] sm:$0xff] %v6664
        %6697 = vst [vmem:[%s556 + $0x90] sm:$0xff] %v6665
        %6698 = vst [vmem:[%s556 + $0x98] sm:$0xff] %v6666
        %6699 = vst [vmem:[%s556 + $0xa0] sm:$0xff] %v6667
        %6700 = vst [vmem:[%s556 + $0xa8] sm:$0xff] %v6668
        %6701 = vst [vmem:[%s556 + $0xb0] sm:$0xff] %v6669
        %6702 = vst [vmem:[%s556 + $0xb8] sm:$0xff] %v6670
        %6703 = vst [vmem:[%s556 + $0xc0] sm:$0xff] %v6671
        %6704 = vst [vmem:[%s556 + $0xc8] sm:$0xff] %v6672
        %6705 = vst [vmem:[%s556 + $0xd0] sm:$0xff] %v6673
        %6706 = vst [vmem:[%s556 + $0xd8] sm:$0xff] %v6674
        %6707 = vst [vmem:[%s556 + $0xe0] sm:$0xff] %v6675
        %6708 = vst [vmem:[%s556 + $0xe8] sm:$0xff] %v6676
        %6709 = vst [vmem:[%s556 + $0xf0] sm:$0xff] %v6677
        %6710 = vst [vmem:[%s556 + $0xf8] sm:$0xff] %v6678
        %s6711 = sand.u32 %s406, 1
        %s6712 = scalar_lea.sflag [#allocation4], %s6711
        %s6713 = sand.u32 %s406, 1
        %s6714 = smul.addr %s6713, 256
        %s6715 = scalar_lea.vmem [#allocation3], %s6714
        // Predicated region
        $region89: #{caasf_pallas.1} parent=87 // pred_check
          %p6716 = pneg %p416
        $region90: #{caasf_pallas.1} parent=87 // pred_check_branch
          %6718 = sbr.rel (%p6716) target = $region92
        $region91: #{caasf_pallas.1} parent=87 // pred_region
          %s6720 = ssub.s32 4096, 4096
          %6721 = vsyncadd %s6712, %s6720
          %s6722 = smul.addr %s31, 32
          %s6723 = smul.addr %s6722, 128
          %s6724 = scalar_lea.hbm %s17, %s6723
          %s6725 = sshll.u32 %s6715, 4
          %s6726 = int_to_ptr.vmem [resolvable:$true] %s6725
          %6731 = dma.vmem_to_hbm [thread:$0]  %s6726, 4096, %s6724, %s6712, 128, 128, 8
        $region92: #{caasf_pallas.1} parent=87 // pred_fallthru
          _
      $region88: #{caasf_pallas.1} parent=5 // pred_fallthru
        _
      %p6732 = scmp.le.s32.totalorder 2, %s26
      // Predicated region
      $region93: #{caasf_pallas.1} parent=5 // pred_check
        %p6733 = pneg %p6732
      $region94: #{caasf_pallas.1} parent=5 // pred_check_branch
        %6735 = sbr.rel (%p6733) target = $region96
      $region95: #{caasf_pallas.1} parent=5 // pred_region
        %s6736 = ssub.s32 %s26, 2
        // Predicated region
        $region97: #{caasf_pallas.1} parent=95 // pred_check
          %p6737 = pneg %p422
        $region98: #{caasf_pallas.1} parent=95 // pred_check_branch
          %6739 = sbr.rel (%p6737) target = $region100
        $region99: #{caasf_pallas.1} parent=95 // pred_region
          %s6740 = sand.u32 %s407, 1
          %s6741 = scalar_lea.sflag [#allocation4], %s6740
          %s6742 = sand.u32 %s407, 1
          %s6743 = smul.addr %s6742, 256
          %s6744 = scalar_lea.vmem [#allocation3], %s6743
          %6745 = dma.done %s6741, 4096
        $region100: #{caasf_pallas.1} parent=95 // pred_fallthru
          _
      $region96: #{caasf_pallas.1} parent=5 // pred_fallthru
        _
    $region6: #{caasf_pallas.1} parent=1 // loop_footer
      %s30 = sadd.s32 1, %s26
    $region7: #{caasf_pallas.1} parent=1 // loop_footer_branch
      %25 = sbr.rel target = $region3
    $region8: #{caasf_pallas.1} parent=1 // loop_exit
      _
    %6746 = vsyncpa [#allocation4], 1
    %s6747 = scalar_lea.sflag [#allocation4], 1
    %6748 = vsyncpa %s6747, 1

</llo_original>
